<compile_context>
chip_gen: v5e
topology: v5e:2x2
jax: 0.10.0
libtpu: 0.0.40
codegen_flags: <defaults>
</compile_context>

<pallas_src>
import numpy as np
import jax
import jax.numpy as jnp
from jax import lax
from jax.experimental import pallas as pl
from jax.experimental.pallas import tpu as pltpu

EPS = 1e-5
NEG_SLOPE = 0.2
LANE = 128                        # lane width / channel padding target
MXU_DTYPE = jnp.bfloat16          # MXU-native operand dtype (f32 accumulation)
VMEM_LIMIT = 32 * 1024 * 1024     # safe on v5e/v6e/v7x scoped-VMEM defaults

# blur filter [1,2,1] x [1,2,1] / 16
_BLUR = ((1 / 16, 2 / 16, 1 / 16),
         (2 / 16, 4 / 16, 2 / 16),
         (1 / 16, 2 / 16, 1 / 16))


def _round_up(x, m):
    return ((x + m - 1) // m) * m


# ----------------------------------------------------------------------------
# Pass A: conv_1 + bias_1 (in-kernel im2col) + per-image BN1 partial stats
# ----------------------------------------------------------------------------
def _conv1_kernel(xp_ref, w_ref, b_ref, y_ref, st_ref):
    # xp: (1, H+2, W+2, Cp) zero-padded input     w: (3, 3, Cp, Cp) bf16
    # y:  (1, H, W, Cp) conv_1(x)+bias_1          st: (1, 2, Cp) sum / sumsq
    _, h, w, cp = y_ref.shape
    acc = jnp.zeros((h * w, cp), jnp.float32)
    for kh in range(3):                       # in-kernel im2col:
        for kw in range(3):                   # 9 shifted windows -> 9 MXU dots
            win = xp_ref[0, kh:kh + h, kw:kw + w, :]
            p = win.reshape(h * w, cp).astype(MXU_DTYPE)
            acc = acc + jnp.dot(p, w_ref[kh, kw],
                                preferred_element_type=jnp.float32)
    y = acc + b_ref[...]
    y_ref[0] = y.reshape(h, w, cp)
    st_ref[0, 0:1, :] = jnp.sum(y, axis=0, keepdims=True)
    st_ref[0, 1:2, :] = jnp.sum(y * y, axis=0, keepdims=True)


# ----------------------------------------------------------------------------
# Pass B: BN1 + leaky_relu + blur + conv_2 + avg_pool(2,2) + bias_2 (fused)
# ----------------------------------------------------------------------------
def _fused_tail_kernel(y1_ref, s1_ref, t1_ref, w_ref, b_ref,
                       y2_ref, st_ref, ap_ref, bp_ref, q_ref):
    # y1: (1, H, W, Cp) raw conv_1 output     s1/t1: (1, Cp) BN1 scale / shift
    # w:  (3, 3, Cp, Kp) bf16 conv_2 weight   b: (1, Kp) bias_2
    # y2: (1, H/2, W/2, Kp)                   st: (1, 2, Kp) sum / sumsq
    # scratch ap/bp/q: (H+2, W+2, Cp) f32
    _, h2, w2, kp = y2_ref.shape
    h, w = 2 * h2, 2 * w2
    cp = y1_ref.shape[3]

    # Zero the padded scratch every step (the grid may be sharded across
    # cores, so a program_id==0-only init would not be seen by the other TC).
    ap_ref[...] = jnp.zeros_like(ap_ref)
    bp_ref[...] = jnp.zeros_like(bp_ref)
    q_ref[...] = jnp.zeros_like(q_ref)

    # BN1 (precomputed scale/shift) + leaky_relu(0.2), then zero-pad by 1.
    a = y1_ref[0].reshape(h * w, cp) * s1_ref[...] + t1_ref[...]
    a = jnp.where(a >= 0, a, NEG_SLOPE * a)
    ap_ref[1:1 + h, 1:1 + w, :] = a.reshape(h, w, cp)

    # Depthwise 3x3 blur with its own zero padding (kept explicit so the
    # border semantics of blur->conv_2 match the reference exactly; folding
    # into a 5x5 conv would change border pixels).
    blur = jnp.zeros((h, w, cp), jnp.float32)
    for kh in range(3):
        for kw in range(3):
            blur = blur + _BLUR[kh][kw] * ap_ref[kh:kh + h, kw:kw + w, :]
    bp_ref[1:1 + h, 1:1 + w, :] = blur

    # avg_pool2d(conv_2(z), 2, 2) == conv_2 applied to the 2x2 box average of
    # the zero-padded blur (both are linear).  Compute the box average Q once,
    # then one matmul per tap at the pooled resolution (4x less MXU work).
    q_ref[0:h + 1, 0:w + 1, :] = 0.25 * (
        bp_ref[0:h + 1, 0:w + 1, :] + bp_ref[1:h + 2, 0:w + 1, :] +
        bp_ref[0:h + 1, 1:w + 2, :] + bp_ref[1:h + 2, 1:w + 2, :])

    acc = jnp.zeros((h2 * w2, kp), jnp.float32)
    for kw in range(3):
        # stride-2 column selection (sublane strided load); rows kept dense
        cols = q_ref[:, pl.ds(kw, w2, 2), :]             # (H+2, W/2, Cp)
        cols = cols.reshape((h + 2) // 2, 2, w2, cp)     # row parity split
        for kh in range(3):
            tap = cols[kh // 2:kh // 2 + h2, kh % 2]     # (H/2, W/2, Cp)
            p = tap.reshape(h2 * w2, cp).astype(MXU_DTYPE)
            acc = acc + jnp.dot(p, w_ref[kh, kw],
                                preferred_element_type=jnp.float32)

    y2 = acc + b_ref[...]
    y2_ref[0] = y2.reshape(h2, w2, kp)
    st_ref[0, 0:1, :] = jnp.sum(y2, axis=0, keepdims=True)
    st_ref[0, 1:2, :] = jnp.sum(y2 * y2, axis=0, keepdims=True)


# ----------------------------------------------------------------------------
# Pass C: BN2 + relu (lane-dense elementwise epilogue)
# ----------------------------------------------------------------------------
def _bn_relu_kernel(y_ref, s_ref, t_ref, o_ref):
    _, h, w, c = y_ref.shape
    y = y_ref[0].reshape(h * w, c) * s_ref[...] + t_ref[...]
    o_ref[0] = jnp.maximum(y, 0.0).reshape(h, w, c)


# ----------------------------------------------------------------------------
# Host-side parameter prep (tiny tensors)
# ----------------------------------------------------------------------------
def _prep_conv_w(w_oihw, cin_p, cout_p):
    o, i, _, _ = w_oihw.shape
    wt = jnp.transpose(w_oihw, (2, 3, 1, 0))               # (3, 3, Cin, Cout)
    wt = jnp.pad(wt, ((0, 0), (0, 0), (0, cin_p - i), (0, cout_p - o)))
    return wt.astype(MXU_DTYPE)


def _pad_row(v, c):
    return jnp.pad(v.astype(jnp.float32), ((0, 0), (0, c - v.shape[1])))


# ----------------------------------------------------------------------------
# Forward
# ----------------------------------------------------------------------------
def block_forward(x_nchw, params):
    n, cin, h, w = x_nchw.shape
    cout = params["w2"].shape[0]
    assert h % 2 == 0 and w % 2 == 0
    ho, wo = h // 2, w // 2
    cp = _round_up(cin, LANE)            # lane-dense channel padding
    kp = _round_up(cout, LANE)
    f32 = jnp.float32

    # host-side layout prep (input pad + tiny weight reshapes only)
    x = jnp.transpose(x_nchw, (0, 2, 3, 1)).astype(f32)           # NHWC
    xp = jnp.pad(x, ((0, 0), (1, 1), (1, 1), (0, cp - cin)))
    w1m = _prep_conv_w(params["w1"], cp, cp)
    w2m = _prep_conv_w(params["w2"], cp, kp)
    b1 = _pad_row(params["b1"], cp)
    b2 = _pad_row(params["b2"], kp)
    g1 = _pad_row(params["g1"], cp)
    be1 = _pad_row(params["be1"], cp)
    g2 = _pad_row(params["g2"], kp)
    be2 = _pad_row(params["be2"], kp)

    cparams = pltpu.CompilerParams(dimension_semantics=("parallel",),
                                   vmem_limit_bytes=VMEM_LIMIT)

    # ---- pass A ------------------------------------------------------------
    y1, st1 = pl.pallas_call(
        _conv1_kernel,
        grid=(n,),
        in_specs=[
            pl.BlockSpec((1, h + 2, w + 2, cp), lambda i: (i, 0, 0, 0)),
            pl.BlockSpec((3, 3, cp, cp), lambda i: (0, 0, 0, 0)),
            pl.BlockSpec((1, cp), lambda i: (0, 0)),
        ],
        out_specs=[
            pl.BlockSpec((1, h, w, cp), lambda i: (i, 0, 0, 0)),
            pl.BlockSpec((1, 2, cp), lambda i: (i, 0, 0)),
        ],
        out_shape=[
            jax.ShapeDtypeStruct((n, h, w, cp), f32),
            jax.ShapeDtypeStruct((n, 2, cp), f32),
        ],
        compiler_params=cparams,
    )(xp, w1m, b1)

    # two-pass BN1: tiny host reduction of per-image partial sums
    cnt1 = n * h * w
    mu1 = jnp.sum(st1[:, 0, :], axis=0, keepdims=True) / cnt1
    var1 = jnp.sum(st1[:, 1, :], axis=0, keepdims=True) / cnt1 - mu1 * mu1
    scale1 = g1 * lax.rsqrt(var1 + EPS)
    shift1 = be1 - mu1 * scale1

    # ---- pass B ------------------------------------------------------------
    y2, st2 = pl.pallas_call(
        _fused_tail_kernel,
        grid=(n,),
        in_specs=[
            pl.BlockSpec((1, h, w, cp), lambda i: (i, 0, 0, 0)),
            pl.BlockSpec((1, cp), lambda i: (0, 0)),
            pl.BlockSpec((1, cp), lambda i: (0, 0)),
            pl.BlockSpec((3, 3, cp, kp), lambda i: (0, 0, 0, 0)),
            pl.BlockSpec((1, kp), lambda i: (0, 0)),
        ],
        out_specs=[
            pl.BlockSpec((1, ho, wo, kp), lambda i: (i, 0, 0, 0)),
            pl.BlockSpec((1, 2, kp), lambda i: (i, 0, 0)),
        ],
        out_shape=[
            jax.ShapeDtypeStruct((n, ho, wo, kp), f32),
            jax.ShapeDtypeStruct((n, 2, kp), f32),
        ],
        scratch_shapes=[
            pltpu.VMEM((h + 2, w + 2, cp), f32),   # padded activation
            pltpu.VMEM((h + 2, w + 2, cp), f32),   # padded blur
            pltpu.VMEM((h + 2, w + 2, cp), f32),   # 2x2 box average of blur
        ],
        compiler_params=cparams,
    )(y1, scale1, shift1, w2m, b2)

    cnt2 = n * ho * wo
    mu2 = jnp.sum(st2[:, 0, :], axis=0, keepdims=True) / cnt2
    var2 = jnp.sum(st2[:, 1, :], axis=0, keepdims=True) / cnt2 - mu2 * mu2
    scale2 = g2 * lax.rsqrt(var2 + EPS)
    shift2 = be2 - mu2 * scale2

    # ---- pass C ------------------------------------------------------------
    out = pl.pallas_call(
        _bn_relu_kernel,
        grid=(n,),
        in_specs=[
            pl.BlockSpec((1, ho, wo, kp), lambda i: (i, 0, 0, 0)),
            pl.BlockSpec((1, kp), lambda i: (0, 0)),
            pl.BlockSpec((1, kp), lambda i: (0, 0)),
        ],
        out_specs=pl.BlockSpec((1, ho, wo, kp), lambda i: (i, 0, 0, 0)),
        out_shape=jax.ShapeDtypeStruct((n, ho, wo, kp), f32),
        compiler_params=cparams,
    )(y2, scale2, shift2)

    out = out[..., :cout]                          # drop channel padding
    return jnp.transpose(out, (0, 3, 1, 2))        # back to NCHW


# ----------------------------------------------------------------------------
# Deterministic parameter init (matches module __init__ shapes)
# ----------------------------------------------------------------------------
def init_params(key, cin, cout):
    k1, k2 = jax.random.split(key)
    return dict(
        w1=jax.random.normal(k1, (cin, cin, 3, 3), jnp.float32) * 0.1,   # conv_1
        w2=jax.random.normal(k2, (cout, cin, 3, 3), jnp.float32) * 0.1,  # conv_2
        b1=jnp.zeros((1, cin), jnp.float32),     # bias_1 (zero_())
        b2=jnp.zeros((1, cout), jnp.float32),    # bias_2 (zero_())
        g1=jnp.ones((1, cin), jnp.float32),      # bn1 gamma
        be1=jnp.zeros((1, cin), jnp.float32),    # bn1 beta
        g2=jnp.ones((1, cout), jnp.float32),     # bn2 gamma
        be2=jnp.zeros((1, cout), jnp.float32),   # bn2 beta
    )


# ----------------------------------------------------------------------------
# Pure-JAX reference (correctness check only)
# ----------------------------------------------------------------------------
def _bn_train(x, gamma, beta):
    mu = jnp.mean(x, axis=(0, 2, 3), keepdims=True)
    var = jnp.mean((x - mu) ** 2, axis=(0, 2, 3), keepdims=True)
    return (x - mu) * lax.rsqrt(var + EPS) * gamma.reshape(1, -1, 1, 1) \
        + beta.reshape(1, -1, 1, 1)


def ref_forward(x, params):
    cin = params["w1"].shape[0]
    cout = params["w2"].shape[0]
    dn = ("NCHW", "OIHW", "NCHW")
    hp = lax.Precision.HIGHEST
    y = lax.conv_general_dilated(x, params["w1"], (1, 1), ((1, 1), (1, 1)),
                                 dimension_numbers=dn, precision=hp)
    y = y + params["b1"].reshape(1, cin, 1, 1)
    y = _bn_train(y, params["g1"], params["be1"])
    y = jnp.where(y >= 0, y, NEG_SLOPE * y)
    f = np.array([1.0, 2.0, 1.0], np.float32)
    f = f[:, None] * f[None, :]
    f /= f.sum()
    blur_w = jnp.tile(jnp.asarray(f).reshape(1, 1, 3, 3), (cin, 1, 1, 1))
    y = lax.conv_general_dilated(y, blur_w, (1, 1), ((1, 1), (1, 1)),
                                 dimension_numbers=dn, feature_group_count=cin,
                                 precision=hp)
    y = lax.conv_general_dilated(y, params["w2"], (1, 1), ((1, 1), (1, 1)),
                                 dimension_numbers=dn, precision=hp)
    n, c, hh, ww = y.shape
    y = y.reshape(n, c, hh // 2, 2, ww // 2, 2).mean(axis=(3, 5))
    y = y + params["b2"].reshape(1, cout, 1, 1)
    y = _bn_train(y, params["g2"], params["be2"])
    return jnp.maximum(y, 0.0)


if __name__ == "__main__":
    key = jax.random.PRNGKey(0)
    kx, kparam = jax.random.split(key)
    n, cin, cout, h, w = 2, 4, 8, 16, 16

    x = jax.random.normal(kx, (n, cin, h, w), jnp.float32)
    params = init_params(kparam, cin, cout)

    fwd = jax.jit(block_forward)
    out = jax.block_until_ready(fwd(x, params))
    assert out.shape == (n, cout, h // 2, w // 2), out.shape

    ref = jax.block_until_ready(ref_forward(x, params))
    # bf16 MXU operands (f32 accumulation) => slightly looser tolerance than
    # the all-f32 variant.
    np.testing.assert_allclose(np.asarray(out), np.asarray(ref),
                               rtol=3e-2, atol=3e-2)
    print("KERNEL_OK")
</pallas_src>

<mosaic_0001>
module attributes {stable_mosaic.version = 11 : i64} {
  func.func @_conv1_kernel(%arg0: i32, %arg1: memref<1x18x18x128xf32, #tpu.memory_space<vmem>>, %arg2: memref<3x3x128x128xbf16, #tpu.memory_space<vmem>>, %arg3: memref<1x128xf32, #tpu.memory_space<vmem>>, %arg4: memref<1x16x16x128xf32, #tpu.memory_space<vmem>>, %arg5: memref<1x2x128xf32, #tpu.memory_space<vmem>>) attributes {dimension_semantics = [#tpu.dimension_semantics<parallel>], iteration_bounds = array<i64: 2>, scalar_prefetch = 0 : i64, scratch_operands = 0 : i64, tpu.core_type = #tpu.core_type<tc>, window_params = [{transform_indices = @transform_0, window_bounds = array<i64: 1, 18, 18, 128>}, {pipeline_mode = #tpu.pipeline_mode<synchronous>, transform_indices = @transform_1, window_bounds = array<i64: 3, 3, 128, 128>}, {pipeline_mode = #tpu.pipeline_mode<synchronous>, transform_indices = @transform_2, window_bounds = array<i64: 1, 128>}, {transform_indices = @transform_3, window_bounds = array<i64: 1, 16, 16, 128>}, {transform_indices = @transform_4, window_bounds = array<i64: 1, 2, 128>}]} {
    %cst = arith.constant 0.000000e+00 : f32
    %0 = vector.broadcast %cst : f32 to vector<256x128xf32>
    %c0 = arith.constant 0 : index
    %c0_0 = arith.constant 0 : index
    %c0_1 = arith.constant 0 : index
    %c0_2 = arith.constant 0 : index
    %1 = vector.load %arg1[%c0, %c0_0, %c0_1, %c0_2] : memref<1x18x18x128xf32, #tpu.memory_space<vmem>>, vector<1x16x16x128xf32>
    %2 = vector.shape_cast %1 : vector<1x16x16x128xf32> to vector<16x16x128xf32>
    %3 = vector.shape_cast %2 : vector<16x16x128xf32> to vector<256x128xf32>
    %4 = arith.truncf %3 : vector<256x128xf32> to vector<256x128xbf16>
    %c0_3 = arith.constant 0 : index
    %c0_4 = arith.constant 0 : index
    %c0_5 = arith.constant 0 : index
    %c0_6 = arith.constant 0 : index
    %5 = vector.load %arg2[%c0_3, %c0_4, %c0_5, %c0_6] : memref<3x3x128x128xbf16, #tpu.memory_space<vmem>>, vector<1x1x128x128xbf16>
    %6 = vector.shape_cast %5 : vector<1x1x128x128xbf16> to vector<128x128xbf16>
    %cst_7 = arith.constant dense<0.000000e+00> : vector<256x128xf32>
    %7 = tpu.matmul %4, %6, %cst_7 {dimension_numbers = #tpu.dot_dimension_numbers<[1], [0], [0], [1], [0, 0, 1, 1], [], []>} : vector<256x128xbf16>, vector<128x128xbf16>, vector<256x128xf32> -> vector<256x128xf32>
    %8 = arith.addf %0, %7 : vector<256x128xf32>
    %c0_8 = arith.constant 0 : index
    %c0_9 = arith.constant 0 : index
    %c1 = arith.constant 1 : index
    %c0_10 = arith.constant 0 : index
    %9 = vector.load %arg1[%c0_8, %c0_9, %c1, %c0_10] : memref<1x18x18x128xf32, #tpu.memory_space<vmem>>, vector<1x16x16x128xf32>
    %10 = vector.shape_cast %9 : vector<1x16x16x128xf32> to vector<16x16x128xf32>
    %11 = vector.shape_cast %10 : vector<16x16x128xf32> to vector<256x128xf32>
    %12 = arith.truncf %11 : vector<256x128xf32> to vector<256x128xbf16>
    %c0_11 = arith.constant 0 : index
    %c1_12 = arith.constant 1 : index
    %c0_13 = arith.constant 0 : index
    %c0_14 = arith.constant 0 : index
    %13 = vector.load %arg2[%c0_11, %c1_12, %c0_13, %c0_14] : memref<3x3x128x128xbf16, #tpu.memory_space<vmem>>, vector<1x1x128x128xbf16>
    %14 = vector.shape_cast %13 : vector<1x1x128x128xbf16> to vector<128x128xbf16>
    %cst_15 = arith.constant dense<0.000000e+00> : vector<256x128xf32>
    %15 = tpu.matmul %12, %14, %cst_15 {dimension_numbers = #tpu.dot_dimension_numbers<[1], [0], [0], [1], [0, 0, 1, 1], [], []>} : vector<256x128xbf16>, vector<128x128xbf16>, vector<256x128xf32> -> vector<256x128xf32>
    %16 = arith.addf %8, %15 : vector<256x128xf32>
    %c0_16 = arith.constant 0 : index
    %c0_17 = arith.constant 0 : index
    %c2 = arith.constant 2 : index
    %c0_18 = arith.constant 0 : index
    %17 = vector.load %arg1[%c0_16, %c0_17, %c2, %c0_18] : memref<1x18x18x128xf32, #tpu.memory_space<vmem>>, vector<1x16x16x128xf32>
    %18 = vector.shape_cast %17 : vector<1x16x16x128xf32> to vector<16x16x128xf32>
    %19 = vector.shape_cast %18 : vector<16x16x128xf32> to vector<256x128xf32>
    %20 = arith.truncf %19 : vector<256x128xf32> to vector<256x128xbf16>
    %c0_19 = arith.constant 0 : index
    %c2_20 = arith.constant 2 : index
    %c0_21 = arith.constant 0 : index
    %c0_22 = arith.constant 0 : index
    %21 = vector.load %arg2[%c0_19, %c2_20, %c0_21, %c0_22] : memref<3x3x128x128xbf16, #tpu.memory_space<vmem>>, vector<1x1x128x128xbf16>
    %22 = vector.shape_cast %21 : vector<1x1x128x128xbf16> to vector<128x128xbf16>
    %cst_23 = arith.constant dense<0.000000e+00> : vector<256x128xf32>
    %23 = tpu.matmul %20, %22, %cst_23 {dimension_numbers = #tpu.dot_dimension_numbers<[1], [0], [0], [1], [0, 0, 1, 1], [], []>} : vector<256x128xbf16>, vector<128x128xbf16>, vector<256x128xf32> -> vector<256x128xf32>
    %24 = arith.addf %16, %23 : vector<256x128xf32>
    %c0_24 = arith.constant 0 : index
    %c1_25 = arith.constant 1 : index
    %c0_26 = arith.constant 0 : index
    %c0_27 = arith.constant 0 : index
    %25 = vector.load %arg1[%c0_24, %c1_25, %c0_26, %c0_27] : memref<1x18x18x128xf32, #tpu.memory_space<vmem>>, vector<1x16x16x128xf32>
    %26 = vector.shape_cast %25 : vector<1x16x16x128xf32> to vector<16x16x128xf32>
    %27 = vector.shape_cast %26 : vector<16x16x128xf32> to vector<256x128xf32>
    %28 = arith.truncf %27 : vector<256x128xf32> to vector<256x128xbf16>
    %c1_28 = arith.constant 1 : index
    %c0_29 = arith.constant 0 : index
    %c0_30 = arith.constant 0 : index
    %c0_31 = arith.constant 0 : index
    %29 = vector.load %arg2[%c1_28, %c0_29, %c0_30, %c0_31] : memref<3x3x128x128xbf16, #tpu.memory_space<vmem>>, vector<1x1x128x128xbf16>
    %30 = vector.shape_cast %29 : vector<1x1x128x128xbf16> to vector<128x128xbf16>
    %cst_32 = arith.constant dense<0.000000e+00> : vector<256x128xf32>
    %31 = tpu.matmul %28, %30, %cst_32 {dimension_numbers = #tpu.dot_dimension_numbers<[1], [0], [0], [1], [0, 0, 1, 1], [], []>} : vector<256x128xbf16>, vector<128x128xbf16>, vector<256x128xf32> -> vector<256x128xf32>
    %32 = arith.addf %24, %31 : vector<256x128xf32>
    %c0_33 = arith.constant 0 : index
    %c1_34 = arith.constant 1 : index
    %c1_35 = arith.constant 1 : index
    %c0_36 = arith.constant 0 : index
    %33 = vector.load %arg1[%c0_33, %c1_34, %c1_35, %c0_36] : memref<1x18x18x128xf32, #tpu.memory_space<vmem>>, vector<1x16x16x128xf32>
    %34 = vector.shape_cast %33 : vector<1x16x16x128xf32> to vector<16x16x128xf32>
    %35 = vector.shape_cast %34 : vector<16x16x128xf32> to vector<256x128xf32>
    %36 = arith.truncf %35 : vector<256x128xf32> to vector<256x128xbf16>
    %c1_37 = arith.constant 1 : index
    %c1_38 = arith.constant 1 : index
    %c0_39 = arith.constant 0 : index
    %c0_40 = arith.constant 0 : index
    %37 = vector.load %arg2[%c1_37, %c1_38, %c0_39, %c0_40] : memref<3x3x128x128xbf16, #tpu.memory_space<vmem>>, vector<1x1x128x128xbf16>
    %38 = vector.shape_cast %37 : vector<1x1x128x128xbf16> to vector<128x128xbf16>
    %cst_41 = arith.constant dense<0.000000e+00> : vector<256x128xf32>
    %39 = tpu.matmul %36, %38, %cst_41 {dimension_numbers = #tpu.dot_dimension_numbers<[1], [0], [0], [1], [0, 0, 1, 1], [], []>} : vector<256x128xbf16>, vector<128x128xbf16>, vector<256x128xf32> -> vector<256x128xf32>
    %40 = arith.addf %32, %39 : vector<256x128xf32>
    %c0_42 = arith.constant 0 : index
    %c1_43 = arith.constant 1 : index
    %c2_44 = arith.constant 2 : index
    %c0_45 = arith.constant 0 : index
    %41 = vector.load %arg1[%c0_42, %c1_43, %c2_44, %c0_45] : memref<1x18x18x128xf32, #tpu.memory_space<vmem>>, vector<1x16x16x128xf32>
    %42 = vector.shape_cast %41 : vector<1x16x16x128xf32> to vector<16x16x128xf32>
    %43 = vector.shape_cast %42 : vector<16x16x128xf32> to vector<256x128xf32>
    %44 = arith.truncf %43 : vector<256x128xf32> to vector<256x128xbf16>
    %c1_46 = arith.constant 1 : index
    %c2_47 = arith.constant 2 : index
    %c0_48 = arith.constant 0 : index
    %c0_49 = arith.constant 0 : index
    %45 = vector.load %arg2[%c1_46, %c2_47, %c0_48, %c0_49] : memref<3x3x128x128xbf16, #tpu.memory_space<vmem>>, vector<1x1x128x128xbf16>
    %46 = vector.shape_cast %45 : vector<1x1x128x128xbf16> to vector<128x128xbf16>
    %cst_50 = arith.constant dense<0.000000e+00> : vector<256x128xf32>
    %47 = tpu.matmul %44, %46, %cst_50 {dimension_numbers = #tpu.dot_dimension_numbers<[1], [0], [0], [1], [0, 0, 1, 1], [], []>} : vector<256x128xbf16>, vector<128x128xbf16>, vector<256x128xf32> -> vector<256x128xf32>
    %48 = arith.addf %40, %47 : vector<256x128xf32>
    %c0_51 = arith.constant 0 : index
    %c2_52 = arith.constant 2 : index
    %c0_53 = arith.constant 0 : index
    %c0_54 = arith.constant 0 : index
    %49 = vector.load %arg1[%c0_51, %c2_52, %c0_53, %c0_54] : memref<1x18x18x128xf32, #tpu.memory_space<vmem>>, vector<1x16x16x128xf32>
    %50 = vector.shape_cast %49 : vector<1x16x16x128xf32> to vector<16x16x128xf32>
    %51 = vector.shape_cast %50 : vector<16x16x128xf32> to vector<256x128xf32>
    %52 = arith.truncf %51 : vector<256x128xf32> to vector<256x128xbf16>
    %c2_55 = arith.constant 2 : index
    %c0_56 = arith.constant 0 : index
    %c0_57 = arith.constant 0 : index
    %c0_58 = arith.constant 0 : index
    %53 = vector.load %arg2[%c2_55, %c0_56, %c0_57, %c0_58] : memref<3x3x128x128xbf16, #tpu.memory_space<vmem>>, vector<1x1x128x128xbf16>
    %54 = vector.shape_cast %53 : vector<1x1x128x128xbf16> to vector<128x128xbf16>
    %cst_59 = arith.constant dense<0.000000e+00> : vector<256x128xf32>
    %55 = tpu.matmul %52, %54, %cst_59 {dimension_numbers = #tpu.dot_dimension_numbers<[1], [0], [0], [1], [0, 0, 1, 1], [], []>} : vector<256x128xbf16>, vector<128x128xbf16>, vector<256x128xf32> -> vector<256x128xf32>
    %56 = arith.addf %48, %55 : vector<256x128xf32>
    %c0_60 = arith.constant 0 : index
    %c2_61 = arith.constant 2 : index
    %c1_62 = arith.constant 1 : index
    %c0_63 = arith.constant 0 : index
    %57 = vector.load %arg1[%c0_60, %c2_61, %c1_62, %c0_63] : memref<1x18x18x128xf32, #tpu.memory_space<vmem>>, vector<1x16x16x128xf32>
    %58 = vector.shape_cast %57 : vector<1x16x16x128xf32> to vector<16x16x128xf32>
    %59 = vector.shape_cast %58 : vector<16x16x128xf32> to vector<256x128xf32>
    %60 = arith.truncf %59 : vector<256x128xf32> to vector<256x128xbf16>
    %c2_64 = arith.constant 2 : index
    %c1_65 = arith.constant 1 : index
    %c0_66 = arith.constant 0 : index
    %c0_67 = arith.constant 0 : index
    %61 = vector.load %arg2[%c2_64, %c1_65, %c0_66, %c0_67] : memref<3x3x128x128xbf16, #tpu.memory_space<vmem>>, vector<1x1x128x128xbf16>
    %62 = vector.shape_cast %61 : vector<1x1x128x128xbf16> to vector<128x128xbf16>
    %cst_68 = arith.constant dense<0.000000e+00> : vector<256x128xf32>
    %63 = tpu.matmul %60, %62, %cst_68 {dimension_numbers = #tpu.dot_dimension_numbers<[1], [0], [0], [1], [0, 0, 1, 1], [], []>} : vector<256x128xbf16>, vector<128x128xbf16>, vector<256x128xf32> -> vector<256x128xf32>
    %64 = arith.addf %56, %63 : vector<256x128xf32>
    %c0_69 = arith.constant 0 : index
    %c2_70 = arith.constant 2 : index
    %c2_71 = arith.constant 2 : index
    %c0_72 = arith.constant 0 : index
    %65 = vector.load %arg1[%c0_69, %c2_70, %c2_71, %c0_72] : memref<1x18x18x128xf32, #tpu.memory_space<vmem>>, vector<1x16x16x128xf32>
    %66 = vector.shape_cast %65 : vector<1x16x16x128xf32> to vector<16x16x128xf32>
    %67 = vector.shape_cast %66 : vector<16x16x128xf32> to vector<256x128xf32>
    %68 = arith.truncf %67 : vector<256x128xf32> to vector<256x128xbf16>
    %c2_73 = arith.constant 2 : index
    %c2_74 = arith.constant 2 : index
    %c0_75 = arith.constant 0 : index
    %c0_76 = arith.constant 0 : index
    %69 = vector.load %arg2[%c2_73, %c2_74, %c0_75, %c0_76] : memref<3x3x128x128xbf16, #tpu.memory_space<vmem>>, vector<1x1x128x128xbf16>
    %70 = vector.shape_cast %69 : vector<1x1x128x128xbf16> to vector<128x128xbf16>
    %cst_77 = arith.constant dense<0.000000e+00> : vector<256x128xf32>
    %71 = tpu.matmul %68, %70, %cst_77 {dimension_numbers = #tpu.dot_dimension_numbers<[1], [0], [0], [1], [0, 0, 1, 1], [], []>} : vector<256x128xbf16>, vector<128x128xbf16>, vector<256x128xf32> -> vector<256x128xf32>
    %72 = arith.addf %64, %71 : vector<256x128xf32>
    %c0_78 = arith.constant 0 : index
    %c0_79 = arith.constant 0 : index
    %73 = vector.load %arg3[%c0_78, %c0_79] : memref<1x128xf32, #tpu.memory_space<vmem>>, vector<1x128xf32>
    %74 = vector.broadcast %73 : vector<1x128xf32> to vector<256x128xf32>
    %75 = arith.addf %72, %74 : vector<256x128xf32>
    %76 = vector.shape_cast %75 : vector<256x128xf32> to vector<16x16x128xf32>
    %c0_80 = arith.constant 0 : index
    %c0_81 = arith.constant 0 : index
    %c0_82 = arith.constant 0 : index
    %c0_83 = arith.constant 0 : index
    %77 = vector.load %arg4[%c0_80, %c0_81, %c0_82, %c0_83] : memref<1x16x16x128xf32, #tpu.memory_space<vmem>>, vector<1x16x16x128xf32>
    %78 = vector.shape_cast %77 : vector<1x16x16x128xf32> to vector<16x16x128xf32>
    %79 = vector.shape_cast %76 : vector<16x16x128xf32> to vector<1x16x16x128xf32>
    tpu.vector_store %arg4[%c0_80, %c0_81, %c0_82, %c0_83], %79 {strides = array<i32>} : memref<1x16x16x128xf32, #tpu.memory_space<vmem>>, vector<1x16x16x128xf32>,
    %cst_84 = arith.constant dense<0.000000e+00> : vector<128xf32>
    %80 = vector.multi_reduction <add>, %75, %cst_84 [0] : vector<256x128xf32> to vector<128xf32>
    %81 = vector.shape_cast %80 : vector<128xf32> to vector<1x128xf32>
    %c0_85 = arith.constant 0 : index
    %c0_86 = arith.constant 0 : index
    %c0_87 = arith.constant 0 : index
    %82 = vector.load %arg5[%c0_85, %c0_86, %c0_87] : memref<1x2x128xf32, #tpu.memory_space<vmem>>, vector<1x1x128xf32>
    %83 = vector.shape_cast %82 : vector<1x1x128xf32> to vector<1x128xf32>
    %84 = vector.shape_cast %81 : vector<1x128xf32> to vector<1x1x128xf32>
    tpu.vector_store %arg5[%c0_85, %c0_86, %c0_87], %84 {strides = array<i32>} : memref<1x2x128xf32, #tpu.memory_space<vmem>>, vector<1x1x128xf32>,
    %85 = arith.mulf %75, %75 : vector<256x128xf32>
    %cst_88 = arith.constant dense<0.000000e+00> : vector<128xf32>
    %86 = vector.multi_reduction <add>, %85, %cst_88 [0] : vector<256x128xf32> to vector<128xf32>
    %87 = vector.shape_cast %86 : vector<128xf32> to vector<1x128xf32>
    %c0_89 = arith.constant 0 : index
    %c1_90 = arith.constant 1 : index
    %c0_91 = arith.constant 0 : index
    %88 = vector.load %arg5[%c0_89, %c1_90, %c0_91] : memref<1x2x128xf32, #tpu.memory_space<vmem>>, vector<1x1x128xf32>
    %89 = vector.shape_cast %88 : vector<1x1x128xf32> to vector<1x128xf32>
    %90 = vector.shape_cast %87 : vector<1x128xf32> to vector<1x1x128xf32>
    tpu.vector_store %arg5[%c0_89, %c1_90, %c0_91], %90 {strides = array<i32>} : memref<1x2x128xf32, #tpu.memory_space<vmem>>, vector<1x1x128xf32>,
    return
  }
  func.func @transform_0(%arg0: i32) -> (i32, i32, i32, i32) {
    %c0_i32 = arith.constant 0 : i32
    %c0_i32_0 = arith.constant 0 : i32
    %c0_i32_1 = arith.constant 0 : i32
    %c0_i32_2 = arith.constant 0 : i32
    return %arg0, %c0_i32, %c0_i32_0, %c0_i32_1 : i32, i32, i32, i32
  }
  func.func @transform_1(%arg0: i32) -> (i32, i32, i32, i32) {
    %c0_i32 = arith.constant 0 : i32
    %c0_i32_0 = arith.constant 0 : i32
    %c0_i32_1 = arith.constant 0 : i32
    %c0_i32_2 = arith.constant 0 : i32
    %c0_i32_3 = arith.constant 0 : i32
    return %c0_i32, %c0_i32_0, %c0_i32_1, %c0_i32_2 : i32, i32, i32, i32
  }
  func.func @transform_2(%arg0: i32) -> (i32, i32) {
    %c0_i32 = arith.constant 0 : i32
    %c0_i32_0 = arith.constant 0 : i32
    %c0_i32_1 = arith.constant 0 : i32
    return %c0_i32, %c0_i32_0 : i32, i32
  }
  func.func @transform_3(%arg0: i32) -> (i32, i32, i32, i32) {
    %c0_i32 = arith.constant 0 : i32
    %c0_i32_0 = arith.constant 0 : i32
    %c0_i32_1 = arith.constant 0 : i32
    %c0_i32_2 = arith.constant 0 : i32
    return %arg0, %c0_i32, %c0_i32_0, %c0_i32_1 : i32, i32, i32, i32
  }
  func.func @transform_4(%arg0: i32) -> (i32, i32, i32) {
    %c0_i32 = arith.constant 0 : i32
    %c0_i32_0 = arith.constant 0 : i32
    %c0_i32_1 = arith.constant 0 : i32
    return %arg0, %c0_i32, %c0_i32_0 : i32, i32, i32
  }
}

module attributes {stable_mosaic.version = 11 : i64} {
  func.func @_fused_tail_kernel(%arg0: i32, %arg1: memref<1x16x16x128xf32, #tpu.memory_space<vmem>>, %arg2: memref<1x128xf32, #tpu.memory_space<vmem>>, %arg3: memref<1x128xf32, #tpu.memory_space<vmem>>, %arg4: memref<3x3x128x128xbf16, #tpu.memory_space<vmem>>, %arg5: memref<1x128xf32, #tpu.memory_space<vmem>>, %arg6: memref<1x8x8x128xf32, #tpu.memory_space<vmem>>, %arg7: memref<1x2x128xf32, #tpu.memory_space<vmem>>, %arg8: memref<18x18x128xf32, #tpu.memory_space<vmem>>, %arg9: memref<18x18x128xf32, #tpu.memory_space<vmem>>, %arg10: memref<18x18x128xf32, #tpu.memory_space<vmem>>) attributes {dimension_semantics = [#tpu.dimension_semantics<parallel>], iteration_bounds = array<i64: 2>, scalar_prefetch = 0 : i64, scratch_operands = 3 : i64, tpu.core_type = #tpu.core_type<tc>, window_params = [{transform_indices = @transform_0, window_bounds = array<i64: 1, 16, 16, 128>}, {pipeline_mode = #tpu.pipeline_mode<synchronous>, transform_indices = @transform_1, window_bounds = array<i64: 1, 128>}, {pipeline_mode = #tpu.pipeline_mode<synchronous>, transform_indices = @transform_2, window_bounds = array<i64: 1, 128>}, {pipeline_mode = #tpu.pipeline_mode<synchronous>, transform_indices = @transform_3, window_bounds = array<i64: 3, 3, 128, 128>}, {pipeline_mode = #tpu.pipeline_mode<synchronous>, transform_indices = @transform_4, window_bounds = array<i64: 1, 128>}, {transform_indices = @transform_5, window_bounds = array<i64: 1, 8, 8, 128>}, {transform_indices = @transform_6, window_bounds = array<i64: 1, 2, 128>}]} {
    %cst = arith.constant 0.000000e+00 : f32
    %0 = vector.broadcast %cst : f32 to vector<18x18x128xf32>
    %c0 = arith.constant 0 : index
    %c0_0 = arith.constant 0 : index
    %c0_1 = arith.constant 0 : index
    %1 = vector.load %arg8[%c0, %c0_0, %c0_1] : memref<18x18x128xf32, #tpu.memory_space<vmem>>, vector<18x18x128xf32>
    tpu.vector_store %arg8[%c0, %c0_0, %c0_1], %0 {strides = array<i32>} : memref<18x18x128xf32, #tpu.memory_space<vmem>>, vector<18x18x128xf32>,
    %cst_2 = arith.constant 0.000000e+00 : f32
    %2 = vector.broadcast %cst_2 : f32 to vector<18x18x128xf32>
    %c0_3 = arith.constant 0 : index
    %c0_4 = arith.constant 0 : index
    %c0_5 = arith.constant 0 : index
    %3 = vector.load %arg9[%c0_3, %c0_4, %c0_5] : memref<18x18x128xf32, #tpu.memory_space<vmem>>, vector<18x18x128xf32>
    tpu.vector_store %arg9[%c0_3, %c0_4, %c0_5], %2 {strides = array<i32>} : memref<18x18x128xf32, #tpu.memory_space<vmem>>, vector<18x18x128xf32>,
    %cst_6 = arith.constant 0.000000e+00 : f32
    %4 = vector.broadcast %cst_6 : f32 to vector<18x18x128xf32>
    %c0_7 = arith.constant 0 : index
    %c0_8 = arith.constant 0 : index
    %c0_9 = arith.constant 0 : index
    %5 = vector.load %arg10[%c0_7, %c0_8, %c0_9] : memref<18x18x128xf32, #tpu.memory_space<vmem>>, vector<18x18x128xf32>
    tpu.vector_store %arg10[%c0_7, %c0_8, %c0_9], %4 {strides = array<i32>} : memref<18x18x128xf32, #tpu.memory_space<vmem>>, vector<18x18x128xf32>,
    %c0_10 = arith.constant 0 : index
    %c0_11 = arith.constant 0 : index
    %c0_12 = arith.constant 0 : index
    %c0_13 = arith.constant 0 : index
    %6 = vector.load %arg1[%c0_10, %c0_11, %c0_12, %c0_13] : memref<1x16x16x128xf32, #tpu.memory_space<vmem>>, vector<1x16x16x128xf32>
    %7 = vector.shape_cast %6 : vector<1x16x16x128xf32> to vector<16x16x128xf32>
    %8 = vector.shape_cast %7 : vector<16x16x128xf32> to vector<256x128xf32>
    %c0_14 = arith.constant 0 : index
    %c0_15 = arith.constant 0 : index
    %9 = vector.load %arg2[%c0_14, %c0_15] : memref<1x128xf32, #tpu.memory_space<vmem>>, vector<1x128xf32>
    %10 = vector.broadcast %9 : vector<1x128xf32> to vector<256x128xf32>
    %11 = arith.mulf %8, %10 : vector<256x128xf32>
    %c0_16 = arith.constant 0 : index
    %c0_17 = arith.constant 0 : index
    %12 = vector.load %arg3[%c0_16, %c0_17] : memref<1x128xf32, #tpu.memory_space<vmem>>, vector<1x128xf32>
    %13 = vector.broadcast %12 : vector<1x128xf32> to vector<256x128xf32>
    %14 = arith.addf %11, %13 : vector<256x128xf32>
    %cst_18 = arith.constant 0.000000e+00 : f32
    %15 = vector.broadcast %cst_18 : f32 to vector<256x128xf32>
    %16 = arith.cmpf oge, %14, %15 : vector<256x128xf32>
    %cst_19 = arith.constant 2.000000e-01 : f32
    %17 = vector.broadcast %cst_19 : f32 to vector<256x128xf32>
    %18 = arith.mulf %17, %14 : vector<256x128xf32>
    %19 = arith.select %16, %14, %18 : vector<256x128xi1>, vector<256x128xf32>
    %20 = vector.shape_cast %19 : vector<256x128xf32> to vector<16x16x128xf32>
    %c1 = arith.constant 1 : index
    %c1_20 = arith.constant 1 : index
    %c0_21 = arith.constant 0 : index
    %21 = vector.load %arg8[%c1, %c1_20, %c0_21] : memref<18x18x128xf32, #tpu.memory_space<vmem>>, vector<16x16x128xf32>
    tpu.vector_store %arg8[%c1, %c1_20, %c0_21], %20 {strides = array<i32>} : memref<18x18x128xf32, #tpu.memory_space<vmem>>, vector<16x16x128xf32>,
    %cst_22 = arith.constant 0.000000e+00 : f32
    %22 = vector.broadcast %cst_22 : f32 to vector<16x16x128xf32>
    %c0_23 = arith.constant 0 : index
    %c0_24 = arith.constant 0 : index
    %c0_25 = arith.constant 0 : index
    %23 = vector.load %arg8[%c0_23, %c0_24, %c0_25] : memref<18x18x128xf32, #tpu.memory_space<vmem>>, vector<16x16x128xf32>
    %cst_26 = arith.constant 6.250000e-02 : f32
    %24 = vector.broadcast %cst_26 : f32 to vector<16x16x128xf32>
    %25 = arith.mulf %24, %23 : vector<16x16x128xf32>
    %26 = arith.addf %22, %25 : vector<16x16x128xf32>
    %c0_27 = arith.constant 0 : index
    %c1_28 = arith.constant 1 : index
    %c0_29 = arith.constant 0 : index
    %27 = vector.load %arg8[%c0_27, %c1_28, %c0_29] : memref<18x18x128xf32, #tpu.memory_space<vmem>>, vector<16x16x128xf32>
    %cst_30 = arith.constant 1.250000e-01 : f32
    %28 = vector.broadcast %cst_30 : f32 to vector<16x16x128xf32>
    %29 = arith.mulf %28, %27 : vector<16x16x128xf32>
    %30 = arith.addf %26, %29 : vector<16x16x128xf32>
    %c0_31 = arith.constant 0 : index
    %c2 = arith.constant 2 : index
    %c0_32 = arith.constant 0 : index
    %31 = vector.load %arg8[%c0_31, %c2, %c0_32] : memref<18x18x128xf32, #tpu.memory_space<vmem>>, vector<16x16x128xf32>
    %cst_33 = arith.constant 6.250000e-02 : f32
    %32 = vector.broadcast %cst_33 : f32 to vector<16x16x128xf32>
    %33 = arith.mulf %32, %31 : vector<16x16x128xf32>
    %34 = arith.addf %30, %33 : vector<16x16x128xf32>
    %c1_34 = arith.constant 1 : index
    %c0_35 = arith.constant 0 : index
    %c0_36 = arith.constant 0 : index
    %35 = vector.load %arg8[%c1_34, %c0_35, %c0_36] : memref<18x18x128xf32, #tpu.memory_space<vmem>>, vector<16x16x128xf32>
    %cst_37 = arith.constant 1.250000e-01 : f32
    %36 = vector.broadcast %cst_37 : f32 to vector<16x16x128xf32>
    %37 = arith.mulf %36, %35 : vector<16x16x128xf32>
    %38 = arith.addf %34, %37 : vector<16x16x128xf32>
    %c1_38 = arith.constant 1 : index
    %c1_39 = arith.constant 1 : index
    %c0_40 = arith.constant 0 : index
    %39 = vector.load %arg8[%c1_38, %c1_39, %c0_40] : memref<18x18x128xf32, #tpu.memory_space<vmem>>, vector<16x16x128xf32>
    %cst_41 = arith.constant 2.500000e-01 : f32
    %40 = vector.broadcast %cst_41 : f32 to vector<16x16x128xf32>
    %41 = arith.mulf %40, %39 : vector<16x16x128xf32>
    %42 = arith.addf %38, %41 : vector<16x16x128xf32>
    %c1_42 = arith.constant 1 : index
    %c2_43 = arith.constant 2 : index
    %c0_44 = arith.constant 0 : index
    %43 = vector.load %arg8[%c1_42, %c2_43, %c0_44] : memref<18x18x128xf32, #tpu.memory_space<vmem>>, vector<16x16x128xf32>
    %cst_45 = arith.constant 1.250000e-01 : f32
    %44 = vector.broadcast %cst_45 : f32 to vector<16x16x128xf32>
    %45 = arith.mulf %44, %43 : vector<16x16x128xf32>
    %46 = arith.addf %42, %45 : vector<16x16x128xf32>
    %c2_46 = arith.constant 2 : index
    %c0_47 = arith.constant 0 : index
    %c0_48 = arith.constant 0 : index
    %47 = vector.load %arg8[%c2_46, %c0_47, %c0_48] : memref<18x18x128xf32, #tpu.memory_space<vmem>>, vector<16x16x128xf32>
    %cst_49 = arith.constant 6.250000e-02 : f32
    %48 = vector.broadcast %cst_49 : f32 to vector<16x16x128xf32>
    %49 = arith.mulf %48, %47 : vector<16x16x128xf32>
    %50 = arith.addf %46, %49 : vector<16x16x128xf32>
    %c2_50 = arith.constant 2 : index
    %c1_51 = arith.constant 1 : index
    %c0_52 = arith.constant 0 : index
    %51 = vector.load %arg8[%c2_50, %c1_51, %c0_52] : memref<18x18x128xf32, #tpu.memory_space<vmem>>, vector<16x16x128xf32>
    %cst_53 = arith.constant 1.250000e-01 : f32
    %52 = vector.broadcast %cst_53 : f32 to vector<16x16x128xf32>
    %53 = arith.mulf %52, %51 : vector<16x16x128xf32>
    %54 = arith.addf %50, %53 : vector<16x16x128xf32>
    %c2_54 = arith.constant 2 : index
    %c2_55 = arith.constant 2 : index
    %c0_56 = arith.constant 0 : index
    %55 = vector.load %arg8[%c2_54, %c2_55, %c0_56] : memref<18x18x128xf32, #tpu.memory_space<vmem>>, vector<16x16x128xf32>
    %cst_57 = arith.constant 6.250000e-02 : f32
    %56 = vector.broadcast %cst_57 : f32 to vector<16x16x128xf32>
    %57 = arith.mulf %56, %55 : vector<16x16x128xf32>
    %58 = arith.addf %54, %57 : vector<16x16x128xf32>
    %c1_58 = arith.constant 1 : index
    %c1_59 = arith.constant 1 : index
    %c0_60 = arith.constant 0 : index
    %59 = vector.load %arg9[%c1_58, %c1_59, %c0_60] : memref<18x18x128xf32, #tpu.memory_space<vmem>>, vector<16x16x128xf32>
    tpu.vector_store %arg9[%c1_58, %c1_59, %c0_60], %58 {strides = array<i32>} : memref<18x18x128xf32, #tpu.memory_space<vmem>>, vector<16x16x128xf32>,
    %c0_61 = arith.constant 0 : index
    %c0_62 = arith.constant 0 : index
    %c0_63 = arith.constant 0 : index
    %60 = vector.load %arg9[%c0_61, %c0_62, %c0_63] : memref<18x18x128xf32, #tpu.memory_space<vmem>>, vector<17x17x128xf32>
    %c1_64 = arith.constant 1 : index
    %c0_65 = arith.constant 0 : index
    %c0_66 = arith.constant 0 : index
    %61 = vector.load %arg9[%c1_64, %c0_65, %c0_66] : memref<18x18x128xf32, #tpu.memory_space<vmem>>, vector<17x17x128xf32>
    %62 = arith.addf %60, %61 : vector<17x17x128xf32>
    %c0_67 = arith.constant 0 : index
    %c1_68 = arith.constant 1 : index
    %c0_69 = arith.constant 0 : index
    %63 = vector.load %arg9[%c0_67, %c1_68, %c0_69] : memref<18x18x128xf32, #tpu.memory_space<vmem>>, vector<17x17x128xf32>
    %64 = arith.addf %62, %63 : vector<17x17x128xf32>
    %c1_70 = arith.constant 1 : index
    %c1_71 = arith.constant 1 : index
    %c0_72 = arith.constant 0 : index
    %65 = vector.load %arg9[%c1_70, %c1_71, %c0_72] : memref<18x18x128xf32, #tpu.memory_space<vmem>>, vector<17x17x128xf32>
    %66 = arith.addf %64, %65 : vector<17x17x128xf32>
    %cst_73 = arith.constant 2.500000e-01 : f32
    %67 = vector.broadcast %cst_73 : f32 to vector<17x17x128xf32>
    %68 = arith.mulf %67, %66 : vector<17x17x128xf32>
    %c0_74 = arith.constant 0 : index
    %c0_75 = arith.constant 0 : index
    %c0_76 = arith.constant 0 : index
    %69 = vector.load %arg10[%c0_74, %c0_75, %c0_76] : memref<18x18x128xf32, #tpu.memory_space<vmem>>, vector<17x17x128xf32>
    tpu.vector_store %arg10[%c0_74, %c0_75, %c0_76], %68 {strides = array<i32>} : memref<18x18x128xf32, #tpu.memory_space<vmem>>, vector<17x17x128xf32>,
    %cst_77 = arith.constant 0.000000e+00 : f32
    %70 = vector.broadcast %cst_77 : f32 to vector<64x128xf32>
    %c0_78 = arith.constant 0 : index
    %c0_79 = arith.constant 0 : index
    %c0_80 = arith.constant 0 : index
    %71 = tpu.strided_load %arg10[%c0_78, %c0_79, %c0_80] {strides = array<i32: 1, 2, 1>} : memref<18x18x128xf32, #tpu.memory_space<vmem>>, vector<18x8x128xf32>
    %72 = vector.shape_cast %71 : vector<18x8x128xf32> to vector<9x2x8x128xf32>
    %73 = vector.extract_strided_slice %72 {offsets = [0, 0, 0, 0], sizes = [8, 1, 8, 128], strides = [1, 1, 1, 1]} : vector<9x2x8x128xf32> to vector<8x1x8x128xf32>
    %74 = vector.shape_cast %73 : vector<8x1x8x128xf32> to vector<8x8x128xf32>
    %75 = vector.shape_cast %74 : vector<8x8x128xf32> to vector<64x128xf32>
    %76 = arith.truncf %75 : vector<64x128xf32> to vector<64x128xbf16>
    %c0_81 = arith.constant 0 : index
    %c0_82 = arith.constant 0 : index
    %c0_83 = arith.constant 0 : index
    %c0_84 = arith.constant 0 : index
    %77 = vector.load %arg4[%c0_81, %c0_82, %c0_83, %c0_84] : memref<3x3x128x128xbf16, #tpu.memory_space<vmem>>, vector<1x1x128x128xbf16>
    %78 = vector.shape_cast %77 : vector<1x1x128x128xbf16> to vector<128x128xbf16>
    %cst_85 = arith.constant dense<0.000000e+00> : vector<64x128xf32>
    %79 = tpu.matmul %76, %78, %cst_85 {dimension_numbers = #tpu.dot_dimension_numbers<[1], [0], [0], [1], [0, 0, 1, 1], [], []>} : vector<64x128xbf16>, vector<128x128xbf16>, vector<64x128xf32> -> vector<64x128xf32>
    %80 = arith.addf %70, %79 : vector<64x128xf32>
    %81 = vector.extract_strided_slice %72 {offsets = [0, 1, 0, 0], sizes = [8, 1, 8, 128], strides = [1, 1, 1, 1]} : vector<9x2x8x128xf32> to vector<8x1x8x128xf32>
    %82 = vector.shape_cast %81 : vector<8x1x8x128xf32> to vector<8x8x128xf32>
    %83 = vector.shape_cast %82 : vector<8x8x128xf32> to vector<64x128xf32>
    %84 = arith.truncf %83 : vector<64x128xf32> to vector<64x128xbf16>
    %c1_86 = arith.constant 1 : index
    %c0_87 = arith.constant 0 : index
    %c0_88 = arith.constant 0 : index
    %c0_89 = arith.constant 0 : index
    %85 = vector.load %arg4[%c1_86, %c0_87, %c0_88, %c0_89] : memref<3x3x128x128xbf16, #tpu.memory_space<vmem>>, vector<1x1x128x128xbf16>
    %86 = vector.shape_cast %85 : vector<1x1x128x128xbf16> to vector<128x128xbf16>
    %cst_90 = arith.constant dense<0.000000e+00> : vector<64x128xf32>
    %87 = tpu.matmul %84, %86, %cst_90 {dimension_numbers = #tpu.dot_dimension_numbers<[1], [0], [0], [1], [0, 0, 1, 1], [], []>} : vector<64x128xbf16>, vector<128x128xbf16>, vector<64x128xf32> -> vector<64x128xf32>
    %88 = arith.addf %80, %87 : vector<64x128xf32>
    %89 = vector.extract_strided_slice %72 {offsets = [1, 0, 0, 0], sizes = [8, 1, 8, 128], strides = [1, 1, 1, 1]} : vector<9x2x8x128xf32> to vector<8x1x8x128xf32>
    %90 = vector.shape_cast %89 : vector<8x1x8x128xf32> to vector<8x8x128xf32>
    %91 = vector.shape_cast %90 : vector<8x8x128xf32> to vector<64x128xf32>
    %92 = arith.truncf %91 : vector<64x128xf32> to vector<64x128xbf16>
    %c2_91 = arith.constant 2 : index
    %c0_92 = arith.constant 0 : index
    %c0_93 = arith.constant 0 : index
    %c0_94 = arith.constant 0 : index
    %93 = vector.load %arg4[%c2_91, %c0_92, %c0_93, %c0_94] : memref<3x3x128x128xbf16, #tpu.memory_space<vmem>>, vector<1x1x128x128xbf16>
    %94 = vector.shape_cast %93 : vector<1x1x128x128xbf16> to vector<128x128xbf16>
    %cst_95 = arith.constant dense<0.000000e+00> : vector<64x128xf32>
    %95 = tpu.matmul %92, %94, %cst_95 {dimension_numbers = #tpu.dot_dimension_numbers<[1], [0], [0], [1], [0, 0, 1, 1], [], []>} : vector<64x128xbf16>, vector<128x128xbf16>, vector<64x128xf32> -> vector<64x128xf32>
    %96 = arith.addf %88, %95 : vector<64x128xf32>
    %c0_96 = arith.constant 0 : index
    %c1_97 = arith.constant 1 : index
    %c0_98 = arith.constant 0 : index
    %97 = tpu.strided_load %arg10[%c0_96, %c1_97, %c0_98] {strides = array<i32: 1, 2, 1>} : memref<18x18x128xf32, #tpu.memory_space<vmem>>, vector<18x8x128xf32>
    %98 = vector.shape_cast %97 : vector<18x8x128xf32> to vector<9x2x8x128xf32>
    %99 = vector.extract_strided_slice %98 {offsets = [0, 0, 0, 0], sizes = [8, 1, 8, 128], strides = [1, 1, 1, 1]} : vector<9x2x8x128xf32> to vector<8x1x8x128xf32>
    %100 = vector.shape_cast %99 : vector<8x1x8x128xf32> to vector<8x8x128xf32>
    %101 = vector.shape_cast %100 : vector<8x8x128xf32> to vector<64x128xf32>
    %102 = arith.truncf %101 : vector<64x128xf32> to vector<64x128xbf16>
    %c0_99 = arith.constant 0 : index
    %c1_100 = arith.constant 1 : index
    %c0_101 = arith.constant 0 : index
    %c0_102 = arith.constant 0 : index
    %103 = vector.load %arg4[%c0_99, %c1_100, %c0_101, %c0_102] : memref<3x3x128x128xbf16, #tpu.memory_space<vmem>>, vector<1x1x128x128xbf16>
    %104 = vector.shape_cast %103 : vector<1x1x128x128xbf16> to vector<128x128xbf16>
    %cst_103 = arith.constant dense<0.000000e+00> : vector<64x128xf32>
    %105 = tpu.matmul %102, %104, %cst_103 {dimension_numbers = #tpu.dot_dimension_numbers<[1], [0], [0], [1], [0, 0, 1, 1], [], []>} : vector<64x128xbf16>, vector<128x128xbf16>, vector<64x128xf32> -> vector<64x128xf32>
    %106 = arith.addf %96, %105 : vector<64x128xf32>
    %107 = vector.extract_strided_slice %98 {offsets = [0, 1, 0, 0], sizes = [8, 1, 8, 128], strides = [1, 1, 1, 1]} : vector<9x2x8x128xf32> to vector<8x1x8x128xf32>
    %108 = vector.shape_cast %107 : vector<8x1x8x128xf32> to vector<8x8x128xf32>
    %109 = vector.shape_cast %108 : vector<8x8x128xf32> to vector<64x128xf32>
    %110 = arith.truncf %109 : vector<64x128xf32> to vector<64x128xbf16>
    %c1_104 = arith.constant 1 : index
    %c1_105 = arith.constant 1 : index
    %c0_106 = arith.constant 0 : index
    %c0_107 = arith.constant 0 : index
    %111 = vector.load %arg4[%c1_104, %c1_105, %c0_106, %c0_107] : memref<3x3x128x128xbf16, #tpu.memory_space<vmem>>, vector<1x1x128x128xbf16>
    %112 = vector.shape_cast %111 : vector<1x1x128x128xbf16> to vector<128x128xbf16>
    %cst_108 = arith.constant dense<0.000000e+00> : vector<64x128xf32>
    %113 = tpu.matmul %110, %112, %cst_108 {dimension_numbers = #tpu.dot_dimension_numbers<[1], [0], [0], [1], [0, 0, 1, 1], [], []>} : vector<64x128xbf16>, vector<128x128xbf16>, vector<64x128xf32> -> vector<64x128xf32>
    %114 = arith.addf %106, %113 : vector<64x128xf32>
    %115 = vector.extract_strided_slice %98 {offsets = [1, 0, 0, 0], sizes = [8, 1, 8, 128], strides = [1, 1, 1, 1]} : vector<9x2x8x128xf32> to vector<8x1x8x128xf32>
    %116 = vector.shape_cast %115 : vector<8x1x8x128xf32> to vector<8x8x128xf32>
    %117 = vector.shape_cast %116 : vector<8x8x128xf32> to vector<64x128xf32>
    %118 = arith.truncf %117 : vector<64x128xf32> to vector<64x128xbf16>
    %c2_109 = arith.constant 2 : index
    %c1_110 = arith.constant 1 : index
    %c0_111 = arith.constant 0 : index
    %c0_112 = arith.constant 0 : index
    %119 = vector.load %arg4[%c2_109, %c1_110, %c0_111, %c0_112] : memref<3x3x128x128xbf16, #tpu.memory_space<vmem>>, vector<1x1x128x128xbf16>
    %120 = vector.shape_cast %119 : vector<1x1x128x128xbf16> to vector<128x128xbf16>
    %cst_113 = arith.constant dense<0.000000e+00> : vector<64x128xf32>
    %121 = tpu.matmul %118, %120, %cst_113 {dimension_numbers = #tpu.dot_dimension_numbers<[1], [0], [0], [1], [0, 0, 1, 1], [], []>} : vector<64x128xbf16>, vector<128x128xbf16>, vector<64x128xf32> -> vector<64x128xf32>
    %122 = arith.addf %114, %121 : vector<64x128xf32>
    %c0_114 = arith.constant 0 : index
    %c2_115 = arith.constant 2 : index
    %c0_116 = arith.constant 0 : index
    %123 = tpu.strided_load %arg10[%c0_114, %c2_115, %c0_116] {strides = array<i32: 1, 2, 1>} : memref<18x18x128xf32, #tpu.memory_space<vmem>>, vector<18x8x128xf32>
    %124 = vector.shape_cast %123 : vector<18x8x128xf32> to vector<9x2x8x128xf32>
    %125 = vector.extract_strided_slice %124 {offsets = [0, 0, 0, 0], sizes = [8, 1, 8, 128], strides = [1, 1, 1, 1]} : vector<9x2x8x128xf32> to vector<8x1x8x128xf32>
    %126 = vector.shape_cast %125 : vector<8x1x8x128xf32> to vector<8x8x128xf32>
    %127 = vector.shape_cast %126 : vector<8x8x128xf32> to vector<64x128xf32>
    %128 = arith.truncf %127 : vector<64x128xf32> to vector<64x128xbf16>
    %c0_117 = arith.constant 0 : index
    %c2_118 = arith.constant 2 : index
    %c0_119 = arith.constant 0 : index
    %c0_120 = arith.constant 0 : index
    %129 = vector.load %arg4[%c0_117, %c2_118, %c0_119, %c0_120] : memref<3x3x128x128xbf16, #tpu.memory_space<vmem>>, vector<1x1x128x128xbf16>
    %130 = vector.shape_cast %129 : vector<1x1x128x128xbf16> to vector<128x128xbf16>
    %cst_121 = arith.constant dense<0.000000e+00> : vector<64x128xf32>
    %131 = tpu.matmul %128, %130, %cst_121 {dimension_numbers = #tpu.dot_dimension_numbers<[1], [0], [0], [1], [0, 0, 1, 1], [], []>} : vector<64x128xbf16>, vector<128x128xbf16>, vector<64x128xf32> -> vector<64x128xf32>
    %132 = arith.addf %122, %131 : vector<64x128xf32>
    %133 = vector.extract_strided_slice %124 {offsets = [0, 1, 0, 0], sizes = [8, 1, 8, 128], strides = [1, 1, 1, 1]} : vector<9x2x8x128xf32> to vector<8x1x8x128xf32>
    %134 = vector.shape_cast %133 : vector<8x1x8x128xf32> to vector<8x8x128xf32>
    %135 = vector.shape_cast %134 : vector<8x8x128xf32> to vector<64x128xf32>
    %136 = arith.truncf %135 : vector<64x128xf32> to vector<64x128xbf16>
    %c1_122 = arith.constant 1 : index
    %c2_123 = arith.constant 2 : index
    %c0_124 = arith.constant 0 : index
    %c0_125 = arith.constant 0 : index
    %137 = vector.load %arg4[%c1_122, %c2_123, %c0_124, %c0_125] : memref<3x3x128x128xbf16, #tpu.memory_space<vmem>>, vector<1x1x128x128xbf16>
    %138 = vector.shape_cast %137 : vector<1x1x128x128xbf16> to vector<128x128xbf16>
    %cst_126 = arith.constant dense<0.000000e+00> : vector<64x128xf32>
    %139 = tpu.matmul %136, %138, %cst_126 {dimension_numbers = #tpu.dot_dimension_numbers<[1], [0], [0], [1], [0, 0, 1, 1], [], []>} : vector<64x128xbf16>, vector<128x128xbf16>, vector<64x128xf32> -> vector<64x128xf32>
    %140 = arith.addf %132, %139 : vector<64x128xf32>
    %141 = vector.extract_strided_slice %124 {offsets = [1, 0, 0, 0], sizes = [8, 1, 8, 128], strides = [1, 1, 1, 1]} : vector<9x2x8x128xf32> to vector<8x1x8x128xf32>
    %142 = vector.shape_cast %141 : vector<8x1x8x128xf32> to vector<8x8x128xf32>
    %143 = vector.shape_cast %142 : vector<8x8x128xf32> to vector<64x128xf32>
    %144 = arith.truncf %143 : vector<64x128xf32> to vector<64x128xbf16>
    %c2_127 = arith.constant 2 : index
    %c2_128 = arith.constant 2 : index
    %c0_129 = arith.constant 0 : index
    %c0_130 = arith.constant 0 : index
    %145 = vector.load %arg4[%c2_127, %c2_128, %c0_129, %c0_130] : memref<3x3x128x128xbf16, #tpu.memory_space<vmem>>, vector<1x1x128x128xbf16>
    %146 = vector.shape_cast %145 : vector<1x1x128x128xbf16> to vector<128x128xbf16>
    %cst_131 = arith.constant dense<0.000000e+00> : vector<64x128xf32>
    %147 = tpu.matmul %144, %146, %cst_131 {dimension_numbers = #tpu.dot_dimension_numbers<[1], [0], [0], [1], [0, 0, 1, 1], [], []>} : vector<64x128xbf16>, vector<128x128xbf16>, vector<64x128xf32> -> vector<64x128xf32>
    %148 = arith.addf %140, %147 : vector<64x128xf32>
    %c0_132 = arith.constant 0 : index
    %c0_133 = arith.constant 0 : index
    %149 = vector.load %arg5[%c0_132, %c0_133] : memref<1x128xf32, #tpu.memory_space<vmem>>, vector<1x128xf32>
    %150 = vector.broadcast %149 : vector<1x128xf32> to vector<64x128xf32>
    %151 = arith.addf %148, %150 : vector<64x128xf32>
    %152 = vector.shape_cast %151 : vector<64x128xf32> to vector<8x8x128xf32>
    %c0_134 = arith.constant 0 : index
    %c0_135 = arith.constant 0 : index
    %c0_136 = arith.constant 0 : index
    %c0_137 = arith.constant 0 : index
    %153 = vector.load %arg6[%c0_134, %c0_135, %c0_136, %c0_137] : memref<1x8x8x128xf32, #tpu.memory_space<vmem>>, vector<1x8x8x128xf32>
    %154 = vector.shape_cast %153 : vector<1x8x8x128xf32> to vector<8x8x128xf32>
    %155 = vector.shape_cast %152 : vector<8x8x128xf32> to vector<1x8x8x128xf32>
    tpu.vector_store %arg6[%c0_134, %c0_135, %c0_136, %c0_137], %155 {strides = array<i32>} : memref<1x8x8x128xf32, #tpu.memory_space<vmem>>, vector<1x8x8x128xf32>,
    %cst_138 = arith.constant dense<0.000000e+00> : vector<128xf32>
    %156 = vector.multi_reduction <add>, %151, %cst_138 [0] : vector<64x128xf32> to vector<128xf32>
    %157 = vector.shape_cast %156 : vector<128xf32> to vector<1x128xf32>
    %c0_139 = arith.constant 0 : index
    %c0_140 = arith.constant 0 : index
    %c0_141 = arith.constant 0 : index
    %158 = vector.load %arg7[%c0_139, %c0_140, %c0_141] : memref<1x2x128xf32, #tpu.memory_space<vmem>>, vector<1x1x128xf32>
    %159 = vector.shape_cast %158 : vector<1x1x128xf32> to vector<1x128xf32>
    %160 = vector.shape_cast %157 : vector<1x128xf32> to vector<1x1x128xf32>
    tpu.vector_store %arg7[%c0_139, %c0_140, %c0_141], %160 {strides = array<i32>} : memref<1x2x128xf32, #tpu.memory_space<vmem>>, vector<1x1x128xf32>,
    %161 = arith.mulf %151, %151 : vector<64x128xf32>
    %cst_142 = arith.constant dense<0.000000e+00> : vector<128xf32>
    %162 = vector.multi_reduction <add>, %161, %cst_142 [0] : vector<64x128xf32> to vector<128xf32>
    %163 = vector.shape_cast %162 : vector<128xf32> to vector<1x128xf32>
    %c0_143 = arith.constant 0 : index
    %c1_144 = arith.constant 1 : index
    %c0_145 = arith.constant 0 : index
    %164 = vector.load %arg7[%c0_143, %c1_144, %c0_145] : memref<1x2x128xf32, #tpu.memory_space<vmem>>, vector<1x1x128xf32>
    %165 = vector.shape_cast %164 : vector<1x1x128xf32> to vector<1x128xf32>
    %166 = vector.shape_cast %163 : vector<1x128xf32> to vector<1x1x128xf32>
    tpu.vector_store %arg7[%c0_143, %c1_144, %c0_145], %166 {strides = array<i32>} : memref<1x2x128xf32, #tpu.memory_space<vmem>>, vector<1x1x128xf32>,
    return
  }
  func.func @transform_0(%arg0: i32) -> (i32, i32, i32, i32) {
    %c0_i32 = arith.constant 0 : i32
    %c0_i32_0 = arith.constant 0 : i32
    %c0_i32_1 = arith.constant 0 : i32
    %c0_i32_2 = arith.constant 0 : i32
    return %arg0, %c0_i32, %c0_i32_0, %c0_i32_1 : i32, i32, i32, i32
  }
  func.func @transform_1(%arg0: i32) -> (i32, i32) {
    %c0_i32 = arith.constant 0 : i32
    %c0_i32_0 = arith.constant 0 : i32
    %c0_i32_1 = arith.constant 0 : i32
    return %c0_i32, %c0_i32_0 : i32, i32
  }
  func.func @transform_2(%arg0: i32) -> (i32, i32) {
    %c0_i32 = arith.constant 0 : i32
    %c0_i32_0 = arith.constant 0 : i32
    %c0_i32_1 = arith.constant 0 : i32
    return %c0_i32, %c0_i32_0 : i32, i32
  }
  func.func @transform_3(%arg0: i32) -> (i32, i32, i32, i32) {
    %c0_i32 = arith.constant 0 : i32
    %c0_i32_0 = arith.constant 0 : i32
    %c0_i32_1 = arith.constant 0 : i32
    %c0_i32_2 = arith.constant 0 : i32
    %c0_i32_3 = arith.constant 0 : i32
    return %c0_i32, %c0_i32_0, %c0_i32_1, %c0_i32_2 : i32, i32, i32, i32
  }
  func.func @transform_4(%arg0: i32) -> (i32, i32) {
    %c0_i32 = arith.constant 0 : i32
    %c0_i32_0 = arith.constant 0 : i32
    %c0_i32_1 = arith.constant 0 : i32
    return %c0_i32, %c0_i32_0 : i32, i32
  }
  func.func @transform_5(%arg0: i32) -> (i32, i32, i32, i32) {
    %c0_i32 = arith.constant 0 : i32
    %c0_i32_0 = arith.constant 0 : i32
    %c0_i32_1 = arith.constant 0 : i32
    %c0_i32_2 = arith.constant 0 : i32
    return %arg0, %c0_i32, %c0_i32_0, %c0_i32_1 : i32, i32, i32, i32
  }
  func.func @transform_6(%arg0: i32) -> (i32, i32, i32) {
    %c0_i32 = arith.constant 0 : i32
    %c0_i32_0 = arith.constant 0 : i32
    %c0_i32_1 = arith.constant 0 : i32
    return %arg0, %c0_i32, %c0_i32_0 : i32, i32, i32
  }
}

module attributes {stable_mosaic.version = 11 : i64} {
  func.func @_bn_relu_kernel(%arg0: i32, %arg1: memref<1x8x8x128xf32, #tpu.memory_space<vmem>>, %arg2: memref<1x128xf32, #tpu.memory_space<vmem>>, %arg3: memref<1x128xf32, #tpu.memory_space<vmem>>, %arg4: memref<1x8x8x128xf32, #tpu.memory_space<vmem>>) attributes {dimension_semantics = [#tpu.dimension_semantics<parallel>], iteration_bounds = array<i64: 2>, scalar_prefetch = 0 : i64, scratch_operands = 0 : i64, tpu.core_type = #tpu.core_type<tc>, window_params = [{transform_indices = @transform_0, window_bounds = array<i64: 1, 8, 8, 128>}, {pipeline_mode = #tpu.pipeline_mode<synchronous>, transform_indices = @transform_1, window_bounds = array<i64: 1, 128>}, {pipeline_mode = #tpu.pipeline_mode<synchronous>, transform_indices = @transform_2, window_bounds = array<i64: 1, 128>}, {transform_indices = @transform_3, window_bounds = array<i64: 1, 8, 8, 128>}]} {
    %c0 = arith.constant 0 : index
    %c0_0 = arith.constant 0 : index
    %c0_1 = arith.constant 0 : index
    %c0_2 = arith.constant 0 : index
    %0 = vector.load %arg1[%c0, %c0_0, %c0_1, %c0_2] : memref<1x8x8x128xf32, #tpu.memory_space<vmem>>, vector<1x8x8x128xf32>
    %1 = vector.shape_cast %0 : vector<1x8x8x128xf32> to vector<8x8x128xf32>
    %2 = vector.shape_cast %1 : vector<8x8x128xf32> to vector<64x128xf32>
    %c0_3 = arith.constant 0 : index
    %c0_4 = arith.constant 0 : index
    %3 = vector.load %arg2[%c0_3, %c0_4] : memref<1x128xf32, #tpu.memory_space<vmem>>, vector<1x128xf32>
    %4 = vector.broadcast %3 : vector<1x128xf32> to vector<64x128xf32>
    %5 = arith.mulf %2, %4 : vector<64x128xf32>
    %c0_5 = arith.constant 0 : index
    %c0_6 = arith.constant 0 : index
    %6 = vector.load %arg3[%c0_5, %c0_6] : memref<1x128xf32, #tpu.memory_space<vmem>>, vector<1x128xf32>
    %7 = vector.broadcast %6 : vector<1x128xf32> to vector<64x128xf32>
    %8 = arith.addf %5, %7 : vector<64x128xf32>
    %cst = arith.constant 0.000000e+00 : f32
    %9 = vector.broadcast %cst : f32 to vector<64x128xf32>
    %10 = arith.maximumf %8, %9 : vector<64x128xf32>
    %11 = vector.shape_cast %10 : vector<64x128xf32> to vector<8x8x128xf32>
    %c0_7 = arith.constant 0 : index
    %c0_8 = arith.constant 0 : index
    %c0_9 = arith.constant 0 : index
    %c0_10 = arith.constant 0 : index
    %12 = vector.load %arg4[%c0_7, %c0_8, %c0_9, %c0_10] : memref<1x8x8x128xf32, #tpu.memory_space<vmem>>, vector<1x8x8x128xf32>
    %13 = vector.shape_cast %12 : vector<1x8x8x128xf32> to vector<8x8x128xf32>
    %14 = vector.shape_cast %11 : vector<8x8x128xf32> to vector<1x8x8x128xf32>
    tpu.vector_store %arg4[%c0_7, %c0_8, %c0_9, %c0_10], %14 {strides = array<i32>} : memref<1x8x8x128xf32, #tpu.memory_space<vmem>>, vector<1x8x8x128xf32>,
    return
  }
  func.func @transform_0(%arg0: i32) -> (i32, i32, i32, i32) {
    %c0_i32 = arith.constant 0 : i32
    %c0_i32_0 = arith.constant 0 : i32
    %c0_i32_1 = arith.constant 0 : i32
    %c0_i32_2 = arith.constant 0 : i32
    return %arg0, %c0_i32, %c0_i32_0, %c0_i32_1 : i32, i32, i32, i32
  }
  func.func @transform_1(%arg0: i32) -> (i32, i32) {
    %c0_i32 = arith.constant 0 : i32
    %c0_i32_0 = arith.constant 0 : i32
    %c0_i32_1 = arith.constant 0 : i32
    return %c0_i32, %c0_i32_0 : i32, i32
  }
  func.func @transform_2(%arg0: i32) -> (i32, i32) {
    %c0_i32 = arith.constant 0 : i32
    %c0_i32_0 = arith.constant 0 : i32
    %c0_i32_1 = arith.constant 0 : i32
    return %c0_i32, %c0_i32_0 : i32, i32
  }
  func.func @transform_3(%arg0: i32) -> (i32, i32, i32, i32) {
    %c0_i32 = arith.constant 0 : i32
    %c0_i32_0 = arith.constant 0 : i32
    %c0_i32_1 = arith.constant 0 : i32
    %c0_i32_2 = arith.constant 0 : i32
    return %arg0, %c0_i32, %c0_i32_0, %c0_i32_1 : i32, i32, i32, i32
  }
}

</mosaic_0001>

<llo_original>
// kernel: block_forward.5
$region0: #{block_forward.5}
  #allocation0 [shape = 'u32[]', space=smem, size = 0x4, offset = 0x4, fixed_abs, tag = 'smem constant byte address 0x4 - core index']
  #allocation1 [shape = 'u32[72,128]{1,0:T(1,128)}', space=vmem, size = 0x9000, scoped, tag = 'internal scratch']
  %s0 = inlined_call_operand.vmem [shape: f32[2,8,8,128], index: 0, kind: input, shape index: {}]
  %s1 = inlined_call_operand.vmem [shape: f32[1,128], index: 1, kind: input, shape index: {}]
  %s2 = inlined_call_operand.vmem [shape: f32[1,128], index: 2, kind: input, shape index: {}]
  %s3 = inlined_call_operand.vmem [shape: f32[2,8,8,128], index: 3, kind: output, shape index: {}]
  %s4 = sld [smem:[#allocation0]]
  $region45: #{block_forward.5} parent=0
    _
  %s6 = ssub.s32 1, %s4
  %s7 = scalar_select 0, %s6, %s4
  loop: start=0, step=1, limit=4
  $region2: #{block_forward.5} parent=0 // loop_pre_header
    _
  $region3: #{block_forward.5} parent=0 // loop_header
    %s9 = sphi 0, %s13
    %p10 = scmp.ge.s32.totalorder %s9, 4
    %s19 = sphi 0, %s21
    %s22 = sphi 0, %s19
    %s23 = sphi 0, %s22
    %s39 = sphi 0, %s23
    %s43 = sphi 0, %s43
    %s45 = sphi 0, %s43
    %s46 = sphi 0, %s45
    %s60 = sphi 0, %s46
    %s64 = sphi 0, %s64
    %s66 = sphi 0, %s64
    %s67 = sphi 0, %s66
    %s81 = sphi 0, %s67
    %s87 = sphi 0, %s89
    %s90 = sphi 0, %s87
    %s91 = sphi 0, %s90
    %s107 = sphi 0, %s91
  $region4: #{block_forward.5} parent=0 // loop_header_branch
    %12 = sbr.rel (%p10) target = $region8
  $region5: #{block_forward.5} parent=0 // loop_body
    %s14 = ssub.s32 %s9, 1
    %s15 = ssub.s32 %s9, 2
    %s16 = sadd.s32 %s9, 1
    %s17 = ssub.s32 %s9, %s16
    %p18 = scmp.eq.s32.totalorder %s17, 0
    %s20 = sadd.s32 %s19, 1
    %s21 = scalar_select %p18, %s19, %s20
    %p24 = pneg %p18
    %p25 = scmp.eq.s32.totalorder %s9, 1
    %p26 = por %p24, %p25
    %p27 = scmp.ne.s32.totalorder %s19, %s22
    %p28 = scmp.eq.s32.totalorder %s9, 0
    %p29 = por %p27, %p28
    %p30 = scmp.ne.s32.totalorder %s19, %s22
    %p31 = scmp.eq.s32.totalorder %s14, 1
    %p32 = por %p30, %p31
    %p33 = scmp.ne.s32.totalorder %s22, %s23
    %p34 = scmp.eq.s32.totalorder %s14, 0
    %p35 = por %p33, %p34
    %p36 = scmp.ne.s32.totalorder %s22, %s23
    %p37 = scmp.eq.s32.totalorder %s15, 1
    %p38 = por %p36, %p37
    %p40 = scmp.ne.s32.totalorder %s23, %s39
    %p41 = scmp.eq.s32.totalorder %s15, 0
    %p42 = por %p40, %p41
    %s44 = sadd.s32 %s43, 1
    %p47 = scmp.eq.s32.totalorder %s9, 1
    %p48 = scmp.ne.s32.totalorder %s43, %s45
    %p49 = scmp.eq.s32.totalorder %s9, 0
    %p50 = por %p48, %p49
    %p51 = scmp.ne.s32.totalorder %s43, %s45
    %p52 = scmp.eq.s32.totalorder %s14, 1
    %p53 = por %p51, %p52
    %p54 = scmp.ne.s32.totalorder %s45, %s46
    %p55 = scmp.eq.s32.totalorder %s14, 0
    %p56 = por %p54, %p55
    %p57 = scmp.ne.s32.totalorder %s45, %s46
    %p58 = scmp.eq.s32.totalorder %s15, 1
    %p59 = por %p57, %p58
    %p61 = scmp.ne.s32.totalorder %s46, %s60
    %p62 = scmp.eq.s32.totalorder %s15, 0
    %p63 = por %p61, %p62
    %s65 = sadd.s32 %s64, 1
    %p68 = scmp.eq.s32.totalorder %s9, 1
    %p69 = scmp.ne.s32.totalorder %s64, %s66
    %p70 = scmp.eq.s32.totalorder %s9, 0
    %p71 = por %p69, %p70
    %p72 = scmp.ne.s32.totalorder %s64, %s66
    %p73 = scmp.eq.s32.totalorder %s14, 1
    %p74 = por %p72, %p73
    %p75 = scmp.ne.s32.totalorder %s66, %s67
    %p76 = scmp.eq.s32.totalorder %s14, 0
    %p77 = por %p75, %p76
    %p78 = scmp.ne.s32.totalorder %s66, %s67
    %p79 = scmp.eq.s32.totalorder %s15, 1
    %p80 = por %p78, %p79
    %p82 = scmp.ne.s32.totalorder %s67, %s81
    %p83 = scmp.eq.s32.totalorder %s15, 0
    %p84 = por %p82, %p83
    %s85 = ssub.s32 %s9, %s16
    %p86 = scmp.eq.s32.totalorder %s85, 0
    %s88 = sadd.s32 %s87, 1
    %s89 = scalar_select %p86, %s87, %s88
    %p92 = pneg %p86
    %p93 = scmp.eq.s32.totalorder %s9, 1
    %p94 = por %p92, %p93
    %p95 = scmp.ne.s32.totalorder %s87, %s90
    %p96 = scmp.eq.s32.totalorder %s9, 0
    %p97 = por %p95, %p96
    %p98 = scmp.ne.s32.totalorder %s87, %s90
    %p99 = scmp.eq.s32.totalorder %s14, 1
    %p100 = por %p98, %p99
    %p101 = scmp.ne.s32.totalorder %s90, %s91
    %p102 = scmp.eq.s32.totalorder %s14, 0
    %p103 = por %p101, %p102
    %p104 = scmp.ne.s32.totalorder %s90, %s91
    %p105 = scmp.eq.s32.totalorder %s15, 1
    %p106 = por %p104, %p105
    %p108 = scmp.ne.s32.totalorder %s91, %s107
    %p109 = scmp.eq.s32.totalorder %s15, 0
    %p110 = por %p108, %p109
    %p111 = scmp.le.s32.totalorder 1, %s9
    %p112 = scmp.lt.s32.totalorder %s9, 3
    %p113 = pnand %p111, %p112
    %p114 = pneg %p113
    // Predicated region
    $region9: #{block_forward.5} parent=5 // pred_check
      _
    $region10: #{block_forward.5} parent=5 // pred_check_branch
      %116 = sbr.rel (%p113) target = $region12
    $region11: #{block_forward.5} parent=5 // pred_region
      %s117 = ssub.s32 %s9, 1
      // Predicated region
      $region13: #{block_forward.5} parent=11 // pred_check
        %p118 = pneg %p56
      $region14: #{block_forward.5} parent=11 // pred_check_branch
        %120 = sbr.rel (%p118) target = $region16
      $region15: #{block_forward.5} parent=11 // pred_region
        _
      $region16: #{block_forward.5} parent=11 // pred_fallthru
        _
      // Predicated region
      $region17: #{block_forward.5} parent=11 // pred_check
        %p121 = pneg %p77
      $region18: #{block_forward.5} parent=11 // pred_check_branch
        %123 = sbr.rel (%p121) target = $region20
      $region19: #{block_forward.5} parent=11 // pred_region
        _
      $region20: #{block_forward.5} parent=11 // pred_fallthru
        _
    $region12: #{block_forward.5} parent=5 // pred_fallthru
      _
    %p124 = scmp.lt.s32.totalorder %s9, 2
    // Predicated region
    $region21: #{block_forward.5} parent=5 // pred_check
      %p125 = pneg %p124
    $region22: #{block_forward.5} parent=5 // pred_check_branch
      %127 = sbr.rel (%p125) target = $region24
    $region23: #{block_forward.5} parent=5 // pred_region
      // Predicated region
      $region25: #{block_forward.5} parent=23 // pred_check
        %p128 = pneg %p29
      $region26: #{block_forward.5} parent=23 // pred_check_branch
        %130 = sbr.rel (%p128) target = $region28
      $region27: #{block_forward.5} parent=23 // pred_region
        %p131 = scmp.lt.s32.totalorder %s9, 1
        %s132 = scalar_select %p131, %s9, 1
        %s133 = smul.addr %s132, 8
        %s134 = smul.addr %s133, 8
        %s135 = scalar_lea.vmem %s0, %s134
      $region28: #{block_forward.5} parent=23 // pred_fallthru
        _
    $region24: #{block_forward.5} parent=5 // pred_fallthru
      _
    %p136 = scmp.le.s32.totalorder 1, %s9
    %p137 = scmp.lt.s32.totalorder %s9, 3
    %p138 = pnand %p136, %p137
    %p139 = pneg %p138
    // Predicated region
    $region29: #{block_forward.5} parent=5 // pred_check
      _
    $region30: #{block_forward.5} parent=5 // pred_check_branch
      %141 = sbr.rel (%p138) target = $region32
    $region31: #{block_forward.5} parent=5 // pred_region
      %s142 = ssub.s32 %s9, 1
      %p143 = scmp.lt.s32.totalorder %s14, 1
      %s144 = scalar_select %p143, %s14, 1
      %s145 = smul.addr %s144, 8
      %s146 = smul.addr %s145, 8
      %s147 = scalar_lea.vmem %s0, %s146
      %p148 = pneg %p35
      %p149 = pneg %p32
      %p150 = pneg %p56
      %p151 = pneg %p53
      %p152 = pneg %p77
      %p153 = pneg %p74
      %p154 = pneg %p103
      %p155 = pneg %p100
      %p156 = scmp.lt.s32.totalorder %s14, 1
      %s157 = scalar_select %p156, %s14, 1
      %s158 = smul.addr %s157, 8
      %s159 = smul.addr %s158, 8
      %s160 = scalar_lea.vmem %s3, %s159
      %p161 = scmp.lt.s32.totalorder %s14, 1
      %s162 = scalar_select %p161, %s14, 1
      %s163 = smul.addr %s162, 8
      %s164 = smul.addr %s163, 8
      %s165 = scalar_lea.vmem %s0, %s164
      %p166 = scmp.lt.s32.totalorder %s14, 1
      %s167 = scalar_select %p166, %s14, 1
      %s168 = smul.addr %s167, 8
      %s169 = smul.addr %s168, 8
      %s170 = scalar_lea.vmem %s3, %s169
      %v171 = vld [vmem:[%s165] sm:$0xff]
      %v172 = vld [vmem:[%s165 + $0x8] sm:$0xff]
      %v173 = vld [vmem:[%s165 + $0x10] sm:$0xff]
      %v174 = vld [vmem:[%s165 + $0x18] sm:$0xff]
      %v175 = vld [vmem:[%s165 + $0x20] sm:$0xff]
      %v176 = vld [vmem:[%s165 + $0x28] sm:$0xff]
      %v177 = vld [vmem:[%s165 + $0x30] sm:$0xff]
      %v178 = vld [vmem:[%s165 + $0x38] sm:$0xff]
      %v179 = vld [vmem:[%s1] sm:$0x1]
      %v181 = vperm.slane %v179, 0
      %v183 = vmul.f32 %v171, %v181
      %v184 = vmul.f32 %v172, %v181
      %v185 = vmul.f32 %v173, %v181
      %v186 = vmul.f32 %v174, %v181
      %v187 = vmul.f32 %v175, %v181
      %v188 = vmul.f32 %v176, %v181
      %v189 = vmul.f32 %v177, %v181
      %v190 = vmul.f32 %v178, %v181
      %v191 = vld [vmem:[%s2] sm:$0x1]
      %v193 = vperm.slane %v191, 0
      %v195 = vadd.f32 %v183, %v193
      %v196 = vadd.f32 %v184, %v193
      %v197 = vadd.f32 %v185, %v193
      %v198 = vadd.f32 %v186, %v193
      %v199 = vadd.f32 %v187, %v193
      %v200 = vadd.f32 %v188, %v193
      %v201 = vadd.f32 %v189, %v193
      %v202 = vadd.f32 %v190, %v193
      %v203 = vmax.f32 %v195, 0.0
      %v204 = vmax.f32 %v196, 0.0
      %v205 = vmax.f32 %v197, 0.0
      %v206 = vmax.f32 %v198, 0.0
      %v207 = vmax.f32 %v199, 0.0
      %v208 = vmax.f32 %v200, 0.0
      %v209 = vmax.f32 %v201, 0.0
      %v210 = vmax.f32 %v202, 0.0
      %211 = vst [vmem:[%s170] sm:$0xff] %v203
      %212 = vst [vmem:[%s170 + $0x8] sm:$0xff] %v204
      %213 = vst [vmem:[%s170 + $0x10] sm:$0xff] %v205
      %214 = vst [vmem:[%s170 + $0x18] sm:$0xff] %v206
      %215 = vst [vmem:[%s170 + $0x20] sm:$0xff] %v207
      %216 = vst [vmem:[%s170 + $0x28] sm:$0xff] %v208
      %217 = vst [vmem:[%s170 + $0x30] sm:$0xff] %v209
      %218 = vst [vmem:[%s170 + $0x38] sm:$0xff] %v210
      %p219 = scmp.lt.s32.totalorder %s14, 1
      %s220 = scalar_select %p219, %s14, 1
      %s221 = smul.addr %s220, 8
      %s222 = smul.addr %s221, 8
      %s223 = scalar_lea.vmem %s3, %s222
      // Predicated region
      $region33: #{block_forward.5} parent=31 // pred_check
        %p224 = pneg %p100
      $region34: #{block_forward.5} parent=31 // pred_check_branch
        %226 = sbr.rel (%p224) target = $region36
      $region35: #{block_forward.5} parent=31 // pred_region
        _
      $region36: #{block_forward.5} parent=31 // pred_fallthru
        _
    $region32: #{block_forward.5} parent=5 // pred_fallthru
      _
    %p227 = scmp.le.s32.totalorder 2, %s9
    // Predicated region
    $region37: #{block_forward.5} parent=5 // pred_check
      %p228 = pneg %p227
    $region38: #{block_forward.5} parent=5 // pred_check_branch
      %230 = sbr.rel (%p228) target = $region40
    $region39: #{block_forward.5} parent=5 // pred_region
      %s231 = ssub.s32 %s9, 2
      // Predicated region
      $region41: #{block_forward.5} parent=39 // pred_check
        %p232 = pneg %p106
      $region42: #{block_forward.5} parent=39 // pred_check_branch
        %234 = sbr.rel (%p232) target = $region44
      $region43: #{block_forward.5} parent=39 // pred_region
        %p235 = scmp.lt.s32.totalorder %s15, 1
        %s236 = scalar_select %p235, %s15, 1
        %s237 = smul.addr %s236, 8
        %s238 = smul.addr %s237, 8
        %s239 = scalar_lea.vmem %s3, %s238
      $region44: #{block_forward.5} parent=39 // pred_fallthru
        _
    $region40: #{block_forward.5} parent=5 // pred_fallthru
      _
  $region6: #{block_forward.5} parent=0 // loop_footer
    %s13 = sadd.s32 1, %s9
  $region7: #{block_forward.5} parent=0 // loop_footer_branch
    %8 = sbr.rel target = $region3
  $region8: #{block_forward.5} parent=0 // loop_exit
    _

// kernel: block_forward.3
$region0: #{block_forward.3}
  #allocation0 [shape = 'u32[]', space=smem, size = 0x4, offset = 0x4, fixed_abs, tag = 'smem constant byte address 0x4 - core index']
  #allocation1 [shape = 'u32[72,128]{1,0:T(1,128)}', space=vmem, size = 0x9000, scoped, tag = 'internal scratch']
  %s0 = inlined_call_operand.vmem [shape: f32[2,18,18,128], index: 0, kind: input, shape index: {}]
  %s1 = inlined_call_operand.vmem [shape: bf16[3,3,128,128], index: 1, kind: input, shape index: {}]
  %s2 = inlined_call_operand.vmem [shape: f32[1,128], index: 2, kind: input, shape index: {}]
  %s3 = inlined_call_operand.vmem [shape: f32[2,16,16,128], index: 3, kind: output, shape index: {0}]
  %s4 = inlined_call_operand.vmem [shape: f32[2,2,128], index: 4, kind: output, shape index: {1}]
  %5 = xla_tuple %s3, %s4
  %s6 = sld [smem:[#allocation0]]
  $region53: #{block_forward.3} parent=0
    _
  %s8 = ssub.s32 1, %s6
  %s9 = scalar_select 0, %s8, %s6
  loop: start=0, step=1, limit=4
  $region2: #{block_forward.3} parent=0 // loop_pre_header
    _
  $region3: #{block_forward.3} parent=0 // loop_header
    %s11 = sphi 0, %s15
    %p12 = scmp.ge.s32.totalorder %s11, 4
    %s21 = sphi 0, %s23
    %s24 = sphi 0, %s21
    %s25 = sphi 0, %s24
    %s41 = sphi 0, %s25
    %s45 = sphi 0, %s45
    %s47 = sphi 0, %s45
    %s48 = sphi 0, %s47
    %s62 = sphi 0, %s48
    %s66 = sphi 0, %s66
    %s68 = sphi 0, %s66
    %s69 = sphi 0, %s68
    %s83 = sphi 0, %s69
    %s89 = sphi 0, %s91
    %s92 = sphi 0, %s89
    %s93 = sphi 0, %s92
    %s109 = sphi 0, %s93
    %s115 = sphi 0, %s117
    %s118 = sphi 0, %s115
    %s119 = sphi 0, %s118
    %s135 = sphi 0, %s119
  $region4: #{block_forward.3} parent=0 // loop_header_branch
    %14 = sbr.rel (%p12) target = $region8
  $region5: #{block_forward.3} parent=0 // loop_body
    %s16 = ssub.s32 %s11, 1
    %s17 = ssub.s32 %s11, 2
    %s18 = sadd.s32 %s11, 1
    %s19 = ssub.s32 %s11, %s18
    %p20 = scmp.eq.s32.totalorder %s19, 0
    %s22 = sadd.s32 %s21, 1
    %s23 = scalar_select %p20, %s21, %s22
    %p26 = pneg %p20
    %p27 = scmp.eq.s32.totalorder %s11, 1
    %p28 = por %p26, %p27
    %p29 = scmp.ne.s32.totalorder %s21, %s24
    %p30 = scmp.eq.s32.totalorder %s11, 0
    %p31 = por %p29, %p30
    %p32 = scmp.ne.s32.totalorder %s21, %s24
    %p33 = scmp.eq.s32.totalorder %s16, 1
    %p34 = por %p32, %p33
    %p35 = scmp.ne.s32.totalorder %s24, %s25
    %p36 = scmp.eq.s32.totalorder %s16, 0
    %p37 = por %p35, %p36
    %p38 = scmp.ne.s32.totalorder %s24, %s25
    %p39 = scmp.eq.s32.totalorder %s17, 1
    %p40 = por %p38, %p39
    %p42 = scmp.ne.s32.totalorder %s25, %s41
    %p43 = scmp.eq.s32.totalorder %s17, 0
    %p44 = por %p42, %p43
    %s46 = sadd.s32 %s45, 1
    %p49 = scmp.eq.s32.totalorder %s11, 1
    %p50 = scmp.ne.s32.totalorder %s45, %s47
    %p51 = scmp.eq.s32.totalorder %s11, 0
    %p52 = por %p50, %p51
    %p53 = scmp.ne.s32.totalorder %s45, %s47
    %p54 = scmp.eq.s32.totalorder %s16, 1
    %p55 = por %p53, %p54
    %p56 = scmp.ne.s32.totalorder %s47, %s48
    %p57 = scmp.eq.s32.totalorder %s16, 0
    %p58 = por %p56, %p57
    %p59 = scmp.ne.s32.totalorder %s47, %s48
    %p60 = scmp.eq.s32.totalorder %s17, 1
    %p61 = por %p59, %p60
    %p63 = scmp.ne.s32.totalorder %s48, %s62
    %p64 = scmp.eq.s32.totalorder %s17, 0
    %p65 = por %p63, %p64
    %s67 = sadd.s32 %s66, 1
    %p70 = scmp.eq.s32.totalorder %s11, 1
    %p71 = scmp.ne.s32.totalorder %s66, %s68
    %p72 = scmp.eq.s32.totalorder %s11, 0
    %p73 = por %p71, %p72
    %p74 = scmp.ne.s32.totalorder %s66, %s68
    %p75 = scmp.eq.s32.totalorder %s16, 1
    %p76 = por %p74, %p75
    %p77 = scmp.ne.s32.totalorder %s68, %s69
    %p78 = scmp.eq.s32.totalorder %s16, 0
    %p79 = por %p77, %p78
    %p80 = scmp.ne.s32.totalorder %s68, %s69
    %p81 = scmp.eq.s32.totalorder %s17, 1
    %p82 = por %p80, %p81
    %p84 = scmp.ne.s32.totalorder %s69, %s83
    %p85 = scmp.eq.s32.totalorder %s17, 0
    %p86 = por %p84, %p85
    %s87 = ssub.s32 %s11, %s18
    %p88 = scmp.eq.s32.totalorder %s87, 0
    %s90 = sadd.s32 %s89, 1
    %s91 = scalar_select %p88, %s89, %s90
    %p94 = pneg %p88
    %p95 = scmp.eq.s32.totalorder %s11, 1
    %p96 = por %p94, %p95
    %p97 = scmp.ne.s32.totalorder %s89, %s92
    %p98 = scmp.eq.s32.totalorder %s11, 0
    %p99 = por %p97, %p98
    %p100 = scmp.ne.s32.totalorder %s89, %s92
    %p101 = scmp.eq.s32.totalorder %s16, 1
    %p102 = por %p100, %p101
    %p103 = scmp.ne.s32.totalorder %s92, %s93
    %p104 = scmp.eq.s32.totalorder %s16, 0
    %p105 = por %p103, %p104
    %p106 = scmp.ne.s32.totalorder %s92, %s93
    %p107 = scmp.eq.s32.totalorder %s17, 1
    %p108 = por %p106, %p107
    %p110 = scmp.ne.s32.totalorder %s93, %s109
    %p111 = scmp.eq.s32.totalorder %s17, 0
    %p112 = por %p110, %p111
    %s113 = ssub.s32 %s11, %s18
    %p114 = scmp.eq.s32.totalorder %s113, 0
    %s116 = sadd.s32 %s115, 1
    %s117 = scalar_select %p114, %s115, %s116
    %p120 = pneg %p114
    %p121 = scmp.eq.s32.totalorder %s11, 1
    %p122 = por %p120, %p121
    %p123 = scmp.ne.s32.totalorder %s115, %s118
    %p124 = scmp.eq.s32.totalorder %s11, 0
    %p125 = por %p123, %p124
    %p126 = scmp.ne.s32.totalorder %s115, %s118
    %p127 = scmp.eq.s32.totalorder %s16, 1
    %p128 = por %p126, %p127
    %p129 = scmp.ne.s32.totalorder %s118, %s119
    %p130 = scmp.eq.s32.totalorder %s16, 0
    %p131 = por %p129, %p130
    %p132 = scmp.ne.s32.totalorder %s118, %s119
    %p133 = scmp.eq.s32.totalorder %s17, 1
    %p134 = por %p132, %p133
    %p136 = scmp.ne.s32.totalorder %s119, %s135
    %p137 = scmp.eq.s32.totalorder %s17, 0
    %p138 = por %p136, %p137
    %p139 = scmp.le.s32.totalorder 1, %s11
    %p140 = scmp.lt.s32.totalorder %s11, 3
    %p141 = pnand %p139, %p140
    %p142 = pneg %p141
    // Predicated region
    $region9: #{block_forward.3} parent=5 // pred_check
      _
    $region10: #{block_forward.3} parent=5 // pred_check_branch
      %144 = sbr.rel (%p141) target = $region12
    $region11: #{block_forward.3} parent=5 // pred_region
      %s145 = ssub.s32 %s11, 1
      // Predicated region
      $region13: #{block_forward.3} parent=11 // pred_check
        %p146 = pneg %p58
      $region14: #{block_forward.3} parent=11 // pred_check_branch
        %148 = sbr.rel (%p146) target = $region16
      $region15: #{block_forward.3} parent=11 // pred_region
        _
      $region16: #{block_forward.3} parent=11 // pred_fallthru
        _
      // Predicated region
      $region17: #{block_forward.3} parent=11 // pred_check
        %p149 = pneg %p79
      $region18: #{block_forward.3} parent=11 // pred_check_branch
        %151 = sbr.rel (%p149) target = $region20
      $region19: #{block_forward.3} parent=11 // pred_region
        _
      $region20: #{block_forward.3} parent=11 // pred_fallthru
        _
    $region12: #{block_forward.3} parent=5 // pred_fallthru
      _
    %p152 = scmp.lt.s32.totalorder %s11, 2
    // Predicated region
    $region21: #{block_forward.3} parent=5 // pred_check
      %p153 = pneg %p152
    $region22: #{block_forward.3} parent=5 // pred_check_branch
      %155 = sbr.rel (%p153) target = $region24
    $region23: #{block_forward.3} parent=5 // pred_region
      // Predicated region
      $region25: #{block_forward.3} parent=23 // pred_check
        %p156 = pneg %p31
      $region26: #{block_forward.3} parent=23 // pred_check_branch
        %158 = sbr.rel (%p156) target = $region28
      $region27: #{block_forward.3} parent=23 // pred_region
        %p159 = scmp.lt.s32.totalorder %s11, 1
        %s160 = scalar_select %p159, %s11, 1
        %s161 = smul.addr %s160, 54
        %s162 = smul.addr %s161, 8
        %s163 = scalar_lea.vmem %s0, %s162
      $region28: #{block_forward.3} parent=23 // pred_fallthru
        _
    $region24: #{block_forward.3} parent=5 // pred_fallthru
      _
    %p164 = scmp.le.s32.totalorder 1, %s11
    %p165 = scmp.lt.s32.totalorder %s11, 3
    %p166 = pnand %p164, %p165
    %p167 = pneg %p166
    // Predicated region
    $region29: #{block_forward.3} parent=5 // pred_check
      _
    $region30: #{block_forward.3} parent=5 // pred_check_branch
      %169 = sbr.rel (%p166) target = $region32
    $region31: #{block_forward.3} parent=5 // pred_region
      %s170 = ssub.s32 %s11, 1
      %p171 = scmp.lt.s32.totalorder %s16, 1
      %s172 = scalar_select %p171, %s16, 1
      %s173 = smul.addr %s172, 54
      %s174 = smul.addr %s173, 8
      %s175 = scalar_lea.vmem %s0, %s174
      %p176 = pneg %p37
      %p177 = pneg %p34
      %p178 = pneg %p58
      %p179 = pneg %p55
      %p180 = pneg %p79
      %p181 = pneg %p76
      %p182 = pneg %p105
      %p183 = pneg %p102
      %p184 = scmp.lt.s32.totalorder %s16, 1
      %s185 = scalar_select %p184, %s16, 1
      %s186 = smul.addr %s185, 32
      %s187 = smul.addr %s186, 8
      %s188 = scalar_lea.vmem %s3, %s187
      %p189 = pneg %p131
      %p190 = pneg %p128
      %p191 = scmp.lt.s32.totalorder %s16, 1
      %s192 = scalar_select %p191, %s16, 1
      %s193 = smul.addr %s192, 2
      %s194 = scalar_lea.vmem %s4, %s193
      %p195 = scmp.lt.s32.totalorder %s16, 1
      %s196 = scalar_select %p195, %s16, 1
      %s197 = smul.addr %s196, 54
      %s198 = smul.addr %s197, 8
      %s199 = scalar_lea.vmem %s0, %s198
      %p200 = scmp.lt.s32.totalorder %s16, 1
      %s201 = scalar_select %p200, %s16, 1
      %s202 = smul.addr %s201, 32
      %s203 = smul.addr %s202, 8
      %s204 = scalar_lea.vmem %s3, %s203
      %p205 = scmp.lt.s32.totalorder %s16, 1
      %s206 = scalar_select %p205, %s16, 1
      %s207 = smul.addr %s206, 2
      %s208 = scalar_lea.vmem %s4, %s207
      %v209 = vld [vmem:[%s199] sm:$0xff]
      %v210 = vld [vmem:[%s199 + $0x8] sm:$0xff]
      %v211 = vld [vmem:[%s199 + $0x18] sm:$0xff]
      %v212 = vld [vmem:[%s199 + $0x20] sm:$0xff]
      %v213 = vld [vmem:[%s199 + $0x30] sm:$0xff]
      %v214 = vld [vmem:[%s199 + $0x38] sm:$0xff]
      %v215 = vld [vmem:[%s199 + $0x48] sm:$0xff]
      %v216 = vld [vmem:[%s199 + $0x50] sm:$0xff]
      %v217 = vld [vmem:[%s199 + $0x60] sm:$0xff]
      %v218 = vld [vmem:[%s199 + $0x68] sm:$0xff]
      %v219 = vld [vmem:[%s199 + $0x78] sm:$0xff]
      %v220 = vld [vmem:[%s199 + $0x80] sm:$0xff]
      %v221 = vld [vmem:[%s199 + $0x90] sm:$0xff]
      %v222 = vld [vmem:[%s199 + $0x98] sm:$0xff]
      %v223 = vld [vmem:[%s199 + $0xa8] sm:$0xff]
      %v224 = vld [vmem:[%s199 + $0xb0] sm:$0xff]
      %v225 = vld [vmem:[%s199 + $0xc0] sm:$0xff]
      %v226 = vld [vmem:[%s199 + $0xc8] sm:$0xff]
      %v227 = vld [vmem:[%s199 + $0xd8] sm:$0xff]
      %v228 = vld [vmem:[%s199 + $0xe0] sm:$0xff]
      %v229 = vld [vmem:[%s199 + $0xf0] sm:$0xff]
      %v230 = vld [vmem:[%s199 + $0xf8] sm:$0xff]
      %v231 = vld [vmem:[%s199 + $0x108] sm:$0xff]
      %v232 = vld [vmem:[%s199 + $0x110] sm:$0xff]
      %v233 = vld [vmem:[%s199 + $0x120] sm:$0xff]
      %v234 = vld [vmem:[%s199 + $0x128] sm:$0xff]
      %v235 = vld [vmem:[%s199 + $0x138] sm:$0xff]
      %v236 = vld [vmem:[%s199 + $0x140] sm:$0xff]
      %v237 = vld [vmem:[%s199 + $0x150] sm:$0xff]
      %v238 = vld [vmem:[%s199 + $0x158] sm:$0xff]
      %v239 = vld [vmem:[%s199 + $0x168] sm:$0xff]
      %v240 = vld [vmem:[%s199 + $0x170] sm:$0xff]
      %v241 = vpack.c.bf16 %v210, %v209
      %v242 = vpack.c.bf16 %v212, %v211
      %v243 = vpack.c.bf16 %v214, %v213
      %v244 = vpack.c.bf16 %v216, %v215
      %v245 = vpack.c.bf16 %v218, %v217
      %v246 = vpack.c.bf16 %v220, %v219
      %v247 = vpack.c.bf16 %v222, %v221
      %v248 = vpack.c.bf16 %v224, %v223
      %v249 = vpack.c.bf16 %v226, %v225
      %v250 = vpack.c.bf16 %v228, %v227
      %v251 = vpack.c.bf16 %v230, %v229
      %v252 = vpack.c.bf16 %v232, %v231
      %v253 = vpack.c.bf16 %v234, %v233
      %v254 = vpack.c.bf16 %v236, %v235
      %v255 = vpack.c.bf16 %v238, %v237
      %v256 = vpack.c.bf16 %v240, %v239
      %v257 = vld [vmem:[%s1] sm:$0xf]
      %v258 = vld [vmem:[%s1 + $0x4] sm:$0xf]
      %v259 = vld [vmem:[%s1 + $0x8] sm:$0xf]
      %v260 = vld [vmem:[%s1 + $0xc] sm:$0xf]
      %v261 = vld [vmem:[%s1 + $0x10] sm:$0xf]
      %v262 = vld [vmem:[%s1 + $0x14] sm:$0xf]
      %v263 = vld [vmem:[%s1 + $0x18] sm:$0xf]
      %v264 = vld [vmem:[%s1 + $0x1c] sm:$0xf]
      %v265 = vld [vmem:[%s1 + $0x20] sm:$0xf]
      %v266 = vld [vmem:[%s1 + $0x24] sm:$0xf]
      %v267 = vld [vmem:[%s1 + $0x28] sm:$0xf]
      %v268 = vld [vmem:[%s1 + $0x2c] sm:$0xf]
      %v269 = vld [vmem:[%s1 + $0x30] sm:$0xf]
      %v270 = vld [vmem:[%s1 + $0x34] sm:$0xf]
      %v271 = vld [vmem:[%s1 + $0x38] sm:$0xf]
      %v272 = vld [vmem:[%s1 + $0x3c] sm:$0xf]
      %v273 = vld [vmem:[%s199 + $0x1] sm:$0xff]
      %v274 = vld [vmem:[%s199 + $0x9] sm:$0xff]
      %v275 = vld [vmem:[%s199 + $0x19] sm:$0xff]
      %v276 = vld [vmem:[%s199 + $0x21] sm:$0xff]
      %v277 = vld [vmem:[%s199 + $0x31] sm:$0xff]
      %v278 = vld [vmem:[%s199 + $0x39] sm:$0xff]
      %v279 = vld [vmem:[%s199 + $0x49] sm:$0xff]
      %v280 = vld [vmem:[%s199 + $0x51] sm:$0xff]
      %v281 = vld [vmem:[%s199 + $0x61] sm:$0xff]
      %v282 = vld [vmem:[%s199 + $0x69] sm:$0xff]
      %v283 = vld [vmem:[%s199 + $0x79] sm:$0xff]
      %v284 = vld [vmem:[%s199 + $0x81] sm:$0xff]
      %v285 = vld [vmem:[%s199 + $0x91] sm:$0xff]
      %v286 = vld [vmem:[%s199 + $0x99] sm:$0xff]
      %v287 = vld [vmem:[%s199 + $0xa9] sm:$0xff]
      %v288 = vld [vmem:[%s199 + $0xb1] sm:$0xff]
      %v289 = vld [vmem:[%s199 + $0xc1] sm:$0xff]
      %v290 = vld [vmem:[%s199 + $0xc9] sm:$0xff]
      %v291 = vld [vmem:[%s199 + $0xd9] sm:$0xff]
      %v292 = vld [vmem:[%s199 + $0xe1] sm:$0xff]
      %v293 = vld [vmem:[%s199 + $0xf1] sm:$0xff]
      %v294 = vld [vmem:[%s199 + $0xf9] sm:$0xff]
      %v295 = vld [vmem:[%s199 + $0x109] sm:$0xff]
      %v296 = vld [vmem:[%s199 + $0x111] sm:$0xff]
      %v297 = vld [vmem:[%s199 + $0x121] sm:$0xff]
      %v298 = vld [vmem:[%s199 + $0x129] sm:$0xff]
      %v299 = vld [vmem:[%s199 + $0x139] sm:$0xff]
      %v300 = vld [vmem:[%s199 + $0x141] sm:$0xff]
      %v301 = vld [vmem:[%s199 + $0x151] sm:$0xff]
      %v302 = vld [vmem:[%s199 + $0x159] sm:$0xff]
      %v303 = vld [vmem:[%s199 + $0x169] sm:$0xff]
      %v304 = vld [vmem:[%s199 + $0x171] sm:$0xff]
      %v305 = vpack.c.bf16 %v274, %v273
      %v306 = vpack.c.bf16 %v276, %v275
      %v307 = vpack.c.bf16 %v278, %v277
      %v308 = vpack.c.bf16 %v280, %v279
      %v309 = vpack.c.bf16 %v282, %v281
      %v310 = vpack.c.bf16 %v284, %v283
      %v311 = vpack.c.bf16 %v286, %v285
      %v312 = vpack.c.bf16 %v288, %v287
      %v313 = vpack.c.bf16 %v290, %v289
      %v314 = vpack.c.bf16 %v292, %v291
      %v315 = vpack.c.bf16 %v294, %v293
      %v316 = vpack.c.bf16 %v296, %v295
      %v317 = vpack.c.bf16 %v298, %v297
      %v318 = vpack.c.bf16 %v300, %v299
      %v319 = vpack.c.bf16 %v302, %v301
      %v320 = vpack.c.bf16 %v304, %v303
      %s321 = scalar_lea.vmem %s1, 64
      %v322 = vld [vmem:[%s321] sm:$0xf]
      %v323 = vld [vmem:[%s321 + $0x4] sm:$0xf]
      %v324 = vld [vmem:[%s321 + $0x8] sm:$0xf]
      %v325 = vld [vmem:[%s321 + $0xc] sm:$0xf]
      %v326 = vld [vmem:[%s321 + $0x10] sm:$0xf]
      %v327 = vld [vmem:[%s321 + $0x14] sm:$0xf]
      %v328 = vld [vmem:[%s321 + $0x18] sm:$0xf]
      %v329 = vld [vmem:[%s321 + $0x1c] sm:$0xf]
      %v330 = vld [vmem:[%s321 + $0x20] sm:$0xf]
      %v331 = vld [vmem:[%s321 + $0x24] sm:$0xf]
      %v332 = vld [vmem:[%s321 + $0x28] sm:$0xf]
      %v333 = vld [vmem:[%s321 + $0x2c] sm:$0xf]
      %v334 = vld [vmem:[%s321 + $0x30] sm:$0xf]
      %v335 = vld [vmem:[%s321 + $0x34] sm:$0xf]
      %v336 = vld [vmem:[%s321 + $0x38] sm:$0xf]
      %v337 = vld [vmem:[%s321 + $0x3c] sm:$0xf]
      %v354 = vunpack.c.l.b16 %v322
      %v355 = vunpack.c.l.b16 %v323
      %v356 = vunpack.c.l.b16 %v324
      %v357 = vunpack.c.l.b16 %v325
      %v358 = vunpack.c.l.b16 %v326
      %v359 = vunpack.c.l.b16 %v327
      %v360 = vunpack.c.l.b16 %v328
      %v361 = vunpack.c.l.b16 %v329
      %v362 = vunpack.c.l.b16 %v330
      %v363 = vunpack.c.l.b16 %v331
      %v364 = vunpack.c.l.b16 %v332
      %v365 = vunpack.c.l.b16 %v333
      %v366 = vunpack.c.l.b16 %v334
      %v367 = vunpack.c.l.b16 %v335
      %v368 = vunpack.c.l.b16 %v336
      %v369 = vunpack.c.l.b16 %v337
      %v370 = vpack.c.b16 %v355, %v354
      %v371 = vpack.c.b16 %v357, %v356
      %v372 = vpack.c.b16 %v359, %v358
      %v373 = vpack.c.b16 %v361, %v360
      %v374 = vpack.c.b16 %v363, %v362
      %v375 = vpack.c.b16 %v365, %v364
      %v376 = vpack.c.b16 %v367, %v366
      %v377 = vpack.c.b16 %v369, %v368
      %386 = vmatpush.bf16.msra.mxu0 %v377
      %387 = vmatpush.bf16.msra.mxu0 %v376
      %388 = vmatpush.bf16.msra.mxu0 %v375
      %389 = vmatpush.bf16.msra.mxu0 %v374
      %390 = vmatpush.bf16.msra.mxu0 %v373
      %391 = vmatpush.bf16.msra.mxu0 %v372
      %392 = vmatpush.bf16.msra.mxu0 %v371
      %393 = vmatpush.bf16.msra.mxu0 %v370
      %394 = vmatmul.bf16.gmra.mxu0 %v305
      %v395 = vpop.f32.mrf.mxu0
      %v396 = vadd.f32 0.0, %v395
      %v397 = vpop.f32.mrf.mxu0
      %v398 = vadd.f32 0.0, %v397
      %399 = vmatmul.bf16.gmra.mxu0 %v306
      %v400 = vpop.f32.mrf.mxu0
      %v401 = vadd.f32 0.0, %v400
      %v402 = vpop.f32.mrf.mxu0
      %v403 = vadd.f32 0.0, %v402
      %404 = vmatmul.bf16.gmra.mxu0 %v307
      %v405 = vpop.f32.mrf.mxu0
      %v406 = vadd.f32 0.0, %v405
      %v407 = vpop.f32.mrf.mxu0
      %v408 = vadd.f32 0.0, %v407
      %409 = vmatmul.bf16.gmra.mxu0 %v308
      %v410 = vpop.f32.mrf.mxu0
      %v411 = vadd.f32 0.0, %v410
      %v412 = vpop.f32.mrf.mxu0
      %v413 = vadd.f32 0.0, %v412
      %414 = vmatmul.bf16.gmra.mxu0 %v309
      %v415 = vpop.f32.mrf.mxu0
      %v416 = vadd.f32 0.0, %v415
      %v417 = vpop.f32.mrf.mxu0
      %v418 = vadd.f32 0.0, %v417
      %419 = vmatmul.bf16.gmra.mxu0 %v310
      %v420 = vpop.f32.mrf.mxu0
      %v421 = vadd.f32 0.0, %v420
      %v422 = vpop.f32.mrf.mxu0
      %v423 = vadd.f32 0.0, %v422
      %424 = vmatmul.bf16.gmra.mxu0 %v311
      %v425 = vpop.f32.mrf.mxu0
      %v426 = vadd.f32 0.0, %v425
      %v427 = vpop.f32.mrf.mxu0
      %v428 = vadd.f32 0.0, %v427
      %429 = vmatmul.bf16.gmra.mxu0 %v312
      %v430 = vpop.f32.mrf.mxu0
      %v431 = vadd.f32 0.0, %v430
      %v432 = vpop.f32.mrf.mxu0
      %v433 = vadd.f32 0.0, %v432
      %434 = vmatmul.bf16.gmra.mxu0 %v313
      %v435 = vpop.f32.mrf.mxu0
      %v436 = vadd.f32 0.0, %v435
      %v437 = vpop.f32.mrf.mxu0
      %v438 = vadd.f32 0.0, %v437
      %439 = vmatmul.bf16.gmra.mxu0 %v314
      %v440 = vpop.f32.mrf.mxu0
      %v441 = vadd.f32 0.0, %v440
      %v442 = vpop.f32.mrf.mxu0
      %v443 = vadd.f32 0.0, %v442
      %444 = vmatmul.bf16.gmra.mxu0 %v315
      %v445 = vpop.f32.mrf.mxu0
      %v446 = vadd.f32 0.0, %v445
      %v447 = vpop.f32.mrf.mxu0
      %v448 = vadd.f32 0.0, %v447
      %449 = vmatmul.bf16.gmra.mxu0 %v316
      %v450 = vpop.f32.mrf.mxu0
      %v451 = vadd.f32 0.0, %v450
      %v452 = vpop.f32.mrf.mxu0
      %v453 = vadd.f32 0.0, %v452
      %454 = vmatmul.bf16.gmra.mxu0 %v317
      %v455 = vpop.f32.mrf.mxu0
      %v456 = vadd.f32 0.0, %v455
      %v457 = vpop.f32.mrf.mxu0
      %v458 = vadd.f32 0.0, %v457
      %459 = vmatmul.bf16.gmra.mxu0 %v318
      %v460 = vpop.f32.mrf.mxu0
      %v461 = vadd.f32 0.0, %v460
      %v462 = vpop.f32.mrf.mxu0
      %v463 = vadd.f32 0.0, %v462
      %464 = vmatmul.bf16.gmra.mxu0 %v319
      %v465 = vpop.f32.mrf.mxu0
      %v466 = vadd.f32 0.0, %v465
      %v467 = vpop.f32.mrf.mxu0
      %v468 = vadd.f32 0.0, %v467
      %469 = vmatmul.bf16.gmra.mxu0 %v320
      %v470 = vpop.f32.mrf.mxu0
      %v471 = vadd.f32 0.0, %v470
      %v472 = vpop.f32.mrf.mxu0
      %v473 = vadd.f32 0.0, %v472
      %474 = vdwg.mxu0
      %v491 = vunpack.c.l.b16 %v257
      %v492 = vunpack.c.l.b16 %v258
      %v493 = vunpack.c.l.b16 %v259
      %v494 = vunpack.c.l.b16 %v260
      %v495 = vunpack.c.l.b16 %v261
      %v496 = vunpack.c.l.b16 %v262
      %v497 = vunpack.c.l.b16 %v263
      %v498 = vunpack.c.l.b16 %v264
      %v499 = vunpack.c.l.b16 %v265
      %v500 = vunpack.c.l.b16 %v266
      %v501 = vunpack.c.l.b16 %v267
      %v502 = vunpack.c.l.b16 %v268
      %v503 = vunpack.c.l.b16 %v269
      %v504 = vunpack.c.l.b16 %v270
      %v505 = vunpack.c.l.b16 %v271
      %v506 = vunpack.c.l.b16 %v272
      %v507 = vpack.c.b16 %v492, %v491
      %v508 = vpack.c.b16 %v494, %v493
      %v509 = vpack.c.b16 %v496, %v495
      %v510 = vpack.c.b16 %v498, %v497
      %v511 = vpack.c.b16 %v500, %v499
      %v512 = vpack.c.b16 %v502, %v501
      %v513 = vpack.c.b16 %v504, %v503
      %v514 = vpack.c.b16 %v506, %v505
      %523 = vmatpush.bf16.msra.mxu0 %v514
      %524 = vmatpush.bf16.msra.mxu0 %v513
      %525 = vmatpush.bf16.msra.mxu0 %v512
      %526 = vmatpush.bf16.msra.mxu0 %v511
      %527 = vmatpush.bf16.msra.mxu0 %v510
      %528 = vmatpush.bf16.msra.mxu0 %v509
      %529 = vmatpush.bf16.msra.mxu0 %v508
      %530 = vmatpush.bf16.msra.mxu0 %v507
      %531 = vmatmul.bf16.gmra.mxu0 %v241
      %v532 = vpop.f32.mrf.mxu0
      %v533 = vadd.f32 %v396, %v532
      %v534 = vpop.f32.mrf.mxu0
      %v535 = vadd.f32 %v398, %v534
      %536 = vmatmul.bf16.gmra.mxu0 %v242
      %v537 = vpop.f32.mrf.mxu0
      %v538 = vadd.f32 %v401, %v537
      %v539 = vpop.f32.mrf.mxu0
      %v540 = vadd.f32 %v403, %v539
      %541 = vmatmul.bf16.gmra.mxu0 %v243
      %v542 = vpop.f32.mrf.mxu0
      %v543 = vadd.f32 %v406, %v542
      %v544 = vpop.f32.mrf.mxu0
      %v545 = vadd.f32 %v408, %v544
      %546 = vmatmul.bf16.gmra.mxu0 %v244
      %v547 = vpop.f32.mrf.mxu0
      %v548 = vadd.f32 %v411, %v547
      %v549 = vpop.f32.mrf.mxu0
      %v550 = vadd.f32 %v413, %v549
      %551 = vmatmul.bf16.gmra.mxu0 %v245
      %v552 = vpop.f32.mrf.mxu0
      %v553 = vadd.f32 %v416, %v552
      %v554 = vpop.f32.mrf.mxu0
      %v555 = vadd.f32 %v418, %v554
      %556 = vmatmul.bf16.gmra.mxu0 %v246
      %v557 = vpop.f32.mrf.mxu0
      %v558 = vadd.f32 %v421, %v557
      %v559 = vpop.f32.mrf.mxu0
      %v560 = vadd.f32 %v423, %v559
      %561 = vmatmul.bf16.gmra.mxu0 %v247
      %v562 = vpop.f32.mrf.mxu0
      %v563 = vadd.f32 %v426, %v562
      %v564 = vpop.f32.mrf.mxu0
      %v565 = vadd.f32 %v428, %v564
      %566 = vmatmul.bf16.gmra.mxu0 %v248
      %v567 = vpop.f32.mrf.mxu0
      %v568 = vadd.f32 %v431, %v567
      %v569 = vpop.f32.mrf.mxu0
      %v570 = vadd.f32 %v433, %v569
      %571 = vmatmul.bf16.gmra.mxu0 %v249
      %v572 = vpop.f32.mrf.mxu0
      %v573 = vadd.f32 %v436, %v572
      %v574 = vpop.f32.mrf.mxu0
      %v575 = vadd.f32 %v438, %v574
      %576 = vmatmul.bf16.gmra.mxu0 %v250
      %v577 = vpop.f32.mrf.mxu0
      %v578 = vadd.f32 %v441, %v577
      %v579 = vpop.f32.mrf.mxu0
      %v580 = vadd.f32 %v443, %v579
      %581 = vmatmul.bf16.gmra.mxu0 %v251
      %v582 = vpop.f32.mrf.mxu0
      %v583 = vadd.f32 %v446, %v582
      %v584 = vpop.f32.mrf.mxu0
      %v585 = vadd.f32 %v448, %v584
      %586 = vmatmul.bf16.gmra.mxu0 %v252
      %v587 = vpop.f32.mrf.mxu0
      %v588 = vadd.f32 %v451, %v587
      %v589 = vpop.f32.mrf.mxu0
      %v590 = vadd.f32 %v453, %v589
      %591 = vmatmul.bf16.gmra.mxu0 %v253
      %v592 = vpop.f32.mrf.mxu0
      %v593 = vadd.f32 %v456, %v592
      %v594 = vpop.f32.mrf.mxu0
      %v595 = vadd.f32 %v458, %v594
      %596 = vmatmul.bf16.gmra.mxu0 %v254
      %v597 = vpop.f32.mrf.mxu0
      %v598 = vadd.f32 %v461, %v597
      %v599 = vpop.f32.mrf.mxu0
      %v600 = vadd.f32 %v463, %v599
      %601 = vmatmul.bf16.gmra.mxu0 %v255
      %v602 = vpop.f32.mrf.mxu0
      %v603 = vadd.f32 %v466, %v602
      %v604 = vpop.f32.mrf.mxu0
      %v605 = vadd.f32 %v468, %v604
      %606 = vmatmul.bf16.gmra.mxu0 %v256
      %v607 = vpop.f32.mrf.mxu0
      %v608 = vadd.f32 %v471, %v607
      %v609 = vpop.f32.mrf.mxu0
      %v610 = vadd.f32 %v473, %v609
      %611 = vdwg.mxu0
      %v612 = vld [vmem:[%s199 + $0x2] sm:$0xff]
      %v613 = vld [vmem:[%s199 + $0xa] sm:$0xff]
      %v614 = vld [vmem:[%s199 + $0x1a] sm:$0xff]
      %v615 = vld [vmem:[%s199 + $0x22] sm:$0xff]
      %v616 = vld [vmem:[%s199 + $0x32] sm:$0xff]
      %v617 = vld [vmem:[%s199 + $0x3a] sm:$0xff]
      %v618 = vld [vmem:[%s199 + $0x4a] sm:$0xff]
      %v619 = vld [vmem:[%s199 + $0x52] sm:$0xff]
      %v620 = vld [vmem:[%s199 + $0x62] sm:$0xff]
      %v621 = vld [vmem:[%s199 + $0x6a] sm:$0xff]
      %v622 = vld [vmem:[%s199 + $0x7a] sm:$0xff]
      %v623 = vld [vmem:[%s199 + $0x82] sm:$0xff]
      %v624 = vld [vmem:[%s199 + $0x92] sm:$0xff]
      %v625 = vld [vmem:[%s199 + $0x9a] sm:$0xff]
      %v626 = vld [vmem:[%s199 + $0xaa] sm:$0xff]
      %v627 = vld [vmem:[%s199 + $0xb2] sm:$0xff]
      %v628 = vld [vmem:[%s199 + $0xc2] sm:$0xff]
      %v629 = vld [vmem:[%s199 + $0xca] sm:$0xff]
      %v630 = vld [vmem:[%s199 + $0xda] sm:$0xff]
      %v631 = vld [vmem:[%s199 + $0xe2] sm:$0xff]
      %v632 = vld [vmem:[%s199 + $0xf2] sm:$0xff]
      %v633 = vld [vmem:[%s199 + $0xfa] sm:$0xff]
      %v634 = vld [vmem:[%s199 + $0x10a] sm:$0xff]
      %v635 = vld [vmem:[%s199 + $0x112] sm:$0xff]
      %v636 = vld [vmem:[%s199 + $0x122] sm:$0xff]
      %v637 = vld [vmem:[%s199 + $0x12a] sm:$0xff]
      %v638 = vld [vmem:[%s199 + $0x13a] sm:$0xff]
      %v639 = vld [vmem:[%s199 + $0x142] sm:$0xff]
      %v640 = vld [vmem:[%s199 + $0x152] sm:$0xff]
      %v641 = vld [vmem:[%s199 + $0x15a] sm:$0xff]
      %v642 = vld [vmem:[%s199 + $0x16a] sm:$0xff]
      %v643 = vld [vmem:[%s199 + $0x172] sm:$0xff]
      %v644 = vpack.c.bf16 %v613, %v612
      %v645 = vpack.c.bf16 %v615, %v614
      %v646 = vpack.c.bf16 %v617, %v616
      %v647 = vpack.c.bf16 %v619, %v618
      %v648 = vpack.c.bf16 %v621, %v620
      %v649 = vpack.c.bf16 %v623, %v622
      %v650 = vpack.c.bf16 %v625, %v624
      %v651 = vpack.c.bf16 %v627, %v626
      %v652 = vpack.c.bf16 %v629, %v628
      %v653 = vpack.c.bf16 %v631, %v630
      %v654 = vpack.c.bf16 %v633, %v632
      %v655 = vpack.c.bf16 %v635, %v634
      %v656 = vpack.c.bf16 %v637, %v636
      %v657 = vpack.c.bf16 %v639, %v638
      %v658 = vpack.c.bf16 %v641, %v640
      %v659 = vpack.c.bf16 %v643, %v642
      %s660 = scalar_lea.vmem %s1, 128
      %v661 = vld [vmem:[%s660] sm:$0xf]
      %v662 = vld [vmem:[%s660 + $0x4] sm:$0xf]
      %v663 = vld [vmem:[%s660 + $0x8] sm:$0xf]
      %v664 = vld [vmem:[%s660 + $0xc] sm:$0xf]
      %v665 = vld [vmem:[%s660 + $0x10] sm:$0xf]
      %v666 = vld [vmem:[%s660 + $0x14] sm:$0xf]
      %v667 = vld [vmem:[%s660 + $0x18] sm:$0xf]
      %v668 = vld [vmem:[%s660 + $0x1c] sm:$0xf]
      %v669 = vld [vmem:[%s660 + $0x20] sm:$0xf]
      %v670 = vld [vmem:[%s660 + $0x24] sm:$0xf]
      %v671 = vld [vmem:[%s660 + $0x28] sm:$0xf]
      %v672 = vld [vmem:[%s660 + $0x2c] sm:$0xf]
      %v673 = vld [vmem:[%s660 + $0x30] sm:$0xf]
      %v674 = vld [vmem:[%s660 + $0x34] sm:$0xf]
      %v675 = vld [vmem:[%s660 + $0x38] sm:$0xf]
      %v676 = vld [vmem:[%s660 + $0x3c] sm:$0xf]
      %v693 = vunpack.c.l.b16 %v661
      %v694 = vunpack.c.l.b16 %v662
      %v695 = vunpack.c.l.b16 %v663
      %v696 = vunpack.c.l.b16 %v664
      %v697 = vunpack.c.l.b16 %v665
      %v698 = vunpack.c.l.b16 %v666
      %v699 = vunpack.c.l.b16 %v667
      %v700 = vunpack.c.l.b16 %v668
      %v701 = vunpack.c.l.b16 %v669
      %v702 = vunpack.c.l.b16 %v670
      %v703 = vunpack.c.l.b16 %v671
      %v704 = vunpack.c.l.b16 %v672
      %v705 = vunpack.c.l.b16 %v673
      %v706 = vunpack.c.l.b16 %v674
      %v707 = vunpack.c.l.b16 %v675
      %v708 = vunpack.c.l.b16 %v676
      %v709 = vpack.c.b16 %v694, %v693
      %v710 = vpack.c.b16 %v696, %v695
      %v711 = vpack.c.b16 %v698, %v697
      %v712 = vpack.c.b16 %v700, %v699
      %v713 = vpack.c.b16 %v702, %v701
      %v714 = vpack.c.b16 %v704, %v703
      %v715 = vpack.c.b16 %v706, %v705
      %v716 = vpack.c.b16 %v708, %v707
      %725 = vmatpush.bf16.msra.mxu0 %v716
      %726 = vmatpush.bf16.msra.mxu0 %v715
      %727 = vmatpush.bf16.msra.mxu0 %v714
      %728 = vmatpush.bf16.msra.mxu0 %v713
      %729 = vmatpush.bf16.msra.mxu0 %v712
      %730 = vmatpush.bf16.msra.mxu0 %v711
      %731 = vmatpush.bf16.msra.mxu0 %v710
      %732 = vmatpush.bf16.msra.mxu0 %v709
      %733 = vmatmul.bf16.gmra.mxu0 %v644
      %v734 = vpop.f32.mrf.mxu0
      %v735 = vadd.f32 0.0, %v734
      %v736 = vpop.f32.mrf.mxu0
      %v737 = vadd.f32 0.0, %v736
      %738 = vmatmul.bf16.gmra.mxu0 %v645
      %v739 = vpop.f32.mrf.mxu0
      %v740 = vadd.f32 0.0, %v739
      %v741 = vpop.f32.mrf.mxu0
      %v742 = vadd.f32 0.0, %v741
      %743 = vmatmul.bf16.gmra.mxu0 %v646
      %v744 = vpop.f32.mrf.mxu0
      %v745 = vadd.f32 0.0, %v744
      %v746 = vpop.f32.mrf.mxu0
      %v747 = vadd.f32 0.0, %v746
      %748 = vmatmul.bf16.gmra.mxu0 %v647
      %v749 = vpop.f32.mrf.mxu0
      %v750 = vadd.f32 0.0, %v749
      %v751 = vpop.f32.mrf.mxu0
      %v752 = vadd.f32 0.0, %v751
      %753 = vmatmul.bf16.gmra.mxu0 %v648
      %v754 = vpop.f32.mrf.mxu0
      %v755 = vadd.f32 0.0, %v754
      %v756 = vpop.f32.mrf.mxu0
      %v757 = vadd.f32 0.0, %v756
      %758 = vmatmul.bf16.gmra.mxu0 %v649
      %v759 = vpop.f32.mrf.mxu0
      %v760 = vadd.f32 0.0, %v759
      %v761 = vpop.f32.mrf.mxu0
      %v762 = vadd.f32 0.0, %v761
      %763 = vmatmul.bf16.gmra.mxu0 %v650
      %v764 = vpop.f32.mrf.mxu0
      %v765 = vadd.f32 0.0, %v764
      %v766 = vpop.f32.mrf.mxu0
      %v767 = vadd.f32 0.0, %v766
      %768 = vmatmul.bf16.gmra.mxu0 %v651
      %v769 = vpop.f32.mrf.mxu0
      %v770 = vadd.f32 0.0, %v769
      %v771 = vpop.f32.mrf.mxu0
      %v772 = vadd.f32 0.0, %v771
      %773 = vmatmul.bf16.gmra.mxu0 %v652
      %v774 = vpop.f32.mrf.mxu0
      %v775 = vadd.f32 0.0, %v774
      %v776 = vpop.f32.mrf.mxu0
      %v777 = vadd.f32 0.0, %v776
      %778 = vmatmul.bf16.gmra.mxu0 %v653
      %v779 = vpop.f32.mrf.mxu0
      %v780 = vadd.f32 0.0, %v779
      %v781 = vpop.f32.mrf.mxu0
      %v782 = vadd.f32 0.0, %v781
      %783 = vmatmul.bf16.gmra.mxu0 %v654
      %v784 = vpop.f32.mrf.mxu0
      %v785 = vadd.f32 0.0, %v784
      %v786 = vpop.f32.mrf.mxu0
      %v787 = vadd.f32 0.0, %v786
      %788 = vmatmul.bf16.gmra.mxu0 %v655
      %v789 = vpop.f32.mrf.mxu0
      %v790 = vadd.f32 0.0, %v789
      %v791 = vpop.f32.mrf.mxu0
      %v792 = vadd.f32 0.0, %v791
      %793 = vmatmul.bf16.gmra.mxu0 %v656
      %v794 = vpop.f32.mrf.mxu0
      %v795 = vadd.f32 0.0, %v794
      %v796 = vpop.f32.mrf.mxu0
      %v797 = vadd.f32 0.0, %v796
      %798 = vmatmul.bf16.gmra.mxu0 %v657
      %v799 = vpop.f32.mrf.mxu0
      %v800 = vadd.f32 0.0, %v799
      %v801 = vpop.f32.mrf.mxu0
      %v802 = vadd.f32 0.0, %v801
      %803 = vmatmul.bf16.gmra.mxu0 %v658
      %v804 = vpop.f32.mrf.mxu0
      %v805 = vadd.f32 0.0, %v804
      %v806 = vpop.f32.mrf.mxu0
      %v807 = vadd.f32 0.0, %v806
      %808 = vmatmul.bf16.gmra.mxu0 %v659
      %v809 = vpop.f32.mrf.mxu0
      %v810 = vadd.f32 0.0, %v809
      %v811 = vpop.f32.mrf.mxu0
      %v812 = vadd.f32 0.0, %v811
      %813 = vdwg.mxu0
      %v814 = vadd.f32 %v533, %v735
      %v815 = vadd.f32 %v535, %v737
      %v816 = vadd.f32 %v538, %v740
      %v817 = vadd.f32 %v540, %v742
      %v818 = vadd.f32 %v543, %v745
      %v819 = vadd.f32 %v545, %v747
      %v820 = vadd.f32 %v548, %v750
      %v821 = vadd.f32 %v550, %v752
      %v822 = vadd.f32 %v553, %v755
      %v823 = vadd.f32 %v555, %v757
      %v824 = vadd.f32 %v558, %v760
      %v825 = vadd.f32 %v560, %v762
      %v826 = vadd.f32 %v563, %v765
      %v827 = vadd.f32 %v565, %v767
      %v828 = vadd.f32 %v568, %v770
      %v829 = vadd.f32 %v570, %v772
      %v830 = vadd.f32 %v573, %v775
      %v831 = vadd.f32 %v575, %v777
      %v832 = vadd.f32 %v578, %v780
      %v833 = vadd.f32 %v580, %v782
      %v834 = vadd.f32 %v583, %v785
      %v835 = vadd.f32 %v585, %v787
      %v836 = vadd.f32 %v588, %v790
      %v837 = vadd.f32 %v590, %v792
      %v838 = vadd.f32 %v593, %v795
      %v839 = vadd.f32 %v595, %v797
      %v840 = vadd.f32 %v598, %v800
      %v841 = vadd.f32 %v600, %v802
      %v842 = vadd.f32 %v603, %v805
      %v843 = vadd.f32 %v605, %v807
      %v844 = vadd.f32 %v608, %v810
      %v845 = vadd.f32 %v610, %v812
      %s846 = scalar_lea.vmem %s199, 24
      %v847 = vld [vmem:[%s846] sm:$0xff]
      %v848 = vld [vmem:[%s846 + $0x8] sm:$0xff]
      %v849 = vld [vmem:[%s846 + $0x18] sm:$0xff]
      %v850 = vld [vmem:[%s846 + $0x20] sm:$0xff]
      %v851 = vld [vmem:[%s846 + $0x30] sm:$0xff]
      %v852 = vld [vmem:[%s846 + $0x38] sm:$0xff]
      %v853 = vld [vmem:[%s846 + $0x48] sm:$0xff]
      %v854 = vld [vmem:[%s846 + $0x50] sm:$0xff]
      %v855 = vld [vmem:[%s846 + $0x60] sm:$0xff]
      %v856 = vld [vmem:[%s846 + $0x68] sm:$0xff]
      %v857 = vld [vmem:[%s846 + $0x78] sm:$0xff]
      %v858 = vld [vmem:[%s846 + $0x80] sm:$0xff]
      %v859 = vld [vmem:[%s846 + $0x90] sm:$0xff]
      %v860 = vld [vmem:[%s846 + $0x98] sm:$0xff]
      %v861 = vld [vmem:[%s846 + $0xa8] sm:$0xff]
      %v862 = vld [vmem:[%s846 + $0xb0] sm:$0xff]
      %v863 = vld [vmem:[%s846 + $0xc0] sm:$0xff]
      %v864 = vld [vmem:[%s846 + $0xc8] sm:$0xff]
      %v865 = vld [vmem:[%s846 + $0xd8] sm:$0xff]
      %v866 = vld [vmem:[%s846 + $0xe0] sm:$0xff]
      %v867 = vld [vmem:[%s846 + $0xf0] sm:$0xff]
      %v868 = vld [vmem:[%s846 + $0xf8] sm:$0xff]
      %v869 = vld [vmem:[%s846 + $0x108] sm:$0xff]
      %v870 = vld [vmem:[%s846 + $0x110] sm:$0xff]
      %v871 = vld [vmem:[%s846 + $0x120] sm:$0xff]
      %v872 = vld [vmem:[%s846 + $0x128] sm:$0xff]
      %v873 = vld [vmem:[%s846 + $0x138] sm:$0xff]
      %v874 = vld [vmem:[%s846 + $0x140] sm:$0xff]
      %v875 = vld [vmem:[%s846 + $0x150] sm:$0xff]
      %v876 = vld [vmem:[%s846 + $0x158] sm:$0xff]
      %v877 = vld [vmem:[%s846 + $0x168] sm:$0xff]
      %v878 = vld [vmem:[%s846 + $0x170] sm:$0xff]
      %v879 = vpack.c.bf16 %v848, %v847
      %v880 = vpack.c.bf16 %v850, %v849
      %v881 = vpack.c.bf16 %v852, %v851
      %v882 = vpack.c.bf16 %v854, %v853
      %v883 = vpack.c.bf16 %v856, %v855
      %v884 = vpack.c.bf16 %v858, %v857
      %v885 = vpack.c.bf16 %v860, %v859
      %v886 = vpack.c.bf16 %v862, %v861
      %v887 = vpack.c.bf16 %v864, %v863
      %v888 = vpack.c.bf16 %v866, %v865
      %v889 = vpack.c.bf16 %v868, %v867
      %v890 = vpack.c.bf16 %v870, %v869
      %v891 = vpack.c.bf16 %v872, %v871
      %v892 = vpack.c.bf16 %v874, %v873
      %v893 = vpack.c.bf16 %v876, %v875
      %v894 = vpack.c.bf16 %v878, %v877
      %s895 = scalar_lea.vmem %s1, 192
      %v896 = vld [vmem:[%s895] sm:$0xf]
      %v897 = vld [vmem:[%s895 + $0x4] sm:$0xf]
      %v898 = vld [vmem:[%s895 + $0x8] sm:$0xf]
      %v899 = vld [vmem:[%s895 + $0xc] sm:$0xf]
      %v900 = vld [vmem:[%s895 + $0x10] sm:$0xf]
      %v901 = vld [vmem:[%s895 + $0x14] sm:$0xf]
      %v902 = vld [vmem:[%s895 + $0x18] sm:$0xf]
      %v903 = vld [vmem:[%s895 + $0x1c] sm:$0xf]
      %v904 = vld [vmem:[%s895 + $0x20] sm:$0xf]
      %v905 = vld [vmem:[%s895 + $0x24] sm:$0xf]
      %v906 = vld [vmem:[%s895 + $0x28] sm:$0xf]
      %v907 = vld [vmem:[%s895 + $0x2c] sm:$0xf]
      %v908 = vld [vmem:[%s895 + $0x30] sm:$0xf]
      %v909 = vld [vmem:[%s895 + $0x34] sm:$0xf]
      %v910 = vld [vmem:[%s895 + $0x38] sm:$0xf]
      %v911 = vld [vmem:[%s895 + $0x3c] sm:$0xf]
      %v928 = vunpack.c.l.b16 %v896
      %v929 = vunpack.c.l.b16 %v897
      %v930 = vunpack.c.l.b16 %v898
      %v931 = vunpack.c.l.b16 %v899
      %v932 = vunpack.c.l.b16 %v900
      %v933 = vunpack.c.l.b16 %v901
      %v934 = vunpack.c.l.b16 %v902
      %v935 = vunpack.c.l.b16 %v903
      %v936 = vunpack.c.l.b16 %v904
      %v937 = vunpack.c.l.b16 %v905
      %v938 = vunpack.c.l.b16 %v906
      %v939 = vunpack.c.l.b16 %v907
      %v940 = vunpack.c.l.b16 %v908
      %v941 = vunpack.c.l.b16 %v909
      %v942 = vunpack.c.l.b16 %v910
      %v943 = vunpack.c.l.b16 %v911
      %v944 = vpack.c.b16 %v929, %v928
      %v945 = vpack.c.b16 %v931, %v930
      %v946 = vpack.c.b16 %v933, %v932
      %v947 = vpack.c.b16 %v935, %v934
      %v948 = vpack.c.b16 %v937, %v936
      %v949 = vpack.c.b16 %v939, %v938
      %v950 = vpack.c.b16 %v941, %v940
      %v951 = vpack.c.b16 %v943, %v942
      %960 = vmatpush.bf16.msra.mxu0 %v951
      %961 = vmatpush.bf16.msra.mxu0 %v950
      %962 = vmatpush.bf16.msra.mxu0 %v949
      %963 = vmatpush.bf16.msra.mxu0 %v948
      %964 = vmatpush.bf16.msra.mxu0 %v947
      %965 = vmatpush.bf16.msra.mxu0 %v946
      %966 = vmatpush.bf16.msra.mxu0 %v945
      %967 = vmatpush.bf16.msra.mxu0 %v944
      %968 = vmatmul.bf16.gmra.mxu0 %v879
      %v969 = vpop.f32.mrf.mxu0
      %v970 = vadd.f32 0.0, %v969
      %v971 = vpop.f32.mrf.mxu0
      %v972 = vadd.f32 0.0, %v971
      %973 = vmatmul.bf16.gmra.mxu0 %v880
      %v974 = vpop.f32.mrf.mxu0
      %v975 = vadd.f32 0.0, %v974
      %v976 = vpop.f32.mrf.mxu0
      %v977 = vadd.f32 0.0, %v976
      %978 = vmatmul.bf16.gmra.mxu0 %v881
      %v979 = vpop.f32.mrf.mxu0
      %v980 = vadd.f32 0.0, %v979
      %v981 = vpop.f32.mrf.mxu0
      %v982 = vadd.f32 0.0, %v981
      %983 = vmatmul.bf16.gmra.mxu0 %v882
      %v984 = vpop.f32.mrf.mxu0
      %v985 = vadd.f32 0.0, %v984
      %v986 = vpop.f32.mrf.mxu0
      %v987 = vadd.f32 0.0, %v986
      %988 = vmatmul.bf16.gmra.mxu0 %v883
      %v989 = vpop.f32.mrf.mxu0
      %v990 = vadd.f32 0.0, %v989
      %v991 = vpop.f32.mrf.mxu0
      %v992 = vadd.f32 0.0, %v991
      %993 = vmatmul.bf16.gmra.mxu0 %v884
      %v994 = vpop.f32.mrf.mxu0
      %v995 = vadd.f32 0.0, %v994
      %v996 = vpop.f32.mrf.mxu0
      %v997 = vadd.f32 0.0, %v996
      %998 = vmatmul.bf16.gmra.mxu0 %v885
      %v999 = vpop.f32.mrf.mxu0
      %v1000 = vadd.f32 0.0, %v999
      %v1001 = vpop.f32.mrf.mxu0
      %v1002 = vadd.f32 0.0, %v1001
      %1003 = vmatmul.bf16.gmra.mxu0 %v886
      %v1004 = vpop.f32.mrf.mxu0
      %v1005 = vadd.f32 0.0, %v1004
      %v1006 = vpop.f32.mrf.mxu0
      %v1007 = vadd.f32 0.0, %v1006
      %1008 = vmatmul.bf16.gmra.mxu0 %v887
      %v1009 = vpop.f32.mrf.mxu0
      %v1010 = vadd.f32 0.0, %v1009
      %v1011 = vpop.f32.mrf.mxu0
      %v1012 = vadd.f32 0.0, %v1011
      %1013 = vmatmul.bf16.gmra.mxu0 %v888
      %v1014 = vpop.f32.mrf.mxu0
      %v1015 = vadd.f32 0.0, %v1014
      %v1016 = vpop.f32.mrf.mxu0
      %v1017 = vadd.f32 0.0, %v1016
      %1018 = vmatmul.bf16.gmra.mxu0 %v889
      %v1019 = vpop.f32.mrf.mxu0
      %v1020 = vadd.f32 0.0, %v1019
      %v1021 = vpop.f32.mrf.mxu0
      %v1022 = vadd.f32 0.0, %v1021
      %1023 = vmatmul.bf16.gmra.mxu0 %v890
      %v1024 = vpop.f32.mrf.mxu0
      %v1025 = vadd.f32 0.0, %v1024
      %v1026 = vpop.f32.mrf.mxu0
      %v1027 = vadd.f32 0.0, %v1026
      %1028 = vmatmul.bf16.gmra.mxu0 %v891
      %v1029 = vpop.f32.mrf.mxu0
      %v1030 = vadd.f32 0.0, %v1029
      %v1031 = vpop.f32.mrf.mxu0
      %v1032 = vadd.f32 0.0, %v1031
      %1033 = vmatmul.bf16.gmra.mxu0 %v892
      %v1034 = vpop.f32.mrf.mxu0
      %v1035 = vadd.f32 0.0, %v1034
      %v1036 = vpop.f32.mrf.mxu0
      %v1037 = vadd.f32 0.0, %v1036
      %1038 = vmatmul.bf16.gmra.mxu0 %v893
      %v1039 = vpop.f32.mrf.mxu0
      %v1040 = vadd.f32 0.0, %v1039
      %v1041 = vpop.f32.mrf.mxu0
      %v1042 = vadd.f32 0.0, %v1041
      %1043 = vmatmul.bf16.gmra.mxu0 %v894
      %v1044 = vpop.f32.mrf.mxu0
      %v1045 = vadd.f32 0.0, %v1044
      %v1046 = vpop.f32.mrf.mxu0
      %v1047 = vadd.f32 0.0, %v1046
      %1048 = vdwg.mxu0
      %v1049 = vadd.f32 %v814, %v970
      %v1050 = vadd.f32 %v815, %v972
      %v1051 = vadd.f32 %v816, %v975
      %v1052 = vadd.f32 %v817, %v977
      %v1053 = vadd.f32 %v818, %v980
      %v1054 = vadd.f32 %v819, %v982
      %v1055 = vadd.f32 %v820, %v985
      %v1056 = vadd.f32 %v821, %v987
      %v1057 = vadd.f32 %v822, %v990
      %v1058 = vadd.f32 %v823, %v992
      %v1059 = vadd.f32 %v824, %v995
      %v1060 = vadd.f32 %v825, %v997
      %v1061 = vadd.f32 %v826, %v1000
      %v1062 = vadd.f32 %v827, %v1002
      %v1063 = vadd.f32 %v828, %v1005
      %v1064 = vadd.f32 %v829, %v1007
      %v1065 = vadd.f32 %v830, %v1010
      %v1066 = vadd.f32 %v831, %v1012
      %v1067 = vadd.f32 %v832, %v1015
      %v1068 = vadd.f32 %v833, %v1017
      %v1069 = vadd.f32 %v834, %v1020
      %v1070 = vadd.f32 %v835, %v1022
      %v1071 = vadd.f32 %v836, %v1025
      %v1072 = vadd.f32 %v837, %v1027
      %v1073 = vadd.f32 %v838, %v1030
      %v1074 = vadd.f32 %v839, %v1032
      %v1075 = vadd.f32 %v840, %v1035
      %v1076 = vadd.f32 %v841, %v1037
      %v1077 = vadd.f32 %v842, %v1040
      %v1078 = vadd.f32 %v843, %v1042
      %v1079 = vadd.f32 %v844, %v1045
      %v1080 = vadd.f32 %v845, %v1047
      %v1081 = vld [vmem:[%s846 + $0x1] sm:$0xff]
      %v1082 = vld [vmem:[%s846 + $0x9] sm:$0xff]
      %v1083 = vld [vmem:[%s846 + $0x19] sm:$0xff]
      %v1084 = vld [vmem:[%s846 + $0x21] sm:$0xff]
      %v1085 = vld [vmem:[%s846 + $0x31] sm:$0xff]
      %v1086 = vld [vmem:[%s846 + $0x39] sm:$0xff]
      %v1087 = vld [vmem:[%s846 + $0x49] sm:$0xff]
      %v1088 = vld [vmem:[%s846 + $0x51] sm:$0xff]
      %v1089 = vld [vmem:[%s846 + $0x61] sm:$0xff]
      %v1090 = vld [vmem:[%s846 + $0x69] sm:$0xff]
      %v1091 = vld [vmem:[%s846 + $0x79] sm:$0xff]
      %v1092 = vld [vmem:[%s846 + $0x81] sm:$0xff]
      %v1093 = vld [vmem:[%s846 + $0x91] sm:$0xff]
      %v1094 = vld [vmem:[%s846 + $0x99] sm:$0xff]
      %v1095 = vld [vmem:[%s846 + $0xa9] sm:$0xff]
      %v1096 = vld [vmem:[%s846 + $0xb1] sm:$0xff]
      %v1097 = vld [vmem:[%s846 + $0xc1] sm:$0xff]
      %v1098 = vld [vmem:[%s846 + $0xc9] sm:$0xff]
      %v1099 = vld [vmem:[%s846 + $0xd9] sm:$0xff]
      %v1100 = vld [vmem:[%s846 + $0xe1] sm:$0xff]
      %v1101 = vld [vmem:[%s846 + $0xf1] sm:$0xff]
      %v1102 = vld [vmem:[%s846 + $0xf9] sm:$0xff]
      %v1103 = vld [vmem:[%s846 + $0x109] sm:$0xff]
      %v1104 = vld [vmem:[%s846 + $0x111] sm:$0xff]
      %v1105 = vld [vmem:[%s846 + $0x121] sm:$0xff]
      %v1106 = vld [vmem:[%s846 + $0x129] sm:$0xff]
      %v1107 = vld [vmem:[%s846 + $0x139] sm:$0xff]
      %v1108 = vld [vmem:[%s846 + $0x141] sm:$0xff]
      %v1109 = vld [vmem:[%s846 + $0x151] sm:$0xff]
      %v1110 = vld [vmem:[%s846 + $0x159] sm:$0xff]
      %v1111 = vld [vmem:[%s846 + $0x169] sm:$0xff]
      %v1112 = vld [vmem:[%s846 + $0x171] sm:$0xff]
      %v1113 = vpack.c.bf16 %v1082, %v1081
      %v1114 = vpack.c.bf16 %v1084, %v1083
      %v1115 = vpack.c.bf16 %v1086, %v1085
      %v1116 = vpack.c.bf16 %v1088, %v1087
      %v1117 = vpack.c.bf16 %v1090, %v1089
      %v1118 = vpack.c.bf16 %v1092, %v1091
      %v1119 = vpack.c.bf16 %v1094, %v1093
      %v1120 = vpack.c.bf16 %v1096, %v1095
      %v1121 = vpack.c.bf16 %v1098, %v1097
      %v1122 = vpack.c.bf16 %v1100, %v1099
      %v1123 = vpack.c.bf16 %v1102, %v1101
      %v1124 = vpack.c.bf16 %v1104, %v1103
      %v1125 = vpack.c.bf16 %v1106, %v1105
      %v1126 = vpack.c.bf16 %v1108, %v1107
      %v1127 = vpack.c.bf16 %v1110, %v1109
      %v1128 = vpack.c.bf16 %v1112, %v1111
      %s1129 = scalar_lea.vmem %s1, 256
      %v1130 = vld [vmem:[%s1129] sm:$0xf]
      %v1131 = vld [vmem:[%s1129 + $0x4] sm:$0xf]
      %v1132 = vld [vmem:[%s1129 + $0x8] sm:$0xf]
      %v1133 = vld [vmem:[%s1129 + $0xc] sm:$0xf]
      %v1134 = vld [vmem:[%s1129 + $0x10] sm:$0xf]
      %v1135 = vld [vmem:[%s1129 + $0x14] sm:$0xf]
      %v1136 = vld [vmem:[%s1129 + $0x18] sm:$0xf]
      %v1137 = vld [vmem:[%s1129 + $0x1c] sm:$0xf]
      %v1138 = vld [vmem:[%s1129 + $0x20] sm:$0xf]
      %v1139 = vld [vmem:[%s1129 + $0x24] sm:$0xf]
      %v1140 = vld [vmem:[%s1129 + $0x28] sm:$0xf]
      %v1141 = vld [vmem:[%s1129 + $0x2c] sm:$0xf]
      %v1142 = vld [vmem:[%s1129 + $0x30] sm:$0xf]
      %v1143 = vld [vmem:[%s1129 + $0x34] sm:$0xf]
      %v1144 = vld [vmem:[%s1129 + $0x38] sm:$0xf]
      %v1145 = vld [vmem:[%s1129 + $0x3c] sm:$0xf]
      %v1162 = vunpack.c.l.b16 %v1130
      %v1163 = vunpack.c.l.b16 %v1131
      %v1164 = vunpack.c.l.b16 %v1132
      %v1165 = vunpack.c.l.b16 %v1133
      %v1166 = vunpack.c.l.b16 %v1134
      %v1167 = vunpack.c.l.b16 %v1135
      %v1168 = vunpack.c.l.b16 %v1136
      %v1169 = vunpack.c.l.b16 %v1137
      %v1170 = vunpack.c.l.b16 %v1138
      %v1171 = vunpack.c.l.b16 %v1139
      %v1172 = vunpack.c.l.b16 %v1140
      %v1173 = vunpack.c.l.b16 %v1141
      %v1174 = vunpack.c.l.b16 %v1142
      %v1175 = vunpack.c.l.b16 %v1143
      %v1176 = vunpack.c.l.b16 %v1144
      %v1177 = vunpack.c.l.b16 %v1145
      %v1178 = vpack.c.b16 %v1163, %v1162
      %v1179 = vpack.c.b16 %v1165, %v1164
      %v1180 = vpack.c.b16 %v1167, %v1166
      %v1181 = vpack.c.b16 %v1169, %v1168
      %v1182 = vpack.c.b16 %v1171, %v1170
      %v1183 = vpack.c.b16 %v1173, %v1172
      %v1184 = vpack.c.b16 %v1175, %v1174
      %v1185 = vpack.c.b16 %v1177, %v1176
      %1194 = vmatpush.bf16.msra.mxu0 %v1185
      %1195 = vmatpush.bf16.msra.mxu0 %v1184
      %1196 = vmatpush.bf16.msra.mxu0 %v1183
      %1197 = vmatpush.bf16.msra.mxu0 %v1182
      %1198 = vmatpush.bf16.msra.mxu0 %v1181
      %1199 = vmatpush.bf16.msra.mxu0 %v1180
      %1200 = vmatpush.bf16.msra.mxu0 %v1179
      %1201 = vmatpush.bf16.msra.mxu0 %v1178
      %1202 = vmatmul.bf16.gmra.mxu0 %v1113
      %v1203 = vpop.f32.mrf.mxu0
      %v1204 = vadd.f32 0.0, %v1203
      %v1205 = vpop.f32.mrf.mxu0
      %v1206 = vadd.f32 0.0, %v1205
      %1207 = vmatmul.bf16.gmra.mxu0 %v1114
      %v1208 = vpop.f32.mrf.mxu0
      %v1209 = vadd.f32 0.0, %v1208
      %v1210 = vpop.f32.mrf.mxu0
      %v1211 = vadd.f32 0.0, %v1210
      %1212 = vmatmul.bf16.gmra.mxu0 %v1115
      %v1213 = vpop.f32.mrf.mxu0
      %v1214 = vadd.f32 0.0, %v1213
      %v1215 = vpop.f32.mrf.mxu0
      %v1216 = vadd.f32 0.0, %v1215
      %1217 = vmatmul.bf16.gmra.mxu0 %v1116
      %v1218 = vpop.f32.mrf.mxu0
      %v1219 = vadd.f32 0.0, %v1218
      %v1220 = vpop.f32.mrf.mxu0
      %v1221 = vadd.f32 0.0, %v1220
      %1222 = vmatmul.bf16.gmra.mxu0 %v1117
      %v1223 = vpop.f32.mrf.mxu0
      %v1224 = vadd.f32 0.0, %v1223
      %v1225 = vpop.f32.mrf.mxu0
      %v1226 = vadd.f32 0.0, %v1225
      %1227 = vmatmul.bf16.gmra.mxu0 %v1118
      %v1228 = vpop.f32.mrf.mxu0
      %v1229 = vadd.f32 0.0, %v1228
      %v1230 = vpop.f32.mrf.mxu0
      %v1231 = vadd.f32 0.0, %v1230
      %1232 = vmatmul.bf16.gmra.mxu0 %v1119
      %v1233 = vpop.f32.mrf.mxu0
      %v1234 = vadd.f32 0.0, %v1233
      %v1235 = vpop.f32.mrf.mxu0
      %v1236 = vadd.f32 0.0, %v1235
      %1237 = vmatmul.bf16.gmra.mxu0 %v1120
      %v1238 = vpop.f32.mrf.mxu0
      %v1239 = vadd.f32 0.0, %v1238
      %v1240 = vpop.f32.mrf.mxu0
      %v1241 = vadd.f32 0.0, %v1240
      %1242 = vmatmul.bf16.gmra.mxu0 %v1121
      %v1243 = vpop.f32.mrf.mxu0
      %v1244 = vadd.f32 0.0, %v1243
      %v1245 = vpop.f32.mrf.mxu0
      %v1246 = vadd.f32 0.0, %v1245
      %1247 = vmatmul.bf16.gmra.mxu0 %v1122
      %v1248 = vpop.f32.mrf.mxu0
      %v1249 = vadd.f32 0.0, %v1248
      %v1250 = vpop.f32.mrf.mxu0
      %v1251 = vadd.f32 0.0, %v1250
      %1252 = vmatmul.bf16.gmra.mxu0 %v1123
      %v1253 = vpop.f32.mrf.mxu0
      %v1254 = vadd.f32 0.0, %v1253
      %v1255 = vpop.f32.mrf.mxu0
      %v1256 = vadd.f32 0.0, %v1255
      %1257 = vmatmul.bf16.gmra.mxu0 %v1124
      %v1258 = vpop.f32.mrf.mxu0
      %v1259 = vadd.f32 0.0, %v1258
      %v1260 = vpop.f32.mrf.mxu0
      %v1261 = vadd.f32 0.0, %v1260
      %1262 = vmatmul.bf16.gmra.mxu0 %v1125
      %v1263 = vpop.f32.mrf.mxu0
      %v1264 = vadd.f32 0.0, %v1263
      %v1265 = vpop.f32.mrf.mxu0
      %v1266 = vadd.f32 0.0, %v1265
      %1267 = vmatmul.bf16.gmra.mxu0 %v1126
      %v1268 = vpop.f32.mrf.mxu0
      %v1269 = vadd.f32 0.0, %v1268
      %v1270 = vpop.f32.mrf.mxu0
      %v1271 = vadd.f32 0.0, %v1270
      %1272 = vmatmul.bf16.gmra.mxu0 %v1127
      %v1273 = vpop.f32.mrf.mxu0
      %v1274 = vadd.f32 0.0, %v1273
      %v1275 = vpop.f32.mrf.mxu0
      %v1276 = vadd.f32 0.0, %v1275
      %1277 = vmatmul.bf16.gmra.mxu0 %v1128
      %v1278 = vpop.f32.mrf.mxu0
      %v1279 = vadd.f32 0.0, %v1278
      %v1280 = vpop.f32.mrf.mxu0
      %v1281 = vadd.f32 0.0, %v1280
      %1282 = vdwg.mxu0
      %v1283 = vadd.f32 %v1049, %v1204
      %v1284 = vadd.f32 %v1050, %v1206
      %v1285 = vadd.f32 %v1051, %v1209
      %v1286 = vadd.f32 %v1052, %v1211
      %v1287 = vadd.f32 %v1053, %v1214
      %v1288 = vadd.f32 %v1054, %v1216
      %v1289 = vadd.f32 %v1055, %v1219
      %v1290 = vadd.f32 %v1056, %v1221
      %v1291 = vadd.f32 %v1057, %v1224
      %v1292 = vadd.f32 %v1058, %v1226
      %v1293 = vadd.f32 %v1059, %v1229
      %v1294 = vadd.f32 %v1060, %v1231
      %v1295 = vadd.f32 %v1061, %v1234
      %v1296 = vadd.f32 %v1062, %v1236
      %v1297 = vadd.f32 %v1063, %v1239
      %v1298 = vadd.f32 %v1064, %v1241
      %v1299 = vadd.f32 %v1065, %v1244
      %v1300 = vadd.f32 %v1066, %v1246
      %v1301 = vadd.f32 %v1067, %v1249
      %v1302 = vadd.f32 %v1068, %v1251
      %v1303 = vadd.f32 %v1069, %v1254
      %v1304 = vadd.f32 %v1070, %v1256
      %v1305 = vadd.f32 %v1071, %v1259
      %v1306 = vadd.f32 %v1072, %v1261
      %v1307 = vadd.f32 %v1073, %v1264
      %v1308 = vadd.f32 %v1074, %v1266
      %v1309 = vadd.f32 %v1075, %v1269
      %v1310 = vadd.f32 %v1076, %v1271
      %v1311 = vadd.f32 %v1077, %v1274
      %v1312 = vadd.f32 %v1078, %v1276
      %v1313 = vadd.f32 %v1079, %v1279
      %v1314 = vadd.f32 %v1080, %v1281
      %v1315 = vld [vmem:[%s846 + $0x2] sm:$0xff]
      %v1316 = vld [vmem:[%s846 + $0xa] sm:$0xff]
      %v1317 = vld [vmem:[%s846 + $0x1a] sm:$0xff]
      %v1318 = vld [vmem:[%s846 + $0x22] sm:$0xff]
      %v1319 = vld [vmem:[%s846 + $0x32] sm:$0xff]
      %v1320 = vld [vmem:[%s846 + $0x3a] sm:$0xff]
      %v1321 = vld [vmem:[%s846 + $0x4a] sm:$0xff]
      %v1322 = vld [vmem:[%s846 + $0x52] sm:$0xff]
      %v1323 = vld [vmem:[%s846 + $0x62] sm:$0xff]
      %v1324 = vld [vmem:[%s846 + $0x6a] sm:$0xff]
      %v1325 = vld [vmem:[%s846 + $0x7a] sm:$0xff]
      %v1326 = vld [vmem:[%s846 + $0x82] sm:$0xff]
      %v1327 = vld [vmem:[%s846 + $0x92] sm:$0xff]
      %v1328 = vld [vmem:[%s846 + $0x9a] sm:$0xff]
      %v1329 = vld [vmem:[%s846 + $0xaa] sm:$0xff]
      %v1330 = vld [vmem:[%s846 + $0xb2] sm:$0xff]
      %v1331 = vld [vmem:[%s846 + $0xc2] sm:$0xff]
      %v1332 = vld [vmem:[%s846 + $0xca] sm:$0xff]
      %v1333 = vld [vmem:[%s846 + $0xda] sm:$0xff]
      %v1334 = vld [vmem:[%s846 + $0xe2] sm:$0xff]
      %v1335 = vld [vmem:[%s846 + $0xf2] sm:$0xff]
      %v1336 = vld [vmem:[%s846 + $0xfa] sm:$0xff]
      %v1337 = vld [vmem:[%s846 + $0x10a] sm:$0xff]
      %v1338 = vld [vmem:[%s846 + $0x112] sm:$0xff]
      %v1339 = vld [vmem:[%s846 + $0x122] sm:$0xff]
      %v1340 = vld [vmem:[%s846 + $0x12a] sm:$0xff]
      %v1341 = vld [vmem:[%s846 + $0x13a] sm:$0xff]
      %v1342 = vld [vmem:[%s846 + $0x142] sm:$0xff]
      %v1343 = vld [vmem:[%s846 + $0x152] sm:$0xff]
      %v1344 = vld [vmem:[%s846 + $0x15a] sm:$0xff]
      %v1345 = vld [vmem:[%s846 + $0x16a] sm:$0xff]
      %v1346 = vld [vmem:[%s846 + $0x172] sm:$0xff]
      %v1347 = vpack.c.bf16 %v1316, %v1315
      %v1348 = vpack.c.bf16 %v1318, %v1317
      %v1349 = vpack.c.bf16 %v1320, %v1319
      %v1350 = vpack.c.bf16 %v1322, %v1321
      %v1351 = vpack.c.bf16 %v1324, %v1323
      %v1352 = vpack.c.bf16 %v1326, %v1325
      %v1353 = vpack.c.bf16 %v1328, %v1327
      %v1354 = vpack.c.bf16 %v1330, %v1329
      %v1355 = vpack.c.bf16 %v1332, %v1331
      %v1356 = vpack.c.bf16 %v1334, %v1333
      %v1357 = vpack.c.bf16 %v1336, %v1335
      %v1358 = vpack.c.bf16 %v1338, %v1337
      %v1359 = vpack.c.bf16 %v1340, %v1339
      %v1360 = vpack.c.bf16 %v1342, %v1341
      %v1361 = vpack.c.bf16 %v1344, %v1343
      %v1362 = vpack.c.bf16 %v1346, %v1345
      %s1363 = scalar_lea.vmem %s1, 320
      %v1364 = vld [vmem:[%s1363] sm:$0xf]
      %v1365 = vld [vmem:[%s1363 + $0x4] sm:$0xf]
      %v1366 = vld [vmem:[%s1363 + $0x8] sm:$0xf]
      %v1367 = vld [vmem:[%s1363 + $0xc] sm:$0xf]
      %v1368 = vld [vmem:[%s1363 + $0x10] sm:$0xf]
      %v1369 = vld [vmem:[%s1363 + $0x14] sm:$0xf]
      %v1370 = vld [vmem:[%s1363 + $0x18] sm:$0xf]
      %v1371 = vld [vmem:[%s1363 + $0x1c] sm:$0xf]
      %v1372 = vld [vmem:[%s1363 + $0x20] sm:$0xf]
      %v1373 = vld [vmem:[%s1363 + $0x24] sm:$0xf]
      %v1374 = vld [vmem:[%s1363 + $0x28] sm:$0xf]
      %v1375 = vld [vmem:[%s1363 + $0x2c] sm:$0xf]
      %v1376 = vld [vmem:[%s1363 + $0x30] sm:$0xf]
      %v1377 = vld [vmem:[%s1363 + $0x34] sm:$0xf]
      %v1378 = vld [vmem:[%s1363 + $0x38] sm:$0xf]
      %v1379 = vld [vmem:[%s1363 + $0x3c] sm:$0xf]
      %v1396 = vunpack.c.l.b16 %v1364
      %v1397 = vunpack.c.l.b16 %v1365
      %v1398 = vunpack.c.l.b16 %v1366
      %v1399 = vunpack.c.l.b16 %v1367
      %v1400 = vunpack.c.l.b16 %v1368
      %v1401 = vunpack.c.l.b16 %v1369
      %v1402 = vunpack.c.l.b16 %v1370
      %v1403 = vunpack.c.l.b16 %v1371
      %v1404 = vunpack.c.l.b16 %v1372
      %v1405 = vunpack.c.l.b16 %v1373
      %v1406 = vunpack.c.l.b16 %v1374
      %v1407 = vunpack.c.l.b16 %v1375
      %v1408 = vunpack.c.l.b16 %v1376
      %v1409 = vunpack.c.l.b16 %v1377
      %v1410 = vunpack.c.l.b16 %v1378
      %v1411 = vunpack.c.l.b16 %v1379
      %v1412 = vpack.c.b16 %v1397, %v1396
      %v1413 = vpack.c.b16 %v1399, %v1398
      %v1414 = vpack.c.b16 %v1401, %v1400
      %v1415 = vpack.c.b16 %v1403, %v1402
      %v1416 = vpack.c.b16 %v1405, %v1404
      %v1417 = vpack.c.b16 %v1407, %v1406
      %v1418 = vpack.c.b16 %v1409, %v1408
      %v1419 = vpack.c.b16 %v1411, %v1410
      %1428 = vmatpush.bf16.msra.mxu0 %v1419
      %1429 = vmatpush.bf16.msra.mxu0 %v1418
      %1430 = vmatpush.bf16.msra.mxu0 %v1417
      %1431 = vmatpush.bf16.msra.mxu0 %v1416
      %1432 = vmatpush.bf16.msra.mxu0 %v1415
      %1433 = vmatpush.bf16.msra.mxu0 %v1414
      %1434 = vmatpush.bf16.msra.mxu0 %v1413
      %1435 = vmatpush.bf16.msra.mxu0 %v1412
      %1436 = vmatmul.bf16.gmra.mxu0 %v1347
      %v1437 = vpop.f32.mrf.mxu0
      %v1438 = vadd.f32 0.0, %v1437
      %v1439 = vpop.f32.mrf.mxu0
      %v1440 = vadd.f32 0.0, %v1439
      %1441 = vmatmul.bf16.gmra.mxu0 %v1348
      %v1442 = vpop.f32.mrf.mxu0
      %v1443 = vadd.f32 0.0, %v1442
      %v1444 = vpop.f32.mrf.mxu0
      %v1445 = vadd.f32 0.0, %v1444
      %1446 = vmatmul.bf16.gmra.mxu0 %v1349
      %v1447 = vpop.f32.mrf.mxu0
      %v1448 = vadd.f32 0.0, %v1447
      %v1449 = vpop.f32.mrf.mxu0
      %v1450 = vadd.f32 0.0, %v1449
      %1451 = vmatmul.bf16.gmra.mxu0 %v1350
      %v1452 = vpop.f32.mrf.mxu0
      %v1453 = vadd.f32 0.0, %v1452
      %v1454 = vpop.f32.mrf.mxu0
      %v1455 = vadd.f32 0.0, %v1454
      %1456 = vmatmul.bf16.gmra.mxu0 %v1351
      %v1457 = vpop.f32.mrf.mxu0
      %v1458 = vadd.f32 0.0, %v1457
      %v1459 = vpop.f32.mrf.mxu0
      %v1460 = vadd.f32 0.0, %v1459
      %1461 = vmatmul.bf16.gmra.mxu0 %v1352
      %v1462 = vpop.f32.mrf.mxu0
      %v1463 = vadd.f32 0.0, %v1462
      %v1464 = vpop.f32.mrf.mxu0
      %v1465 = vadd.f32 0.0, %v1464
      %1466 = vmatmul.bf16.gmra.mxu0 %v1353
      %v1467 = vpop.f32.mrf.mxu0
      %v1468 = vadd.f32 0.0, %v1467
      %v1469 = vpop.f32.mrf.mxu0
      %v1470 = vadd.f32 0.0, %v1469
      %1471 = vmatmul.bf16.gmra.mxu0 %v1354
      %v1472 = vpop.f32.mrf.mxu0
      %v1473 = vadd.f32 0.0, %v1472
      %v1474 = vpop.f32.mrf.mxu0
      %v1475 = vadd.f32 0.0, %v1474
      %1476 = vmatmul.bf16.gmra.mxu0 %v1355
      %v1477 = vpop.f32.mrf.mxu0
      %v1478 = vadd.f32 0.0, %v1477
      %v1479 = vpop.f32.mrf.mxu0
      %v1480 = vadd.f32 0.0, %v1479
      %1481 = vmatmul.bf16.gmra.mxu0 %v1356
      %v1482 = vpop.f32.mrf.mxu0
      %v1483 = vadd.f32 0.0, %v1482
      %v1484 = vpop.f32.mrf.mxu0
      %v1485 = vadd.f32 0.0, %v1484
      %1486 = vmatmul.bf16.gmra.mxu0 %v1357
      %v1487 = vpop.f32.mrf.mxu0
      %v1488 = vadd.f32 0.0, %v1487
      %v1489 = vpop.f32.mrf.mxu0
      %v1490 = vadd.f32 0.0, %v1489
      %1491 = vmatmul.bf16.gmra.mxu0 %v1358
      %v1492 = vpop.f32.mrf.mxu0
      %v1493 = vadd.f32 0.0, %v1492
      %v1494 = vpop.f32.mrf.mxu0
      %v1495 = vadd.f32 0.0, %v1494
      %1496 = vmatmul.bf16.gmra.mxu0 %v1359
      %v1497 = vpop.f32.mrf.mxu0
      %v1498 = vadd.f32 0.0, %v1497
      %v1499 = vpop.f32.mrf.mxu0
      %v1500 = vadd.f32 0.0, %v1499
      %1501 = vmatmul.bf16.gmra.mxu0 %v1360
      %v1502 = vpop.f32.mrf.mxu0
      %v1503 = vadd.f32 0.0, %v1502
      %v1504 = vpop.f32.mrf.mxu0
      %v1505 = vadd.f32 0.0, %v1504
      %1506 = vmatmul.bf16.gmra.mxu0 %v1361
      %v1507 = vpop.f32.mrf.mxu0
      %v1508 = vadd.f32 0.0, %v1507
      %v1509 = vpop.f32.mrf.mxu0
      %v1510 = vadd.f32 0.0, %v1509
      %1511 = vmatmul.bf16.gmra.mxu0 %v1362
      %v1512 = vpop.f32.mrf.mxu0
      %v1513 = vadd.f32 0.0, %v1512
      %v1514 = vpop.f32.mrf.mxu0
      %v1515 = vadd.f32 0.0, %v1514
      %1516 = vdwg.mxu0
      %v1517 = vadd.f32 %v1283, %v1438
      %v1518 = vadd.f32 %v1284, %v1440
      %v1519 = vadd.f32 %v1285, %v1443
      %v1520 = vadd.f32 %v1286, %v1445
      %v1521 = vadd.f32 %v1287, %v1448
      %v1522 = vadd.f32 %v1288, %v1450
      %v1523 = vadd.f32 %v1289, %v1453
      %v1524 = vadd.f32 %v1290, %v1455
      %v1525 = vadd.f32 %v1291, %v1458
      %v1526 = vadd.f32 %v1292, %v1460
      %v1527 = vadd.f32 %v1293, %v1463
      %v1528 = vadd.f32 %v1294, %v1465
      %v1529 = vadd.f32 %v1295, %v1468
      %v1530 = vadd.f32 %v1296, %v1470
      %v1531 = vadd.f32 %v1297, %v1473
      %v1532 = vadd.f32 %v1298, %v1475
      %v1533 = vadd.f32 %v1299, %v1478
      %v1534 = vadd.f32 %v1300, %v1480
      %v1535 = vadd.f32 %v1301, %v1483
      %v1536 = vadd.f32 %v1302, %v1485
      %v1537 = vadd.f32 %v1303, %v1488
      %v1538 = vadd.f32 %v1304, %v1490
      %v1539 = vadd.f32 %v1305, %v1493
      %v1540 = vadd.f32 %v1306, %v1495
      %v1541 = vadd.f32 %v1307, %v1498
      %v1542 = vadd.f32 %v1308, %v1500
      %v1543 = vadd.f32 %v1309, %v1503
      %v1544 = vadd.f32 %v1310, %v1505
      %v1545 = vadd.f32 %v1311, %v1508
      %v1546 = vadd.f32 %v1312, %v1510
      %v1547 = vadd.f32 %v1313, %v1513
      %v1548 = vadd.f32 %v1314, %v1515
      %s1549 = scalar_lea.vmem %s199, 48
      %v1550 = vld [vmem:[%s1549] sm:$0xff]
      %v1551 = vld [vmem:[%s1549 + $0x8] sm:$0xff]
      %v1552 = vld [vmem:[%s1549 + $0x18] sm:$0xff]
      %v1553 = vld [vmem:[%s1549 + $0x20] sm:$0xff]
      %v1554 = vld [vmem:[%s1549 + $0x30] sm:$0xff]
      %v1555 = vld [vmem:[%s1549 + $0x38] sm:$0xff]
      %v1556 = vld [vmem:[%s1549 + $0x48] sm:$0xff]
      %v1557 = vld [vmem:[%s1549 + $0x50] sm:$0xff]
      %v1558 = vld [vmem:[%s1549 + $0x60] sm:$0xff]
      %v1559 = vld [vmem:[%s1549 + $0x68] sm:$0xff]
      %v1560 = vld [vmem:[%s1549 + $0x78] sm:$0xff]
      %v1561 = vld [vmem:[%s1549 + $0x80] sm:$0xff]
      %v1562 = vld [vmem:[%s1549 + $0x90] sm:$0xff]
      %v1563 = vld [vmem:[%s1549 + $0x98] sm:$0xff]
      %v1564 = vld [vmem:[%s1549 + $0xa8] sm:$0xff]
      %v1565 = vld [vmem:[%s1549 + $0xb0] sm:$0xff]
      %v1566 = vld [vmem:[%s1549 + $0xc0] sm:$0xff]
      %v1567 = vld [vmem:[%s1549 + $0xc8] sm:$0xff]
      %v1568 = vld [vmem:[%s1549 + $0xd8] sm:$0xff]
      %v1569 = vld [vmem:[%s1549 + $0xe0] sm:$0xff]
      %v1570 = vld [vmem:[%s1549 + $0xf0] sm:$0xff]
      %v1571 = vld [vmem:[%s1549 + $0xf8] sm:$0xff]
      %v1572 = vld [vmem:[%s1549 + $0x108] sm:$0xff]
      %v1573 = vld [vmem:[%s1549 + $0x110] sm:$0xff]
      %v1574 = vld [vmem:[%s1549 + $0x120] sm:$0xff]
      %v1575 = vld [vmem:[%s1549 + $0x128] sm:$0xff]
      %v1576 = vld [vmem:[%s1549 + $0x138] sm:$0xff]
      %v1577 = vld [vmem:[%s1549 + $0x140] sm:$0xff]
      %v1578 = vld [vmem:[%s1549 + $0x150] sm:$0xff]
      %v1579 = vld [vmem:[%s1549 + $0x158] sm:$0xff]
      %v1580 = vld [vmem:[%s1549 + $0x168] sm:$0xff]
      %v1581 = vld [vmem:[%s1549 + $0x170] sm:$0xff]
      %v1582 = vpack.c.bf16 %v1551, %v1550
      %v1583 = vpack.c.bf16 %v1553, %v1552
      %v1584 = vpack.c.bf16 %v1555, %v1554
      %v1585 = vpack.c.bf16 %v1557, %v1556
      %v1586 = vpack.c.bf16 %v1559, %v1558
      %v1587 = vpack.c.bf16 %v1561, %v1560
      %v1588 = vpack.c.bf16 %v1563, %v1562
      %v1589 = vpack.c.bf16 %v1565, %v1564
      %v1590 = vpack.c.bf16 %v1567, %v1566
      %v1591 = vpack.c.bf16 %v1569, %v1568
      %v1592 = vpack.c.bf16 %v1571, %v1570
      %v1593 = vpack.c.bf16 %v1573, %v1572
      %v1594 = vpack.c.bf16 %v1575, %v1574
      %v1595 = vpack.c.bf16 %v1577, %v1576
      %v1596 = vpack.c.bf16 %v1579, %v1578
      %v1597 = vpack.c.bf16 %v1581, %v1580
      %s1598 = scalar_lea.vmem %s1, 384
      %v1599 = vld [vmem:[%s1598] sm:$0xf]
      %v1600 = vld [vmem:[%s1598 + $0x4] sm:$0xf]
      %v1601 = vld [vmem:[%s1598 + $0x8] sm:$0xf]
      %v1602 = vld [vmem:[%s1598 + $0xc] sm:$0xf]
      %v1603 = vld [vmem:[%s1598 + $0x10] sm:$0xf]
      %v1604 = vld [vmem:[%s1598 + $0x14] sm:$0xf]
      %v1605 = vld [vmem:[%s1598 + $0x18] sm:$0xf]
      %v1606 = vld [vmem:[%s1598 + $0x1c] sm:$0xf]
      %v1607 = vld [vmem:[%s1598 + $0x20] sm:$0xf]
      %v1608 = vld [vmem:[%s1598 + $0x24] sm:$0xf]
      %v1609 = vld [vmem:[%s1598 + $0x28] sm:$0xf]
      %v1610 = vld [vmem:[%s1598 + $0x2c] sm:$0xf]
      %v1611 = vld [vmem:[%s1598 + $0x30] sm:$0xf]
      %v1612 = vld [vmem:[%s1598 + $0x34] sm:$0xf]
      %v1613 = vld [vmem:[%s1598 + $0x38] sm:$0xf]
      %v1614 = vld [vmem:[%s1598 + $0x3c] sm:$0xf]
      %v1631 = vunpack.c.l.b16 %v1599
      %v1632 = vunpack.c.l.b16 %v1600
      %v1633 = vunpack.c.l.b16 %v1601
      %v1634 = vunpack.c.l.b16 %v1602
      %v1635 = vunpack.c.l.b16 %v1603
      %v1636 = vunpack.c.l.b16 %v1604
      %v1637 = vunpack.c.l.b16 %v1605
      %v1638 = vunpack.c.l.b16 %v1606
      %v1639 = vunpack.c.l.b16 %v1607
      %v1640 = vunpack.c.l.b16 %v1608
      %v1641 = vunpack.c.l.b16 %v1609
      %v1642 = vunpack.c.l.b16 %v1610
      %v1643 = vunpack.c.l.b16 %v1611
      %v1644 = vunpack.c.l.b16 %v1612
      %v1645 = vunpack.c.l.b16 %v1613
      %v1646 = vunpack.c.l.b16 %v1614
      %v1647 = vpack.c.b16 %v1632, %v1631
      %v1648 = vpack.c.b16 %v1634, %v1633
      %v1649 = vpack.c.b16 %v1636, %v1635
      %v1650 = vpack.c.b16 %v1638, %v1637
      %v1651 = vpack.c.b16 %v1640, %v1639
      %v1652 = vpack.c.b16 %v1642, %v1641
      %v1653 = vpack.c.b16 %v1644, %v1643
      %v1654 = vpack.c.b16 %v1646, %v1645
      %1663 = vmatpush.bf16.msra.mxu0 %v1654
      %1664 = vmatpush.bf16.msra.mxu0 %v1653
      %1665 = vmatpush.bf16.msra.mxu0 %v1652
      %1666 = vmatpush.bf16.msra.mxu0 %v1651
      %1667 = vmatpush.bf16.msra.mxu0 %v1650
      %1668 = vmatpush.bf16.msra.mxu0 %v1649
      %1669 = vmatpush.bf16.msra.mxu0 %v1648
      %1670 = vmatpush.bf16.msra.mxu0 %v1647
      %1671 = vmatmul.bf16.gmra.mxu0 %v1582
      %v1672 = vpop.f32.mrf.mxu0
      %v1673 = vadd.f32 0.0, %v1672
      %v1674 = vpop.f32.mrf.mxu0
      %v1675 = vadd.f32 0.0, %v1674
      %1676 = vmatmul.bf16.gmra.mxu0 %v1583
      %v1677 = vpop.f32.mrf.mxu0
      %v1678 = vadd.f32 0.0, %v1677
      %v1679 = vpop.f32.mrf.mxu0
      %v1680 = vadd.f32 0.0, %v1679
      %1681 = vmatmul.bf16.gmra.mxu0 %v1584
      %v1682 = vpop.f32.mrf.mxu0
      %v1683 = vadd.f32 0.0, %v1682
      %v1684 = vpop.f32.mrf.mxu0
      %v1685 = vadd.f32 0.0, %v1684
      %1686 = vmatmul.bf16.gmra.mxu0 %v1585
      %v1687 = vpop.f32.mrf.mxu0
      %v1688 = vadd.f32 0.0, %v1687
      %v1689 = vpop.f32.mrf.mxu0
      %v1690 = vadd.f32 0.0, %v1689
      %1691 = vmatmul.bf16.gmra.mxu0 %v1586
      %v1692 = vpop.f32.mrf.mxu0
      %v1693 = vadd.f32 0.0, %v1692
      %v1694 = vpop.f32.mrf.mxu0
      %v1695 = vadd.f32 0.0, %v1694
      %1696 = vmatmul.bf16.gmra.mxu0 %v1587
      %v1697 = vpop.f32.mrf.mxu0
      %v1698 = vadd.f32 0.0, %v1697
      %v1699 = vpop.f32.mrf.mxu0
      %v1700 = vadd.f32 0.0, %v1699
      %1701 = vmatmul.bf16.gmra.mxu0 %v1588
      %v1702 = vpop.f32.mrf.mxu0
      %v1703 = vadd.f32 0.0, %v1702
      %v1704 = vpop.f32.mrf.mxu0
      %v1705 = vadd.f32 0.0, %v1704
      %1706 = vmatmul.bf16.gmra.mxu0 %v1589
      %v1707 = vpop.f32.mrf.mxu0
      %v1708 = vadd.f32 0.0, %v1707
      %v1709 = vpop.f32.mrf.mxu0
      %v1710 = vadd.f32 0.0, %v1709
      %1711 = vmatmul.bf16.gmra.mxu0 %v1590
      %v1712 = vpop.f32.mrf.mxu0
      %v1713 = vadd.f32 0.0, %v1712
      %v1714 = vpop.f32.mrf.mxu0
      %v1715 = vadd.f32 0.0, %v1714
      %1716 = vmatmul.bf16.gmra.mxu0 %v1591
      %v1717 = vpop.f32.mrf.mxu0
      %v1718 = vadd.f32 0.0, %v1717
      %v1719 = vpop.f32.mrf.mxu0
      %v1720 = vadd.f32 0.0, %v1719
      %1721 = vmatmul.bf16.gmra.mxu0 %v1592
      %v1722 = vpop.f32.mrf.mxu0
      %v1723 = vadd.f32 0.0, %v1722
      %v1724 = vpop.f32.mrf.mxu0
      %v1725 = vadd.f32 0.0, %v1724
      %1726 = vmatmul.bf16.gmra.mxu0 %v1593
      %v1727 = vpop.f32.mrf.mxu0
      %v1728 = vadd.f32 0.0, %v1727
      %v1729 = vpop.f32.mrf.mxu0
      %v1730 = vadd.f32 0.0, %v1729
      %1731 = vmatmul.bf16.gmra.mxu0 %v1594
      %v1732 = vpop.f32.mrf.mxu0
      %v1733 = vadd.f32 0.0, %v1732
      %v1734 = vpop.f32.mrf.mxu0
      %v1735 = vadd.f32 0.0, %v1734
      %1736 = vmatmul.bf16.gmra.mxu0 %v1595
      %v1737 = vpop.f32.mrf.mxu0
      %v1738 = vadd.f32 0.0, %v1737
      %v1739 = vpop.f32.mrf.mxu0
      %v1740 = vadd.f32 0.0, %v1739
      %1741 = vmatmul.bf16.gmra.mxu0 %v1596
      %v1742 = vpop.f32.mrf.mxu0
      %v1743 = vadd.f32 0.0, %v1742
      %v1744 = vpop.f32.mrf.mxu0
      %v1745 = vadd.f32 0.0, %v1744
      %1746 = vmatmul.bf16.gmra.mxu0 %v1597
      %v1747 = vpop.f32.mrf.mxu0
      %v1748 = vadd.f32 0.0, %v1747
      %v1749 = vpop.f32.mrf.mxu0
      %v1750 = vadd.f32 0.0, %v1749
      %1751 = vdwg.mxu0
      %v1752 = vadd.f32 %v1517, %v1673
      %v1753 = vadd.f32 %v1518, %v1675
      %v1754 = vadd.f32 %v1519, %v1678
      %v1755 = vadd.f32 %v1520, %v1680
      %v1756 = vadd.f32 %v1521, %v1683
      %v1757 = vadd.f32 %v1522, %v1685
      %v1758 = vadd.f32 %v1523, %v1688
      %v1759 = vadd.f32 %v1524, %v1690
      %v1760 = vadd.f32 %v1525, %v1693
      %v1761 = vadd.f32 %v1526, %v1695
      %v1762 = vadd.f32 %v1527, %v1698
      %v1763 = vadd.f32 %v1528, %v1700
      %v1764 = vadd.f32 %v1529, %v1703
      %v1765 = vadd.f32 %v1530, %v1705
      %v1766 = vadd.f32 %v1531, %v1708
      %v1767 = vadd.f32 %v1532, %v1710
      %v1768 = vadd.f32 %v1533, %v1713
      %v1769 = vadd.f32 %v1534, %v1715
      %v1770 = vadd.f32 %v1535, %v1718
      %v1771 = vadd.f32 %v1536, %v1720
      %v1772 = vadd.f32 %v1537, %v1723
      %v1773 = vadd.f32 %v1538, %v1725
      %v1774 = vadd.f32 %v1539, %v1728
      %v1775 = vadd.f32 %v1540, %v1730
      %v1776 = vadd.f32 %v1541, %v1733
      %v1777 = vadd.f32 %v1542, %v1735
      %v1778 = vadd.f32 %v1543, %v1738
      %v1779 = vadd.f32 %v1544, %v1740
      %v1780 = vadd.f32 %v1545, %v1743
      %v1781 = vadd.f32 %v1546, %v1745
      %v1782 = vadd.f32 %v1547, %v1748
      %v1783 = vadd.f32 %v1548, %v1750
      %v1784 = vld [vmem:[%s1549 + $0x1] sm:$0xff]
      %v1785 = vld [vmem:[%s1549 + $0x9] sm:$0xff]
      %v1786 = vld [vmem:[%s1549 + $0x19] sm:$0xff]
      %v1787 = vld [vmem:[%s1549 + $0x21] sm:$0xff]
      %v1788 = vld [vmem:[%s1549 + $0x31] sm:$0xff]
      %v1789 = vld [vmem:[%s1549 + $0x39] sm:$0xff]
      %v1790 = vld [vmem:[%s1549 + $0x49] sm:$0xff]
      %v1791 = vld [vmem:[%s1549 + $0x51] sm:$0xff]
      %v1792 = vld [vmem:[%s1549 + $0x61] sm:$0xff]
      %v1793 = vld [vmem:[%s1549 + $0x69] sm:$0xff]
      %v1794 = vld [vmem:[%s1549 + $0x79] sm:$0xff]
      %v1795 = vld [vmem:[%s1549 + $0x81] sm:$0xff]
      %v1796 = vld [vmem:[%s1549 + $0x91] sm:$0xff]
      %v1797 = vld [vmem:[%s1549 + $0x99] sm:$0xff]
      %v1798 = vld [vmem:[%s1549 + $0xa9] sm:$0xff]
      %v1799 = vld [vmem:[%s1549 + $0xb1] sm:$0xff]
      %v1800 = vld [vmem:[%s1549 + $0xc1] sm:$0xff]
      %v1801 = vld [vmem:[%s1549 + $0xc9] sm:$0xff]
      %v1802 = vld [vmem:[%s1549 + $0xd9] sm:$0xff]
      %v1803 = vld [vmem:[%s1549 + $0xe1] sm:$0xff]
      %v1804 = vld [vmem:[%s1549 + $0xf1] sm:$0xff]
      %v1805 = vld [vmem:[%s1549 + $0xf9] sm:$0xff]
      %v1806 = vld [vmem:[%s1549 + $0x109] sm:$0xff]
      %v1807 = vld [vmem:[%s1549 + $0x111] sm:$0xff]
      %v1808 = vld [vmem:[%s1549 + $0x121] sm:$0xff]
      %v1809 = vld [vmem:[%s1549 + $0x129] sm:$0xff]
      %v1810 = vld [vmem:[%s1549 + $0x139] sm:$0xff]
      %v1811 = vld [vmem:[%s1549 + $0x141] sm:$0xff]
      %v1812 = vld [vmem:[%s1549 + $0x151] sm:$0xff]
      %v1813 = vld [vmem:[%s1549 + $0x159] sm:$0xff]
      %v1814 = vld [vmem:[%s1549 + $0x169] sm:$0xff]
      %v1815 = vld [vmem:[%s1549 + $0x171] sm:$0xff]
      %v1816 = vpack.c.bf16 %v1785, %v1784
      %v1817 = vpack.c.bf16 %v1787, %v1786
      %v1818 = vpack.c.bf16 %v1789, %v1788
      %v1819 = vpack.c.bf16 %v1791, %v1790
      %v1820 = vpack.c.bf16 %v1793, %v1792
      %v1821 = vpack.c.bf16 %v1795, %v1794
      %v1822 = vpack.c.bf16 %v1797, %v1796
      %v1823 = vpack.c.bf16 %v1799, %v1798
      %v1824 = vpack.c.bf16 %v1801, %v1800
      %v1825 = vpack.c.bf16 %v1803, %v1802
      %v1826 = vpack.c.bf16 %v1805, %v1804
      %v1827 = vpack.c.bf16 %v1807, %v1806
      %v1828 = vpack.c.bf16 %v1809, %v1808
      %v1829 = vpack.c.bf16 %v1811, %v1810
      %v1830 = vpack.c.bf16 %v1813, %v1812
      %v1831 = vpack.c.bf16 %v1815, %v1814
      %s1832 = scalar_lea.vmem %s1, 448
      %v1833 = vld [vmem:[%s1832] sm:$0xf]
      %v1834 = vld [vmem:[%s1832 + $0x4] sm:$0xf]
      %v1835 = vld [vmem:[%s1832 + $0x8] sm:$0xf]
      %v1836 = vld [vmem:[%s1832 + $0xc] sm:$0xf]
      %v1837 = vld [vmem:[%s1832 + $0x10] sm:$0xf]
      %v1838 = vld [vmem:[%s1832 + $0x14] sm:$0xf]
      %v1839 = vld [vmem:[%s1832 + $0x18] sm:$0xf]
      %v1840 = vld [vmem:[%s1832 + $0x1c] sm:$0xf]
      %v1841 = vld [vmem:[%s1832 + $0x20] sm:$0xf]
      %v1842 = vld [vmem:[%s1832 + $0x24] sm:$0xf]
      %v1843 = vld [vmem:[%s1832 + $0x28] sm:$0xf]
      %v1844 = vld [vmem:[%s1832 + $0x2c] sm:$0xf]
      %v1845 = vld [vmem:[%s1832 + $0x30] sm:$0xf]
      %v1846 = vld [vmem:[%s1832 + $0x34] sm:$0xf]
      %v1847 = vld [vmem:[%s1832 + $0x38] sm:$0xf]
      %v1848 = vld [vmem:[%s1832 + $0x3c] sm:$0xf]
      %v1865 = vunpack.c.l.b16 %v1833
      %v1866 = vunpack.c.l.b16 %v1834
      %v1867 = vunpack.c.l.b16 %v1835
      %v1868 = vunpack.c.l.b16 %v1836
      %v1869 = vunpack.c.l.b16 %v1837
      %v1870 = vunpack.c.l.b16 %v1838
      %v1871 = vunpack.c.l.b16 %v1839
      %v1872 = vunpack.c.l.b16 %v1840
      %v1873 = vunpack.c.l.b16 %v1841
      %v1874 = vunpack.c.l.b16 %v1842
      %v1875 = vunpack.c.l.b16 %v1843
      %v1876 = vunpack.c.l.b16 %v1844
      %v1877 = vunpack.c.l.b16 %v1845
      %v1878 = vunpack.c.l.b16 %v1846
      %v1879 = vunpack.c.l.b16 %v1847
      %v1880 = vunpack.c.l.b16 %v1848
      %v1881 = vpack.c.b16 %v1866, %v1865
      %v1882 = vpack.c.b16 %v1868, %v1867
      %v1883 = vpack.c.b16 %v1870, %v1869
      %v1884 = vpack.c.b16 %v1872, %v1871
      %v1885 = vpack.c.b16 %v1874, %v1873
      %v1886 = vpack.c.b16 %v1876, %v1875
      %v1887 = vpack.c.b16 %v1878, %v1877
      %v1888 = vpack.c.b16 %v1880, %v1879
      %1897 = vmatpush.bf16.msra.mxu0 %v1888
      %1898 = vmatpush.bf16.msra.mxu0 %v1887
      %1899 = vmatpush.bf16.msra.mxu0 %v1886
      %1900 = vmatpush.bf16.msra.mxu0 %v1885
      %1901 = vmatpush.bf16.msra.mxu0 %v1884
      %1902 = vmatpush.bf16.msra.mxu0 %v1883
      %1903 = vmatpush.bf16.msra.mxu0 %v1882
      %1904 = vmatpush.bf16.msra.mxu0 %v1881
      %1905 = vmatmul.bf16.gmra.mxu0 %v1816
      %v1906 = vpop.f32.mrf.mxu0
      %v1907 = vadd.f32 0.0, %v1906
      %v1908 = vpop.f32.mrf.mxu0
      %v1909 = vadd.f32 0.0, %v1908
      %1910 = vmatmul.bf16.gmra.mxu0 %v1817
      %v1911 = vpop.f32.mrf.mxu0
      %v1912 = vadd.f32 0.0, %v1911
      %v1913 = vpop.f32.mrf.mxu0
      %v1914 = vadd.f32 0.0, %v1913
      %1915 = vmatmul.bf16.gmra.mxu0 %v1818
      %v1916 = vpop.f32.mrf.mxu0
      %v1917 = vadd.f32 0.0, %v1916
      %v1918 = vpop.f32.mrf.mxu0
      %v1919 = vadd.f32 0.0, %v1918
      %1920 = vmatmul.bf16.gmra.mxu0 %v1819
      %v1921 = vpop.f32.mrf.mxu0
      %v1922 = vadd.f32 0.0, %v1921
      %v1923 = vpop.f32.mrf.mxu0
      %v1924 = vadd.f32 0.0, %v1923
      %1925 = vmatmul.bf16.gmra.mxu0 %v1820
      %v1926 = vpop.f32.mrf.mxu0
      %v1927 = vadd.f32 0.0, %v1926
      %v1928 = vpop.f32.mrf.mxu0
      %v1929 = vadd.f32 0.0, %v1928
      %1930 = vmatmul.bf16.gmra.mxu0 %v1821
      %v1931 = vpop.f32.mrf.mxu0
      %v1932 = vadd.f32 0.0, %v1931
      %v1933 = vpop.f32.mrf.mxu0
      %v1934 = vadd.f32 0.0, %v1933
      %1935 = vmatmul.bf16.gmra.mxu0 %v1822
      %v1936 = vpop.f32.mrf.mxu0
      %v1937 = vadd.f32 0.0, %v1936
      %v1938 = vpop.f32.mrf.mxu0
      %v1939 = vadd.f32 0.0, %v1938
      %1940 = vmatmul.bf16.gmra.mxu0 %v1823
      %v1941 = vpop.f32.mrf.mxu0
      %v1942 = vadd.f32 0.0, %v1941
      %v1943 = vpop.f32.mrf.mxu0
      %v1944 = vadd.f32 0.0, %v1943
      %1945 = vmatmul.bf16.gmra.mxu0 %v1824
      %v1946 = vpop.f32.mrf.mxu0
      %v1947 = vadd.f32 0.0, %v1946
      %v1948 = vpop.f32.mrf.mxu0
      %v1949 = vadd.f32 0.0, %v1948
      %1950 = vmatmul.bf16.gmra.mxu0 %v1825
      %v1951 = vpop.f32.mrf.mxu0
      %v1952 = vadd.f32 0.0, %v1951
      %v1953 = vpop.f32.mrf.mxu0
      %v1954 = vadd.f32 0.0, %v1953
      %1955 = vmatmul.bf16.gmra.mxu0 %v1826
      %v1956 = vpop.f32.mrf.mxu0
      %v1957 = vadd.f32 0.0, %v1956
      %v1958 = vpop.f32.mrf.mxu0
      %v1959 = vadd.f32 0.0, %v1958
      %1960 = vmatmul.bf16.gmra.mxu0 %v1827
      %v1961 = vpop.f32.mrf.mxu0
      %v1962 = vadd.f32 0.0, %v1961
      %v1963 = vpop.f32.mrf.mxu0
      %v1964 = vadd.f32 0.0, %v1963
      %1965 = vmatmul.bf16.gmra.mxu0 %v1828
      %v1966 = vpop.f32.mrf.mxu0
      %v1967 = vadd.f32 0.0, %v1966
      %v1968 = vpop.f32.mrf.mxu0
      %v1969 = vadd.f32 0.0, %v1968
      %1970 = vmatmul.bf16.gmra.mxu0 %v1829
      %v1971 = vpop.f32.mrf.mxu0
      %v1972 = vadd.f32 0.0, %v1971
      %v1973 = vpop.f32.mrf.mxu0
      %v1974 = vadd.f32 0.0, %v1973
      %1975 = vmatmul.bf16.gmra.mxu0 %v1830
      %v1976 = vpop.f32.mrf.mxu0
      %v1977 = vadd.f32 0.0, %v1976
      %v1978 = vpop.f32.mrf.mxu0
      %v1979 = vadd.f32 0.0, %v1978
      %1980 = vmatmul.bf16.gmra.mxu0 %v1831
      %v1981 = vpop.f32.mrf.mxu0
      %v1982 = vadd.f32 0.0, %v1981
      %v1983 = vpop.f32.mrf.mxu0
      %v1984 = vadd.f32 0.0, %v1983
      %1985 = vdwg.mxu0
      %v1986 = vadd.f32 %v1752, %v1907
      %v1987 = vadd.f32 %v1753, %v1909
      %v1988 = vadd.f32 %v1754, %v1912
      %v1989 = vadd.f32 %v1755, %v1914
      %v1990 = vadd.f32 %v1756, %v1917
      %v1991 = vadd.f32 %v1757, %v1919
      %v1992 = vadd.f32 %v1758, %v1922
      %v1993 = vadd.f32 %v1759, %v1924
      %v1994 = vadd.f32 %v1760, %v1927
      %v1995 = vadd.f32 %v1761, %v1929
      %v1996 = vadd.f32 %v1762, %v1932
      %v1997 = vadd.f32 %v1763, %v1934
      %v1998 = vadd.f32 %v1764, %v1937
      %v1999 = vadd.f32 %v1765, %v1939
      %v2000 = vadd.f32 %v1766, %v1942
      %v2001 = vadd.f32 %v1767, %v1944
      %v2002 = vadd.f32 %v1768, %v1947
      %v2003 = vadd.f32 %v1769, %v1949
      %v2004 = vadd.f32 %v1770, %v1952
      %v2005 = vadd.f32 %v1771, %v1954
      %v2006 = vadd.f32 %v1772, %v1957
      %v2007 = vadd.f32 %v1773, %v1959
      %v2008 = vadd.f32 %v1774, %v1962
      %v2009 = vadd.f32 %v1775, %v1964
      %v2010 = vadd.f32 %v1776, %v1967
      %v2011 = vadd.f32 %v1777, %v1969
      %v2012 = vadd.f32 %v1778, %v1972
      %v2013 = vadd.f32 %v1779, %v1974
      %v2014 = vadd.f32 %v1780, %v1977
      %v2015 = vadd.f32 %v1781, %v1979
      %v2016 = vadd.f32 %v1782, %v1982
      %v2017 = vadd.f32 %v1783, %v1984
      %v2018 = vld [vmem:[%s1549 + $0x2] sm:$0xff]
      %v2019 = vld [vmem:[%s1549 + $0xa] sm:$0xff]
      %v2020 = vld [vmem:[%s1549 + $0x1a] sm:$0xff]
      %v2021 = vld [vmem:[%s1549 + $0x22] sm:$0xff]
      %v2022 = vld [vmem:[%s1549 + $0x32] sm:$0xff]
      %v2023 = vld [vmem:[%s1549 + $0x3a] sm:$0xff]
      %v2024 = vld [vmem:[%s1549 + $0x4a] sm:$0xff]
      %v2025 = vld [vmem:[%s1549 + $0x52] sm:$0xff]
      %v2026 = vld [vmem:[%s1549 + $0x62] sm:$0xff]
      %v2027 = vld [vmem:[%s1549 + $0x6a] sm:$0xff]
      %v2028 = vld [vmem:[%s1549 + $0x7a] sm:$0xff]
      %v2029 = vld [vmem:[%s1549 + $0x82] sm:$0xff]
      %v2030 = vld [vmem:[%s1549 + $0x92] sm:$0xff]
      %v2031 = vld [vmem:[%s1549 + $0x9a] sm:$0xff]
      %v2032 = vld [vmem:[%s1549 + $0xaa] sm:$0xff]
      %v2033 = vld [vmem:[%s1549 + $0xb2] sm:$0xff]
      %v2034 = vld [vmem:[%s1549 + $0xc2] sm:$0xff]
      %v2035 = vld [vmem:[%s1549 + $0xca] sm:$0xff]
      %v2036 = vld [vmem:[%s1549 + $0xda] sm:$0xff]
      %v2037 = vld [vmem:[%s1549 + $0xe2] sm:$0xff]
      %v2038 = vld [vmem:[%s1549 + $0xf2] sm:$0xff]
      %v2039 = vld [vmem:[%s1549 + $0xfa] sm:$0xff]
      %v2040 = vld [vmem:[%s1549 + $0x10a] sm:$0xff]
      %v2041 = vld [vmem:[%s1549 + $0x112] sm:$0xff]
      %v2042 = vld [vmem:[%s1549 + $0x122] sm:$0xff]
      %v2043 = vld [vmem:[%s1549 + $0x12a] sm:$0xff]
      %v2044 = vld [vmem:[%s1549 + $0x13a] sm:$0xff]
      %v2045 = vld [vmem:[%s1549 + $0x142] sm:$0xff]
      %v2046 = vld [vmem:[%s1549 + $0x152] sm:$0xff]
      %v2047 = vld [vmem:[%s1549 + $0x15a] sm:$0xff]
      %v2048 = vld [vmem:[%s1549 + $0x16a] sm:$0xff]
      %v2049 = vld [vmem:[%s1549 + $0x172] sm:$0xff]
      %v2050 = vpack.c.bf16 %v2019, %v2018
      %v2051 = vpack.c.bf16 %v2021, %v2020
      %v2052 = vpack.c.bf16 %v2023, %v2022
      %v2053 = vpack.c.bf16 %v2025, %v2024
      %v2054 = vpack.c.bf16 %v2027, %v2026
      %v2055 = vpack.c.bf16 %v2029, %v2028
      %v2056 = vpack.c.bf16 %v2031, %v2030
      %v2057 = vpack.c.bf16 %v2033, %v2032
      %v2058 = vpack.c.bf16 %v2035, %v2034
      %v2059 = vpack.c.bf16 %v2037, %v2036
      %v2060 = vpack.c.bf16 %v2039, %v2038
      %v2061 = vpack.c.bf16 %v2041, %v2040
      %v2062 = vpack.c.bf16 %v2043, %v2042
      %v2063 = vpack.c.bf16 %v2045, %v2044
      %v2064 = vpack.c.bf16 %v2047, %v2046
      %v2065 = vpack.c.bf16 %v2049, %v2048
      %s2066 = scalar_lea.vmem %s1, 512
      %v2067 = vld [vmem:[%s2066] sm:$0xf]
      %v2068 = vld [vmem:[%s2066 + $0x4] sm:$0xf]
      %v2069 = vld [vmem:[%s2066 + $0x8] sm:$0xf]
      %v2070 = vld [vmem:[%s2066 + $0xc] sm:$0xf]
      %v2071 = vld [vmem:[%s2066 + $0x10] sm:$0xf]
      %v2072 = vld [vmem:[%s2066 + $0x14] sm:$0xf]
      %v2073 = vld [vmem:[%s2066 + $0x18] sm:$0xf]
      %v2074 = vld [vmem:[%s2066 + $0x1c] sm:$0xf]
      %v2075 = vld [vmem:[%s2066 + $0x20] sm:$0xf]
      %v2076 = vld [vmem:[%s2066 + $0x24] sm:$0xf]
      %v2077 = vld [vmem:[%s2066 + $0x28] sm:$0xf]
      %v2078 = vld [vmem:[%s2066 + $0x2c] sm:$0xf]
      %v2079 = vld [vmem:[%s2066 + $0x30] sm:$0xf]
      %v2080 = vld [vmem:[%s2066 + $0x34] sm:$0xf]
      %v2081 = vld [vmem:[%s2066 + $0x38] sm:$0xf]
      %v2082 = vld [vmem:[%s2066 + $0x3c] sm:$0xf]
      %v2099 = vunpack.c.l.b16 %v2067
      %v2100 = vunpack.c.l.b16 %v2068
      %v2101 = vunpack.c.l.b16 %v2069
      %v2102 = vunpack.c.l.b16 %v2070
      %v2103 = vunpack.c.l.b16 %v2071
      %v2104 = vunpack.c.l.b16 %v2072
      %v2105 = vunpack.c.l.b16 %v2073
      %v2106 = vunpack.c.l.b16 %v2074
      %v2107 = vunpack.c.l.b16 %v2075
      %v2108 = vunpack.c.l.b16 %v2076
      %v2109 = vunpack.c.l.b16 %v2077
      %v2110 = vunpack.c.l.b16 %v2078
      %v2111 = vunpack.c.l.b16 %v2079
      %v2112 = vunpack.c.l.b16 %v2080
      %v2113 = vunpack.c.l.b16 %v2081
      %v2114 = vunpack.c.l.b16 %v2082
      %v2115 = vpack.c.b16 %v2100, %v2099
      %v2116 = vpack.c.b16 %v2102, %v2101
      %v2117 = vpack.c.b16 %v2104, %v2103
      %v2118 = vpack.c.b16 %v2106, %v2105
      %v2119 = vpack.c.b16 %v2108, %v2107
      %v2120 = vpack.c.b16 %v2110, %v2109
      %v2121 = vpack.c.b16 %v2112, %v2111
      %v2122 = vpack.c.b16 %v2114, %v2113
      %2131 = vmatpush.bf16.msra.mxu0 %v2122
      %2132 = vmatpush.bf16.msra.mxu0 %v2121
      %2133 = vmatpush.bf16.msra.mxu0 %v2120
      %2134 = vmatpush.bf16.msra.mxu0 %v2119
      %2135 = vmatpush.bf16.msra.mxu0 %v2118
      %2136 = vmatpush.bf16.msra.mxu0 %v2117
      %2137 = vmatpush.bf16.msra.mxu0 %v2116
      %2138 = vmatpush.bf16.msra.mxu0 %v2115
      %2139 = vmatmul.bf16.gmra.mxu0 %v2050
      %v2140 = vpop.f32.mrf.mxu0
      %v2141 = vadd.f32 0.0, %v2140
      %v2142 = vpop.f32.mrf.mxu0
      %v2143 = vadd.f32 0.0, %v2142
      %2144 = vmatmul.bf16.gmra.mxu0 %v2051
      %v2145 = vpop.f32.mrf.mxu0
      %v2146 = vadd.f32 0.0, %v2145
      %v2147 = vpop.f32.mrf.mxu0
      %v2148 = vadd.f32 0.0, %v2147
      %2149 = vmatmul.bf16.gmra.mxu0 %v2052
      %v2150 = vpop.f32.mrf.mxu0
      %v2151 = vadd.f32 0.0, %v2150
      %v2152 = vpop.f32.mrf.mxu0
      %v2153 = vadd.f32 0.0, %v2152
      %2154 = vmatmul.bf16.gmra.mxu0 %v2053
      %v2155 = vpop.f32.mrf.mxu0
      %v2156 = vadd.f32 0.0, %v2155
      %v2157 = vpop.f32.mrf.mxu0
      %v2158 = vadd.f32 0.0, %v2157
      %2159 = vmatmul.bf16.gmra.mxu0 %v2054
      %v2160 = vpop.f32.mrf.mxu0
      %v2161 = vadd.f32 0.0, %v2160
      %v2162 = vpop.f32.mrf.mxu0
      %v2163 = vadd.f32 0.0, %v2162
      %2164 = vmatmul.bf16.gmra.mxu0 %v2055
      %v2165 = vpop.f32.mrf.mxu0
      %v2166 = vadd.f32 0.0, %v2165
      %v2167 = vpop.f32.mrf.mxu0
      %v2168 = vadd.f32 0.0, %v2167
      %2169 = vmatmul.bf16.gmra.mxu0 %v2056
      %v2170 = vpop.f32.mrf.mxu0
      %v2171 = vadd.f32 0.0, %v2170
      %v2172 = vpop.f32.mrf.mxu0
      %v2173 = vadd.f32 0.0, %v2172
      %2174 = vmatmul.bf16.gmra.mxu0 %v2057
      %v2175 = vpop.f32.mrf.mxu0
      %v2176 = vadd.f32 0.0, %v2175
      %v2177 = vpop.f32.mrf.mxu0
      %v2178 = vadd.f32 0.0, %v2177
      %2179 = vmatmul.bf16.gmra.mxu0 %v2058
      %v2180 = vpop.f32.mrf.mxu0
      %v2181 = vadd.f32 0.0, %v2180
      %v2182 = vpop.f32.mrf.mxu0
      %v2183 = vadd.f32 0.0, %v2182
      %2184 = vmatmul.bf16.gmra.mxu0 %v2059
      %v2185 = vpop.f32.mrf.mxu0
      %v2186 = vadd.f32 0.0, %v2185
      %v2187 = vpop.f32.mrf.mxu0
      %v2188 = vadd.f32 0.0, %v2187
      %2189 = vmatmul.bf16.gmra.mxu0 %v2060
      %v2190 = vpop.f32.mrf.mxu0
      %v2191 = vadd.f32 0.0, %v2190
      %v2192 = vpop.f32.mrf.mxu0
      %v2193 = vadd.f32 0.0, %v2192
      %2194 = vmatmul.bf16.gmra.mxu0 %v2061
      %v2195 = vpop.f32.mrf.mxu0
      %v2196 = vadd.f32 0.0, %v2195
      %v2197 = vpop.f32.mrf.mxu0
      %v2198 = vadd.f32 0.0, %v2197
      %2199 = vmatmul.bf16.gmra.mxu0 %v2062
      %v2200 = vpop.f32.mrf.mxu0
      %v2201 = vadd.f32 0.0, %v2200
      %v2202 = vpop.f32.mrf.mxu0
      %v2203 = vadd.f32 0.0, %v2202
      %2204 = vmatmul.bf16.gmra.mxu0 %v2063
      %v2205 = vpop.f32.mrf.mxu0
      %v2206 = vadd.f32 0.0, %v2205
      %v2207 = vpop.f32.mrf.mxu0
      %v2208 = vadd.f32 0.0, %v2207
      %2209 = vmatmul.bf16.gmra.mxu0 %v2064
      %v2210 = vpop.f32.mrf.mxu0
      %v2211 = vadd.f32 0.0, %v2210
      %v2212 = vpop.f32.mrf.mxu0
      %v2213 = vadd.f32 0.0, %v2212
      %2214 = vmatmul.bf16.gmra.mxu0 %v2065
      %v2215 = vpop.f32.mrf.mxu0
      %v2216 = vadd.f32 0.0, %v2215
      %v2217 = vpop.f32.mrf.mxu0
      %v2218 = vadd.f32 0.0, %v2217
      %2219 = vdwg.mxu0
      %v2220 = vadd.f32 %v1986, %v2141
      %v2221 = vadd.f32 %v1987, %v2143
      %v2222 = vadd.f32 %v1988, %v2146
      %v2223 = vadd.f32 %v1989, %v2148
      %v2224 = vadd.f32 %v1990, %v2151
      %v2225 = vadd.f32 %v1991, %v2153
      %v2226 = vadd.f32 %v1992, %v2156
      %v2227 = vadd.f32 %v1993, %v2158
      %v2228 = vadd.f32 %v1994, %v2161
      %v2229 = vadd.f32 %v1995, %v2163
      %v2230 = vadd.f32 %v1996, %v2166
      %v2231 = vadd.f32 %v1997, %v2168
      %v2232 = vadd.f32 %v1998, %v2171
      %v2233 = vadd.f32 %v1999, %v2173
      %v2234 = vadd.f32 %v2000, %v2176
      %v2235 = vadd.f32 %v2001, %v2178
      %v2236 = vadd.f32 %v2002, %v2181
      %v2237 = vadd.f32 %v2003, %v2183
      %v2238 = vadd.f32 %v2004, %v2186
      %v2239 = vadd.f32 %v2005, %v2188
      %v2240 = vadd.f32 %v2006, %v2191
      %v2241 = vadd.f32 %v2007, %v2193
      %v2242 = vadd.f32 %v2008, %v2196
      %v2243 = vadd.f32 %v2009, %v2198
      %v2244 = vadd.f32 %v2010, %v2201
      %v2245 = vadd.f32 %v2011, %v2203
      %v2246 = vadd.f32 %v2012, %v2206
      %v2247 = vadd.f32 %v2013, %v2208
      %v2248 = vadd.f32 %v2014, %v2211
      %v2249 = vadd.f32 %v2015, %v2213
      %v2250 = vadd.f32 %v2016, %v2216
      %v2251 = vadd.f32 %v2017, %v2218
      %v2252 = vld [vmem:[%s2] sm:$0x1]
      %v2254 = vperm.slane %v2252, 0
      %v2256 = vadd.f32 %v2220, %v2254
      %v2257 = vadd.f32 %v2221, %v2254
      %v2258 = vadd.f32 %v2222, %v2254
      %v2259 = vadd.f32 %v2223, %v2254
      %v2260 = vadd.f32 %v2224, %v2254
      %v2261 = vadd.f32 %v2225, %v2254
      %v2262 = vadd.f32 %v2226, %v2254
      %v2263 = vadd.f32 %v2227, %v2254
      %v2264 = vadd.f32 %v2228, %v2254
      %v2265 = vadd.f32 %v2229, %v2254
      %v2266 = vadd.f32 %v2230, %v2254
      %v2267 = vadd.f32 %v2231, %v2254
      %v2268 = vadd.f32 %v2232, %v2254
      %v2269 = vadd.f32 %v2233, %v2254
      %v2270 = vadd.f32 %v2234, %v2254
      %v2271 = vadd.f32 %v2235, %v2254
      %v2272 = vadd.f32 %v2236, %v2254
      %v2273 = vadd.f32 %v2237, %v2254
      %v2274 = vadd.f32 %v2238, %v2254
      %v2275 = vadd.f32 %v2239, %v2254
      %v2276 = vadd.f32 %v2240, %v2254
      %v2277 = vadd.f32 %v2241, %v2254
      %v2278 = vadd.f32 %v2242, %v2254
      %v2279 = vadd.f32 %v2243, %v2254
      %v2280 = vadd.f32 %v2244, %v2254
      %v2281 = vadd.f32 %v2245, %v2254
      %v2282 = vadd.f32 %v2246, %v2254
      %v2283 = vadd.f32 %v2247, %v2254
      %v2284 = vadd.f32 %v2248, %v2254
      %v2285 = vadd.f32 %v2249, %v2254
      %v2286 = vadd.f32 %v2250, %v2254
      %v2287 = vadd.f32 %v2251, %v2254
      %2288 = vst [vmem:[%s204] sm:$0xff] %v2256
      %2289 = vst [vmem:[%s204 + $0x8] sm:$0xff] %v2257
      %2290 = vst [vmem:[%s204 + $0x10] sm:$0xff] %v2258
      %2291 = vst [vmem:[%s204 + $0x18] sm:$0xff] %v2259
      %2292 = vst [vmem:[%s204 + $0x20] sm:$0xff] %v2260
      %2293 = vst [vmem:[%s204 + $0x28] sm:$0xff] %v2261
      %2294 = vst [vmem:[%s204 + $0x30] sm:$0xff] %v2262
      %2295 = vst [vmem:[%s204 + $0x38] sm:$0xff] %v2263
      %2296 = vst [vmem:[%s204 + $0x40] sm:$0xff] %v2264
      %2297 = vst [vmem:[%s204 + $0x48] sm:$0xff] %v2265
      %2298 = vst [vmem:[%s204 + $0x50] sm:$0xff] %v2266
      %2299 = vst [vmem:[%s204 + $0x58] sm:$0xff] %v2267
      %2300 = vst [vmem:[%s204 + $0x60] sm:$0xff] %v2268
      %2301 = vst [vmem:[%s204 + $0x68] sm:$0xff] %v2269
      %2302 = vst [vmem:[%s204 + $0x70] sm:$0xff] %v2270
      %2303 = vst [vmem:[%s204 + $0x78] sm:$0xff] %v2271
      %2304 = vst [vmem:[%s204 + $0x80] sm:$0xff] %v2272
      %2305 = vst [vmem:[%s204 + $0x88] sm:$0xff] %v2273
      %2306 = vst [vmem:[%s204 + $0x90] sm:$0xff] %v2274
      %2307 = vst [vmem:[%s204 + $0x98] sm:$0xff] %v2275
      %2308 = vst [vmem:[%s204 + $0xa0] sm:$0xff] %v2276
      %2309 = vst [vmem:[%s204 + $0xa8] sm:$0xff] %v2277
      %2310 = vst [vmem:[%s204 + $0xb0] sm:$0xff] %v2278
      %2311 = vst [vmem:[%s204 + $0xb8] sm:$0xff] %v2279
      %2312 = vst [vmem:[%s204 + $0xc0] sm:$0xff] %v2280
      %2313 = vst [vmem:[%s204 + $0xc8] sm:$0xff] %v2281
      %2314 = vst [vmem:[%s204 + $0xd0] sm:$0xff] %v2282
      %2315 = vst [vmem:[%s204 + $0xd8] sm:$0xff] %v2283
      %2316 = vst [vmem:[%s204 + $0xe0] sm:$0xff] %v2284
      %2317 = vst [vmem:[%s204 + $0xe8] sm:$0xff] %v2285
      %2318 = vst [vmem:[%s204 + $0xf0] sm:$0xff] %v2286
      %2319 = vst [vmem:[%s204 + $0xf8] sm:$0xff] %v2287
      %v2320 = vadd.f32 %v2256, %v2257
      %v2321 = vadd.f32 %v2320, %v2258
      %v2322 = vadd.f32 %v2321, %v2259
      %v2323 = vadd.f32 %v2322, %v2260
      %v2324 = vadd.f32 %v2323, %v2261
      %v2325 = vadd.f32 %v2324, %v2262
      %v2326 = vadd.f32 %v2325, %v2263
      %v2327 = vadd.f32 %v2326, %v2264
      %v2328 = vadd.f32 %v2327, %v2265
      %v2329 = vadd.f32 %v2328, %v2266
      %v2330 = vadd.f32 %v2329, %v2267
      %v2331 = vadd.f32 %v2330, %v2268
      %v2332 = vadd.f32 %v2331, %v2269
      %v2333 = vadd.f32 %v2332, %v2270
      %v2334 = vadd.f32 %v2333, %v2271
      %v2335 = vadd.f32 %v2334, %v2272
      %v2336 = vadd.f32 %v2335, %v2273
      %v2337 = vadd.f32 %v2336, %v2274
      %v2338 = vadd.f32 %v2337, %v2275
      %v2339 = vadd.f32 %v2338, %v2276
      %v2340 = vadd.f32 %v2339, %v2277
      %v2341 = vadd.f32 %v2340, %v2278
      %v2342 = vadd.f32 %v2341, %v2279
      %v2343 = vadd.f32 %v2342, %v2280
      %v2344 = vadd.f32 %v2343, %v2281
      %v2345 = vadd.f32 %v2344, %v2282
      %v2346 = vadd.f32 %v2345, %v2283
      %v2347 = vadd.f32 %v2346, %v2284
      %v2348 = vadd.f32 %v2347, %v2285
      %v2349 = vadd.f32 %v2348, %v2286
      %v2350 = vadd.f32 %v2349, %v2287
      %v2351 = vrot.slane %v2350, 4
      %v2352 = vadd.f32 %v2350, %v2351
      %v2353 = vrot.slane %v2352, 2
      %v2354 = vadd.f32 %v2352, %v2353
      %v2355 = vrot.slane %v2354, 1
      %v2356 = vadd.f32 %v2354, %v2355
      %2357 = vst [vmem:[%s208] sm:$0x1] %v2356
      %v2358 = vmul.f32 %v2256, %v2256
      %v2359 = vmul.f32 %v2257, %v2257
      %v2360 = vmul.f32 %v2258, %v2258
      %v2361 = vmul.f32 %v2259, %v2259
      %v2362 = vmul.f32 %v2260, %v2260
      %v2363 = vmul.f32 %v2261, %v2261
      %v2364 = vmul.f32 %v2262, %v2262
      %v2365 = vmul.f32 %v2263, %v2263
      %v2366 = vmul.f32 %v2264, %v2264
      %v2367 = vmul.f32 %v2265, %v2265
      %v2368 = vmul.f32 %v2266, %v2266
      %v2369 = vmul.f32 %v2267, %v2267
      %v2370 = vmul.f32 %v2268, %v2268
      %v2371 = vmul.f32 %v2269, %v2269
      %v2372 = vmul.f32 %v2270, %v2270
      %v2373 = vmul.f32 %v2271, %v2271
      %v2374 = vmul.f32 %v2272, %v2272
      %v2375 = vmul.f32 %v2273, %v2273
      %v2376 = vmul.f32 %v2274, %v2274
      %v2377 = vmul.f32 %v2275, %v2275
      %v2378 = vmul.f32 %v2276, %v2276
      %v2379 = vmul.f32 %v2277, %v2277
      %v2380 = vmul.f32 %v2278, %v2278
      %v2381 = vmul.f32 %v2279, %v2279
      %v2382 = vmul.f32 %v2280, %v2280
      %v2383 = vmul.f32 %v2281, %v2281
      %v2384 = vmul.f32 %v2282, %v2282
      %v2385 = vmul.f32 %v2283, %v2283
      %v2386 = vmul.f32 %v2284, %v2284
      %v2387 = vmul.f32 %v2285, %v2285
      %v2388 = vmul.f32 %v2286, %v2286
      %v2389 = vmul.f32 %v2287, %v2287
      %v2390 = vadd.f32 %v2358, %v2359
      %v2391 = vadd.f32 %v2390, %v2360
      %v2392 = vadd.f32 %v2391, %v2361
      %v2393 = vadd.f32 %v2392, %v2362
      %v2394 = vadd.f32 %v2393, %v2363
      %v2395 = vadd.f32 %v2394, %v2364
      %v2396 = vadd.f32 %v2395, %v2365
      %v2397 = vadd.f32 %v2396, %v2366
      %v2398 = vadd.f32 %v2397, %v2367
      %v2399 = vadd.f32 %v2398, %v2368
      %v2400 = vadd.f32 %v2399, %v2369
      %v2401 = vadd.f32 %v2400, %v2370
      %v2402 = vadd.f32 %v2401, %v2371
      %v2403 = vadd.f32 %v2402, %v2372
      %v2404 = vadd.f32 %v2403, %v2373
      %v2405 = vadd.f32 %v2404, %v2374
      %v2406 = vadd.f32 %v2405, %v2375
      %v2407 = vadd.f32 %v2406, %v2376
      %v2408 = vadd.f32 %v2407, %v2377
      %v2409 = vadd.f32 %v2408, %v2378
      %v2410 = vadd.f32 %v2409, %v2379
      %v2411 = vadd.f32 %v2410, %v2380
      %v2412 = vadd.f32 %v2411, %v2381
      %v2413 = vadd.f32 %v2412, %v2382
      %v2414 = vadd.f32 %v2413, %v2383
      %v2415 = vadd.f32 %v2414, %v2384
      %v2416 = vadd.f32 %v2415, %v2385
      %v2417 = vadd.f32 %v2416, %v2386
      %v2418 = vadd.f32 %v2417, %v2387
      %v2419 = vadd.f32 %v2418, %v2388
      %v2420 = vadd.f32 %v2419, %v2389
      %v2421 = vrot.slane %v2420, 4
      %v2422 = vadd.f32 %v2420, %v2421
      %v2423 = vrot.slane %v2422, 2
      %v2424 = vadd.f32 %v2422, %v2423
      %v2425 = vrot.slane %v2424, 1
      %v2426 = vadd.f32 %v2424, %v2425
      %2427 = vst [vmem:[%s208 + $0x1] sm:$0x1] %v2426
      %p2428 = scmp.lt.s32.totalorder %s16, 1
      %s2429 = scalar_select %p2428, %s16, 1
      %s2430 = smul.addr %s2429, 32
      %s2431 = smul.addr %s2430, 8
      %s2432 = scalar_lea.vmem %s3, %s2431
      %p2433 = scmp.lt.s32.totalorder %s16, 1
      %s2434 = scalar_select %p2433, %s16, 1
      %s2435 = smul.addr %s2434, 2
      %s2436 = scalar_lea.vmem %s4, %s2435
      // Predicated region
      $region33: #{block_forward.3} parent=31 // pred_check
        %p2437 = pneg %p102
      $region34: #{block_forward.3} parent=31 // pred_check_branch
        %2439 = sbr.rel (%p2437) target = $region36
      $region35: #{block_forward.3} parent=31 // pred_region
        _
      $region36: #{block_forward.3} parent=31 // pred_fallthru
        _
      // Predicated region
      $region37: #{block_forward.3} parent=31 // pred_check
        %p2440 = pneg %p128
      $region38: #{block_forward.3} parent=31 // pred_check_branch
        %2442 = sbr.rel (%p2440) target = $region40
      $region39: #{block_forward.3} parent=31 // pred_region
        _
      $region40: #{block_forward.3} parent=31 // pred_fallthru
        _
    $region32: #{block_forward.3} parent=5 // pred_fallthru
      _
    %p2443 = scmp.le.s32.totalorder 2, %s11
    // Predicated region
    $region41: #{block_forward.3} parent=5 // pred_check
      %p2444 = pneg %p2443
    $region42: #{block_forward.3} parent=5 // pred_check_branch
      %2446 = sbr.rel (%p2444) target = $region44
    $region43: #{block_forward.3} parent=5 // pred_region
      %s2447 = ssub.s32 %s11, 2
      // Predicated region
      $region45: #{block_forward.3} parent=43 // pred_check
        %p2448 = pneg %p108
      $region46: #{block_forward.3} parent=43 // pred_check_branch
        %2450 = sbr.rel (%p2448) target = $region48
      $region47: #{block_forward.3} parent=43 // pred_region
        %p2451 = scmp.lt.s32.totalorder %s17, 1
        %s2452 = scalar_select %p2451, %s17, 1
        %s2453 = smul.addr %s2452, 32
        %s2454 = smul.addr %s2453, 8
        %s2455 = scalar_lea.vmem %s3, %s2454
      $region48: #{block_forward.3} parent=43 // pred_fallthru
        _
      // Predicated region
      $region49: #{block_forward.3} parent=43 // pred_check
        %p2456 = pneg %p134
      $region50: #{block_forward.3} parent=43 // pred_check_branch
        %2458 = sbr.rel (%p2456) target = $region52
      $region51: #{block_forward.3} parent=43 // pred_region
        %p2459 = scmp.lt.s32.totalorder %s17, 1
        %s2460 = scalar_select %p2459, %s17, 1
        %s2461 = smul.addr %s2460, 2
        %s2462 = scalar_lea.vmem %s4, %s2461
      $region52: #{block_forward.3} parent=43 // pred_fallthru
        _
    $region44: #{block_forward.3} parent=5 // pred_fallthru
      _
  $region6: #{block_forward.3} parent=0 // loop_footer
    %s15 = sadd.s32 1, %s11
  $region7: #{block_forward.3} parent=0 // loop_footer_branch
    %10 = sbr.rel target = $region3
  $region8: #{block_forward.3} parent=0 // loop_exit
    _

// kernel: block_forward.4
$region0: #{block_forward.4}
  #allocation0 [shape = 'u32[]', space=smem, size = 0x4, offset = 0x4, fixed_abs, tag = 'smem constant byte address 0x4 - core index']
  #allocation1 [shape = 'u32[72,128]{1,0:T(1,128)}', space=vmem, size = 0x9000, scoped, tag = 'internal scratch']
  #allocation2 [shape = 'f32[18,18,128]{2,1,0:T(8,128)}', space=vmem, size = 0x36000, scoped, tag = 'scratch operand']
  #allocation3 [shape = 'f32[18,18,128]{2,1,0:T(8,128)}', space=vmem, size = 0x36000, scoped, tag = 'scratch operand']
  #allocation4 [shape = 'f32[18,18,128]{2,1,0:T(8,128)}', space=vmem, size = 0x36000, scoped, tag = 'scratch operand']
  %s0 = inlined_call_operand.vmem [shape: f32[2,16,16,128], index: 0, kind: input, shape index: {}]
  %s1 = inlined_call_operand.vmem [shape: f32[1,128], index: 1, kind: input, shape index: {}]
  %s2 = inlined_call_operand.vmem [shape: f32[1,128], index: 2, kind: input, shape index: {}]
  %s3 = inlined_call_operand.vmem [shape: bf16[3,3,128,128], index: 3, kind: input, shape index: {}]
  %s4 = inlined_call_operand.vmem [shape: f32[1,128], index: 4, kind: input, shape index: {}]
  %s5 = inlined_call_operand.vmem [shape: f32[2,8,8,128], index: 5, kind: output, shape index: {0}]
  %s6 = inlined_call_operand.vmem [shape: f32[2,2,128], index: 6, kind: output, shape index: {1}]
  %7 = xla_tuple %s5, %s6
  %s8 = sld [smem:[#allocation0]]
  $region61: #{block_forward.4} parent=0
    _
  %s10 = ssub.s32 1, %s8
  %s11 = scalar_select 0, %s10, %s8
  loop: start=0, step=1, limit=4
  $region2: #{block_forward.4} parent=0 // loop_pre_header
    _
  $region3: #{block_forward.4} parent=0 // loop_header
    %s13 = sphi 0, %s17
    %p14 = scmp.ge.s32.totalorder %s13, 4
    %s23 = sphi 0, %s25
    %s26 = sphi 0, %s23
    %s27 = sphi 0, %s26
    %s43 = sphi 0, %s27
    %s47 = sphi 0, %s47
    %s49 = sphi 0, %s47
    %s50 = sphi 0, %s49
    %s64 = sphi 0, %s50
    %s68 = sphi 0, %s68
    %s70 = sphi 0, %s68
    %s71 = sphi 0, %s70
    %s85 = sphi 0, %s71
    %s89 = sphi 0, %s89
    %s91 = sphi 0, %s89
    %s92 = sphi 0, %s91
    %s106 = sphi 0, %s92
    %s110 = sphi 0, %s110
    %s112 = sphi 0, %s110
    %s113 = sphi 0, %s112
    %s127 = sphi 0, %s113
    %s133 = sphi 0, %s135
    %s136 = sphi 0, %s133
    %s137 = sphi 0, %s136
    %s153 = sphi 0, %s137
    %s159 = sphi 0, %s161
    %s162 = sphi 0, %s159
    %s163 = sphi 0, %s162
    %s179 = sphi 0, %s163
  $region4: #{block_forward.4} parent=0 // loop_header_branch
    %16 = sbr.rel (%p14) target = $region8
  $region5: #{block_forward.4} parent=0 // loop_body
    %s18 = ssub.s32 %s13, 1
    %s19 = ssub.s32 %s13, 2
    %s20 = sadd.s32 %s13, 1
    %s21 = ssub.s32 %s13, %s20
    %p22 = scmp.eq.s32.totalorder %s21, 0
    %s24 = sadd.s32 %s23, 1
    %s25 = scalar_select %p22, %s23, %s24
    %p28 = pneg %p22
    %p29 = scmp.eq.s32.totalorder %s13, 1
    %p30 = por %p28, %p29
    %p31 = scmp.ne.s32.totalorder %s23, %s26
    %p32 = scmp.eq.s32.totalorder %s13, 0
    %p33 = por %p31, %p32
    %p34 = scmp.ne.s32.totalorder %s23, %s26
    %p35 = scmp.eq.s32.totalorder %s18, 1
    %p36 = por %p34, %p35
    %p37 = scmp.ne.s32.totalorder %s26, %s27
    %p38 = scmp.eq.s32.totalorder %s18, 0
    %p39 = por %p37, %p38
    %p40 = scmp.ne.s32.totalorder %s26, %s27
    %p41 = scmp.eq.s32.totalorder %s19, 1
    %p42 = por %p40, %p41
    %p44 = scmp.ne.s32.totalorder %s27, %s43
    %p45 = scmp.eq.s32.totalorder %s19, 0
    %p46 = por %p44, %p45
    %s48 = sadd.s32 %s47, 1
    %p51 = scmp.eq.s32.totalorder %s13, 1
    %p52 = scmp.ne.s32.totalorder %s47, %s49
    %p53 = scmp.eq.s32.totalorder %s13, 0
    %p54 = por %p52, %p53
    %p55 = scmp.ne.s32.totalorder %s47, %s49
    %p56 = scmp.eq.s32.totalorder %s18, 1
    %p57 = por %p55, %p56
    %p58 = scmp.ne.s32.totalorder %s49, %s50
    %p59 = scmp.eq.s32.totalorder %s18, 0
    %p60 = por %p58, %p59
    %p61 = scmp.ne.s32.totalorder %s49, %s50
    %p62 = scmp.eq.s32.totalorder %s19, 1
    %p63 = por %p61, %p62
    %p65 = scmp.ne.s32.totalorder %s50, %s64
    %p66 = scmp.eq.s32.totalorder %s19, 0
    %p67 = por %p65, %p66
    %s69 = sadd.s32 %s68, 1
    %p72 = scmp.eq.s32.totalorder %s13, 1
    %p73 = scmp.ne.s32.totalorder %s68, %s70
    %p74 = scmp.eq.s32.totalorder %s13, 0
    %p75 = por %p73, %p74
    %p76 = scmp.ne.s32.totalorder %s68, %s70
    %p77 = scmp.eq.s32.totalorder %s18, 1
    %p78 = por %p76, %p77
    %p79 = scmp.ne.s32.totalorder %s70, %s71
    %p80 = scmp.eq.s32.totalorder %s18, 0
    %p81 = por %p79, %p80
    %p82 = scmp.ne.s32.totalorder %s70, %s71
    %p83 = scmp.eq.s32.totalorder %s19, 1
    %p84 = por %p82, %p83
    %p86 = scmp.ne.s32.totalorder %s71, %s85
    %p87 = scmp.eq.s32.totalorder %s19, 0
    %p88 = por %p86, %p87
    %s90 = sadd.s32 %s89, 1
    %p93 = scmp.eq.s32.totalorder %s13, 1
    %p94 = scmp.ne.s32.totalorder %s89, %s91
    %p95 = scmp.eq.s32.totalorder %s13, 0
    %p96 = por %p94, %p95
    %p97 = scmp.ne.s32.totalorder %s89, %s91
    %p98 = scmp.eq.s32.totalorder %s18, 1
    %p99 = por %p97, %p98
    %p100 = scmp.ne.s32.totalorder %s91, %s92
    %p101 = scmp.eq.s32.totalorder %s18, 0
    %p102 = por %p100, %p101
    %p103 = scmp.ne.s32.totalorder %s91, %s92
    %p104 = scmp.eq.s32.totalorder %s19, 1
    %p105 = por %p103, %p104
    %p107 = scmp.ne.s32.totalorder %s92, %s106
    %p108 = scmp.eq.s32.totalorder %s19, 0
    %p109 = por %p107, %p108
    %s111 = sadd.s32 %s110, 1
    %p114 = scmp.eq.s32.totalorder %s13, 1
    %p115 = scmp.ne.s32.totalorder %s110, %s112
    %p116 = scmp.eq.s32.totalorder %s13, 0
    %p117 = por %p115, %p116
    %p118 = scmp.ne.s32.totalorder %s110, %s112
    %p119 = scmp.eq.s32.totalorder %s18, 1
    %p120 = por %p118, %p119
    %p121 = scmp.ne.s32.totalorder %s112, %s113
    %p122 = scmp.eq.s32.totalorder %s18, 0
    %p123 = por %p121, %p122
    %p124 = scmp.ne.s32.totalorder %s112, %s113
    %p125 = scmp.eq.s32.totalorder %s19, 1
    %p126 = por %p124, %p125
    %p128 = scmp.ne.s32.totalorder %s113, %s127
    %p129 = scmp.eq.s32.totalorder %s19, 0
    %p130 = por %p128, %p129
    %s131 = ssub.s32 %s13, %s20
    %p132 = scmp.eq.s32.totalorder %s131, 0
    %s134 = sadd.s32 %s133, 1
    %s135 = scalar_select %p132, %s133, %s134
    %p138 = pneg %p132
    %p139 = scmp.eq.s32.totalorder %s13, 1
    %p140 = por %p138, %p139
    %p141 = scmp.ne.s32.totalorder %s133, %s136
    %p142 = scmp.eq.s32.totalorder %s13, 0
    %p143 = por %p141, %p142
    %p144 = scmp.ne.s32.totalorder %s133, %s136
    %p145 = scmp.eq.s32.totalorder %s18, 1
    %p146 = por %p144, %p145
    %p147 = scmp.ne.s32.totalorder %s136, %s137
    %p148 = scmp.eq.s32.totalorder %s18, 0
    %p149 = por %p147, %p148
    %p150 = scmp.ne.s32.totalorder %s136, %s137
    %p151 = scmp.eq.s32.totalorder %s19, 1
    %p152 = por %p150, %p151
    %p154 = scmp.ne.s32.totalorder %s137, %s153
    %p155 = scmp.eq.s32.totalorder %s19, 0
    %p156 = por %p154, %p155
    %s157 = ssub.s32 %s13, %s20
    %p158 = scmp.eq.s32.totalorder %s157, 0
    %s160 = sadd.s32 %s159, 1
    %s161 = scalar_select %p158, %s159, %s160
    %p164 = pneg %p158
    %p165 = scmp.eq.s32.totalorder %s13, 1
    %p166 = por %p164, %p165
    %p167 = scmp.ne.s32.totalorder %s159, %s162
    %p168 = scmp.eq.s32.totalorder %s13, 0
    %p169 = por %p167, %p168
    %p170 = scmp.ne.s32.totalorder %s159, %s162
    %p171 = scmp.eq.s32.totalorder %s18, 1
    %p172 = por %p170, %p171
    %p173 = scmp.ne.s32.totalorder %s162, %s163
    %p174 = scmp.eq.s32.totalorder %s18, 0
    %p175 = por %p173, %p174
    %p176 = scmp.ne.s32.totalorder %s162, %s163
    %p177 = scmp.eq.s32.totalorder %s19, 1
    %p178 = por %p176, %p177
    %p180 = scmp.ne.s32.totalorder %s163, %s179
    %p181 = scmp.eq.s32.totalorder %s19, 0
    %p182 = por %p180, %p181
    %p183 = scmp.le.s32.totalorder 1, %s13
    %p184 = scmp.lt.s32.totalorder %s13, 3
    %p185 = pnand %p183, %p184
    %p186 = pneg %p185
    // Predicated region
    $region9: #{block_forward.4} parent=5 // pred_check
      _
    $region10: #{block_forward.4} parent=5 // pred_check_branch
      %188 = sbr.rel (%p185) target = $region12
    $region11: #{block_forward.4} parent=5 // pred_region
      %s189 = ssub.s32 %s13, 1
      // Predicated region
      $region13: #{block_forward.4} parent=11 // pred_check
        %p190 = pneg %p60
      $region14: #{block_forward.4} parent=11 // pred_check_branch
        %192 = sbr.rel (%p190) target = $region16
      $region15: #{block_forward.4} parent=11 // pred_region
        _
      $region16: #{block_forward.4} parent=11 // pred_fallthru
        _
      // Predicated region
      $region17: #{block_forward.4} parent=11 // pred_check
        %p193 = pneg %p81
      $region18: #{block_forward.4} parent=11 // pred_check_branch
        %195 = sbr.rel (%p193) target = $region20
      $region19: #{block_forward.4} parent=11 // pred_region
        _
      $region20: #{block_forward.4} parent=11 // pred_fallthru
        _
      // Predicated region
      $region21: #{block_forward.4} parent=11 // pred_check
        %p196 = pneg %p102
      $region22: #{block_forward.4} parent=11 // pred_check_branch
        %198 = sbr.rel (%p196) target = $region24
      $region23: #{block_forward.4} parent=11 // pred_region
        _
      $region24: #{block_forward.4} parent=11 // pred_fallthru
        _
      // Predicated region
      $region25: #{block_forward.4} parent=11 // pred_check
        %p199 = pneg %p123
      $region26: #{block_forward.4} parent=11 // pred_check_branch
        %201 = sbr.rel (%p199) target = $region28
      $region27: #{block_forward.4} parent=11 // pred_region
        _
      $region28: #{block_forward.4} parent=11 // pred_fallthru
        _
    $region12: #{block_forward.4} parent=5 // pred_fallthru
      _
    %p202 = scmp.lt.s32.totalorder %s13, 2
    // Predicated region
    $region29: #{block_forward.4} parent=5 // pred_check
      %p203 = pneg %p202
    $region30: #{block_forward.4} parent=5 // pred_check_branch
      %205 = sbr.rel (%p203) target = $region32
    $region31: #{block_forward.4} parent=5 // pred_region
      // Predicated region
      $region33: #{block_forward.4} parent=31 // pred_check
        %p206 = pneg %p33
      $region34: #{block_forward.4} parent=31 // pred_check_branch
        %208 = sbr.rel (%p206) target = $region36
      $region35: #{block_forward.4} parent=31 // pred_region
        %p209 = scmp.lt.s32.totalorder %s13, 1
        %s210 = scalar_select %p209, %s13, 1
        %s211 = smul.addr %s210, 32
        %s212 = smul.addr %s211, 8
        %s213 = scalar_lea.vmem %s0, %s212
      $region36: #{block_forward.4} parent=31 // pred_fallthru
        _
    $region32: #{block_forward.4} parent=5 // pred_fallthru
      _
    %p214 = scmp.le.s32.totalorder 1, %s13
    %p215 = scmp.lt.s32.totalorder %s13, 3
    %p216 = pnand %p214, %p215
    %p217 = pneg %p216
    // Predicated region
    $region37: #{block_forward.4} parent=5 // pred_check
      _
    $region38: #{block_forward.4} parent=5 // pred_check_branch
      %219 = sbr.rel (%p216) target = $region40
    $region39: #{block_forward.4} parent=5 // pred_region
      %s220 = ssub.s32 %s13, 1
      %p221 = scmp.lt.s32.totalorder %s18, 1
      %s222 = scalar_select %p221, %s18, 1
      %s223 = smul.addr %s222, 32
      %s224 = smul.addr %s223, 8
      %s225 = scalar_lea.vmem %s0, %s224
      %p226 = pneg %p39
      %p227 = pneg %p36
      %p228 = pneg %p60
      %p229 = pneg %p57
      %p230 = pneg %p81
      %p231 = pneg %p78
      %p232 = pneg %p102
      %p233 = pneg %p99
      %p234 = pneg %p123
      %p235 = pneg %p120
      %p236 = pneg %p149
      %p237 = pneg %p146
      %p238 = scmp.lt.s32.totalorder %s18, 1
      %s239 = scalar_select %p238, %s18, 1
      %s240 = smul.addr %s239, 8
      %s241 = smul.addr %s240, 8
      %s242 = scalar_lea.vmem %s5, %s241
      %p243 = pneg %p175
      %p244 = pneg %p172
      %p245 = scmp.lt.s32.totalorder %s18, 1
      %s246 = scalar_select %p245, %s18, 1
      %s247 = smul.addr %s246, 2
      %s248 = scalar_lea.vmem %s6, %s247
      %p249 = scmp.lt.s32.totalorder %s18, 1
      %s250 = scalar_select %p249, %s18, 1
      %s251 = smul.addr %s250, 32
      %s252 = smul.addr %s251, 8
      %s253 = scalar_lea.vmem %s0, %s252
      %p254 = scmp.lt.s32.totalorder %s18, 1
      %s255 = scalar_select %p254, %s18, 1
      %s256 = smul.addr %s255, 8
      %s257 = smul.addr %s256, 8
      %s258 = scalar_lea.vmem %s5, %s257
      %p259 = scmp.lt.s32.totalorder %s18, 1
      %s260 = scalar_select %p259, %s18, 1
      %s261 = smul.addr %s260, 2
      %s262 = scalar_lea.vmem %s6, %s261
      %263 = vst [vmem:[#allocation2] sm:$0xff] 0.0
      %264 = vst [vmem:[#allocation2 + $0x8] sm:$0xff] 0.0
      %265 = vst [vmem:[#allocation2 + $0x10] sm:$0x3] 0.0
      %266 = vst [vmem:[#allocation2 + $0x18] sm:$0xff] 0.0
      %267 = vst [vmem:[#allocation2 + $0x20] sm:$0xff] 0.0
      %268 = vst [vmem:[#allocation2 + $0x28] sm:$0x3] 0.0
      %269 = vst [vmem:[#allocation2 + $0x30] sm:$0xff] 0.0
      %270 = vst [vmem:[#allocation2 + $0x38] sm:$0xff] 0.0
      %271 = vst [vmem:[#allocation2 + $0x40] sm:$0x3] 0.0
      %272 = vst [vmem:[#allocation2 + $0x48] sm:$0xff] 0.0
      %273 = vst [vmem:[#allocation2 + $0x50] sm:$0xff] 0.0
      %274 = vst [vmem:[#allocation2 + $0x58] sm:$0x3] 0.0
      %275 = vst [vmem:[#allocation2 + $0x60] sm:$0xff] 0.0
      %276 = vst [vmem:[#allocation2 + $0x68] sm:$0xff] 0.0
      %277 = vst [vmem:[#allocation2 + $0x70] sm:$0x3] 0.0
      %278 = vst [vmem:[#allocation2 + $0x78] sm:$0xff] 0.0
      %279 = vst [vmem:[#allocation2 + $0x80] sm:$0xff] 0.0
      %280 = vst [vmem:[#allocation2 + $0x88] sm:$0x3] 0.0
      %281 = vst [vmem:[#allocation2 + $0x90] sm:$0xff] 0.0
      %282 = vst [vmem:[#allocation2 + $0x98] sm:$0xff] 0.0
      %283 = vst [vmem:[#allocation2 + $0xa0] sm:$0x3] 0.0
      %284 = vst [vmem:[#allocation2 + $0xa8] sm:$0xff] 0.0
      %285 = vst [vmem:[#allocation2 + $0xb0] sm:$0xff] 0.0
      %286 = vst [vmem:[#allocation2 + $0xb8] sm:$0x3] 0.0
      %287 = vst [vmem:[#allocation2 + $0xc0] sm:$0xff] 0.0
      %288 = vst [vmem:[#allocation2 + $0xc8] sm:$0xff] 0.0
      %289 = vst [vmem:[#allocation2 + $0xd0] sm:$0x3] 0.0
      %290 = vst [vmem:[#allocation2 + $0xd8] sm:$0xff] 0.0
      %291 = vst [vmem:[#allocation2 + $0xe0] sm:$0xff] 0.0
      %292 = vst [vmem:[#allocation2 + $0xe8] sm:$0x3] 0.0
      %293 = vst [vmem:[#allocation2 + $0xf0] sm:$0xff] 0.0
      %294 = vst [vmem:[#allocation2 + $0xf8] sm:$0xff] 0.0
      %295 = vst [vmem:[#allocation2 + $0x100] sm:$0x3] 0.0
      %296 = vst [vmem:[#allocation2 + $0x108] sm:$0xff] 0.0
      %297 = vst [vmem:[#allocation2 + $0x110] sm:$0xff] 0.0
      %298 = vst [vmem:[#allocation2 + $0x118] sm:$0x3] 0.0
      %299 = vst [vmem:[#allocation2 + $0x120] sm:$0xff] 0.0
      %300 = vst [vmem:[#allocation2 + $0x128] sm:$0xff] 0.0
      %301 = vst [vmem:[#allocation2 + $0x130] sm:$0x3] 0.0
      %302 = vst [vmem:[#allocation2 + $0x138] sm:$0xff] 0.0
      %303 = vst [vmem:[#allocation2 + $0x140] sm:$0xff] 0.0
      %304 = vst [vmem:[#allocation2 + $0x148] sm:$0x3] 0.0
      %305 = vst [vmem:[#allocation2 + $0x150] sm:$0xff] 0.0
      %306 = vst [vmem:[#allocation2 + $0x158] sm:$0xff] 0.0
      %307 = vst [vmem:[#allocation2 + $0x160] sm:$0x3] 0.0
      %308 = vst [vmem:[#allocation2 + $0x168] sm:$0xff] 0.0
      %309 = vst [vmem:[#allocation2 + $0x170] sm:$0xff] 0.0
      %310 = vst [vmem:[#allocation2 + $0x178] sm:$0x3] 0.0
      %311 = vst [vmem:[#allocation2 + $0x180] sm:$0xff] 0.0
      %312 = vst [vmem:[#allocation2 + $0x188] sm:$0xff] 0.0
      %313 = vst [vmem:[#allocation2 + $0x190] sm:$0x3] 0.0
      %314 = vst [vmem:[#allocation2 + $0x198] sm:$0xff] 0.0
      %315 = vst [vmem:[#allocation2 + $0x1a0] sm:$0xff] 0.0
      %316 = vst [vmem:[#allocation2 + $0x1a8] sm:$0x3] 0.0
      %317 = vst [vmem:[#allocation3] sm:$0xff] 0.0
      %318 = vst [vmem:[#allocation3 + $0x8] sm:$0xff] 0.0
      %319 = vst [vmem:[#allocation3 + $0x10] sm:$0x3] 0.0
      %320 = vst [vmem:[#allocation3 + $0x18] sm:$0xff] 0.0
      %321 = vst [vmem:[#allocation3 + $0x20] sm:$0xff] 0.0
      %322 = vst [vmem:[#allocation3 + $0x28] sm:$0x3] 0.0
      %323 = vst [vmem:[#allocation3 + $0x30] sm:$0xff] 0.0
      %324 = vst [vmem:[#allocation3 + $0x38] sm:$0xff] 0.0
      %325 = vst [vmem:[#allocation3 + $0x40] sm:$0x3] 0.0
      %326 = vst [vmem:[#allocation3 + $0x48] sm:$0xff] 0.0
      %327 = vst [vmem:[#allocation3 + $0x50] sm:$0xff] 0.0
      %328 = vst [vmem:[#allocation3 + $0x58] sm:$0x3] 0.0
      %329 = vst [vmem:[#allocation3 + $0x60] sm:$0xff] 0.0
      %330 = vst [vmem:[#allocation3 + $0x68] sm:$0xff] 0.0
      %331 = vst [vmem:[#allocation3 + $0x70] sm:$0x3] 0.0
      %332 = vst [vmem:[#allocation3 + $0x78] sm:$0xff] 0.0
      %333 = vst [vmem:[#allocation3 + $0x80] sm:$0xff] 0.0
      %334 = vst [vmem:[#allocation3 + $0x88] sm:$0x3] 0.0
      %335 = vst [vmem:[#allocation3 + $0x90] sm:$0xff] 0.0
      %336 = vst [vmem:[#allocation3 + $0x98] sm:$0xff] 0.0
      %337 = vst [vmem:[#allocation3 + $0xa0] sm:$0x3] 0.0
      %338 = vst [vmem:[#allocation3 + $0xa8] sm:$0xff] 0.0
      %339 = vst [vmem:[#allocation3 + $0xb0] sm:$0xff] 0.0
      %340 = vst [vmem:[#allocation3 + $0xb8] sm:$0x3] 0.0
      %341 = vst [vmem:[#allocation3 + $0xc0] sm:$0xff] 0.0
      %342 = vst [vmem:[#allocation3 + $0xc8] sm:$0xff] 0.0
      %343 = vst [vmem:[#allocation3 + $0xd0] sm:$0x3] 0.0
      %344 = vst [vmem:[#allocation3 + $0xd8] sm:$0xff] 0.0
      %345 = vst [vmem:[#allocation3 + $0xe0] sm:$0xff] 0.0
      %346 = vst [vmem:[#allocation3 + $0xe8] sm:$0x3] 0.0
      %347 = vst [vmem:[#allocation3 + $0xf0] sm:$0xff] 0.0
      %348 = vst [vmem:[#allocation3 + $0xf8] sm:$0xff] 0.0
      %349 = vst [vmem:[#allocation3 + $0x100] sm:$0x3] 0.0
      %350 = vst [vmem:[#allocation3 + $0x108] sm:$0xff] 0.0
      %351 = vst [vmem:[#allocation3 + $0x110] sm:$0xff] 0.0
      %352 = vst [vmem:[#allocation3 + $0x118] sm:$0x3] 0.0
      %353 = vst [vmem:[#allocation3 + $0x120] sm:$0xff] 0.0
      %354 = vst [vmem:[#allocation3 + $0x128] sm:$0xff] 0.0
      %355 = vst [vmem:[#allocation3 + $0x130] sm:$0x3] 0.0
      %356 = vst [vmem:[#allocation3 + $0x138] sm:$0xff] 0.0
      %357 = vst [vmem:[#allocation3 + $0x140] sm:$0xff] 0.0
      %358 = vst [vmem:[#allocation3 + $0x148] sm:$0x3] 0.0
      %359 = vst [vmem:[#allocation3 + $0x150] sm:$0xff] 0.0
      %360 = vst [vmem:[#allocation3 + $0x158] sm:$0xff] 0.0
      %361 = vst [vmem:[#allocation3 + $0x160] sm:$0x3] 0.0
      %362 = vst [vmem:[#allocation3 + $0x168] sm:$0xff] 0.0
      %363 = vst [vmem:[#allocation3 + $0x170] sm:$0xff] 0.0
      %364 = vst [vmem:[#allocation3 + $0x178] sm:$0x3] 0.0
      %365 = vst [vmem:[#allocation3 + $0x180] sm:$0xff] 0.0
      %366 = vst [vmem:[#allocation3 + $0x188] sm:$0xff] 0.0
      %367 = vst [vmem:[#allocation3 + $0x190] sm:$0x3] 0.0
      %368 = vst [vmem:[#allocation3 + $0x198] sm:$0xff] 0.0
      %369 = vst [vmem:[#allocation3 + $0x1a0] sm:$0xff] 0.0
      %370 = vst [vmem:[#allocation3 + $0x1a8] sm:$0x3] 0.0
      %371 = vst [vmem:[#allocation4] sm:$0xff] 0.0
      %372 = vst [vmem:[#allocation4 + $0x8] sm:$0xff] 0.0
      %373 = vst [vmem:[#allocation4 + $0x10] sm:$0x3] 0.0
      %374 = vst [vmem:[#allocation4 + $0x18] sm:$0xff] 0.0
      %375 = vst [vmem:[#allocation4 + $0x20] sm:$0xff] 0.0
      %376 = vst [vmem:[#allocation4 + $0x28] sm:$0x3] 0.0
      %377 = vst [vmem:[#allocation4 + $0x30] sm:$0xff] 0.0
      %378 = vst [vmem:[#allocation4 + $0x38] sm:$0xff] 0.0
      %379 = vst [vmem:[#allocation4 + $0x40] sm:$0x3] 0.0
      %380 = vst [vmem:[#allocation4 + $0x48] sm:$0xff] 0.0
      %381 = vst [vmem:[#allocation4 + $0x50] sm:$0xff] 0.0
      %382 = vst [vmem:[#allocation4 + $0x58] sm:$0x3] 0.0
      %383 = vst [vmem:[#allocation4 + $0x60] sm:$0xff] 0.0
      %384 = vst [vmem:[#allocation4 + $0x68] sm:$0xff] 0.0
      %385 = vst [vmem:[#allocation4 + $0x70] sm:$0x3] 0.0
      %386 = vst [vmem:[#allocation4 + $0x78] sm:$0xff] 0.0
      %387 = vst [vmem:[#allocation4 + $0x80] sm:$0xff] 0.0
      %388 = vst [vmem:[#allocation4 + $0x88] sm:$0x3] 0.0
      %389 = vst [vmem:[#allocation4 + $0x90] sm:$0xff] 0.0
      %390 = vst [vmem:[#allocation4 + $0x98] sm:$0xff] 0.0
      %391 = vst [vmem:[#allocation4 + $0xa0] sm:$0x3] 0.0
      %392 = vst [vmem:[#allocation4 + $0xa8] sm:$0xff] 0.0
      %393 = vst [vmem:[#allocation4 + $0xb0] sm:$0xff] 0.0
      %394 = vst [vmem:[#allocation4 + $0xb8] sm:$0x3] 0.0
      %395 = vst [vmem:[#allocation4 + $0xc0] sm:$0xff] 0.0
      %396 = vst [vmem:[#allocation4 + $0xc8] sm:$0xff] 0.0
      %397 = vst [vmem:[#allocation4 + $0xd0] sm:$0x3] 0.0
      %398 = vst [vmem:[#allocation4 + $0xd8] sm:$0xff] 0.0
      %399 = vst [vmem:[#allocation4 + $0xe0] sm:$0xff] 0.0
      %400 = vst [vmem:[#allocation4 + $0xe8] sm:$0x3] 0.0
      %401 = vst [vmem:[#allocation4 + $0xf0] sm:$0xff] 0.0
      %402 = vst [vmem:[#allocation4 + $0xf8] sm:$0xff] 0.0
      %403 = vst [vmem:[#allocation4 + $0x100] sm:$0x3] 0.0
      %404 = vst [vmem:[#allocation4 + $0x108] sm:$0xff] 0.0
      %405 = vst [vmem:[#allocation4 + $0x110] sm:$0xff] 0.0
      %406 = vst [vmem:[#allocation4 + $0x118] sm:$0x3] 0.0
      %407 = vst [vmem:[#allocation4 + $0x120] sm:$0xff] 0.0
      %408 = vst [vmem:[#allocation4 + $0x128] sm:$0xff] 0.0
      %409 = vst [vmem:[#allocation4 + $0x130] sm:$0x3] 0.0
      %410 = vst [vmem:[#allocation4 + $0x138] sm:$0xff] 0.0
      %411 = vst [vmem:[#allocation4 + $0x140] sm:$0xff] 0.0
      %412 = vst [vmem:[#allocation4 + $0x148] sm:$0x3] 0.0
      %413 = vst [vmem:[#allocation4 + $0x150] sm:$0xff] 0.0
      %414 = vst [vmem:[#allocation4 + $0x158] sm:$0xff] 0.0
      %415 = vst [vmem:[#allocation4 + $0x160] sm:$0x3] 0.0
      %416 = vst [vmem:[#allocation4 + $0x168] sm:$0xff] 0.0
      %417 = vst [vmem:[#allocation4 + $0x170] sm:$0xff] 0.0
      %418 = vst [vmem:[#allocation4 + $0x178] sm:$0x3] 0.0
      %419 = vst [vmem:[#allocation4 + $0x180] sm:$0xff] 0.0
      %420 = vst [vmem:[#allocation4 + $0x188] sm:$0xff] 0.0
      %421 = vst [vmem:[#allocation4 + $0x190] sm:$0x3] 0.0
      %422 = vst [vmem:[#allocation4 + $0x198] sm:$0xff] 0.0
      %423 = vst [vmem:[#allocation4 + $0x1a0] sm:$0xff] 0.0
      %424 = vst [vmem:[#allocation4 + $0x1a8] sm:$0x3] 0.0
      %v425 = vld [vmem:[%s253] sm:$0xff]
      %v426 = vld [vmem:[%s253 + $0x8] sm:$0xff]
      %v427 = vld [vmem:[%s253 + $0x10] sm:$0xff]
      %v428 = vld [vmem:[%s253 + $0x18] sm:$0xff]
      %v429 = vld [vmem:[%s253 + $0x20] sm:$0xff]
      %v430 = vld [vmem:[%s253 + $0x28] sm:$0xff]
      %v431 = vld [vmem:[%s253 + $0x30] sm:$0xff]
      %v432 = vld [vmem:[%s253 + $0x38] sm:$0xff]
      %v433 = vld [vmem:[%s253 + $0x40] sm:$0xff]
      %v434 = vld [vmem:[%s253 + $0x48] sm:$0xff]
      %v435 = vld [vmem:[%s253 + $0x50] sm:$0xff]
      %v436 = vld [vmem:[%s253 + $0x58] sm:$0xff]
      %v437 = vld [vmem:[%s253 + $0x60] sm:$0xff]
      %v438 = vld [vmem:[%s253 + $0x68] sm:$0xff]
      %v439 = vld [vmem:[%s253 + $0x70] sm:$0xff]
      %v440 = vld [vmem:[%s253 + $0x78] sm:$0xff]
      %v441 = vld [vmem:[%s253 + $0x80] sm:$0xff]
      %v442 = vld [vmem:[%s253 + $0x88] sm:$0xff]
      %v443 = vld [vmem:[%s253 + $0x90] sm:$0xff]
      %v444 = vld [vmem:[%s253 + $0x98] sm:$0xff]
      %v445 = vld [vmem:[%s253 + $0xa0] sm:$0xff]
      %v446 = vld [vmem:[%s253 + $0xa8] sm:$0xff]
      %v447 = vld [vmem:[%s253 + $0xb0] sm:$0xff]
      %v448 = vld [vmem:[%s253 + $0xb8] sm:$0xff]
      %v449 = vld [vmem:[%s253 + $0xc0] sm:$0xff]
      %v450 = vld [vmem:[%s253 + $0xc8] sm:$0xff]
      %v451 = vld [vmem:[%s253 + $0xd0] sm:$0xff]
      %v452 = vld [vmem:[%s253 + $0xd8] sm:$0xff]
      %v453 = vld [vmem:[%s253 + $0xe0] sm:$0xff]
      %v454 = vld [vmem:[%s253 + $0xe8] sm:$0xff]
      %v455 = vld [vmem:[%s253 + $0xf0] sm:$0xff]
      %v456 = vld [vmem:[%s253 + $0xf8] sm:$0xff]
      %v457 = vld [vmem:[%s1] sm:$0x1]
      %v459 = vperm.slane %v457, 0
      %v461 = vmul.f32 %v425, %v459
      %v462 = vmul.f32 %v426, %v459
      %v463 = vmul.f32 %v427, %v459
      %v464 = vmul.f32 %v428, %v459
      %v465 = vmul.f32 %v429, %v459
      %v466 = vmul.f32 %v430, %v459
      %v467 = vmul.f32 %v431, %v459
      %v468 = vmul.f32 %v432, %v459
      %v469 = vmul.f32 %v433, %v459
      %v470 = vmul.f32 %v434, %v459
      %v471 = vmul.f32 %v435, %v459
      %v472 = vmul.f32 %v436, %v459
      %v473 = vmul.f32 %v437, %v459
      %v474 = vmul.f32 %v438, %v459
      %v475 = vmul.f32 %v439, %v459
      %v476 = vmul.f32 %v440, %v459
      %v477 = vmul.f32 %v441, %v459
      %v478 = vmul.f32 %v442, %v459
      %v479 = vmul.f32 %v443, %v459
      %v480 = vmul.f32 %v444, %v459
      %v481 = vmul.f32 %v445, %v459
      %v482 = vmul.f32 %v446, %v459
      %v483 = vmul.f32 %v447, %v459
      %v484 = vmul.f32 %v448, %v459
      %v485 = vmul.f32 %v449, %v459
      %v486 = vmul.f32 %v450, %v459
      %v487 = vmul.f32 %v451, %v459
      %v488 = vmul.f32 %v452, %v459
      %v489 = vmul.f32 %v453, %v459
      %v490 = vmul.f32 %v454, %v459
      %v491 = vmul.f32 %v455, %v459
      %v492 = vmul.f32 %v456, %v459
      %v493 = vld [vmem:[%s2] sm:$0x1]
      %v495 = vperm.slane %v493, 0
      %v497 = vadd.f32 %v461, %v495
      %v498 = vadd.f32 %v462, %v495
      %v499 = vadd.f32 %v463, %v495
      %v500 = vadd.f32 %v464, %v495
      %v501 = vadd.f32 %v465, %v495
      %v502 = vadd.f32 %v466, %v495
      %v503 = vadd.f32 %v467, %v495
      %v504 = vadd.f32 %v468, %v495
      %v505 = vadd.f32 %v469, %v495
      %v506 = vadd.f32 %v470, %v495
      %v507 = vadd.f32 %v471, %v495
      %v508 = vadd.f32 %v472, %v495
      %v509 = vadd.f32 %v473, %v495
      %v510 = vadd.f32 %v474, %v495
      %v511 = vadd.f32 %v475, %v495
      %v512 = vadd.f32 %v476, %v495
      %v513 = vadd.f32 %v477, %v495
      %v514 = vadd.f32 %v478, %v495
      %v515 = vadd.f32 %v479, %v495
      %v516 = vadd.f32 %v480, %v495
      %v517 = vadd.f32 %v481, %v495
      %v518 = vadd.f32 %v482, %v495
      %v519 = vadd.f32 %v483, %v495
      %v520 = vadd.f32 %v484, %v495
      %v521 = vadd.f32 %v485, %v495
      %v522 = vadd.f32 %v486, %v495
      %v523 = vadd.f32 %v487, %v495
      %v524 = vadd.f32 %v488, %v495
      %v525 = vadd.f32 %v489, %v495
      %v526 = vadd.f32 %v490, %v495
      %v527 = vadd.f32 %v491, %v495
      %v528 = vadd.f32 %v492, %v495
      %vm529 = vcmp.ge.f32.partialorder %v497, 0.0
      %vm530 = vcmp.ge.f32.partialorder %v498, 0.0
      %vm531 = vcmp.ge.f32.partialorder %v499, 0.0
      %vm532 = vcmp.ge.f32.partialorder %v500, 0.0
      %vm533 = vcmp.ge.f32.partialorder %v501, 0.0
      %vm534 = vcmp.ge.f32.partialorder %v502, 0.0
      %vm535 = vcmp.ge.f32.partialorder %v503, 0.0
      %vm536 = vcmp.ge.f32.partialorder %v504, 0.0
      %vm537 = vcmp.ge.f32.partialorder %v505, 0.0
      %vm538 = vcmp.ge.f32.partialorder %v506, 0.0
      %vm539 = vcmp.ge.f32.partialorder %v507, 0.0
      %vm540 = vcmp.ge.f32.partialorder %v508, 0.0
      %vm541 = vcmp.ge.f32.partialorder %v509, 0.0
      %vm542 = vcmp.ge.f32.partialorder %v510, 0.0
      %vm543 = vcmp.ge.f32.partialorder %v511, 0.0
      %vm544 = vcmp.ge.f32.partialorder %v512, 0.0
      %vm545 = vcmp.ge.f32.partialorder %v513, 0.0
      %vm546 = vcmp.ge.f32.partialorder %v514, 0.0
      %vm547 = vcmp.ge.f32.partialorder %v515, 0.0
      %vm548 = vcmp.ge.f32.partialorder %v516, 0.0
      %vm549 = vcmp.ge.f32.partialorder %v517, 0.0
      %vm550 = vcmp.ge.f32.partialorder %v518, 0.0
      %vm551 = vcmp.ge.f32.partialorder %v519, 0.0
      %vm552 = vcmp.ge.f32.partialorder %v520, 0.0
      %vm553 = vcmp.ge.f32.partialorder %v521, 0.0
      %vm554 = vcmp.ge.f32.partialorder %v522, 0.0
      %vm555 = vcmp.ge.f32.partialorder %v523, 0.0
      %vm556 = vcmp.ge.f32.partialorder %v524, 0.0
      %vm557 = vcmp.ge.f32.partialorder %v525, 0.0
      %vm558 = vcmp.ge.f32.partialorder %v526, 0.0
      %vm559 = vcmp.ge.f32.partialorder %v527, 0.0
      %vm560 = vcmp.ge.f32.partialorder %v528, 0.0
      %v561 = vmul.f32 %v497, 0.2
      %v562 = vmul.f32 %v498, 0.2
      %v563 = vmul.f32 %v499, 0.2
      %v564 = vmul.f32 %v500, 0.2
      %v565 = vmul.f32 %v501, 0.2
      %v566 = vmul.f32 %v502, 0.2
      %v567 = vmul.f32 %v503, 0.2
      %v568 = vmul.f32 %v504, 0.2
      %v569 = vmul.f32 %v505, 0.2
      %v570 = vmul.f32 %v506, 0.2
      %v571 = vmul.f32 %v507, 0.2
      %v572 = vmul.f32 %v508, 0.2
      %v573 = vmul.f32 %v509, 0.2
      %v574 = vmul.f32 %v510, 0.2
      %v575 = vmul.f32 %v511, 0.2
      %v576 = vmul.f32 %v512, 0.2
      %v577 = vmul.f32 %v513, 0.2
      %v578 = vmul.f32 %v514, 0.2
      %v579 = vmul.f32 %v515, 0.2
      %v580 = vmul.f32 %v516, 0.2
      %v581 = vmul.f32 %v517, 0.2
      %v582 = vmul.f32 %v518, 0.2
      %v583 = vmul.f32 %v519, 0.2
      %v584 = vmul.f32 %v520, 0.2
      %v585 = vmul.f32 %v521, 0.2
      %v586 = vmul.f32 %v522, 0.2
      %v587 = vmul.f32 %v523, 0.2
      %v588 = vmul.f32 %v524, 0.2
      %v589 = vmul.f32 %v525, 0.2
      %v590 = vmul.f32 %v526, 0.2
      %v591 = vmul.f32 %v527, 0.2
      %v592 = vmul.f32 %v528, 0.2
      %v593 = vsel %vm529, %v497, %v561
      %v594 = vsel %vm530, %v498, %v562
      %v595 = vsel %vm531, %v499, %v563
      %v596 = vsel %vm532, %v500, %v564
      %v597 = vsel %vm533, %v501, %v565
      %v598 = vsel %vm534, %v502, %v566
      %v599 = vsel %vm535, %v503, %v567
      %v600 = vsel %vm536, %v504, %v568
      %v601 = vsel %vm537, %v505, %v569
      %v602 = vsel %vm538, %v506, %v570
      %v603 = vsel %vm539, %v507, %v571
      %v604 = vsel %vm540, %v508, %v572
      %v605 = vsel %vm541, %v509, %v573
      %v606 = vsel %vm542, %v510, %v574
      %v607 = vsel %vm543, %v511, %v575
      %v608 = vsel %vm544, %v512, %v576
      %v609 = vsel %vm545, %v513, %v577
      %v610 = vsel %vm546, %v514, %v578
      %v611 = vsel %vm547, %v515, %v579
      %v612 = vsel %vm548, %v516, %v580
      %v613 = vsel %vm549, %v517, %v581
      %v614 = vsel %vm550, %v518, %v582
      %v615 = vsel %vm551, %v519, %v583
      %v616 = vsel %vm552, %v520, %v584
      %v617 = vsel %vm553, %v521, %v585
      %v618 = vsel %vm554, %v522, %v586
      %v619 = vsel %vm555, %v523, %v587
      %v620 = vsel %vm556, %v524, %v588
      %v621 = vsel %vm557, %v525, %v589
      %v622 = vsel %vm558, %v526, %v590
      %v623 = vsel %vm559, %v527, %v591
      %v624 = vsel %vm560, %v528, %v592
      %s625 = scalar_lea.vmem [#allocation2], 24
      %626 = vst [vmem:[%s625 + $0x1] sm:$0xff] %v593
      %627 = vst [vmem:[%s625 + $0x9] sm:$0xff] %v594
      %628 = vst [vmem:[%s625 + $0x19] sm:$0xff] %v595
      %629 = vst [vmem:[%s625 + $0x21] sm:$0xff] %v596
      %630 = vst [vmem:[%s625 + $0x31] sm:$0xff] %v597
      %631 = vst [vmem:[%s625 + $0x39] sm:$0xff] %v598
      %632 = vst [vmem:[%s625 + $0x49] sm:$0xff] %v599
      %633 = vst [vmem:[%s625 + $0x51] sm:$0xff] %v600
      %634 = vst [vmem:[%s625 + $0x61] sm:$0xff] %v601
      %635 = vst [vmem:[%s625 + $0x69] sm:$0xff] %v602
      %636 = vst [vmem:[%s625 + $0x79] sm:$0xff] %v603
      %637 = vst [vmem:[%s625 + $0x81] sm:$0xff] %v604
      %638 = vst [vmem:[%s625 + $0x91] sm:$0xff] %v605
      %639 = vst [vmem:[%s625 + $0x99] sm:$0xff] %v606
      %640 = vst [vmem:[%s625 + $0xa9] sm:$0xff] %v607
      %641 = vst [vmem:[%s625 + $0xb1] sm:$0xff] %v608
      %642 = vst [vmem:[%s625 + $0xc1] sm:$0xff] %v609
      %643 = vst [vmem:[%s625 + $0xc9] sm:$0xff] %v610
      %644 = vst [vmem:[%s625 + $0xd9] sm:$0xff] %v611
      %645 = vst [vmem:[%s625 + $0xe1] sm:$0xff] %v612
      %646 = vst [vmem:[%s625 + $0xf1] sm:$0xff] %v613
      %647 = vst [vmem:[%s625 + $0xf9] sm:$0xff] %v614
      %648 = vst [vmem:[%s625 + $0x109] sm:$0xff] %v615
      %649 = vst [vmem:[%s625 + $0x111] sm:$0xff] %v616
      %650 = vst [vmem:[%s625 + $0x121] sm:$0xff] %v617
      %651 = vst [vmem:[%s625 + $0x129] sm:$0xff] %v618
      %652 = vst [vmem:[%s625 + $0x139] sm:$0xff] %v619
      %653 = vst [vmem:[%s625 + $0x141] sm:$0xff] %v620
      %654 = vst [vmem:[%s625 + $0x151] sm:$0xff] %v621
      %655 = vst [vmem:[%s625 + $0x159] sm:$0xff] %v622
      %656 = vst [vmem:[%s625 + $0x169] sm:$0xff] %v623
      %657 = vst [vmem:[%s625 + $0x171] sm:$0xff] %v624
      %v658 = vld [vmem:[#allocation2] sm:$0xff]
      %v659 = vld [vmem:[#allocation2 + $0x8] sm:$0xff]
      %v660 = vld [vmem:[#allocation2 + $0x18] sm:$0xff]
      %v661 = vld [vmem:[#allocation2 + $0x20] sm:$0xff]
      %v662 = vld [vmem:[#allocation2 + $0x30] sm:$0xff]
      %v663 = vld [vmem:[#allocation2 + $0x38] sm:$0xff]
      %v664 = vld [vmem:[#allocation2 + $0x48] sm:$0xff]
      %v665 = vld [vmem:[#allocation2 + $0x50] sm:$0xff]
      %v666 = vld [vmem:[#allocation2 + $0x60] sm:$0xff]
      %v667 = vld [vmem:[#allocation2 + $0x68] sm:$0xff]
      %v668 = vld [vmem:[#allocation2 + $0x78] sm:$0xff]
      %v669 = vld [vmem:[#allocation2 + $0x80] sm:$0xff]
      %v670 = vld [vmem:[#allocation2 + $0x90] sm:$0xff]
      %v671 = vld [vmem:[#allocation2 + $0x98] sm:$0xff]
      %v672 = vld [vmem:[#allocation2 + $0xa8] sm:$0xff]
      %v673 = vld [vmem:[#allocation2 + $0xb0] sm:$0xff]
      %v674 = vld [vmem:[#allocation2 + $0xc0] sm:$0xff]
      %v675 = vld [vmem:[#allocation2 + $0xc8] sm:$0xff]
      %v676 = vld [vmem:[#allocation2 + $0xd8] sm:$0xff]
      %v677 = vld [vmem:[#allocation2 + $0xe0] sm:$0xff]
      %v678 = vld [vmem:[#allocation2 + $0xf0] sm:$0xff]
      %v679 = vld [vmem:[#allocation2 + $0xf8] sm:$0xff]
      %v680 = vld [vmem:[#allocation2 + $0x108] sm:$0xff]
      %v681 = vld [vmem:[#allocation2 + $0x110] sm:$0xff]
      %v682 = vld [vmem:[#allocation2 + $0x120] sm:$0xff]
      %v683 = vld [vmem:[#allocation2 + $0x128] sm:$0xff]
      %v684 = vld [vmem:[#allocation2 + $0x138] sm:$0xff]
      %v685 = vld [vmem:[#allocation2 + $0x140] sm:$0xff]
      %v686 = vld [vmem:[#allocation2 + $0x150] sm:$0xff]
      %v687 = vld [vmem:[#allocation2 + $0x158] sm:$0xff]
      %v688 = vld [vmem:[#allocation2 + $0x168] sm:$0xff]
      %v689 = vld [vmem:[#allocation2 + $0x170] sm:$0xff]
      %v690 = vmul.f32 %v658, 0.0625
      %v691 = vmul.f32 %v659, 0.0625
      %v692 = vmul.f32 %v660, 0.0625
      %v693 = vmul.f32 %v661, 0.0625
      %v694 = vmul.f32 %v662, 0.0625
      %v695 = vmul.f32 %v663, 0.0625
      %v696 = vmul.f32 %v664, 0.0625
      %v697 = vmul.f32 %v665, 0.0625
      %v698 = vmul.f32 %v666, 0.0625
      %v699 = vmul.f32 %v667, 0.0625
      %v700 = vmul.f32 %v668, 0.0625
      %v701 = vmul.f32 %v669, 0.0625
      %v702 = vmul.f32 %v670, 0.0625
      %v703 = vmul.f32 %v671, 0.0625
      %v704 = vmul.f32 %v672, 0.0625
      %v705 = vmul.f32 %v673, 0.0625
      %v706 = vmul.f32 %v674, 0.0625
      %v707 = vmul.f32 %v675, 0.0625
      %v708 = vmul.f32 %v676, 0.0625
      %v709 = vmul.f32 %v677, 0.0625
      %v710 = vmul.f32 %v678, 0.0625
      %v711 = vmul.f32 %v679, 0.0625
      %v712 = vmul.f32 %v680, 0.0625
      %v713 = vmul.f32 %v681, 0.0625
      %v714 = vmul.f32 %v682, 0.0625
      %v715 = vmul.f32 %v683, 0.0625
      %v716 = vmul.f32 %v684, 0.0625
      %v717 = vmul.f32 %v685, 0.0625
      %v718 = vmul.f32 %v686, 0.0625
      %v719 = vmul.f32 %v687, 0.0625
      %v720 = vmul.f32 %v688, 0.0625
      %v721 = vmul.f32 %v689, 0.0625
      %v722 = vadd.f32 %v690, 0.0
      %v723 = vadd.f32 %v691, 0.0
      %v724 = vadd.f32 %v692, 0.0
      %v725 = vadd.f32 %v693, 0.0
      %v726 = vadd.f32 %v694, 0.0
      %v727 = vadd.f32 %v695, 0.0
      %v728 = vadd.f32 %v696, 0.0
      %v729 = vadd.f32 %v697, 0.0
      %v730 = vadd.f32 %v698, 0.0
      %v731 = vadd.f32 %v699, 0.0
      %v732 = vadd.f32 %v700, 0.0
      %v733 = vadd.f32 %v701, 0.0
      %v734 = vadd.f32 %v702, 0.0
      %v735 = vadd.f32 %v703, 0.0
      %v736 = vadd.f32 %v704, 0.0
      %v737 = vadd.f32 %v705, 0.0
      %v738 = vadd.f32 %v706, 0.0
      %v739 = vadd.f32 %v707, 0.0
      %v740 = vadd.f32 %v708, 0.0
      %v741 = vadd.f32 %v709, 0.0
      %v742 = vadd.f32 %v710, 0.0
      %v743 = vadd.f32 %v711, 0.0
      %v744 = vadd.f32 %v712, 0.0
      %v745 = vadd.f32 %v713, 0.0
      %v746 = vadd.f32 %v714, 0.0
      %v747 = vadd.f32 %v715, 0.0
      %v748 = vadd.f32 %v716, 0.0
      %v749 = vadd.f32 %v717, 0.0
      %v750 = vadd.f32 %v718, 0.0
      %v751 = vadd.f32 %v719, 0.0
      %v752 = vadd.f32 %v720, 0.0
      %v753 = vadd.f32 %v721, 0.0
      %v754 = vld [vmem:[#allocation2 + $0x1] sm:$0xff]
      %v755 = vld [vmem:[#allocation2 + $0x9] sm:$0xff]
      %v756 = vld [vmem:[#allocation2 + $0x19] sm:$0xff]
      %v757 = vld [vmem:[#allocation2 + $0x21] sm:$0xff]
      %v758 = vld [vmem:[#allocation2 + $0x31] sm:$0xff]
      %v759 = vld [vmem:[#allocation2 + $0x39] sm:$0xff]
      %v760 = vld [vmem:[#allocation2 + $0x49] sm:$0xff]
      %v761 = vld [vmem:[#allocation2 + $0x51] sm:$0xff]
      %v762 = vld [vmem:[#allocation2 + $0x61] sm:$0xff]
      %v763 = vld [vmem:[#allocation2 + $0x69] sm:$0xff]
      %v764 = vld [vmem:[#allocation2 + $0x79] sm:$0xff]
      %v765 = vld [vmem:[#allocation2 + $0x81] sm:$0xff]
      %v766 = vld [vmem:[#allocation2 + $0x91] sm:$0xff]
      %v767 = vld [vmem:[#allocation2 + $0x99] sm:$0xff]
      %v768 = vld [vmem:[#allocation2 + $0xa9] sm:$0xff]
      %v769 = vld [vmem:[#allocation2 + $0xb1] sm:$0xff]
      %v770 = vld [vmem:[#allocation2 + $0xc1] sm:$0xff]
      %v771 = vld [vmem:[#allocation2 + $0xc9] sm:$0xff]
      %v772 = vld [vmem:[#allocation2 + $0xd9] sm:$0xff]
      %v773 = vld [vmem:[#allocation2 + $0xe1] sm:$0xff]
      %v774 = vld [vmem:[#allocation2 + $0xf1] sm:$0xff]
      %v775 = vld [vmem:[#allocation2 + $0xf9] sm:$0xff]
      %v776 = vld [vmem:[#allocation2 + $0x109] sm:$0xff]
      %v777 = vld [vmem:[#allocation2 + $0x111] sm:$0xff]
      %v778 = vld [vmem:[#allocation2 + $0x121] sm:$0xff]
      %v779 = vld [vmem:[#allocation2 + $0x129] sm:$0xff]
      %v780 = vld [vmem:[#allocation2 + $0x139] sm:$0xff]
      %v781 = vld [vmem:[#allocation2 + $0x141] sm:$0xff]
      %v782 = vld [vmem:[#allocation2 + $0x151] sm:$0xff]
      %v783 = vld [vmem:[#allocation2 + $0x159] sm:$0xff]
      %v784 = vld [vmem:[#allocation2 + $0x169] sm:$0xff]
      %v785 = vld [vmem:[#allocation2 + $0x171] sm:$0xff]
      %v786 = vmul.f32 %v754, 0.125
      %v787 = vmul.f32 %v755, 0.125
      %v788 = vmul.f32 %v756, 0.125
      %v789 = vmul.f32 %v757, 0.125
      %v790 = vmul.f32 %v758, 0.125
      %v791 = vmul.f32 %v759, 0.125
      %v792 = vmul.f32 %v760, 0.125
      %v793 = vmul.f32 %v761, 0.125
      %v794 = vmul.f32 %v762, 0.125
      %v795 = vmul.f32 %v763, 0.125
      %v796 = vmul.f32 %v764, 0.125
      %v797 = vmul.f32 %v765, 0.125
      %v798 = vmul.f32 %v766, 0.125
      %v799 = vmul.f32 %v767, 0.125
      %v800 = vmul.f32 %v768, 0.125
      %v801 = vmul.f32 %v769, 0.125
      %v802 = vmul.f32 %v770, 0.125
      %v803 = vmul.f32 %v771, 0.125
      %v804 = vmul.f32 %v772, 0.125
      %v805 = vmul.f32 %v773, 0.125
      %v806 = vmul.f32 %v774, 0.125
      %v807 = vmul.f32 %v775, 0.125
      %v808 = vmul.f32 %v776, 0.125
      %v809 = vmul.f32 %v777, 0.125
      %v810 = vmul.f32 %v778, 0.125
      %v811 = vmul.f32 %v779, 0.125
      %v812 = vmul.f32 %v780, 0.125
      %v813 = vmul.f32 %v781, 0.125
      %v814 = vmul.f32 %v782, 0.125
      %v815 = vmul.f32 %v783, 0.125
      %v816 = vmul.f32 %v784, 0.125
      %v817 = vmul.f32 %v785, 0.125
      %v818 = vadd.f32 %v722, %v786
      %v819 = vadd.f32 %v723, %v787
      %v820 = vadd.f32 %v724, %v788
      %v821 = vadd.f32 %v725, %v789
      %v822 = vadd.f32 %v726, %v790
      %v823 = vadd.f32 %v727, %v791
      %v824 = vadd.f32 %v728, %v792
      %v825 = vadd.f32 %v729, %v793
      %v826 = vadd.f32 %v730, %v794
      %v827 = vadd.f32 %v731, %v795
      %v828 = vadd.f32 %v732, %v796
      %v829 = vadd.f32 %v733, %v797
      %v830 = vadd.f32 %v734, %v798
      %v831 = vadd.f32 %v735, %v799
      %v832 = vadd.f32 %v736, %v800
      %v833 = vadd.f32 %v737, %v801
      %v834 = vadd.f32 %v738, %v802
      %v835 = vadd.f32 %v739, %v803
      %v836 = vadd.f32 %v740, %v804
      %v837 = vadd.f32 %v741, %v805
      %v838 = vadd.f32 %v742, %v806
      %v839 = vadd.f32 %v743, %v807
      %v840 = vadd.f32 %v744, %v808
      %v841 = vadd.f32 %v745, %v809
      %v842 = vadd.f32 %v746, %v810
      %v843 = vadd.f32 %v747, %v811
      %v844 = vadd.f32 %v748, %v812
      %v845 = vadd.f32 %v749, %v813
      %v846 = vadd.f32 %v750, %v814
      %v847 = vadd.f32 %v751, %v815
      %v848 = vadd.f32 %v752, %v816
      %v849 = vadd.f32 %v753, %v817
      %v850 = vld [vmem:[#allocation2 + $0x2] sm:$0xff]
      %v851 = vld [vmem:[#allocation2 + $0xa] sm:$0xff]
      %v852 = vld [vmem:[#allocation2 + $0x1a] sm:$0xff]
      %v853 = vld [vmem:[#allocation2 + $0x22] sm:$0xff]
      %v854 = vld [vmem:[#allocation2 + $0x32] sm:$0xff]
      %v855 = vld [vmem:[#allocation2 + $0x3a] sm:$0xff]
      %v856 = vld [vmem:[#allocation2 + $0x4a] sm:$0xff]
      %v857 = vld [vmem:[#allocation2 + $0x52] sm:$0xff]
      %v858 = vld [vmem:[#allocation2 + $0x62] sm:$0xff]
      %v859 = vld [vmem:[#allocation2 + $0x6a] sm:$0xff]
      %v860 = vld [vmem:[#allocation2 + $0x7a] sm:$0xff]
      %v861 = vld [vmem:[#allocation2 + $0x82] sm:$0xff]
      %v862 = vld [vmem:[#allocation2 + $0x92] sm:$0xff]
      %v863 = vld [vmem:[#allocation2 + $0x9a] sm:$0xff]
      %v864 = vld [vmem:[#allocation2 + $0xaa] sm:$0xff]
      %v865 = vld [vmem:[#allocation2 + $0xb2] sm:$0xff]
      %v866 = vld [vmem:[#allocation2 + $0xc2] sm:$0xff]
      %v867 = vld [vmem:[#allocation2 + $0xca] sm:$0xff]
      %v868 = vld [vmem:[#allocation2 + $0xda] sm:$0xff]
      %v869 = vld [vmem:[#allocation2 + $0xe2] sm:$0xff]
      %v870 = vld [vmem:[#allocation2 + $0xf2] sm:$0xff]
      %v871 = vld [vmem:[#allocation2 + $0xfa] sm:$0xff]
      %v872 = vld [vmem:[#allocation2 + $0x10a] sm:$0xff]
      %v873 = vld [vmem:[#allocation2 + $0x112] sm:$0xff]
      %v874 = vld [vmem:[#allocation2 + $0x122] sm:$0xff]
      %v875 = vld [vmem:[#allocation2 + $0x12a] sm:$0xff]
      %v876 = vld [vmem:[#allocation2 + $0x13a] sm:$0xff]
      %v877 = vld [vmem:[#allocation2 + $0x142] sm:$0xff]
      %v878 = vld [vmem:[#allocation2 + $0x152] sm:$0xff]
      %v879 = vld [vmem:[#allocation2 + $0x15a] sm:$0xff]
      %v880 = vld [vmem:[#allocation2 + $0x16a] sm:$0xff]
      %v881 = vld [vmem:[#allocation2 + $0x172] sm:$0xff]
      %v882 = vmul.f32 %v850, 0.0625
      %v883 = vmul.f32 %v851, 0.0625
      %v884 = vmul.f32 %v852, 0.0625
      %v885 = vmul.f32 %v853, 0.0625
      %v886 = vmul.f32 %v854, 0.0625
      %v887 = vmul.f32 %v855, 0.0625
      %v888 = vmul.f32 %v856, 0.0625
      %v889 = vmul.f32 %v857, 0.0625
      %v890 = vmul.f32 %v858, 0.0625
      %v891 = vmul.f32 %v859, 0.0625
      %v892 = vmul.f32 %v860, 0.0625
      %v893 = vmul.f32 %v861, 0.0625
      %v894 = vmul.f32 %v862, 0.0625
      %v895 = vmul.f32 %v863, 0.0625
      %v896 = vmul.f32 %v864, 0.0625
      %v897 = vmul.f32 %v865, 0.0625
      %v898 = vmul.f32 %v866, 0.0625
      %v899 = vmul.f32 %v867, 0.0625
      %v900 = vmul.f32 %v868, 0.0625
      %v901 = vmul.f32 %v869, 0.0625
      %v902 = vmul.f32 %v870, 0.0625
      %v903 = vmul.f32 %v871, 0.0625
      %v904 = vmul.f32 %v872, 0.0625
      %v905 = vmul.f32 %v873, 0.0625
      %v906 = vmul.f32 %v874, 0.0625
      %v907 = vmul.f32 %v875, 0.0625
      %v908 = vmul.f32 %v876, 0.0625
      %v909 = vmul.f32 %v877, 0.0625
      %v910 = vmul.f32 %v878, 0.0625
      %v911 = vmul.f32 %v879, 0.0625
      %v912 = vmul.f32 %v880, 0.0625
      %v913 = vmul.f32 %v881, 0.0625
      %v914 = vadd.f32 %v818, %v882
      %v915 = vadd.f32 %v819, %v883
      %v916 = vadd.f32 %v820, %v884
      %v917 = vadd.f32 %v821, %v885
      %v918 = vadd.f32 %v822, %v886
      %v919 = vadd.f32 %v823, %v887
      %v920 = vadd.f32 %v824, %v888
      %v921 = vadd.f32 %v825, %v889
      %v922 = vadd.f32 %v826, %v890
      %v923 = vadd.f32 %v827, %v891
      %v924 = vadd.f32 %v828, %v892
      %v925 = vadd.f32 %v829, %v893
      %v926 = vadd.f32 %v830, %v894
      %v927 = vadd.f32 %v831, %v895
      %v928 = vadd.f32 %v832, %v896
      %v929 = vadd.f32 %v833, %v897
      %v930 = vadd.f32 %v834, %v898
      %v931 = vadd.f32 %v835, %v899
      %v932 = vadd.f32 %v836, %v900
      %v933 = vadd.f32 %v837, %v901
      %v934 = vadd.f32 %v838, %v902
      %v935 = vadd.f32 %v839, %v903
      %v936 = vadd.f32 %v840, %v904
      %v937 = vadd.f32 %v841, %v905
      %v938 = vadd.f32 %v842, %v906
      %v939 = vadd.f32 %v843, %v907
      %v940 = vadd.f32 %v844, %v908
      %v941 = vadd.f32 %v845, %v909
      %v942 = vadd.f32 %v846, %v910
      %v943 = vadd.f32 %v847, %v911
      %v944 = vadd.f32 %v848, %v912
      %v945 = vadd.f32 %v849, %v913
      %v946 = vld [vmem:[%s625] sm:$0xff]
      %v947 = vld [vmem:[%s625 + $0x8] sm:$0xff]
      %v948 = vld [vmem:[%s625 + $0x18] sm:$0xff]
      %v949 = vld [vmem:[%s625 + $0x20] sm:$0xff]
      %v950 = vld [vmem:[%s625 + $0x30] sm:$0xff]
      %v951 = vld [vmem:[%s625 + $0x38] sm:$0xff]
      %v952 = vld [vmem:[%s625 + $0x48] sm:$0xff]
      %v953 = vld [vmem:[%s625 + $0x50] sm:$0xff]
      %v954 = vld [vmem:[%s625 + $0x60] sm:$0xff]
      %v955 = vld [vmem:[%s625 + $0x68] sm:$0xff]
      %v956 = vld [vmem:[%s625 + $0x78] sm:$0xff]
      %v957 = vld [vmem:[%s625 + $0x80] sm:$0xff]
      %v958 = vld [vmem:[%s625 + $0x90] sm:$0xff]
      %v959 = vld [vmem:[%s625 + $0x98] sm:$0xff]
      %v960 = vld [vmem:[%s625 + $0xa8] sm:$0xff]
      %v961 = vld [vmem:[%s625 + $0xb0] sm:$0xff]
      %v962 = vld [vmem:[%s625 + $0xc0] sm:$0xff]
      %v963 = vld [vmem:[%s625 + $0xc8] sm:$0xff]
      %v964 = vld [vmem:[%s625 + $0xd8] sm:$0xff]
      %v965 = vld [vmem:[%s625 + $0xe0] sm:$0xff]
      %v966 = vld [vmem:[%s625 + $0xf0] sm:$0xff]
      %v967 = vld [vmem:[%s625 + $0xf8] sm:$0xff]
      %v968 = vld [vmem:[%s625 + $0x108] sm:$0xff]
      %v969 = vld [vmem:[%s625 + $0x110] sm:$0xff]
      %v970 = vld [vmem:[%s625 + $0x120] sm:$0xff]
      %v971 = vld [vmem:[%s625 + $0x128] sm:$0xff]
      %v972 = vld [vmem:[%s625 + $0x138] sm:$0xff]
      %v973 = vld [vmem:[%s625 + $0x140] sm:$0xff]
      %v974 = vld [vmem:[%s625 + $0x150] sm:$0xff]
      %v975 = vld [vmem:[%s625 + $0x158] sm:$0xff]
      %v976 = vld [vmem:[%s625 + $0x168] sm:$0xff]
      %v977 = vld [vmem:[%s625 + $0x170] sm:$0xff]
      %v978 = vmul.f32 %v946, 0.125
      %v979 = vmul.f32 %v947, 0.125
      %v980 = vmul.f32 %v948, 0.125
      %v981 = vmul.f32 %v949, 0.125
      %v982 = vmul.f32 %v950, 0.125
      %v983 = vmul.f32 %v951, 0.125
      %v984 = vmul.f32 %v952, 0.125
      %v985 = vmul.f32 %v953, 0.125
      %v986 = vmul.f32 %v954, 0.125
      %v987 = vmul.f32 %v955, 0.125
      %v988 = vmul.f32 %v956, 0.125
      %v989 = vmul.f32 %v957, 0.125
      %v990 = vmul.f32 %v958, 0.125
      %v991 = vmul.f32 %v959, 0.125
      %v992 = vmul.f32 %v960, 0.125
      %v993 = vmul.f32 %v961, 0.125
      %v994 = vmul.f32 %v962, 0.125
      %v995 = vmul.f32 %v963, 0.125
      %v996 = vmul.f32 %v964, 0.125
      %v997 = vmul.f32 %v965, 0.125
      %v998 = vmul.f32 %v966, 0.125
      %v999 = vmul.f32 %v967, 0.125
      %v1000 = vmul.f32 %v968, 0.125
      %v1001 = vmul.f32 %v969, 0.125
      %v1002 = vmul.f32 %v970, 0.125
      %v1003 = vmul.f32 %v971, 0.125
      %v1004 = vmul.f32 %v972, 0.125
      %v1005 = vmul.f32 %v973, 0.125
      %v1006 = vmul.f32 %v974, 0.125
      %v1007 = vmul.f32 %v975, 0.125
      %v1008 = vmul.f32 %v976, 0.125
      %v1009 = vmul.f32 %v977, 0.125
      %v1010 = vadd.f32 %v914, %v978
      %v1011 = vadd.f32 %v915, %v979
      %v1012 = vadd.f32 %v916, %v980
      %v1013 = vadd.f32 %v917, %v981
      %v1014 = vadd.f32 %v918, %v982
      %v1015 = vadd.f32 %v919, %v983
      %v1016 = vadd.f32 %v920, %v984
      %v1017 = vadd.f32 %v921, %v985
      %v1018 = vadd.f32 %v922, %v986
      %v1019 = vadd.f32 %v923, %v987
      %v1020 = vadd.f32 %v924, %v988
      %v1021 = vadd.f32 %v925, %v989
      %v1022 = vadd.f32 %v926, %v990
      %v1023 = vadd.f32 %v927, %v991
      %v1024 = vadd.f32 %v928, %v992
      %v1025 = vadd.f32 %v929, %v993
      %v1026 = vadd.f32 %v930, %v994
      %v1027 = vadd.f32 %v931, %v995
      %v1028 = vadd.f32 %v932, %v996
      %v1029 = vadd.f32 %v933, %v997
      %v1030 = vadd.f32 %v934, %v998
      %v1031 = vadd.f32 %v935, %v999
      %v1032 = vadd.f32 %v936, %v1000
      %v1033 = vadd.f32 %v937, %v1001
      %v1034 = vadd.f32 %v938, %v1002
      %v1035 = vadd.f32 %v939, %v1003
      %v1036 = vadd.f32 %v940, %v1004
      %v1037 = vadd.f32 %v941, %v1005
      %v1038 = vadd.f32 %v942, %v1006
      %v1039 = vadd.f32 %v943, %v1007
      %v1040 = vadd.f32 %v944, %v1008
      %v1041 = vadd.f32 %v945, %v1009
      %v1042 = vld [vmem:[%s625 + $0x1] sm:$0xff]
      %v1043 = vld [vmem:[%s625 + $0x9] sm:$0xff]
      %v1044 = vld [vmem:[%s625 + $0x19] sm:$0xff]
      %v1045 = vld [vmem:[%s625 + $0x21] sm:$0xff]
      %v1046 = vld [vmem:[%s625 + $0x31] sm:$0xff]
      %v1047 = vld [vmem:[%s625 + $0x39] sm:$0xff]
      %v1048 = vld [vmem:[%s625 + $0x49] sm:$0xff]
      %v1049 = vld [vmem:[%s625 + $0x51] sm:$0xff]
      %v1050 = vld [vmem:[%s625 + $0x61] sm:$0xff]
      %v1051 = vld [vmem:[%s625 + $0x69] sm:$0xff]
      %v1052 = vld [vmem:[%s625 + $0x79] sm:$0xff]
      %v1053 = vld [vmem:[%s625 + $0x81] sm:$0xff]
      %v1054 = vld [vmem:[%s625 + $0x91] sm:$0xff]
      %v1055 = vld [vmem:[%s625 + $0x99] sm:$0xff]
      %v1056 = vld [vmem:[%s625 + $0xa9] sm:$0xff]
      %v1057 = vld [vmem:[%s625 + $0xb1] sm:$0xff]
      %v1058 = vld [vmem:[%s625 + $0xc1] sm:$0xff]
      %v1059 = vld [vmem:[%s625 + $0xc9] sm:$0xff]
      %v1060 = vld [vmem:[%s625 + $0xd9] sm:$0xff]
      %v1061 = vld [vmem:[%s625 + $0xe1] sm:$0xff]
      %v1062 = vld [vmem:[%s625 + $0xf1] sm:$0xff]
      %v1063 = vld [vmem:[%s625 + $0xf9] sm:$0xff]
      %v1064 = vld [vmem:[%s625 + $0x109] sm:$0xff]
      %v1065 = vld [vmem:[%s625 + $0x111] sm:$0xff]
      %v1066 = vld [vmem:[%s625 + $0x121] sm:$0xff]
      %v1067 = vld [vmem:[%s625 + $0x129] sm:$0xff]
      %v1068 = vld [vmem:[%s625 + $0x139] sm:$0xff]
      %v1069 = vld [vmem:[%s625 + $0x141] sm:$0xff]
      %v1070 = vld [vmem:[%s625 + $0x151] sm:$0xff]
      %v1071 = vld [vmem:[%s625 + $0x159] sm:$0xff]
      %v1072 = vld [vmem:[%s625 + $0x169] sm:$0xff]
      %v1073 = vld [vmem:[%s625 + $0x171] sm:$0xff]
      %v1074 = vmul.f32 %v1042, 0.25
      %v1075 = vmul.f32 %v1043, 0.25
      %v1076 = vmul.f32 %v1044, 0.25
      %v1077 = vmul.f32 %v1045, 0.25
      %v1078 = vmul.f32 %v1046, 0.25
      %v1079 = vmul.f32 %v1047, 0.25
      %v1080 = vmul.f32 %v1048, 0.25
      %v1081 = vmul.f32 %v1049, 0.25
      %v1082 = vmul.f32 %v1050, 0.25
      %v1083 = vmul.f32 %v1051, 0.25
      %v1084 = vmul.f32 %v1052, 0.25
      %v1085 = vmul.f32 %v1053, 0.25
      %v1086 = vmul.f32 %v1054, 0.25
      %v1087 = vmul.f32 %v1055, 0.25
      %v1088 = vmul.f32 %v1056, 0.25
      %v1089 = vmul.f32 %v1057, 0.25
      %v1090 = vmul.f32 %v1058, 0.25
      %v1091 = vmul.f32 %v1059, 0.25
      %v1092 = vmul.f32 %v1060, 0.25
      %v1093 = vmul.f32 %v1061, 0.25
      %v1094 = vmul.f32 %v1062, 0.25
      %v1095 = vmul.f32 %v1063, 0.25
      %v1096 = vmul.f32 %v1064, 0.25
      %v1097 = vmul.f32 %v1065, 0.25
      %v1098 = vmul.f32 %v1066, 0.25
      %v1099 = vmul.f32 %v1067, 0.25
      %v1100 = vmul.f32 %v1068, 0.25
      %v1101 = vmul.f32 %v1069, 0.25
      %v1102 = vmul.f32 %v1070, 0.25
      %v1103 = vmul.f32 %v1071, 0.25
      %v1104 = vmul.f32 %v1072, 0.25
      %v1105 = vmul.f32 %v1073, 0.25
      %v1106 = vadd.f32 %v1010, %v1074
      %v1107 = vadd.f32 %v1011, %v1075
      %v1108 = vadd.f32 %v1012, %v1076
      %v1109 = vadd.f32 %v1013, %v1077
      %v1110 = vadd.f32 %v1014, %v1078
      %v1111 = vadd.f32 %v1015, %v1079
      %v1112 = vadd.f32 %v1016, %v1080
      %v1113 = vadd.f32 %v1017, %v1081
      %v1114 = vadd.f32 %v1018, %v1082
      %v1115 = vadd.f32 %v1019, %v1083
      %v1116 = vadd.f32 %v1020, %v1084
      %v1117 = vadd.f32 %v1021, %v1085
      %v1118 = vadd.f32 %v1022, %v1086
      %v1119 = vadd.f32 %v1023, %v1087
      %v1120 = vadd.f32 %v1024, %v1088
      %v1121 = vadd.f32 %v1025, %v1089
      %v1122 = vadd.f32 %v1026, %v1090
      %v1123 = vadd.f32 %v1027, %v1091
      %v1124 = vadd.f32 %v1028, %v1092
      %v1125 = vadd.f32 %v1029, %v1093
      %v1126 = vadd.f32 %v1030, %v1094
      %v1127 = vadd.f32 %v1031, %v1095
      %v1128 = vadd.f32 %v1032, %v1096
      %v1129 = vadd.f32 %v1033, %v1097
      %v1130 = vadd.f32 %v1034, %v1098
      %v1131 = vadd.f32 %v1035, %v1099
      %v1132 = vadd.f32 %v1036, %v1100
      %v1133 = vadd.f32 %v1037, %v1101
      %v1134 = vadd.f32 %v1038, %v1102
      %v1135 = vadd.f32 %v1039, %v1103
      %v1136 = vadd.f32 %v1040, %v1104
      %v1137 = vadd.f32 %v1041, %v1105
      %v1138 = vld [vmem:[%s625 + $0x2] sm:$0xff]
      %v1139 = vld [vmem:[%s625 + $0xa] sm:$0xff]
      %v1140 = vld [vmem:[%s625 + $0x1a] sm:$0xff]
      %v1141 = vld [vmem:[%s625 + $0x22] sm:$0xff]
      %v1142 = vld [vmem:[%s625 + $0x32] sm:$0xff]
      %v1143 = vld [vmem:[%s625 + $0x3a] sm:$0xff]
      %v1144 = vld [vmem:[%s625 + $0x4a] sm:$0xff]
      %v1145 = vld [vmem:[%s625 + $0x52] sm:$0xff]
      %v1146 = vld [vmem:[%s625 + $0x62] sm:$0xff]
      %v1147 = vld [vmem:[%s625 + $0x6a] sm:$0xff]
      %v1148 = vld [vmem:[%s625 + $0x7a] sm:$0xff]
      %v1149 = vld [vmem:[%s625 + $0x82] sm:$0xff]
      %v1150 = vld [vmem:[%s625 + $0x92] sm:$0xff]
      %v1151 = vld [vmem:[%s625 + $0x9a] sm:$0xff]
      %v1152 = vld [vmem:[%s625 + $0xaa] sm:$0xff]
      %v1153 = vld [vmem:[%s625 + $0xb2] sm:$0xff]
      %v1154 = vld [vmem:[%s625 + $0xc2] sm:$0xff]
      %v1155 = vld [vmem:[%s625 + $0xca] sm:$0xff]
      %v1156 = vld [vmem:[%s625 + $0xda] sm:$0xff]
      %v1157 = vld [vmem:[%s625 + $0xe2] sm:$0xff]
      %v1158 = vld [vmem:[%s625 + $0xf2] sm:$0xff]
      %v1159 = vld [vmem:[%s625 + $0xfa] sm:$0xff]
      %v1160 = vld [vmem:[%s625 + $0x10a] sm:$0xff]
      %v1161 = vld [vmem:[%s625 + $0x112] sm:$0xff]
      %v1162 = vld [vmem:[%s625 + $0x122] sm:$0xff]
      %v1163 = vld [vmem:[%s625 + $0x12a] sm:$0xff]
      %v1164 = vld [vmem:[%s625 + $0x13a] sm:$0xff]
      %v1165 = vld [vmem:[%s625 + $0x142] sm:$0xff]
      %v1166 = vld [vmem:[%s625 + $0x152] sm:$0xff]
      %v1167 = vld [vmem:[%s625 + $0x15a] sm:$0xff]
      %v1168 = vld [vmem:[%s625 + $0x16a] sm:$0xff]
      %v1169 = vld [vmem:[%s625 + $0x172] sm:$0xff]
      %v1170 = vmul.f32 %v1138, 0.125
      %v1171 = vmul.f32 %v1139, 0.125
      %v1172 = vmul.f32 %v1140, 0.125
      %v1173 = vmul.f32 %v1141, 0.125
      %v1174 = vmul.f32 %v1142, 0.125
      %v1175 = vmul.f32 %v1143, 0.125
      %v1176 = vmul.f32 %v1144, 0.125
      %v1177 = vmul.f32 %v1145, 0.125
      %v1178 = vmul.f32 %v1146, 0.125
      %v1179 = vmul.f32 %v1147, 0.125
      %v1180 = vmul.f32 %v1148, 0.125
      %v1181 = vmul.f32 %v1149, 0.125
      %v1182 = vmul.f32 %v1150, 0.125
      %v1183 = vmul.f32 %v1151, 0.125
      %v1184 = vmul.f32 %v1152, 0.125
      %v1185 = vmul.f32 %v1153, 0.125
      %v1186 = vmul.f32 %v1154, 0.125
      %v1187 = vmul.f32 %v1155, 0.125
      %v1188 = vmul.f32 %v1156, 0.125
      %v1189 = vmul.f32 %v1157, 0.125
      %v1190 = vmul.f32 %v1158, 0.125
      %v1191 = vmul.f32 %v1159, 0.125
      %v1192 = vmul.f32 %v1160, 0.125
      %v1193 = vmul.f32 %v1161, 0.125
      %v1194 = vmul.f32 %v1162, 0.125
      %v1195 = vmul.f32 %v1163, 0.125
      %v1196 = vmul.f32 %v1164, 0.125
      %v1197 = vmul.f32 %v1165, 0.125
      %v1198 = vmul.f32 %v1166, 0.125
      %v1199 = vmul.f32 %v1167, 0.125
      %v1200 = vmul.f32 %v1168, 0.125
      %v1201 = vmul.f32 %v1169, 0.125
      %v1202 = vadd.f32 %v1106, %v1170
      %v1203 = vadd.f32 %v1107, %v1171
      %v1204 = vadd.f32 %v1108, %v1172
      %v1205 = vadd.f32 %v1109, %v1173
      %v1206 = vadd.f32 %v1110, %v1174
      %v1207 = vadd.f32 %v1111, %v1175
      %v1208 = vadd.f32 %v1112, %v1176
      %v1209 = vadd.f32 %v1113, %v1177
      %v1210 = vadd.f32 %v1114, %v1178
      %v1211 = vadd.f32 %v1115, %v1179
      %v1212 = vadd.f32 %v1116, %v1180
      %v1213 = vadd.f32 %v1117, %v1181
      %v1214 = vadd.f32 %v1118, %v1182
      %v1215 = vadd.f32 %v1119, %v1183
      %v1216 = vadd.f32 %v1120, %v1184
      %v1217 = vadd.f32 %v1121, %v1185
      %v1218 = vadd.f32 %v1122, %v1186
      %v1219 = vadd.f32 %v1123, %v1187
      %v1220 = vadd.f32 %v1124, %v1188
      %v1221 = vadd.f32 %v1125, %v1189
      %v1222 = vadd.f32 %v1126, %v1190
      %v1223 = vadd.f32 %v1127, %v1191
      %v1224 = vadd.f32 %v1128, %v1192
      %v1225 = vadd.f32 %v1129, %v1193
      %v1226 = vadd.f32 %v1130, %v1194
      %v1227 = vadd.f32 %v1131, %v1195
      %v1228 = vadd.f32 %v1132, %v1196
      %v1229 = vadd.f32 %v1133, %v1197
      %v1230 = vadd.f32 %v1134, %v1198
      %v1231 = vadd.f32 %v1135, %v1199
      %v1232 = vadd.f32 %v1136, %v1200
      %v1233 = vadd.f32 %v1137, %v1201
      %s1234 = scalar_lea.vmem [#allocation2], 48
      %v1235 = vld [vmem:[%s1234] sm:$0xff]
      %v1236 = vld [vmem:[%s1234 + $0x8] sm:$0xff]
      %v1237 = vld [vmem:[%s1234 + $0x18] sm:$0xff]
      %v1238 = vld [vmem:[%s1234 + $0x20] sm:$0xff]
      %v1239 = vld [vmem:[%s1234 + $0x30] sm:$0xff]
      %v1240 = vld [vmem:[%s1234 + $0x38] sm:$0xff]
      %v1241 = vld [vmem:[%s1234 + $0x48] sm:$0xff]
      %v1242 = vld [vmem:[%s1234 + $0x50] sm:$0xff]
      %v1243 = vld [vmem:[%s1234 + $0x60] sm:$0xff]
      %v1244 = vld [vmem:[%s1234 + $0x68] sm:$0xff]
      %v1245 = vld [vmem:[%s1234 + $0x78] sm:$0xff]
      %v1246 = vld [vmem:[%s1234 + $0x80] sm:$0xff]
      %v1247 = vld [vmem:[%s1234 + $0x90] sm:$0xff]
      %v1248 = vld [vmem:[%s1234 + $0x98] sm:$0xff]
      %v1249 = vld [vmem:[%s1234 + $0xa8] sm:$0xff]
      %v1250 = vld [vmem:[%s1234 + $0xb0] sm:$0xff]
      %v1251 = vld [vmem:[%s1234 + $0xc0] sm:$0xff]
      %v1252 = vld [vmem:[%s1234 + $0xc8] sm:$0xff]
      %v1253 = vld [vmem:[%s1234 + $0xd8] sm:$0xff]
      %v1254 = vld [vmem:[%s1234 + $0xe0] sm:$0xff]
      %v1255 = vld [vmem:[%s1234 + $0xf0] sm:$0xff]
      %v1256 = vld [vmem:[%s1234 + $0xf8] sm:$0xff]
      %v1257 = vld [vmem:[%s1234 + $0x108] sm:$0xff]
      %v1258 = vld [vmem:[%s1234 + $0x110] sm:$0xff]
      %v1259 = vld [vmem:[%s1234 + $0x120] sm:$0xff]
      %v1260 = vld [vmem:[%s1234 + $0x128] sm:$0xff]
      %v1261 = vld [vmem:[%s1234 + $0x138] sm:$0xff]
      %v1262 = vld [vmem:[%s1234 + $0x140] sm:$0xff]
      %v1263 = vld [vmem:[%s1234 + $0x150] sm:$0xff]
      %v1264 = vld [vmem:[%s1234 + $0x158] sm:$0xff]
      %v1265 = vld [vmem:[%s1234 + $0x168] sm:$0xff]
      %v1266 = vld [vmem:[%s1234 + $0x170] sm:$0xff]
      %v1267 = vmul.f32 %v1235, 0.0625
      %v1268 = vmul.f32 %v1236, 0.0625
      %v1269 = vmul.f32 %v1237, 0.0625
      %v1270 = vmul.f32 %v1238, 0.0625
      %v1271 = vmul.f32 %v1239, 0.0625
      %v1272 = vmul.f32 %v1240, 0.0625
      %v1273 = vmul.f32 %v1241, 0.0625
      %v1274 = vmul.f32 %v1242, 0.0625
      %v1275 = vmul.f32 %v1243, 0.0625
      %v1276 = vmul.f32 %v1244, 0.0625
      %v1277 = vmul.f32 %v1245, 0.0625
      %v1278 = vmul.f32 %v1246, 0.0625
      %v1279 = vmul.f32 %v1247, 0.0625
      %v1280 = vmul.f32 %v1248, 0.0625
      %v1281 = vmul.f32 %v1249, 0.0625
      %v1282 = vmul.f32 %v1250, 0.0625
      %v1283 = vmul.f32 %v1251, 0.0625
      %v1284 = vmul.f32 %v1252, 0.0625
      %v1285 = vmul.f32 %v1253, 0.0625
      %v1286 = vmul.f32 %v1254, 0.0625
      %v1287 = vmul.f32 %v1255, 0.0625
      %v1288 = vmul.f32 %v1256, 0.0625
      %v1289 = vmul.f32 %v1257, 0.0625
      %v1290 = vmul.f32 %v1258, 0.0625
      %v1291 = vmul.f32 %v1259, 0.0625
      %v1292 = vmul.f32 %v1260, 0.0625
      %v1293 = vmul.f32 %v1261, 0.0625
      %v1294 = vmul.f32 %v1262, 0.0625
      %v1295 = vmul.f32 %v1263, 0.0625
      %v1296 = vmul.f32 %v1264, 0.0625
      %v1297 = vmul.f32 %v1265, 0.0625
      %v1298 = vmul.f32 %v1266, 0.0625
      %v1299 = vadd.f32 %v1202, %v1267
      %v1300 = vadd.f32 %v1203, %v1268
      %v1301 = vadd.f32 %v1204, %v1269
      %v1302 = vadd.f32 %v1205, %v1270
      %v1303 = vadd.f32 %v1206, %v1271
      %v1304 = vadd.f32 %v1207, %v1272
      %v1305 = vadd.f32 %v1208, %v1273
      %v1306 = vadd.f32 %v1209, %v1274
      %v1307 = vadd.f32 %v1210, %v1275
      %v1308 = vadd.f32 %v1211, %v1276
      %v1309 = vadd.f32 %v1212, %v1277
      %v1310 = vadd.f32 %v1213, %v1278
      %v1311 = vadd.f32 %v1214, %v1279
      %v1312 = vadd.f32 %v1215, %v1280
      %v1313 = vadd.f32 %v1216, %v1281
      %v1314 = vadd.f32 %v1217, %v1282
      %v1315 = vadd.f32 %v1218, %v1283
      %v1316 = vadd.f32 %v1219, %v1284
      %v1317 = vadd.f32 %v1220, %v1285
      %v1318 = vadd.f32 %v1221, %v1286
      %v1319 = vadd.f32 %v1222, %v1287
      %v1320 = vadd.f32 %v1223, %v1288
      %v1321 = vadd.f32 %v1224, %v1289
      %v1322 = vadd.f32 %v1225, %v1290
      %v1323 = vadd.f32 %v1226, %v1291
      %v1324 = vadd.f32 %v1227, %v1292
      %v1325 = vadd.f32 %v1228, %v1293
      %v1326 = vadd.f32 %v1229, %v1294
      %v1327 = vadd.f32 %v1230, %v1295
      %v1328 = vadd.f32 %v1231, %v1296
      %v1329 = vadd.f32 %v1232, %v1297
      %v1330 = vadd.f32 %v1233, %v1298
      %v1331 = vld [vmem:[%s1234 + $0x1] sm:$0xff]
      %v1332 = vld [vmem:[%s1234 + $0x9] sm:$0xff]
      %v1333 = vld [vmem:[%s1234 + $0x19] sm:$0xff]
      %v1334 = vld [vmem:[%s1234 + $0x21] sm:$0xff]
      %v1335 = vld [vmem:[%s1234 + $0x31] sm:$0xff]
      %v1336 = vld [vmem:[%s1234 + $0x39] sm:$0xff]
      %v1337 = vld [vmem:[%s1234 + $0x49] sm:$0xff]
      %v1338 = vld [vmem:[%s1234 + $0x51] sm:$0xff]
      %v1339 = vld [vmem:[%s1234 + $0x61] sm:$0xff]
      %v1340 = vld [vmem:[%s1234 + $0x69] sm:$0xff]
      %v1341 = vld [vmem:[%s1234 + $0x79] sm:$0xff]
      %v1342 = vld [vmem:[%s1234 + $0x81] sm:$0xff]
      %v1343 = vld [vmem:[%s1234 + $0x91] sm:$0xff]
      %v1344 = vld [vmem:[%s1234 + $0x99] sm:$0xff]
      %v1345 = vld [vmem:[%s1234 + $0xa9] sm:$0xff]
      %v1346 = vld [vmem:[%s1234 + $0xb1] sm:$0xff]
      %v1347 = vld [vmem:[%s1234 + $0xc1] sm:$0xff]
      %v1348 = vld [vmem:[%s1234 + $0xc9] sm:$0xff]
      %v1349 = vld [vmem:[%s1234 + $0xd9] sm:$0xff]
      %v1350 = vld [vmem:[%s1234 + $0xe1] sm:$0xff]
      %v1351 = vld [vmem:[%s1234 + $0xf1] sm:$0xff]
      %v1352 = vld [vmem:[%s1234 + $0xf9] sm:$0xff]
      %v1353 = vld [vmem:[%s1234 + $0x109] sm:$0xff]
      %v1354 = vld [vmem:[%s1234 + $0x111] sm:$0xff]
      %v1355 = vld [vmem:[%s1234 + $0x121] sm:$0xff]
      %v1356 = vld [vmem:[%s1234 + $0x129] sm:$0xff]
      %v1357 = vld [vmem:[%s1234 + $0x139] sm:$0xff]
      %v1358 = vld [vmem:[%s1234 + $0x141] sm:$0xff]
      %v1359 = vld [vmem:[%s1234 + $0x151] sm:$0xff]
      %v1360 = vld [vmem:[%s1234 + $0x159] sm:$0xff]
      %v1361 = vld [vmem:[%s1234 + $0x169] sm:$0xff]
      %v1362 = vld [vmem:[%s1234 + $0x171] sm:$0xff]
      %v1363 = vmul.f32 %v1331, 0.125
      %v1364 = vmul.f32 %v1332, 0.125
      %v1365 = vmul.f32 %v1333, 0.125
      %v1366 = vmul.f32 %v1334, 0.125
      %v1367 = vmul.f32 %v1335, 0.125
      %v1368 = vmul.f32 %v1336, 0.125
      %v1369 = vmul.f32 %v1337, 0.125
      %v1370 = vmul.f32 %v1338, 0.125
      %v1371 = vmul.f32 %v1339, 0.125
      %v1372 = vmul.f32 %v1340, 0.125
      %v1373 = vmul.f32 %v1341, 0.125
      %v1374 = vmul.f32 %v1342, 0.125
      %v1375 = vmul.f32 %v1343, 0.125
      %v1376 = vmul.f32 %v1344, 0.125
      %v1377 = vmul.f32 %v1345, 0.125
      %v1378 = vmul.f32 %v1346, 0.125
      %v1379 = vmul.f32 %v1347, 0.125
      %v1380 = vmul.f32 %v1348, 0.125
      %v1381 = vmul.f32 %v1349, 0.125
      %v1382 = vmul.f32 %v1350, 0.125
      %v1383 = vmul.f32 %v1351, 0.125
      %v1384 = vmul.f32 %v1352, 0.125
      %v1385 = vmul.f32 %v1353, 0.125
      %v1386 = vmul.f32 %v1354, 0.125
      %v1387 = vmul.f32 %v1355, 0.125
      %v1388 = vmul.f32 %v1356, 0.125
      %v1389 = vmul.f32 %v1357, 0.125
      %v1390 = vmul.f32 %v1358, 0.125
      %v1391 = vmul.f32 %v1359, 0.125
      %v1392 = vmul.f32 %v1360, 0.125
      %v1393 = vmul.f32 %v1361, 0.125
      %v1394 = vmul.f32 %v1362, 0.125
      %v1395 = vadd.f32 %v1299, %v1363
      %v1396 = vadd.f32 %v1300, %v1364
      %v1397 = vadd.f32 %v1301, %v1365
      %v1398 = vadd.f32 %v1302, %v1366
      %v1399 = vadd.f32 %v1303, %v1367
      %v1400 = vadd.f32 %v1304, %v1368
      %v1401 = vadd.f32 %v1305, %v1369
      %v1402 = vadd.f32 %v1306, %v1370
      %v1403 = vadd.f32 %v1307, %v1371
      %v1404 = vadd.f32 %v1308, %v1372
      %v1405 = vadd.f32 %v1309, %v1373
      %v1406 = vadd.f32 %v1310, %v1374
      %v1407 = vadd.f32 %v1311, %v1375
      %v1408 = vadd.f32 %v1312, %v1376
      %v1409 = vadd.f32 %v1313, %v1377
      %v1410 = vadd.f32 %v1314, %v1378
      %v1411 = vadd.f32 %v1315, %v1379
      %v1412 = vadd.f32 %v1316, %v1380
      %v1413 = vadd.f32 %v1317, %v1381
      %v1414 = vadd.f32 %v1318, %v1382
      %v1415 = vadd.f32 %v1319, %v1383
      %v1416 = vadd.f32 %v1320, %v1384
      %v1417 = vadd.f32 %v1321, %v1385
      %v1418 = vadd.f32 %v1322, %v1386
      %v1419 = vadd.f32 %v1323, %v1387
      %v1420 = vadd.f32 %v1324, %v1388
      %v1421 = vadd.f32 %v1325, %v1389
      %v1422 = vadd.f32 %v1326, %v1390
      %v1423 = vadd.f32 %v1327, %v1391
      %v1424 = vadd.f32 %v1328, %v1392
      %v1425 = vadd.f32 %v1329, %v1393
      %v1426 = vadd.f32 %v1330, %v1394
      %v1427 = vld [vmem:[%s1234 + $0x2] sm:$0xff]
      %v1428 = vld [vmem:[%s1234 + $0xa] sm:$0xff]
      %v1429 = vld [vmem:[%s1234 + $0x1a] sm:$0xff]
      %v1430 = vld [vmem:[%s1234 + $0x22] sm:$0xff]
      %v1431 = vld [vmem:[%s1234 + $0x32] sm:$0xff]
      %v1432 = vld [vmem:[%s1234 + $0x3a] sm:$0xff]
      %v1433 = vld [vmem:[%s1234 + $0x4a] sm:$0xff]
      %v1434 = vld [vmem:[%s1234 + $0x52] sm:$0xff]
      %v1435 = vld [vmem:[%s1234 + $0x62] sm:$0xff]
      %v1436 = vld [vmem:[%s1234 + $0x6a] sm:$0xff]
      %v1437 = vld [vmem:[%s1234 + $0x7a] sm:$0xff]
      %v1438 = vld [vmem:[%s1234 + $0x82] sm:$0xff]
      %v1439 = vld [vmem:[%s1234 + $0x92] sm:$0xff]
      %v1440 = vld [vmem:[%s1234 + $0x9a] sm:$0xff]
      %v1441 = vld [vmem:[%s1234 + $0xaa] sm:$0xff]
      %v1442 = vld [vmem:[%s1234 + $0xb2] sm:$0xff]
      %v1443 = vld [vmem:[%s1234 + $0xc2] sm:$0xff]
      %v1444 = vld [vmem:[%s1234 + $0xca] sm:$0xff]
      %v1445 = vld [vmem:[%s1234 + $0xda] sm:$0xff]
      %v1446 = vld [vmem:[%s1234 + $0xe2] sm:$0xff]
      %v1447 = vld [vmem:[%s1234 + $0xf2] sm:$0xff]
      %v1448 = vld [vmem:[%s1234 + $0xfa] sm:$0xff]
      %v1449 = vld [vmem:[%s1234 + $0x10a] sm:$0xff]
      %v1450 = vld [vmem:[%s1234 + $0x112] sm:$0xff]
      %v1451 = vld [vmem:[%s1234 + $0x122] sm:$0xff]
      %v1452 = vld [vmem:[%s1234 + $0x12a] sm:$0xff]
      %v1453 = vld [vmem:[%s1234 + $0x13a] sm:$0xff]
      %v1454 = vld [vmem:[%s1234 + $0x142] sm:$0xff]
      %v1455 = vld [vmem:[%s1234 + $0x152] sm:$0xff]
      %v1456 = vld [vmem:[%s1234 + $0x15a] sm:$0xff]
      %v1457 = vld [vmem:[%s1234 + $0x16a] sm:$0xff]
      %v1458 = vld [vmem:[%s1234 + $0x172] sm:$0xff]
      %v1459 = vmul.f32 %v1427, 0.0625
      %v1460 = vmul.f32 %v1428, 0.0625
      %v1461 = vmul.f32 %v1429, 0.0625
      %v1462 = vmul.f32 %v1430, 0.0625
      %v1463 = vmul.f32 %v1431, 0.0625
      %v1464 = vmul.f32 %v1432, 0.0625
      %v1465 = vmul.f32 %v1433, 0.0625
      %v1466 = vmul.f32 %v1434, 0.0625
      %v1467 = vmul.f32 %v1435, 0.0625
      %v1468 = vmul.f32 %v1436, 0.0625
      %v1469 = vmul.f32 %v1437, 0.0625
      %v1470 = vmul.f32 %v1438, 0.0625
      %v1471 = vmul.f32 %v1439, 0.0625
      %v1472 = vmul.f32 %v1440, 0.0625
      %v1473 = vmul.f32 %v1441, 0.0625
      %v1474 = vmul.f32 %v1442, 0.0625
      %v1475 = vmul.f32 %v1443, 0.0625
      %v1476 = vmul.f32 %v1444, 0.0625
      %v1477 = vmul.f32 %v1445, 0.0625
      %v1478 = vmul.f32 %v1446, 0.0625
      %v1479 = vmul.f32 %v1447, 0.0625
      %v1480 = vmul.f32 %v1448, 0.0625
      %v1481 = vmul.f32 %v1449, 0.0625
      %v1482 = vmul.f32 %v1450, 0.0625
      %v1483 = vmul.f32 %v1451, 0.0625
      %v1484 = vmul.f32 %v1452, 0.0625
      %v1485 = vmul.f32 %v1453, 0.0625
      %v1486 = vmul.f32 %v1454, 0.0625
      %v1487 = vmul.f32 %v1455, 0.0625
      %v1488 = vmul.f32 %v1456, 0.0625
      %v1489 = vmul.f32 %v1457, 0.0625
      %v1490 = vmul.f32 %v1458, 0.0625
      %v1491 = vadd.f32 %v1395, %v1459
      %v1492 = vadd.f32 %v1396, %v1460
      %v1493 = vadd.f32 %v1397, %v1461
      %v1494 = vadd.f32 %v1398, %v1462
      %v1495 = vadd.f32 %v1399, %v1463
      %v1496 = vadd.f32 %v1400, %v1464
      %v1497 = vadd.f32 %v1401, %v1465
      %v1498 = vadd.f32 %v1402, %v1466
      %v1499 = vadd.f32 %v1403, %v1467
      %v1500 = vadd.f32 %v1404, %v1468
      %v1501 = vadd.f32 %v1405, %v1469
      %v1502 = vadd.f32 %v1406, %v1470
      %v1503 = vadd.f32 %v1407, %v1471
      %v1504 = vadd.f32 %v1408, %v1472
      %v1505 = vadd.f32 %v1409, %v1473
      %v1506 = vadd.f32 %v1410, %v1474
      %v1507 = vadd.f32 %v1411, %v1475
      %v1508 = vadd.f32 %v1412, %v1476
      %v1509 = vadd.f32 %v1413, %v1477
      %v1510 = vadd.f32 %v1414, %v1478
      %v1511 = vadd.f32 %v1415, %v1479
      %v1512 = vadd.f32 %v1416, %v1480
      %v1513 = vadd.f32 %v1417, %v1481
      %v1514 = vadd.f32 %v1418, %v1482
      %v1515 = vadd.f32 %v1419, %v1483
      %v1516 = vadd.f32 %v1420, %v1484
      %v1517 = vadd.f32 %v1421, %v1485
      %v1518 = vadd.f32 %v1422, %v1486
      %v1519 = vadd.f32 %v1423, %v1487
      %v1520 = vadd.f32 %v1424, %v1488
      %v1521 = vadd.f32 %v1425, %v1489
      %v1522 = vadd.f32 %v1426, %v1490
      %s1523 = scalar_lea.vmem [#allocation3], 24
      %1524 = vst [vmem:[%s1523 + $0x1] sm:$0xff] %v1491
      %1525 = vst [vmem:[%s1523 + $0x9] sm:$0xff] %v1492
      %1526 = vst [vmem:[%s1523 + $0x19] sm:$0xff] %v1493
      %1527 = vst [vmem:[%s1523 + $0x21] sm:$0xff] %v1494
      %1528 = vst [vmem:[%s1523 + $0x31] sm:$0xff] %v1495
      %1529 = vst [vmem:[%s1523 + $0x39] sm:$0xff] %v1496
      %1530 = vst [vmem:[%s1523 + $0x49] sm:$0xff] %v1497
      %1531 = vst [vmem:[%s1523 + $0x51] sm:$0xff] %v1498
      %1532 = vst [vmem:[%s1523 + $0x61] sm:$0xff] %v1499
      %1533 = vst [vmem:[%s1523 + $0x69] sm:$0xff] %v1500
      %1534 = vst [vmem:[%s1523 + $0x79] sm:$0xff] %v1501
      %1535 = vst [vmem:[%s1523 + $0x81] sm:$0xff] %v1502
      %1536 = vst [vmem:[%s1523 + $0x91] sm:$0xff] %v1503
      %1537 = vst [vmem:[%s1523 + $0x99] sm:$0xff] %v1504
      %1538 = vst [vmem:[%s1523 + $0xa9] sm:$0xff] %v1505
      %1539 = vst [vmem:[%s1523 + $0xb1] sm:$0xff] %v1506
      %1540 = vst [vmem:[%s1523 + $0xc1] sm:$0xff] %v1507
      %1541 = vst [vmem:[%s1523 + $0xc9] sm:$0xff] %v1508
      %1542 = vst [vmem:[%s1523 + $0xd9] sm:$0xff] %v1509
      %1543 = vst [vmem:[%s1523 + $0xe1] sm:$0xff] %v1510
      %1544 = vst [vmem:[%s1523 + $0xf1] sm:$0xff] %v1511
      %1545 = vst [vmem:[%s1523 + $0xf9] sm:$0xff] %v1512
      %1546 = vst [vmem:[%s1523 + $0x109] sm:$0xff] %v1513
      %1547 = vst [vmem:[%s1523 + $0x111] sm:$0xff] %v1514
      %1548 = vst [vmem:[%s1523 + $0x121] sm:$0xff] %v1515
      %1549 = vst [vmem:[%s1523 + $0x129] sm:$0xff] %v1516
      %1550 = vst [vmem:[%s1523 + $0x139] sm:$0xff] %v1517
      %1551 = vst [vmem:[%s1523 + $0x141] sm:$0xff] %v1518
      %1552 = vst [vmem:[%s1523 + $0x151] sm:$0xff] %v1519
      %1553 = vst [vmem:[%s1523 + $0x159] sm:$0xff] %v1520
      %1554 = vst [vmem:[%s1523 + $0x169] sm:$0xff] %v1521
      %1555 = vst [vmem:[%s1523 + $0x171] sm:$0xff] %v1522
      %v1556 = vld [vmem:[#allocation3] sm:$0xff]
      %v1557 = vld [vmem:[#allocation3 + $0x8] sm:$0xff]
      %v1558 = vld [vmem:[#allocation3 + $0x10] sm:$0x1]
      %v1559 = vld [vmem:[#allocation3 + $0x18] sm:$0xff]
      %v1560 = vld [vmem:[#allocation3 + $0x20] sm:$0xff]
      %v1561 = vld [vmem:[#allocation3 + $0x28] sm:$0x1]
      %v1562 = vld [vmem:[#allocation3 + $0x30] sm:$0xff]
      %v1563 = vld [vmem:[#allocation3 + $0x38] sm:$0xff]
      %v1564 = vld [vmem:[#allocation3 + $0x40] sm:$0x1]
      %v1565 = vld [vmem:[#allocation3 + $0x48] sm:$0xff]
      %v1566 = vld [vmem:[#allocation3 + $0x50] sm:$0xff]
      %v1567 = vld [vmem:[#allocation3 + $0x58] sm:$0x1]
      %v1568 = vld [vmem:[#allocation3 + $0x60] sm:$0xff]
      %v1569 = vld [vmem:[#allocation3 + $0x68] sm:$0xff]
      %v1570 = vld [vmem:[#allocation3 + $0x70] sm:$0x1]
      %v1571 = vld [vmem:[#allocation3 + $0x78] sm:$0xff]
      %v1572 = vld [vmem:[#allocation3 + $0x80] sm:$0xff]
      %v1573 = vld [vmem:[#allocation3 + $0x88] sm:$0x1]
      %v1574 = vld [vmem:[#allocation3 + $0x90] sm:$0xff]
      %v1575 = vld [vmem:[#allocation3 + $0x98] sm:$0xff]
      %v1576 = vld [vmem:[#allocation3 + $0xa0] sm:$0x1]
      %v1577 = vld [vmem:[#allocation3 + $0xa8] sm:$0xff]
      %v1578 = vld [vmem:[#allocation3 + $0xb0] sm:$0xff]
      %v1579 = vld [vmem:[#allocation3 + $0xb8] sm:$0x1]
      %v1580 = vld [vmem:[#allocation3 + $0xc0] sm:$0xff]
      %v1581 = vld [vmem:[#allocation3 + $0xc8] sm:$0xff]
      %v1582 = vld [vmem:[#allocation3 + $0xd0] sm:$0x1]
      %v1583 = vld [vmem:[#allocation3 + $0xd8] sm:$0xff]
      %v1584 = vld [vmem:[#allocation3 + $0xe0] sm:$0xff]
      %v1585 = vld [vmem:[#allocation3 + $0xe8] sm:$0x1]
      %v1586 = vld [vmem:[#allocation3 + $0xf0] sm:$0xff]
      %v1587 = vld [vmem:[#allocation3 + $0xf8] sm:$0xff]
      %v1588 = vld [vmem:[#allocation3 + $0x100] sm:$0x1]
      %v1589 = vld [vmem:[#allocation3 + $0x108] sm:$0xff]
      %v1590 = vld [vmem:[#allocation3 + $0x110] sm:$0xff]
      %v1591 = vld [vmem:[#allocation3 + $0x118] sm:$0x1]
      %v1592 = vld [vmem:[#allocation3 + $0x120] sm:$0xff]
      %v1593 = vld [vmem:[#allocation3 + $0x128] sm:$0xff]
      %v1594 = vld [vmem:[#allocation3 + $0x130] sm:$0x1]
      %v1595 = vld [vmem:[#allocation3 + $0x138] sm:$0xff]
      %v1596 = vld [vmem:[#allocation3 + $0x140] sm:$0xff]
      %v1597 = vld [vmem:[#allocation3 + $0x148] sm:$0x1]
      %v1598 = vld [vmem:[#allocation3 + $0x150] sm:$0xff]
      %v1599 = vld [vmem:[#allocation3 + $0x158] sm:$0xff]
      %v1600 = vld [vmem:[#allocation3 + $0x160] sm:$0x1]
      %v1601 = vld [vmem:[#allocation3 + $0x168] sm:$0xff]
      %v1602 = vld [vmem:[#allocation3 + $0x170] sm:$0xff]
      %v1603 = vld [vmem:[#allocation3 + $0x178] sm:$0x1]
      %v1604 = vld [vmem:[#allocation3 + $0x180] sm:$0xff]
      %v1605 = vld [vmem:[#allocation3 + $0x188] sm:$0xff]
      %v1606 = vld [vmem:[#allocation3 + $0x190] sm:$0x1]
      %v1607 = vld [vmem:[%s1523] sm:$0xff]
      %v1608 = vld [vmem:[%s1523 + $0x8] sm:$0xff]
      %v1609 = vld [vmem:[%s1523 + $0x10] sm:$0x1]
      %v1610 = vld [vmem:[%s1523 + $0x18] sm:$0xff]
      %v1611 = vld [vmem:[%s1523 + $0x20] sm:$0xff]
      %v1612 = vld [vmem:[%s1523 + $0x28] sm:$0x1]
      %v1613 = vld [vmem:[%s1523 + $0x30] sm:$0xff]
      %v1614 = vld [vmem:[%s1523 + $0x38] sm:$0xff]
      %v1615 = vld [vmem:[%s1523 + $0x40] sm:$0x1]
      %v1616 = vld [vmem:[%s1523 + $0x48] sm:$0xff]
      %v1617 = vld [vmem:[%s1523 + $0x50] sm:$0xff]
      %v1618 = vld [vmem:[%s1523 + $0x58] sm:$0x1]
      %v1619 = vld [vmem:[%s1523 + $0x60] sm:$0xff]
      %v1620 = vld [vmem:[%s1523 + $0x68] sm:$0xff]
      %v1621 = vld [vmem:[%s1523 + $0x70] sm:$0x1]
      %v1622 = vld [vmem:[%s1523 + $0x78] sm:$0xff]
      %v1623 = vld [vmem:[%s1523 + $0x80] sm:$0xff]
      %v1624 = vld [vmem:[%s1523 + $0x88] sm:$0x1]
      %v1625 = vld [vmem:[%s1523 + $0x90] sm:$0xff]
      %v1626 = vld [vmem:[%s1523 + $0x98] sm:$0xff]
      %v1627 = vld [vmem:[%s1523 + $0xa0] sm:$0x1]
      %v1628 = vld [vmem:[%s1523 + $0xa8] sm:$0xff]
      %v1629 = vld [vmem:[%s1523 + $0xb0] sm:$0xff]
      %v1630 = vld [vmem:[%s1523 + $0xb8] sm:$0x1]
      %v1631 = vld [vmem:[%s1523 + $0xc0] sm:$0xff]
      %v1632 = vld [vmem:[%s1523 + $0xc8] sm:$0xff]
      %v1633 = vld [vmem:[%s1523 + $0xd0] sm:$0x1]
      %v1634 = vld [vmem:[%s1523 + $0xd8] sm:$0xff]
      %v1635 = vld [vmem:[%s1523 + $0xe0] sm:$0xff]
      %v1636 = vld [vmem:[%s1523 + $0xe8] sm:$0x1]
      %v1637 = vld [vmem:[%s1523 + $0xf0] sm:$0xff]
      %v1638 = vld [vmem:[%s1523 + $0xf8] sm:$0xff]
      %v1639 = vld [vmem:[%s1523 + $0x100] sm:$0x1]
      %v1640 = vld [vmem:[%s1523 + $0x108] sm:$0xff]
      %v1641 = vld [vmem:[%s1523 + $0x110] sm:$0xff]
      %v1642 = vld [vmem:[%s1523 + $0x118] sm:$0x1]
      %v1643 = vld [vmem:[%s1523 + $0x120] sm:$0xff]
      %v1644 = vld [vmem:[%s1523 + $0x128] sm:$0xff]
      %v1645 = vld [vmem:[%s1523 + $0x130] sm:$0x1]
      %v1646 = vld [vmem:[%s1523 + $0x138] sm:$0xff]
      %v1647 = vld [vmem:[%s1523 + $0x140] sm:$0xff]
      %v1648 = vld [vmem:[%s1523 + $0x148] sm:$0x1]
      %v1649 = vld [vmem:[%s1523 + $0x150] sm:$0xff]
      %v1650 = vld [vmem:[%s1523 + $0x158] sm:$0xff]
      %v1651 = vld [vmem:[%s1523 + $0x160] sm:$0x1]
      %v1652 = vld [vmem:[%s1523 + $0x168] sm:$0xff]
      %v1653 = vld [vmem:[%s1523 + $0x170] sm:$0xff]
      %v1654 = vld [vmem:[%s1523 + $0x178] sm:$0x1]
      %v1655 = vld [vmem:[%s1523 + $0x180] sm:$0xff]
      %v1656 = vld [vmem:[%s1523 + $0x188] sm:$0xff]
      %v1657 = vld [vmem:[%s1523 + $0x190] sm:$0x1]
      %v1658 = vadd.f32 %v1556, %v1607
      %v1659 = vadd.f32 %v1557, %v1608
      %v1660 = vadd.f32 %v1558, %v1609
      %v1661 = vadd.f32 %v1559, %v1610
      %v1662 = vadd.f32 %v1560, %v1611
      %v1663 = vadd.f32 %v1561, %v1612
      %v1664 = vadd.f32 %v1562, %v1613
      %v1665 = vadd.f32 %v1563, %v1614
      %v1666 = vadd.f32 %v1564, %v1615
      %v1667 = vadd.f32 %v1565, %v1616
      %v1668 = vadd.f32 %v1566, %v1617
      %v1669 = vadd.f32 %v1567, %v1618
      %v1670 = vadd.f32 %v1568, %v1619
      %v1671 = vadd.f32 %v1569, %v1620
      %v1672 = vadd.f32 %v1570, %v1621
      %v1673 = vadd.f32 %v1571, %v1622
      %v1674 = vadd.f32 %v1572, %v1623
      %v1675 = vadd.f32 %v1573, %v1624
      %v1676 = vadd.f32 %v1574, %v1625
      %v1677 = vadd.f32 %v1575, %v1626
      %v1678 = vadd.f32 %v1576, %v1627
      %v1679 = vadd.f32 %v1577, %v1628
      %v1680 = vadd.f32 %v1578, %v1629
      %v1681 = vadd.f32 %v1579, %v1630
      %v1682 = vadd.f32 %v1580, %v1631
      %v1683 = vadd.f32 %v1581, %v1632
      %v1684 = vadd.f32 %v1582, %v1633
      %v1685 = vadd.f32 %v1583, %v1634
      %v1686 = vadd.f32 %v1584, %v1635
      %v1687 = vadd.f32 %v1585, %v1636
      %v1688 = vadd.f32 %v1586, %v1637
      %v1689 = vadd.f32 %v1587, %v1638
      %v1690 = vadd.f32 %v1588, %v1639
      %v1691 = vadd.f32 %v1589, %v1640
      %v1692 = vadd.f32 %v1590, %v1641
      %v1693 = vadd.f32 %v1591, %v1642
      %v1694 = vadd.f32 %v1592, %v1643
      %v1695 = vadd.f32 %v1593, %v1644
      %v1696 = vadd.f32 %v1594, %v1645
      %v1697 = vadd.f32 %v1595, %v1646
      %v1698 = vadd.f32 %v1596, %v1647
      %v1699 = vadd.f32 %v1597, %v1648
      %v1700 = vadd.f32 %v1598, %v1649
      %v1701 = vadd.f32 %v1599, %v1650
      %v1702 = vadd.f32 %v1600, %v1651
      %v1703 = vadd.f32 %v1601, %v1652
      %v1704 = vadd.f32 %v1602, %v1653
      %v1705 = vadd.f32 %v1603, %v1654
      %v1706 = vadd.f32 %v1604, %v1655
      %v1707 = vadd.f32 %v1605, %v1656
      %v1708 = vadd.f32 %v1606, %v1657
      %v1709 = vld [vmem:[#allocation3 + $0x1] sm:$0xff]
      %v1710 = vld [vmem:[#allocation3 + $0x9] sm:$0xff]
      %v1711 = vld [vmem:[#allocation3 + $0x11] sm:$0x1]
      %v1712 = vld [vmem:[#allocation3 + $0x19] sm:$0xff]
      %v1713 = vld [vmem:[#allocation3 + $0x21] sm:$0xff]
      %v1714 = vld [vmem:[#allocation3 + $0x29] sm:$0x1]
      %v1715 = vld [vmem:[#allocation3 + $0x31] sm:$0xff]
      %v1716 = vld [vmem:[#allocation3 + $0x39] sm:$0xff]
      %v1717 = vld [vmem:[#allocation3 + $0x41] sm:$0x1]
      %v1718 = vld [vmem:[#allocation3 + $0x49] sm:$0xff]
      %v1719 = vld [vmem:[#allocation3 + $0x51] sm:$0xff]
      %v1720 = vld [vmem:[#allocation3 + $0x59] sm:$0x1]
      %v1721 = vld [vmem:[#allocation3 + $0x61] sm:$0xff]
      %v1722 = vld [vmem:[#allocation3 + $0x69] sm:$0xff]
      %v1723 = vld [vmem:[#allocation3 + $0x71] sm:$0x1]
      %v1724 = vld [vmem:[#allocation3 + $0x79] sm:$0xff]
      %v1725 = vld [vmem:[#allocation3 + $0x81] sm:$0xff]
      %v1726 = vld [vmem:[#allocation3 + $0x89] sm:$0x1]
      %v1727 = vld [vmem:[#allocation3 + $0x91] sm:$0xff]
      %v1728 = vld [vmem:[#allocation3 + $0x99] sm:$0xff]
      %v1729 = vld [vmem:[#allocation3 + $0xa1] sm:$0x1]
      %v1730 = vld [vmem:[#allocation3 + $0xa9] sm:$0xff]
      %v1731 = vld [vmem:[#allocation3 + $0xb1] sm:$0xff]
      %v1732 = vld [vmem:[#allocation3 + $0xb9] sm:$0x1]
      %v1733 = vld [vmem:[#allocation3 + $0xc1] sm:$0xff]
      %v1734 = vld [vmem:[#allocation3 + $0xc9] sm:$0xff]
      %v1735 = vld [vmem:[#allocation3 + $0xd1] sm:$0x1]
      %v1736 = vld [vmem:[#allocation3 + $0xd9] sm:$0xff]
      %v1737 = vld [vmem:[#allocation3 + $0xe1] sm:$0xff]
      %v1738 = vld [vmem:[#allocation3 + $0xe9] sm:$0x1]
      %v1739 = vld [vmem:[#allocation3 + $0xf1] sm:$0xff]
      %v1740 = vld [vmem:[#allocation3 + $0xf9] sm:$0xff]
      %v1741 = vld [vmem:[#allocation3 + $0x101] sm:$0x1]
      %v1742 = vld [vmem:[#allocation3 + $0x109] sm:$0xff]
      %v1743 = vld [vmem:[#allocation3 + $0x111] sm:$0xff]
      %v1744 = vld [vmem:[#allocation3 + $0x119] sm:$0x1]
      %v1745 = vld [vmem:[#allocation3 + $0x121] sm:$0xff]
      %v1746 = vld [vmem:[#allocation3 + $0x129] sm:$0xff]
      %v1747 = vld [vmem:[#allocation3 + $0x131] sm:$0x1]
      %v1748 = vld [vmem:[#allocation3 + $0x139] sm:$0xff]
      %v1749 = vld [vmem:[#allocation3 + $0x141] sm:$0xff]
      %v1750 = vld [vmem:[#allocation3 + $0x149] sm:$0x1]
      %v1751 = vld [vmem:[#allocation3 + $0x151] sm:$0xff]
      %v1752 = vld [vmem:[#allocation3 + $0x159] sm:$0xff]
      %v1753 = vld [vmem:[#allocation3 + $0x161] sm:$0x1]
      %v1754 = vld [vmem:[#allocation3 + $0x169] sm:$0xff]
      %v1755 = vld [vmem:[#allocation3 + $0x171] sm:$0xff]
      %v1756 = vld [vmem:[#allocation3 + $0x179] sm:$0x1]
      %v1757 = vld [vmem:[#allocation3 + $0x181] sm:$0xff]
      %v1758 = vld [vmem:[#allocation3 + $0x189] sm:$0xff]
      %v1759 = vld [vmem:[#allocation3 + $0x191] sm:$0x1]
      %v1760 = vadd.f32 %v1658, %v1709
      %v1761 = vadd.f32 %v1659, %v1710
      %v1762 = vadd.f32 %v1660, %v1711
      %v1763 = vadd.f32 %v1661, %v1712
      %v1764 = vadd.f32 %v1662, %v1713
      %v1765 = vadd.f32 %v1663, %v1714
      %v1766 = vadd.f32 %v1664, %v1715
      %v1767 = vadd.f32 %v1665, %v1716
      %v1768 = vadd.f32 %v1666, %v1717
      %v1769 = vadd.f32 %v1667, %v1718
      %v1770 = vadd.f32 %v1668, %v1719
      %v1771 = vadd.f32 %v1669, %v1720
      %v1772 = vadd.f32 %v1670, %v1721
      %v1773 = vadd.f32 %v1671, %v1722
      %v1774 = vadd.f32 %v1672, %v1723
      %v1775 = vadd.f32 %v1673, %v1724
      %v1776 = vadd.f32 %v1674, %v1725
      %v1777 = vadd.f32 %v1675, %v1726
      %v1778 = vadd.f32 %v1676, %v1727
      %v1779 = vadd.f32 %v1677, %v1728
      %v1780 = vadd.f32 %v1678, %v1729
      %v1781 = vadd.f32 %v1679, %v1730
      %v1782 = vadd.f32 %v1680, %v1731
      %v1783 = vadd.f32 %v1681, %v1732
      %v1784 = vadd.f32 %v1682, %v1733
      %v1785 = vadd.f32 %v1683, %v1734
      %v1786 = vadd.f32 %v1684, %v1735
      %v1787 = vadd.f32 %v1685, %v1736
      %v1788 = vadd.f32 %v1686, %v1737
      %v1789 = vadd.f32 %v1687, %v1738
      %v1790 = vadd.f32 %v1688, %v1739
      %v1791 = vadd.f32 %v1689, %v1740
      %v1792 = vadd.f32 %v1690, %v1741
      %v1793 = vadd.f32 %v1691, %v1742
      %v1794 = vadd.f32 %v1692, %v1743
      %v1795 = vadd.f32 %v1693, %v1744
      %v1796 = vadd.f32 %v1694, %v1745
      %v1797 = vadd.f32 %v1695, %v1746
      %v1798 = vadd.f32 %v1696, %v1747
      %v1799 = vadd.f32 %v1697, %v1748
      %v1800 = vadd.f32 %v1698, %v1749
      %v1801 = vadd.f32 %v1699, %v1750
      %v1802 = vadd.f32 %v1700, %v1751
      %v1803 = vadd.f32 %v1701, %v1752
      %v1804 = vadd.f32 %v1702, %v1753
      %v1805 = vadd.f32 %v1703, %v1754
      %v1806 = vadd.f32 %v1704, %v1755
      %v1807 = vadd.f32 %v1705, %v1756
      %v1808 = vadd.f32 %v1706, %v1757
      %v1809 = vadd.f32 %v1707, %v1758
      %v1810 = vadd.f32 %v1708, %v1759
      %v1811 = vld [vmem:[%s1523 + $0x1] sm:$0xff]
      %v1812 = vld [vmem:[%s1523 + $0x9] sm:$0xff]
      %v1813 = vld [vmem:[%s1523 + $0x11] sm:$0x1]
      %v1814 = vld [vmem:[%s1523 + $0x19] sm:$0xff]
      %v1815 = vld [vmem:[%s1523 + $0x21] sm:$0xff]
      %v1816 = vld [vmem:[%s1523 + $0x29] sm:$0x1]
      %v1817 = vld [vmem:[%s1523 + $0x31] sm:$0xff]
      %v1818 = vld [vmem:[%s1523 + $0x39] sm:$0xff]
      %v1819 = vld [vmem:[%s1523 + $0x41] sm:$0x1]
      %v1820 = vld [vmem:[%s1523 + $0x49] sm:$0xff]
      %v1821 = vld [vmem:[%s1523 + $0x51] sm:$0xff]
      %v1822 = vld [vmem:[%s1523 + $0x59] sm:$0x1]
      %v1823 = vld [vmem:[%s1523 + $0x61] sm:$0xff]
      %v1824 = vld [vmem:[%s1523 + $0x69] sm:$0xff]
      %v1825 = vld [vmem:[%s1523 + $0x71] sm:$0x1]
      %v1826 = vld [vmem:[%s1523 + $0x79] sm:$0xff]
      %v1827 = vld [vmem:[%s1523 + $0x81] sm:$0xff]
      %v1828 = vld [vmem:[%s1523 + $0x89] sm:$0x1]
      %v1829 = vld [vmem:[%s1523 + $0x91] sm:$0xff]
      %v1830 = vld [vmem:[%s1523 + $0x99] sm:$0xff]
      %v1831 = vld [vmem:[%s1523 + $0xa1] sm:$0x1]
      %v1832 = vld [vmem:[%s1523 + $0xa9] sm:$0xff]
      %v1833 = vld [vmem:[%s1523 + $0xb1] sm:$0xff]
      %v1834 = vld [vmem:[%s1523 + $0xb9] sm:$0x1]
      %v1835 = vld [vmem:[%s1523 + $0xc1] sm:$0xff]
      %v1836 = vld [vmem:[%s1523 + $0xc9] sm:$0xff]
      %v1837 = vld [vmem:[%s1523 + $0xd1] sm:$0x1]
      %v1838 = vld [vmem:[%s1523 + $0xd9] sm:$0xff]
      %v1839 = vld [vmem:[%s1523 + $0xe1] sm:$0xff]
      %v1840 = vld [vmem:[%s1523 + $0xe9] sm:$0x1]
      %v1841 = vld [vmem:[%s1523 + $0xf1] sm:$0xff]
      %v1842 = vld [vmem:[%s1523 + $0xf9] sm:$0xff]
      %v1843 = vld [vmem:[%s1523 + $0x101] sm:$0x1]
      %v1844 = vld [vmem:[%s1523 + $0x109] sm:$0xff]
      %v1845 = vld [vmem:[%s1523 + $0x111] sm:$0xff]
      %v1846 = vld [vmem:[%s1523 + $0x119] sm:$0x1]
      %v1847 = vld [vmem:[%s1523 + $0x121] sm:$0xff]
      %v1848 = vld [vmem:[%s1523 + $0x129] sm:$0xff]
      %v1849 = vld [vmem:[%s1523 + $0x131] sm:$0x1]
      %v1850 = vld [vmem:[%s1523 + $0x139] sm:$0xff]
      %v1851 = vld [vmem:[%s1523 + $0x141] sm:$0xff]
      %v1852 = vld [vmem:[%s1523 + $0x149] sm:$0x1]
      %v1853 = vld [vmem:[%s1523 + $0x151] sm:$0xff]
      %v1854 = vld [vmem:[%s1523 + $0x159] sm:$0xff]
      %v1855 = vld [vmem:[%s1523 + $0x161] sm:$0x1]
      %v1856 = vld [vmem:[%s1523 + $0x169] sm:$0xff]
      %v1857 = vld [vmem:[%s1523 + $0x171] sm:$0xff]
      %v1858 = vld [vmem:[%s1523 + $0x179] sm:$0x1]
      %v1859 = vld [vmem:[%s1523 + $0x181] sm:$0xff]
      %v1860 = vld [vmem:[%s1523 + $0x189] sm:$0xff]
      %v1861 = vld [vmem:[%s1523 + $0x191] sm:$0x1]
      %v1862 = vadd.f32 %v1760, %v1811
      %v1863 = vadd.f32 %v1761, %v1812
      %v1864 = vadd.f32 %v1762, %v1813
      %v1865 = vadd.f32 %v1763, %v1814
      %v1866 = vadd.f32 %v1764, %v1815
      %v1867 = vadd.f32 %v1765, %v1816
      %v1868 = vadd.f32 %v1766, %v1817
      %v1869 = vadd.f32 %v1767, %v1818
      %v1870 = vadd.f32 %v1768, %v1819
      %v1871 = vadd.f32 %v1769, %v1820
      %v1872 = vadd.f32 %v1770, %v1821
      %v1873 = vadd.f32 %v1771, %v1822
      %v1874 = vadd.f32 %v1772, %v1823
      %v1875 = vadd.f32 %v1773, %v1824
      %v1876 = vadd.f32 %v1774, %v1825
      %v1877 = vadd.f32 %v1775, %v1826
      %v1878 = vadd.f32 %v1776, %v1827
      %v1879 = vadd.f32 %v1777, %v1828
      %v1880 = vadd.f32 %v1778, %v1829
      %v1881 = vadd.f32 %v1779, %v1830
      %v1882 = vadd.f32 %v1780, %v1831
      %v1883 = vadd.f32 %v1781, %v1832
      %v1884 = vadd.f32 %v1782, %v1833
      %v1885 = vadd.f32 %v1783, %v1834
      %v1886 = vadd.f32 %v1784, %v1835
      %v1887 = vadd.f32 %v1785, %v1836
      %v1888 = vadd.f32 %v1786, %v1837
      %v1889 = vadd.f32 %v1787, %v1838
      %v1890 = vadd.f32 %v1788, %v1839
      %v1891 = vadd.f32 %v1789, %v1840
      %v1892 = vadd.f32 %v1790, %v1841
      %v1893 = vadd.f32 %v1791, %v1842
      %v1894 = vadd.f32 %v1792, %v1843
      %v1895 = vadd.f32 %v1793, %v1844
      %v1896 = vadd.f32 %v1794, %v1845
      %v1897 = vadd.f32 %v1795, %v1846
      %v1898 = vadd.f32 %v1796, %v1847
      %v1899 = vadd.f32 %v1797, %v1848
      %v1900 = vadd.f32 %v1798, %v1849
      %v1901 = vadd.f32 %v1799, %v1850
      %v1902 = vadd.f32 %v1800, %v1851
      %v1903 = vadd.f32 %v1801, %v1852
      %v1904 = vadd.f32 %v1802, %v1853
      %v1905 = vadd.f32 %v1803, %v1854
      %v1906 = vadd.f32 %v1804, %v1855
      %v1907 = vadd.f32 %v1805, %v1856
      %v1908 = vadd.f32 %v1806, %v1857
      %v1909 = vadd.f32 %v1807, %v1858
      %v1910 = vadd.f32 %v1808, %v1859
      %v1911 = vadd.f32 %v1809, %v1860
      %v1912 = vadd.f32 %v1810, %v1861
      %v1913 = vmul.f32 %v1862, 0.25
      %v1914 = vmul.f32 %v1863, 0.25
      %v1915 = vmul.f32 %v1864, 0.25
      %v1916 = vmul.f32 %v1865, 0.25
      %v1917 = vmul.f32 %v1866, 0.25
      %v1918 = vmul.f32 %v1867, 0.25
      %v1919 = vmul.f32 %v1868, 0.25
      %v1920 = vmul.f32 %v1869, 0.25
      %v1921 = vmul.f32 %v1870, 0.25
      %v1922 = vmul.f32 %v1871, 0.25
      %v1923 = vmul.f32 %v1872, 0.25
      %v1924 = vmul.f32 %v1873, 0.25
      %v1925 = vmul.f32 %v1874, 0.25
      %v1926 = vmul.f32 %v1875, 0.25
      %v1927 = vmul.f32 %v1876, 0.25
      %v1928 = vmul.f32 %v1877, 0.25
      %v1929 = vmul.f32 %v1878, 0.25
      %v1930 = vmul.f32 %v1879, 0.25
      %v1931 = vmul.f32 %v1880, 0.25
      %v1932 = vmul.f32 %v1881, 0.25
      %v1933 = vmul.f32 %v1882, 0.25
      %v1934 = vmul.f32 %v1883, 0.25
      %v1935 = vmul.f32 %v1884, 0.25
      %v1936 = vmul.f32 %v1885, 0.25
      %v1937 = vmul.f32 %v1886, 0.25
      %v1938 = vmul.f32 %v1887, 0.25
      %v1939 = vmul.f32 %v1888, 0.25
      %v1940 = vmul.f32 %v1889, 0.25
      %v1941 = vmul.f32 %v1890, 0.25
      %v1942 = vmul.f32 %v1891, 0.25
      %v1943 = vmul.f32 %v1892, 0.25
      %v1944 = vmul.f32 %v1893, 0.25
      %v1945 = vmul.f32 %v1894, 0.25
      %v1946 = vmul.f32 %v1895, 0.25
      %v1947 = vmul.f32 %v1896, 0.25
      %v1948 = vmul.f32 %v1897, 0.25
      %v1949 = vmul.f32 %v1898, 0.25
      %v1950 = vmul.f32 %v1899, 0.25
      %v1951 = vmul.f32 %v1900, 0.25
      %v1952 = vmul.f32 %v1901, 0.25
      %v1953 = vmul.f32 %v1902, 0.25
      %v1954 = vmul.f32 %v1903, 0.25
      %v1955 = vmul.f32 %v1904, 0.25
      %v1956 = vmul.f32 %v1905, 0.25
      %v1957 = vmul.f32 %v1906, 0.25
      %v1958 = vmul.f32 %v1907, 0.25
      %v1959 = vmul.f32 %v1908, 0.25
      %v1960 = vmul.f32 %v1909, 0.25
      %v1961 = vmul.f32 %v1910, 0.25
      %v1962 = vmul.f32 %v1911, 0.25
      %v1963 = vmul.f32 %v1912, 0.25
      %1964 = vst [vmem:[#allocation4] sm:$0xff] %v1913
      %1965 = vst [vmem:[#allocation4 + $0x8] sm:$0xff] %v1914
      %1966 = vst [vmem:[#allocation4 + $0x10] sm:$0x1] %v1915
      %1967 = vst [vmem:[#allocation4 + $0x18] sm:$0xff] %v1916
      %1968 = vst [vmem:[#allocation4 + $0x20] sm:$0xff] %v1917
      %1969 = vst [vmem:[#allocation4 + $0x28] sm:$0x1] %v1918
      %1970 = vst [vmem:[#allocation4 + $0x30] sm:$0xff] %v1919
      %1971 = vst [vmem:[#allocation4 + $0x38] sm:$0xff] %v1920
      %1972 = vst [vmem:[#allocation4 + $0x40] sm:$0x1] %v1921
      %1973 = vst [vmem:[#allocation4 + $0x48] sm:$0xff] %v1922
      %1974 = vst [vmem:[#allocation4 + $0x50] sm:$0xff] %v1923
      %1975 = vst [vmem:[#allocation4 + $0x58] sm:$0x1] %v1924
      %1976 = vst [vmem:[#allocation4 + $0x60] sm:$0xff] %v1925
      %1977 = vst [vmem:[#allocation4 + $0x68] sm:$0xff] %v1926
      %1978 = vst [vmem:[#allocation4 + $0x70] sm:$0x1] %v1927
      %1979 = vst [vmem:[#allocation4 + $0x78] sm:$0xff] %v1928
      %1980 = vst [vmem:[#allocation4 + $0x80] sm:$0xff] %v1929
      %1981 = vst [vmem:[#allocation4 + $0x88] sm:$0x1] %v1930
      %1982 = vst [vmem:[#allocation4 + $0x90] sm:$0xff] %v1931
      %1983 = vst [vmem:[#allocation4 + $0x98] sm:$0xff] %v1932
      %1984 = vst [vmem:[#allocation4 + $0xa0] sm:$0x1] %v1933
      %1985 = vst [vmem:[#allocation4 + $0xa8] sm:$0xff] %v1934
      %1986 = vst [vmem:[#allocation4 + $0xb0] sm:$0xff] %v1935
      %1987 = vst [vmem:[#allocation4 + $0xb8] sm:$0x1] %v1936
      %1988 = vst [vmem:[#allocation4 + $0xc0] sm:$0xff] %v1937
      %1989 = vst [vmem:[#allocation4 + $0xc8] sm:$0xff] %v1938
      %1990 = vst [vmem:[#allocation4 + $0xd0] sm:$0x1] %v1939
      %1991 = vst [vmem:[#allocation4 + $0xd8] sm:$0xff] %v1940
      %1992 = vst [vmem:[#allocation4 + $0xe0] sm:$0xff] %v1941
      %1993 = vst [vmem:[#allocation4 + $0xe8] sm:$0x1] %v1942
      %1994 = vst [vmem:[#allocation4 + $0xf0] sm:$0xff] %v1943
      %1995 = vst [vmem:[#allocation4 + $0xf8] sm:$0xff] %v1944
      %1996 = vst [vmem:[#allocation4 + $0x100] sm:$0x1] %v1945
      %1997 = vst [vmem:[#allocation4 + $0x108] sm:$0xff] %v1946
      %1998 = vst [vmem:[#allocation4 + $0x110] sm:$0xff] %v1947
      %1999 = vst [vmem:[#allocation4 + $0x118] sm:$0x1] %v1948
      %2000 = vst [vmem:[#allocation4 + $0x120] sm:$0xff] %v1949
      %2001 = vst [vmem:[#allocation4 + $0x128] sm:$0xff] %v1950
      %2002 = vst [vmem:[#allocation4 + $0x130] sm:$0x1] %v1951
      %2003 = vst [vmem:[#allocation4 + $0x138] sm:$0xff] %v1952
      %2004 = vst [vmem:[#allocation4 + $0x140] sm:$0xff] %v1953
      %2005 = vst [vmem:[#allocation4 + $0x148] sm:$0x1] %v1954
      %2006 = vst [vmem:[#allocation4 + $0x150] sm:$0xff] %v1955
      %2007 = vst [vmem:[#allocation4 + $0x158] sm:$0xff] %v1956
      %2008 = vst [vmem:[#allocation4 + $0x160] sm:$0x1] %v1957
      %2009 = vst [vmem:[#allocation4 + $0x168] sm:$0xff] %v1958
      %2010 = vst [vmem:[#allocation4 + $0x170] sm:$0xff] %v1959
      %2011 = vst [vmem:[#allocation4 + $0x178] sm:$0x1] %v1960
      %2012 = vst [vmem:[#allocation4 + $0x180] sm:$0xff] %v1961
      %2013 = vst [vmem:[#allocation4 + $0x188] sm:$0xff] %v1962
      %2014 = vst [vmem:[#allocation4 + $0x190] sm:$0x1] %v1963
      %v2015 = vld [vmem:[#allocation4] ss:$2 sm:$0xff]
      %s2016 = scalar_lea.vmem [#allocation4], 24
      %v2017 = vld [vmem:[%s2016] ss:$2 sm:$0xff]
      %s2018 = scalar_lea.vmem [#allocation4], 48
      %v2019 = vld [vmem:[%s2018] ss:$2 sm:$0xff]
      %s2020 = scalar_lea.vmem [#allocation4], 72
      %v2021 = vld [vmem:[%s2020] ss:$2 sm:$0xff]
      %s2022 = scalar_lea.vmem [#allocation4], 96
      %v2023 = vld [vmem:[%s2022] ss:$2 sm:$0xff]
      %s2024 = scalar_lea.vmem [#allocation4], 120
      %v2025 = vld [vmem:[%s2024] ss:$2 sm:$0xff]
      %s2026 = scalar_lea.vmem [#allocation4], 144
      %v2027 = vld [vmem:[%s2026] ss:$2 sm:$0xff]
      %s2028 = scalar_lea.vmem [#allocation4], 168
      %v2029 = vld [vmem:[%s2028] ss:$2 sm:$0xff]
      %s2030 = scalar_lea.vmem [#allocation4], 192
      %v2031 = vld [vmem:[%s2030] ss:$2 sm:$0xff]
      %s2032 = scalar_lea.vmem [#allocation4], 216
      %v2033 = vld [vmem:[%s2032] ss:$2 sm:$0xff]
      %s2034 = scalar_lea.vmem [#allocation4], 240
      %v2035 = vld [vmem:[%s2034] ss:$2 sm:$0xff]
      %s2036 = scalar_lea.vmem [#allocation4], 264
      %v2037 = vld [vmem:[%s2036] ss:$2 sm:$0xff]
      %s2038 = scalar_lea.vmem [#allocation4], 288
      %v2039 = vld [vmem:[%s2038] ss:$2 sm:$0xff]
      %s2040 = scalar_lea.vmem [#allocation4], 312
      %v2041 = vld [vmem:[%s2040] ss:$2 sm:$0xff]
      %s2042 = scalar_lea.vmem [#allocation4], 336
      %v2043 = vld [vmem:[%s2042] ss:$2 sm:$0xff]
      %s2044 = scalar_lea.vmem [#allocation4], 360
      %v2045 = vld [vmem:[%s2044] ss:$2 sm:$0xff]
      %s2046 = scalar_lea.vmem [#allocation4], 384
      %v2047 = vld [vmem:[%s2046] ss:$2 sm:$0xff]
      %v2048 = vpack.c.bf16 %v2019, %v2015
      %v2049 = vpack.c.bf16 %v2027, %v2023
      %v2050 = vpack.c.bf16 %v2035, %v2031
      %v2051 = vpack.c.bf16 %v2043, %v2039
      %v2052 = vld [vmem:[%s3] sm:$0xf]
      %v2053 = vld [vmem:[%s3 + $0x4] sm:$0xf]
      %v2054 = vld [vmem:[%s3 + $0x8] sm:$0xf]
      %v2055 = vld [vmem:[%s3 + $0xc] sm:$0xf]
      %v2056 = vld [vmem:[%s3 + $0x10] sm:$0xf]
      %v2057 = vld [vmem:[%s3 + $0x14] sm:$0xf]
      %v2058 = vld [vmem:[%s3 + $0x18] sm:$0xf]
      %v2059 = vld [vmem:[%s3 + $0x1c] sm:$0xf]
      %v2060 = vld [vmem:[%s3 + $0x20] sm:$0xf]
      %v2061 = vld [vmem:[%s3 + $0x24] sm:$0xf]
      %v2062 = vld [vmem:[%s3 + $0x28] sm:$0xf]
      %v2063 = vld [vmem:[%s3 + $0x2c] sm:$0xf]
      %v2064 = vld [vmem:[%s3 + $0x30] sm:$0xf]
      %v2065 = vld [vmem:[%s3 + $0x34] sm:$0xf]
      %v2066 = vld [vmem:[%s3 + $0x38] sm:$0xf]
      %v2067 = vld [vmem:[%s3 + $0x3c] sm:$0xf]
      %v2068 = vpack.c.bf16 %v2021, %v2017
      %v2069 = vpack.c.bf16 %v2029, %v2025
      %v2070 = vpack.c.bf16 %v2037, %v2033
      %v2071 = vpack.c.bf16 %v2045, %v2041
      %s2072 = scalar_lea.vmem %s3, 192
      %v2073 = vld [vmem:[%s2072] sm:$0xf]
      %v2074 = vld [vmem:[%s2072 + $0x4] sm:$0xf]
      %v2075 = vld [vmem:[%s2072 + $0x8] sm:$0xf]
      %v2076 = vld [vmem:[%s2072 + $0xc] sm:$0xf]
      %v2077 = vld [vmem:[%s2072 + $0x10] sm:$0xf]
      %v2078 = vld [vmem:[%s2072 + $0x14] sm:$0xf]
      %v2079 = vld [vmem:[%s2072 + $0x18] sm:$0xf]
      %v2080 = vld [vmem:[%s2072 + $0x1c] sm:$0xf]
      %v2081 = vld [vmem:[%s2072 + $0x20] sm:$0xf]
      %v2082 = vld [vmem:[%s2072 + $0x24] sm:$0xf]
      %v2083 = vld [vmem:[%s2072 + $0x28] sm:$0xf]
      %v2084 = vld [vmem:[%s2072 + $0x2c] sm:$0xf]
      %v2085 = vld [vmem:[%s2072 + $0x30] sm:$0xf]
      %v2086 = vld [vmem:[%s2072 + $0x34] sm:$0xf]
      %v2087 = vld [vmem:[%s2072 + $0x38] sm:$0xf]
      %v2088 = vld [vmem:[%s2072 + $0x3c] sm:$0xf]
      %v2105 = vunpack.c.l.b16 %v2073
      %v2106 = vunpack.c.l.b16 %v2074
      %v2107 = vunpack.c.l.b16 %v2075
      %v2108 = vunpack.c.l.b16 %v2076
      %v2109 = vunpack.c.l.b16 %v2077
      %v2110 = vunpack.c.l.b16 %v2078
      %v2111 = vunpack.c.l.b16 %v2079
      %v2112 = vunpack.c.l.b16 %v2080
      %v2113 = vunpack.c.l.b16 %v2081
      %v2114 = vunpack.c.l.b16 %v2082
      %v2115 = vunpack.c.l.b16 %v2083
      %v2116 = vunpack.c.l.b16 %v2084
      %v2117 = vunpack.c.l.b16 %v2085
      %v2118 = vunpack.c.l.b16 %v2086
      %v2119 = vunpack.c.l.b16 %v2087
      %v2120 = vunpack.c.l.b16 %v2088
      %v2121 = vpack.c.b16 %v2106, %v2105
      %v2122 = vpack.c.b16 %v2108, %v2107
      %v2123 = vpack.c.b16 %v2110, %v2109
      %v2124 = vpack.c.b16 %v2112, %v2111
      %v2125 = vpack.c.b16 %v2114, %v2113
      %v2126 = vpack.c.b16 %v2116, %v2115
      %v2127 = vpack.c.b16 %v2118, %v2117
      %v2128 = vpack.c.b16 %v2120, %v2119
      %2137 = vmatpush.bf16.msra.mxu0 %v2128
      %2138 = vmatpush.bf16.msra.mxu0 %v2127
      %2139 = vmatpush.bf16.msra.mxu0 %v2126
      %2140 = vmatpush.bf16.msra.mxu0 %v2125
      %2141 = vmatpush.bf16.msra.mxu0 %v2124
      %2142 = vmatpush.bf16.msra.mxu0 %v2123
      %2143 = vmatpush.bf16.msra.mxu0 %v2122
      %2144 = vmatpush.bf16.msra.mxu0 %v2121
      %2145 = vmatmul.bf16.gmra.mxu0 %v2068
      %v2146 = vpop.f32.mrf.mxu0
      %v2147 = vadd.f32 0.0, %v2146
      %v2148 = vpop.f32.mrf.mxu0
      %v2149 = vadd.f32 0.0, %v2148
      %2150 = vmatmul.bf16.gmra.mxu0 %v2069
      %v2151 = vpop.f32.mrf.mxu0
      %v2152 = vadd.f32 0.0, %v2151
      %v2153 = vpop.f32.mrf.mxu0
      %v2154 = vadd.f32 0.0, %v2153
      %2155 = vmatmul.bf16.gmra.mxu0 %v2070
      %v2156 = vpop.f32.mrf.mxu0
      %v2157 = vadd.f32 0.0, %v2156
      %v2158 = vpop.f32.mrf.mxu0
      %v2159 = vadd.f32 0.0, %v2158
      %2160 = vmatmul.bf16.gmra.mxu0 %v2071
      %v2161 = vpop.f32.mrf.mxu0
      %v2162 = vadd.f32 0.0, %v2161
      %v2163 = vpop.f32.mrf.mxu0
      %v2164 = vadd.f32 0.0, %v2163
      %2165 = vdwg.mxu0
      %v2182 = vunpack.c.l.b16 %v2052
      %v2183 = vunpack.c.l.b16 %v2053
      %v2184 = vunpack.c.l.b16 %v2054
      %v2185 = vunpack.c.l.b16 %v2055
      %v2186 = vunpack.c.l.b16 %v2056
      %v2187 = vunpack.c.l.b16 %v2057
      %v2188 = vunpack.c.l.b16 %v2058
      %v2189 = vunpack.c.l.b16 %v2059
      %v2190 = vunpack.c.l.b16 %v2060
      %v2191 = vunpack.c.l.b16 %v2061
      %v2192 = vunpack.c.l.b16 %v2062
      %v2193 = vunpack.c.l.b16 %v2063
      %v2194 = vunpack.c.l.b16 %v2064
      %v2195 = vunpack.c.l.b16 %v2065
      %v2196 = vunpack.c.l.b16 %v2066
      %v2197 = vunpack.c.l.b16 %v2067
      %v2198 = vpack.c.b16 %v2183, %v2182
      %v2199 = vpack.c.b16 %v2185, %v2184
      %v2200 = vpack.c.b16 %v2187, %v2186
      %v2201 = vpack.c.b16 %v2189, %v2188
      %v2202 = vpack.c.b16 %v2191, %v2190
      %v2203 = vpack.c.b16 %v2193, %v2192
      %v2204 = vpack.c.b16 %v2195, %v2194
      %v2205 = vpack.c.b16 %v2197, %v2196
      %2214 = vmatpush.bf16.msra.mxu0 %v2205
      %2215 = vmatpush.bf16.msra.mxu0 %v2204
      %2216 = vmatpush.bf16.msra.mxu0 %v2203
      %2217 = vmatpush.bf16.msra.mxu0 %v2202
      %2218 = vmatpush.bf16.msra.mxu0 %v2201
      %2219 = vmatpush.bf16.msra.mxu0 %v2200
      %2220 = vmatpush.bf16.msra.mxu0 %v2199
      %2221 = vmatpush.bf16.msra.mxu0 %v2198
      %2222 = vmatmul.bf16.gmra.mxu0 %v2048
      %v2223 = vpop.f32.mrf.mxu0
      %v2224 = vadd.f32 %v2147, %v2223
      %v2225 = vpop.f32.mrf.mxu0
      %v2226 = vadd.f32 %v2149, %v2225
      %2227 = vmatmul.bf16.gmra.mxu0 %v2049
      %v2228 = vpop.f32.mrf.mxu0
      %v2229 = vadd.f32 %v2152, %v2228
      %v2230 = vpop.f32.mrf.mxu0
      %v2231 = vadd.f32 %v2154, %v2230
      %2232 = vmatmul.bf16.gmra.mxu0 %v2050
      %v2233 = vpop.f32.mrf.mxu0
      %v2234 = vadd.f32 %v2157, %v2233
      %v2235 = vpop.f32.mrf.mxu0
      %v2236 = vadd.f32 %v2159, %v2235
      %2237 = vmatmul.bf16.gmra.mxu0 %v2051
      %v2238 = vpop.f32.mrf.mxu0
      %v2239 = vadd.f32 %v2162, %v2238
      %v2240 = vpop.f32.mrf.mxu0
      %v2241 = vadd.f32 %v2164, %v2240
      %2242 = vdwg.mxu0
      %v2243 = vpack.c.bf16 %v2023, %v2019
      %v2244 = vpack.c.bf16 %v2031, %v2027
      %v2245 = vpack.c.bf16 %v2039, %v2035
      %v2246 = vpack.c.bf16 %v2047, %v2043
      %s2247 = scalar_lea.vmem %s3, 384
      %v2248 = vld [vmem:[%s2247] sm:$0xf]
      %v2249 = vld [vmem:[%s2247 + $0x4] sm:$0xf]
      %v2250 = vld [vmem:[%s2247 + $0x8] sm:$0xf]
      %v2251 = vld [vmem:[%s2247 + $0xc] sm:$0xf]
      %v2252 = vld [vmem:[%s2247 + $0x10] sm:$0xf]
      %v2253 = vld [vmem:[%s2247 + $0x14] sm:$0xf]
      %v2254 = vld [vmem:[%s2247 + $0x18] sm:$0xf]
      %v2255 = vld [vmem:[%s2247 + $0x1c] sm:$0xf]
      %v2256 = vld [vmem:[%s2247 + $0x20] sm:$0xf]
      %v2257 = vld [vmem:[%s2247 + $0x24] sm:$0xf]
      %v2258 = vld [vmem:[%s2247 + $0x28] sm:$0xf]
      %v2259 = vld [vmem:[%s2247 + $0x2c] sm:$0xf]
      %v2260 = vld [vmem:[%s2247 + $0x30] sm:$0xf]
      %v2261 = vld [vmem:[%s2247 + $0x34] sm:$0xf]
      %v2262 = vld [vmem:[%s2247 + $0x38] sm:$0xf]
      %v2263 = vld [vmem:[%s2247 + $0x3c] sm:$0xf]
      %v2280 = vunpack.c.l.b16 %v2248
      %v2281 = vunpack.c.l.b16 %v2249
      %v2282 = vunpack.c.l.b16 %v2250
      %v2283 = vunpack.c.l.b16 %v2251
      %v2284 = vunpack.c.l.b16 %v2252
      %v2285 = vunpack.c.l.b16 %v2253
      %v2286 = vunpack.c.l.b16 %v2254
      %v2287 = vunpack.c.l.b16 %v2255
      %v2288 = vunpack.c.l.b16 %v2256
      %v2289 = vunpack.c.l.b16 %v2257
      %v2290 = vunpack.c.l.b16 %v2258
      %v2291 = vunpack.c.l.b16 %v2259
      %v2292 = vunpack.c.l.b16 %v2260
      %v2293 = vunpack.c.l.b16 %v2261
      %v2294 = vunpack.c.l.b16 %v2262
      %v2295 = vunpack.c.l.b16 %v2263
      %v2296 = vpack.c.b16 %v2281, %v2280
      %v2297 = vpack.c.b16 %v2283, %v2282
      %v2298 = vpack.c.b16 %v2285, %v2284
      %v2299 = vpack.c.b16 %v2287, %v2286
      %v2300 = vpack.c.b16 %v2289, %v2288
      %v2301 = vpack.c.b16 %v2291, %v2290
      %v2302 = vpack.c.b16 %v2293, %v2292
      %v2303 = vpack.c.b16 %v2295, %v2294
      %2312 = vmatpush.bf16.msra.mxu0 %v2303
      %2313 = vmatpush.bf16.msra.mxu0 %v2302
      %2314 = vmatpush.bf16.msra.mxu0 %v2301
      %2315 = vmatpush.bf16.msra.mxu0 %v2300
      %2316 = vmatpush.bf16.msra.mxu0 %v2299
      %2317 = vmatpush.bf16.msra.mxu0 %v2298
      %2318 = vmatpush.bf16.msra.mxu0 %v2297
      %2319 = vmatpush.bf16.msra.mxu0 %v2296
      %2320 = vmatmul.bf16.gmra.mxu0 %v2243
      %v2321 = vpop.f32.mrf.mxu0
      %v2322 = vadd.f32 0.0, %v2321
      %v2323 = vpop.f32.mrf.mxu0
      %v2324 = vadd.f32 0.0, %v2323
      %2325 = vmatmul.bf16.gmra.mxu0 %v2244
      %v2326 = vpop.f32.mrf.mxu0
      %v2327 = vadd.f32 0.0, %v2326
      %v2328 = vpop.f32.mrf.mxu0
      %v2329 = vadd.f32 0.0, %v2328
      %2330 = vmatmul.bf16.gmra.mxu0 %v2245
      %v2331 = vpop.f32.mrf.mxu0
      %v2332 = vadd.f32 0.0, %v2331
      %v2333 = vpop.f32.mrf.mxu0
      %v2334 = vadd.f32 0.0, %v2333
      %2335 = vmatmul.bf16.gmra.mxu0 %v2246
      %v2336 = vpop.f32.mrf.mxu0
      %v2337 = vadd.f32 0.0, %v2336
      %v2338 = vpop.f32.mrf.mxu0
      %v2339 = vadd.f32 0.0, %v2338
      %2340 = vdwg.mxu0
      %v2341 = vadd.f32 %v2224, %v2322
      %v2342 = vadd.f32 %v2226, %v2324
      %v2343 = vadd.f32 %v2229, %v2327
      %v2344 = vadd.f32 %v2231, %v2329
      %v2345 = vadd.f32 %v2234, %v2332
      %v2346 = vadd.f32 %v2236, %v2334
      %v2347 = vadd.f32 %v2239, %v2337
      %v2348 = vadd.f32 %v2241, %v2339
      %s2349 = scalar_lea.vmem [#allocation4], 1
      %v2350 = vld [vmem:[%s2349] ss:$2 sm:$0xff]
      %s2351 = scalar_lea.vmem [#allocation4], 25
      %v2352 = vld [vmem:[%s2351] ss:$2 sm:$0xff]
      %s2353 = scalar_lea.vmem [#allocation4], 49
      %v2354 = vld [vmem:[%s2353] ss:$2 sm:$0xff]
      %s2355 = scalar_lea.vmem [#allocation4], 73
      %v2356 = vld [vmem:[%s2355] ss:$2 sm:$0xff]
      %s2357 = scalar_lea.vmem [#allocation4], 97
      %v2358 = vld [vmem:[%s2357] ss:$2 sm:$0xff]
      %s2359 = scalar_lea.vmem [#allocation4], 121
      %v2360 = vld [vmem:[%s2359] ss:$2 sm:$0xff]
      %s2361 = scalar_lea.vmem [#allocation4], 145
      %v2362 = vld [vmem:[%s2361] ss:$2 sm:$0xff]
      %s2363 = scalar_lea.vmem [#allocation4], 169
      %v2364 = vld [vmem:[%s2363] ss:$2 sm:$0xff]
      %s2365 = scalar_lea.vmem [#allocation4], 193
      %v2366 = vld [vmem:[%s2365] ss:$2 sm:$0xff]
      %s2367 = scalar_lea.vmem [#allocation4], 217
      %v2368 = vld [vmem:[%s2367] ss:$2 sm:$0xff]
      %s2369 = scalar_lea.vmem [#allocation4], 241
      %v2370 = vld [vmem:[%s2369] ss:$2 sm:$0xff]
      %s2371 = scalar_lea.vmem [#allocation4], 265
      %v2372 = vld [vmem:[%s2371] ss:$2 sm:$0xff]
      %s2373 = scalar_lea.vmem [#allocation4], 289
      %v2374 = vld [vmem:[%s2373] ss:$2 sm:$0xff]
      %s2375 = scalar_lea.vmem [#allocation4], 313
      %v2376 = vld [vmem:[%s2375] ss:$2 sm:$0xff]
      %s2377 = scalar_lea.vmem [#allocation4], 337
      %v2378 = vld [vmem:[%s2377] ss:$2 sm:$0xff]
      %s2379 = scalar_lea.vmem [#allocation4], 361
      %v2380 = vld [vmem:[%s2379] ss:$2 sm:$0xff]
      %s2381 = scalar_lea.vmem [#allocation4], 385
      %v2382 = vld [vmem:[%s2381] ss:$2 sm:$0xff]
      %v2383 = vpack.c.bf16 %v2354, %v2350
      %v2384 = vpack.c.bf16 %v2362, %v2358
      %v2385 = vpack.c.bf16 %v2370, %v2366
      %v2386 = vpack.c.bf16 %v2378, %v2374
      %s2387 = scalar_lea.vmem %s3, 64
      %v2388 = vld [vmem:[%s2387] sm:$0xf]
      %v2389 = vld [vmem:[%s2387 + $0x4] sm:$0xf]
      %v2390 = vld [vmem:[%s2387 + $0x8] sm:$0xf]
      %v2391 = vld [vmem:[%s2387 + $0xc] sm:$0xf]
      %v2392 = vld [vmem:[%s2387 + $0x10] sm:$0xf]
      %v2393 = vld [vmem:[%s2387 + $0x14] sm:$0xf]
      %v2394 = vld [vmem:[%s2387 + $0x18] sm:$0xf]
      %v2395 = vld [vmem:[%s2387 + $0x1c] sm:$0xf]
      %v2396 = vld [vmem:[%s2387 + $0x20] sm:$0xf]
      %v2397 = vld [vmem:[%s2387 + $0x24] sm:$0xf]
      %v2398 = vld [vmem:[%s2387 + $0x28] sm:$0xf]
      %v2399 = vld [vmem:[%s2387 + $0x2c] sm:$0xf]
      %v2400 = vld [vmem:[%s2387 + $0x30] sm:$0xf]
      %v2401 = vld [vmem:[%s2387 + $0x34] sm:$0xf]
      %v2402 = vld [vmem:[%s2387 + $0x38] sm:$0xf]
      %v2403 = vld [vmem:[%s2387 + $0x3c] sm:$0xf]
      %v2420 = vunpack.c.l.b16 %v2388
      %v2421 = vunpack.c.l.b16 %v2389
      %v2422 = vunpack.c.l.b16 %v2390
      %v2423 = vunpack.c.l.b16 %v2391
      %v2424 = vunpack.c.l.b16 %v2392
      %v2425 = vunpack.c.l.b16 %v2393
      %v2426 = vunpack.c.l.b16 %v2394
      %v2427 = vunpack.c.l.b16 %v2395
      %v2428 = vunpack.c.l.b16 %v2396
      %v2429 = vunpack.c.l.b16 %v2397
      %v2430 = vunpack.c.l.b16 %v2398
      %v2431 = vunpack.c.l.b16 %v2399
      %v2432 = vunpack.c.l.b16 %v2400
      %v2433 = vunpack.c.l.b16 %v2401
      %v2434 = vunpack.c.l.b16 %v2402
      %v2435 = vunpack.c.l.b16 %v2403
      %v2436 = vpack.c.b16 %v2421, %v2420
      %v2437 = vpack.c.b16 %v2423, %v2422
      %v2438 = vpack.c.b16 %v2425, %v2424
      %v2439 = vpack.c.b16 %v2427, %v2426
      %v2440 = vpack.c.b16 %v2429, %v2428
      %v2441 = vpack.c.b16 %v2431, %v2430
      %v2442 = vpack.c.b16 %v2433, %v2432
      %v2443 = vpack.c.b16 %v2435, %v2434
      %2452 = vmatpush.bf16.msra.mxu0 %v2443
      %2453 = vmatpush.bf16.msra.mxu0 %v2442
      %2454 = vmatpush.bf16.msra.mxu0 %v2441
      %2455 = vmatpush.bf16.msra.mxu0 %v2440
      %2456 = vmatpush.bf16.msra.mxu0 %v2439
      %2457 = vmatpush.bf16.msra.mxu0 %v2438
      %2458 = vmatpush.bf16.msra.mxu0 %v2437
      %2459 = vmatpush.bf16.msra.mxu0 %v2436
      %2460 = vmatmul.bf16.gmra.mxu0 %v2383
      %v2461 = vpop.f32.mrf.mxu0
      %v2462 = vadd.f32 0.0, %v2461
      %v2463 = vpop.f32.mrf.mxu0
      %v2464 = vadd.f32 0.0, %v2463
      %2465 = vmatmul.bf16.gmra.mxu0 %v2384
      %v2466 = vpop.f32.mrf.mxu0
      %v2467 = vadd.f32 0.0, %v2466
      %v2468 = vpop.f32.mrf.mxu0
      %v2469 = vadd.f32 0.0, %v2468
      %2470 = vmatmul.bf16.gmra.mxu0 %v2385
      %v2471 = vpop.f32.mrf.mxu0
      %v2472 = vadd.f32 0.0, %v2471
      %v2473 = vpop.f32.mrf.mxu0
      %v2474 = vadd.f32 0.0, %v2473
      %2475 = vmatmul.bf16.gmra.mxu0 %v2386
      %v2476 = vpop.f32.mrf.mxu0
      %v2477 = vadd.f32 0.0, %v2476
      %v2478 = vpop.f32.mrf.mxu0
      %v2479 = vadd.f32 0.0, %v2478
      %2480 = vdwg.mxu0
      %v2481 = vadd.f32 %v2341, %v2462
      %v2482 = vadd.f32 %v2342, %v2464
      %v2483 = vadd.f32 %v2343, %v2467
      %v2484 = vadd.f32 %v2344, %v2469
      %v2485 = vadd.f32 %v2345, %v2472
      %v2486 = vadd.f32 %v2346, %v2474
      %v2487 = vadd.f32 %v2347, %v2477
      %v2488 = vadd.f32 %v2348, %v2479
      %v2489 = vpack.c.bf16 %v2356, %v2352
      %v2490 = vpack.c.bf16 %v2364, %v2360
      %v2491 = vpack.c.bf16 %v2372, %v2368
      %v2492 = vpack.c.bf16 %v2380, %v2376
      %s2493 = scalar_lea.vmem %s3, 256
      %v2494 = vld [vmem:[%s2493] sm:$0xf]
      %v2495 = vld [vmem:[%s2493 + $0x4] sm:$0xf]
      %v2496 = vld [vmem:[%s2493 + $0x8] sm:$0xf]
      %v2497 = vld [vmem:[%s2493 + $0xc] sm:$0xf]
      %v2498 = vld [vmem:[%s2493 + $0x10] sm:$0xf]
      %v2499 = vld [vmem:[%s2493 + $0x14] sm:$0xf]
      %v2500 = vld [vmem:[%s2493 + $0x18] sm:$0xf]
      %v2501 = vld [vmem:[%s2493 + $0x1c] sm:$0xf]
      %v2502 = vld [vmem:[%s2493 + $0x20] sm:$0xf]
      %v2503 = vld [vmem:[%s2493 + $0x24] sm:$0xf]
      %v2504 = vld [vmem:[%s2493 + $0x28] sm:$0xf]
      %v2505 = vld [vmem:[%s2493 + $0x2c] sm:$0xf]
      %v2506 = vld [vmem:[%s2493 + $0x30] sm:$0xf]
      %v2507 = vld [vmem:[%s2493 + $0x34] sm:$0xf]
      %v2508 = vld [vmem:[%s2493 + $0x38] sm:$0xf]
      %v2509 = vld [vmem:[%s2493 + $0x3c] sm:$0xf]
      %v2526 = vunpack.c.l.b16 %v2494
      %v2527 = vunpack.c.l.b16 %v2495
      %v2528 = vunpack.c.l.b16 %v2496
      %v2529 = vunpack.c.l.b16 %v2497
      %v2530 = vunpack.c.l.b16 %v2498
      %v2531 = vunpack.c.l.b16 %v2499
      %v2532 = vunpack.c.l.b16 %v2500
      %v2533 = vunpack.c.l.b16 %v2501
      %v2534 = vunpack.c.l.b16 %v2502
      %v2535 = vunpack.c.l.b16 %v2503
      %v2536 = vunpack.c.l.b16 %v2504
      %v2537 = vunpack.c.l.b16 %v2505
      %v2538 = vunpack.c.l.b16 %v2506
      %v2539 = vunpack.c.l.b16 %v2507
      %v2540 = vunpack.c.l.b16 %v2508
      %v2541 = vunpack.c.l.b16 %v2509
      %v2542 = vpack.c.b16 %v2527, %v2526
      %v2543 = vpack.c.b16 %v2529, %v2528
      %v2544 = vpack.c.b16 %v2531, %v2530
      %v2545 = vpack.c.b16 %v2533, %v2532
      %v2546 = vpack.c.b16 %v2535, %v2534
      %v2547 = vpack.c.b16 %v2537, %v2536
      %v2548 = vpack.c.b16 %v2539, %v2538
      %v2549 = vpack.c.b16 %v2541, %v2540
      %2558 = vmatpush.bf16.msra.mxu0 %v2549
      %2559 = vmatpush.bf16.msra.mxu0 %v2548
      %2560 = vmatpush.bf16.msra.mxu0 %v2547
      %2561 = vmatpush.bf16.msra.mxu0 %v2546
      %2562 = vmatpush.bf16.msra.mxu0 %v2545
      %2563 = vmatpush.bf16.msra.mxu0 %v2544
      %2564 = vmatpush.bf16.msra.mxu0 %v2543
      %2565 = vmatpush.bf16.msra.mxu0 %v2542
      %2566 = vmatmul.bf16.gmra.mxu0 %v2489
      %v2567 = vpop.f32.mrf.mxu0
      %v2568 = vadd.f32 0.0, %v2567
      %v2569 = vpop.f32.mrf.mxu0
      %v2570 = vadd.f32 0.0, %v2569
      %2571 = vmatmul.bf16.gmra.mxu0 %v2490
      %v2572 = vpop.f32.mrf.mxu0
      %v2573 = vadd.f32 0.0, %v2572
      %v2574 = vpop.f32.mrf.mxu0
      %v2575 = vadd.f32 0.0, %v2574
      %2576 = vmatmul.bf16.gmra.mxu0 %v2491
      %v2577 = vpop.f32.mrf.mxu0
      %v2578 = vadd.f32 0.0, %v2577
      %v2579 = vpop.f32.mrf.mxu0
      %v2580 = vadd.f32 0.0, %v2579
      %2581 = vmatmul.bf16.gmra.mxu0 %v2492
      %v2582 = vpop.f32.mrf.mxu0
      %v2583 = vadd.f32 0.0, %v2582
      %v2584 = vpop.f32.mrf.mxu0
      %v2585 = vadd.f32 0.0, %v2584
      %2586 = vdwg.mxu0
      %v2587 = vadd.f32 %v2481, %v2568
      %v2588 = vadd.f32 %v2482, %v2570
      %v2589 = vadd.f32 %v2483, %v2573
      %v2590 = vadd.f32 %v2484, %v2575
      %v2591 = vadd.f32 %v2485, %v2578
      %v2592 = vadd.f32 %v2486, %v2580
      %v2593 = vadd.f32 %v2487, %v2583
      %v2594 = vadd.f32 %v2488, %v2585
      %v2595 = vpack.c.bf16 %v2358, %v2354
      %v2596 = vpack.c.bf16 %v2366, %v2362
      %v2597 = vpack.c.bf16 %v2374, %v2370
      %v2598 = vpack.c.bf16 %v2382, %v2378
      %s2599 = scalar_lea.vmem %s3, 448
      %v2600 = vld [vmem:[%s2599] sm:$0xf]
      %v2601 = vld [vmem:[%s2599 + $0x4] sm:$0xf]
      %v2602 = vld [vmem:[%s2599 + $0x8] sm:$0xf]
      %v2603 = vld [vmem:[%s2599 + $0xc] sm:$0xf]
      %v2604 = vld [vmem:[%s2599 + $0x10] sm:$0xf]
      %v2605 = vld [vmem:[%s2599 + $0x14] sm:$0xf]
      %v2606 = vld [vmem:[%s2599 + $0x18] sm:$0xf]
      %v2607 = vld [vmem:[%s2599 + $0x1c] sm:$0xf]
      %v2608 = vld [vmem:[%s2599 + $0x20] sm:$0xf]
      %v2609 = vld [vmem:[%s2599 + $0x24] sm:$0xf]
      %v2610 = vld [vmem:[%s2599 + $0x28] sm:$0xf]
      %v2611 = vld [vmem:[%s2599 + $0x2c] sm:$0xf]
      %v2612 = vld [vmem:[%s2599 + $0x30] sm:$0xf]
      %v2613 = vld [vmem:[%s2599 + $0x34] sm:$0xf]
      %v2614 = vld [vmem:[%s2599 + $0x38] sm:$0xf]
      %v2615 = vld [vmem:[%s2599 + $0x3c] sm:$0xf]
      %v2632 = vunpack.c.l.b16 %v2600
      %v2633 = vunpack.c.l.b16 %v2601
      %v2634 = vunpack.c.l.b16 %v2602
      %v2635 = vunpack.c.l.b16 %v2603
      %v2636 = vunpack.c.l.b16 %v2604
      %v2637 = vunpack.c.l.b16 %v2605
      %v2638 = vunpack.c.l.b16 %v2606
      %v2639 = vunpack.c.l.b16 %v2607
      %v2640 = vunpack.c.l.b16 %v2608
      %v2641 = vunpack.c.l.b16 %v2609
      %v2642 = vunpack.c.l.b16 %v2610
      %v2643 = vunpack.c.l.b16 %v2611
      %v2644 = vunpack.c.l.b16 %v2612
      %v2645 = vunpack.c.l.b16 %v2613
      %v2646 = vunpack.c.l.b16 %v2614
      %v2647 = vunpack.c.l.b16 %v2615
      %v2648 = vpack.c.b16 %v2633, %v2632
      %v2649 = vpack.c.b16 %v2635, %v2634
      %v2650 = vpack.c.b16 %v2637, %v2636
      %v2651 = vpack.c.b16 %v2639, %v2638
      %v2652 = vpack.c.b16 %v2641, %v2640
      %v2653 = vpack.c.b16 %v2643, %v2642
      %v2654 = vpack.c.b16 %v2645, %v2644
      %v2655 = vpack.c.b16 %v2647, %v2646
      %2664 = vmatpush.bf16.msra.mxu0 %v2655
      %2665 = vmatpush.bf16.msra.mxu0 %v2654
      %2666 = vmatpush.bf16.msra.mxu0 %v2653
      %2667 = vmatpush.bf16.msra.mxu0 %v2652
      %2668 = vmatpush.bf16.msra.mxu0 %v2651
      %2669 = vmatpush.bf16.msra.mxu0 %v2650
      %2670 = vmatpush.bf16.msra.mxu0 %v2649
      %2671 = vmatpush.bf16.msra.mxu0 %v2648
      %2672 = vmatmul.bf16.gmra.mxu0 %v2595
      %v2673 = vpop.f32.mrf.mxu0
      %v2674 = vadd.f32 0.0, %v2673
      %v2675 = vpop.f32.mrf.mxu0
      %v2676 = vadd.f32 0.0, %v2675
      %2677 = vmatmul.bf16.gmra.mxu0 %v2596
      %v2678 = vpop.f32.mrf.mxu0
      %v2679 = vadd.f32 0.0, %v2678
      %v2680 = vpop.f32.mrf.mxu0
      %v2681 = vadd.f32 0.0, %v2680
      %2682 = vmatmul.bf16.gmra.mxu0 %v2597
      %v2683 = vpop.f32.mrf.mxu0
      %v2684 = vadd.f32 0.0, %v2683
      %v2685 = vpop.f32.mrf.mxu0
      %v2686 = vadd.f32 0.0, %v2685
      %2687 = vmatmul.bf16.gmra.mxu0 %v2598
      %v2688 = vpop.f32.mrf.mxu0
      %v2689 = vadd.f32 0.0, %v2688
      %v2690 = vpop.f32.mrf.mxu0
      %v2691 = vadd.f32 0.0, %v2690
      %2692 = vdwg.mxu0
      %v2693 = vadd.f32 %v2587, %v2674
      %v2694 = vadd.f32 %v2588, %v2676
      %v2695 = vadd.f32 %v2589, %v2679
      %v2696 = vadd.f32 %v2590, %v2681
      %v2697 = vadd.f32 %v2591, %v2684
      %v2698 = vadd.f32 %v2592, %v2686
      %v2699 = vadd.f32 %v2593, %v2689
      %v2700 = vadd.f32 %v2594, %v2691
      %s2701 = scalar_lea.vmem [#allocation4], 2
      %v2702 = vld [vmem:[%s2701] ss:$2 sm:$0xff]
      %s2703 = scalar_lea.vmem [#allocation4], 26
      %v2704 = vld [vmem:[%s2703] ss:$2 sm:$0xff]
      %s2705 = scalar_lea.vmem [#allocation4], 50
      %v2706 = vld [vmem:[%s2705] ss:$2 sm:$0xff]
      %s2707 = scalar_lea.vmem [#allocation4], 74
      %v2708 = vld [vmem:[%s2707] ss:$2 sm:$0xff]
      %s2709 = scalar_lea.vmem [#allocation4], 98
      %v2710 = vld [vmem:[%s2709] ss:$2 sm:$0xff]
      %s2711 = scalar_lea.vmem [#allocation4], 122
      %v2712 = vld [vmem:[%s2711] ss:$2 sm:$0xff]
      %s2713 = scalar_lea.vmem [#allocation4], 146
      %v2714 = vld [vmem:[%s2713] ss:$2 sm:$0xff]
      %s2715 = scalar_lea.vmem [#allocation4], 170
      %v2716 = vld [vmem:[%s2715] ss:$2 sm:$0xff]
      %s2717 = scalar_lea.vmem [#allocation4], 194
      %v2718 = vld [vmem:[%s2717] ss:$2 sm:$0xff]
      %s2719 = scalar_lea.vmem [#allocation4], 218
      %v2720 = vld [vmem:[%s2719] ss:$2 sm:$0xff]
      %s2721 = scalar_lea.vmem [#allocation4], 242
      %v2722 = vld [vmem:[%s2721] ss:$2 sm:$0xff]
      %s2723 = scalar_lea.vmem [#allocation4], 266
      %v2724 = vld [vmem:[%s2723] ss:$2 sm:$0xff]
      %s2725 = scalar_lea.vmem [#allocation4], 290
      %v2726 = vld [vmem:[%s2725] ss:$2 sm:$0xff]
      %s2727 = scalar_lea.vmem [#allocation4], 314
      %v2728 = vld [vmem:[%s2727] ss:$2 sm:$0xff]
      %s2729 = scalar_lea.vmem [#allocation4], 338
      %v2730 = vld [vmem:[%s2729] ss:$2 sm:$0xff]
      %s2731 = scalar_lea.vmem [#allocation4], 362
      %v2732 = vld [vmem:[%s2731] ss:$2 sm:$0xff]
      %s2733 = scalar_lea.vmem [#allocation4], 386
      %v2734 = vld [vmem:[%s2733] ss:$2 sm:$0xff]
      %v2735 = vpack.c.bf16 %v2706, %v2702
      %v2736 = vpack.c.bf16 %v2714, %v2710
      %v2737 = vpack.c.bf16 %v2722, %v2718
      %v2738 = vpack.c.bf16 %v2730, %v2726
      %s2739 = scalar_lea.vmem %s3, 128
      %v2740 = vld [vmem:[%s2739] sm:$0xf]
      %v2741 = vld [vmem:[%s2739 + $0x4] sm:$0xf]
      %v2742 = vld [vmem:[%s2739 + $0x8] sm:$0xf]
      %v2743 = vld [vmem:[%s2739 + $0xc] sm:$0xf]
      %v2744 = vld [vmem:[%s2739 + $0x10] sm:$0xf]
      %v2745 = vld [vmem:[%s2739 + $0x14] sm:$0xf]
      %v2746 = vld [vmem:[%s2739 + $0x18] sm:$0xf]
      %v2747 = vld [vmem:[%s2739 + $0x1c] sm:$0xf]
      %v2748 = vld [vmem:[%s2739 + $0x20] sm:$0xf]
      %v2749 = vld [vmem:[%s2739 + $0x24] sm:$0xf]
      %v2750 = vld [vmem:[%s2739 + $0x28] sm:$0xf]
      %v2751 = vld [vmem:[%s2739 + $0x2c] sm:$0xf]
      %v2752 = vld [vmem:[%s2739 + $0x30] sm:$0xf]
      %v2753 = vld [vmem:[%s2739 + $0x34] sm:$0xf]
      %v2754 = vld [vmem:[%s2739 + $0x38] sm:$0xf]
      %v2755 = vld [vmem:[%s2739 + $0x3c] sm:$0xf]
      %v2772 = vunpack.c.l.b16 %v2740
      %v2773 = vunpack.c.l.b16 %v2741
      %v2774 = vunpack.c.l.b16 %v2742
      %v2775 = vunpack.c.l.b16 %v2743
      %v2776 = vunpack.c.l.b16 %v2744
      %v2777 = vunpack.c.l.b16 %v2745
      %v2778 = vunpack.c.l.b16 %v2746
      %v2779 = vunpack.c.l.b16 %v2747
      %v2780 = vunpack.c.l.b16 %v2748
      %v2781 = vunpack.c.l.b16 %v2749
      %v2782 = vunpack.c.l.b16 %v2750
      %v2783 = vunpack.c.l.b16 %v2751
      %v2784 = vunpack.c.l.b16 %v2752
      %v2785 = vunpack.c.l.b16 %v2753
      %v2786 = vunpack.c.l.b16 %v2754
      %v2787 = vunpack.c.l.b16 %v2755
      %v2788 = vpack.c.b16 %v2773, %v2772
      %v2789 = vpack.c.b16 %v2775, %v2774
      %v2790 = vpack.c.b16 %v2777, %v2776
      %v2791 = vpack.c.b16 %v2779, %v2778
      %v2792 = vpack.c.b16 %v2781, %v2780
      %v2793 = vpack.c.b16 %v2783, %v2782
      %v2794 = vpack.c.b16 %v2785, %v2784
      %v2795 = vpack.c.b16 %v2787, %v2786
      %2804 = vmatpush.bf16.msra.mxu0 %v2795
      %2805 = vmatpush.bf16.msra.mxu0 %v2794
      %2806 = vmatpush.bf16.msra.mxu0 %v2793
      %2807 = vmatpush.bf16.msra.mxu0 %v2792
      %2808 = vmatpush.bf16.msra.mxu0 %v2791
      %2809 = vmatpush.bf16.msra.mxu0 %v2790
      %2810 = vmatpush.bf16.msra.mxu0 %v2789
      %2811 = vmatpush.bf16.msra.mxu0 %v2788
      %2812 = vmatmul.bf16.gmra.mxu0 %v2735
      %v2813 = vpop.f32.mrf.mxu0
      %v2814 = vadd.f32 0.0, %v2813
      %v2815 = vpop.f32.mrf.mxu0
      %v2816 = vadd.f32 0.0, %v2815
      %2817 = vmatmul.bf16.gmra.mxu0 %v2736
      %v2818 = vpop.f32.mrf.mxu0
      %v2819 = vadd.f32 0.0, %v2818
      %v2820 = vpop.f32.mrf.mxu0
      %v2821 = vadd.f32 0.0, %v2820
      %2822 = vmatmul.bf16.gmra.mxu0 %v2737
      %v2823 = vpop.f32.mrf.mxu0
      %v2824 = vadd.f32 0.0, %v2823
      %v2825 = vpop.f32.mrf.mxu0
      %v2826 = vadd.f32 0.0, %v2825
      %2827 = vmatmul.bf16.gmra.mxu0 %v2738
      %v2828 = vpop.f32.mrf.mxu0
      %v2829 = vadd.f32 0.0, %v2828
      %v2830 = vpop.f32.mrf.mxu0
      %v2831 = vadd.f32 0.0, %v2830
      %2832 = vdwg.mxu0
      %v2833 = vadd.f32 %v2693, %v2814
      %v2834 = vadd.f32 %v2694, %v2816
      %v2835 = vadd.f32 %v2695, %v2819
      %v2836 = vadd.f32 %v2696, %v2821
      %v2837 = vadd.f32 %v2697, %v2824
      %v2838 = vadd.f32 %v2698, %v2826
      %v2839 = vadd.f32 %v2699, %v2829
      %v2840 = vadd.f32 %v2700, %v2831
      %v2841 = vpack.c.bf16 %v2708, %v2704
      %v2842 = vpack.c.bf16 %v2716, %v2712
      %v2843 = vpack.c.bf16 %v2724, %v2720
      %v2844 = vpack.c.bf16 %v2732, %v2728
      %s2845 = scalar_lea.vmem %s3, 320
      %v2846 = vld [vmem:[%s2845] sm:$0xf]
      %v2847 = vld [vmem:[%s2845 + $0x4] sm:$0xf]
      %v2848 = vld [vmem:[%s2845 + $0x8] sm:$0xf]
      %v2849 = vld [vmem:[%s2845 + $0xc] sm:$0xf]
      %v2850 = vld [vmem:[%s2845 + $0x10] sm:$0xf]
      %v2851 = vld [vmem:[%s2845 + $0x14] sm:$0xf]
      %v2852 = vld [vmem:[%s2845 + $0x18] sm:$0xf]
      %v2853 = vld [vmem:[%s2845 + $0x1c] sm:$0xf]
      %v2854 = vld [vmem:[%s2845 + $0x20] sm:$0xf]
      %v2855 = vld [vmem:[%s2845 + $0x24] sm:$0xf]
      %v2856 = vld [vmem:[%s2845 + $0x28] sm:$0xf]
      %v2857 = vld [vmem:[%s2845 + $0x2c] sm:$0xf]
      %v2858 = vld [vmem:[%s2845 + $0x30] sm:$0xf]
      %v2859 = vld [vmem:[%s2845 + $0x34] sm:$0xf]
      %v2860 = vld [vmem:[%s2845 + $0x38] sm:$0xf]
      %v2861 = vld [vmem:[%s2845 + $0x3c] sm:$0xf]
      %v2878 = vunpack.c.l.b16 %v2846
      %v2879 = vunpack.c.l.b16 %v2847
      %v2880 = vunpack.c.l.b16 %v2848
      %v2881 = vunpack.c.l.b16 %v2849
      %v2882 = vunpack.c.l.b16 %v2850
      %v2883 = vunpack.c.l.b16 %v2851
      %v2884 = vunpack.c.l.b16 %v2852
      %v2885 = vunpack.c.l.b16 %v2853
      %v2886 = vunpack.c.l.b16 %v2854
      %v2887 = vunpack.c.l.b16 %v2855
      %v2888 = vunpack.c.l.b16 %v2856
      %v2889 = vunpack.c.l.b16 %v2857
      %v2890 = vunpack.c.l.b16 %v2858
      %v2891 = vunpack.c.l.b16 %v2859
      %v2892 = vunpack.c.l.b16 %v2860
      %v2893 = vunpack.c.l.b16 %v2861
      %v2894 = vpack.c.b16 %v2879, %v2878
      %v2895 = vpack.c.b16 %v2881, %v2880
      %v2896 = vpack.c.b16 %v2883, %v2882
      %v2897 = vpack.c.b16 %v2885, %v2884
      %v2898 = vpack.c.b16 %v2887, %v2886
      %v2899 = vpack.c.b16 %v2889, %v2888
      %v2900 = vpack.c.b16 %v2891, %v2890
      %v2901 = vpack.c.b16 %v2893, %v2892
      %2910 = vmatpush.bf16.msra.mxu0 %v2901
      %2911 = vmatpush.bf16.msra.mxu0 %v2900
      %2912 = vmatpush.bf16.msra.mxu0 %v2899
      %2913 = vmatpush.bf16.msra.mxu0 %v2898
      %2914 = vmatpush.bf16.msra.mxu0 %v2897
      %2915 = vmatpush.bf16.msra.mxu0 %v2896
      %2916 = vmatpush.bf16.msra.mxu0 %v2895
      %2917 = vmatpush.bf16.msra.mxu0 %v2894
      %2918 = vmatmul.bf16.gmra.mxu0 %v2841
      %v2919 = vpop.f32.mrf.mxu0
      %v2920 = vadd.f32 0.0, %v2919
      %v2921 = vpop.f32.mrf.mxu0
      %v2922 = vadd.f32 0.0, %v2921
      %2923 = vmatmul.bf16.gmra.mxu0 %v2842
      %v2924 = vpop.f32.mrf.mxu0
      %v2925 = vadd.f32 0.0, %v2924
      %v2926 = vpop.f32.mrf.mxu0
      %v2927 = vadd.f32 0.0, %v2926
      %2928 = vmatmul.bf16.gmra.mxu0 %v2843
      %v2929 = vpop.f32.mrf.mxu0
      %v2930 = vadd.f32 0.0, %v2929
      %v2931 = vpop.f32.mrf.mxu0
      %v2932 = vadd.f32 0.0, %v2931
      %2933 = vmatmul.bf16.gmra.mxu0 %v2844
      %v2934 = vpop.f32.mrf.mxu0
      %v2935 = vadd.f32 0.0, %v2934
      %v2936 = vpop.f32.mrf.mxu0
      %v2937 = vadd.f32 0.0, %v2936
      %2938 = vdwg.mxu0
      %v2939 = vadd.f32 %v2833, %v2920
      %v2940 = vadd.f32 %v2834, %v2922
      %v2941 = vadd.f32 %v2835, %v2925
      %v2942 = vadd.f32 %v2836, %v2927
      %v2943 = vadd.f32 %v2837, %v2930
      %v2944 = vadd.f32 %v2838, %v2932
      %v2945 = vadd.f32 %v2839, %v2935
      %v2946 = vadd.f32 %v2840, %v2937
      %v2947 = vpack.c.bf16 %v2710, %v2706
      %v2948 = vpack.c.bf16 %v2718, %v2714
      %v2949 = vpack.c.bf16 %v2726, %v2722
      %v2950 = vpack.c.bf16 %v2734, %v2730
      %s2951 = scalar_lea.vmem %s3, 512
      %v2952 = vld [vmem:[%s2951] sm:$0xf]
      %v2953 = vld [vmem:[%s2951 + $0x4] sm:$0xf]
      %v2954 = vld [vmem:[%s2951 + $0x8] sm:$0xf]
      %v2955 = vld [vmem:[%s2951 + $0xc] sm:$0xf]
      %v2956 = vld [vmem:[%s2951 + $0x10] sm:$0xf]
      %v2957 = vld [vmem:[%s2951 + $0x14] sm:$0xf]
      %v2958 = vld [vmem:[%s2951 + $0x18] sm:$0xf]
      %v2959 = vld [vmem:[%s2951 + $0x1c] sm:$0xf]
      %v2960 = vld [vmem:[%s2951 + $0x20] sm:$0xf]
      %v2961 = vld [vmem:[%s2951 + $0x24] sm:$0xf]
      %v2962 = vld [vmem:[%s2951 + $0x28] sm:$0xf]
      %v2963 = vld [vmem:[%s2951 + $0x2c] sm:$0xf]
      %v2964 = vld [vmem:[%s2951 + $0x30] sm:$0xf]
      %v2965 = vld [vmem:[%s2951 + $0x34] sm:$0xf]
      %v2966 = vld [vmem:[%s2951 + $0x38] sm:$0xf]
      %v2967 = vld [vmem:[%s2951 + $0x3c] sm:$0xf]
      %v2984 = vunpack.c.l.b16 %v2952
      %v2985 = vunpack.c.l.b16 %v2953
      %v2986 = vunpack.c.l.b16 %v2954
      %v2987 = vunpack.c.l.b16 %v2955
      %v2988 = vunpack.c.l.b16 %v2956
      %v2989 = vunpack.c.l.b16 %v2957
      %v2990 = vunpack.c.l.b16 %v2958
      %v2991 = vunpack.c.l.b16 %v2959
      %v2992 = vunpack.c.l.b16 %v2960
      %v2993 = vunpack.c.l.b16 %v2961
      %v2994 = vunpack.c.l.b16 %v2962
      %v2995 = vunpack.c.l.b16 %v2963
      %v2996 = vunpack.c.l.b16 %v2964
      %v2997 = vunpack.c.l.b16 %v2965
      %v2998 = vunpack.c.l.b16 %v2966
      %v2999 = vunpack.c.l.b16 %v2967
      %v3000 = vpack.c.b16 %v2985, %v2984
      %v3001 = vpack.c.b16 %v2987, %v2986
      %v3002 = vpack.c.b16 %v2989, %v2988
      %v3003 = vpack.c.b16 %v2991, %v2990
      %v3004 = vpack.c.b16 %v2993, %v2992
      %v3005 = vpack.c.b16 %v2995, %v2994
      %v3006 = vpack.c.b16 %v2997, %v2996
      %v3007 = vpack.c.b16 %v2999, %v2998
      %3016 = vmatpush.bf16.msra.mxu0 %v3007
      %3017 = vmatpush.bf16.msra.mxu0 %v3006
      %3018 = vmatpush.bf16.msra.mxu0 %v3005
      %3019 = vmatpush.bf16.msra.mxu0 %v3004
      %3020 = vmatpush.bf16.msra.mxu0 %v3003
      %3021 = vmatpush.bf16.msra.mxu0 %v3002
      %3022 = vmatpush.bf16.msra.mxu0 %v3001
      %3023 = vmatpush.bf16.msra.mxu0 %v3000
      %3024 = vmatmul.bf16.gmra.mxu0 %v2947
      %v3025 = vpop.f32.mrf.mxu0
      %v3026 = vadd.f32 0.0, %v3025
      %v3027 = vpop.f32.mrf.mxu0
      %v3028 = vadd.f32 0.0, %v3027
      %3029 = vmatmul.bf16.gmra.mxu0 %v2948
      %v3030 = vpop.f32.mrf.mxu0
      %v3031 = vadd.f32 0.0, %v3030
      %v3032 = vpop.f32.mrf.mxu0
      %v3033 = vadd.f32 0.0, %v3032
      %3034 = vmatmul.bf16.gmra.mxu0 %v2949
      %v3035 = vpop.f32.mrf.mxu0
      %v3036 = vadd.f32 0.0, %v3035
      %v3037 = vpop.f32.mrf.mxu0
      %v3038 = vadd.f32 0.0, %v3037
      %3039 = vmatmul.bf16.gmra.mxu0 %v2950
      %v3040 = vpop.f32.mrf.mxu0
      %v3041 = vadd.f32 0.0, %v3040
      %v3042 = vpop.f32.mrf.mxu0
      %v3043 = vadd.f32 0.0, %v3042
      %3044 = vdwg.mxu0
      %v3045 = vadd.f32 %v2939, %v3026
      %v3046 = vadd.f32 %v2940, %v3028
      %v3047 = vadd.f32 %v2941, %v3031
      %v3048 = vadd.f32 %v2942, %v3033
      %v3049 = vadd.f32 %v2943, %v3036
      %v3050 = vadd.f32 %v2944, %v3038
      %v3051 = vadd.f32 %v2945, %v3041
      %v3052 = vadd.f32 %v2946, %v3043
      %v3053 = vld [vmem:[%s4] sm:$0x1]
      %v3055 = vperm.slane %v3053, 0
      %v3057 = vadd.f32 %v3045, %v3055
      %v3058 = vadd.f32 %v3046, %v3055
      %v3059 = vadd.f32 %v3047, %v3055
      %v3060 = vadd.f32 %v3048, %v3055
      %v3061 = vadd.f32 %v3049, %v3055
      %v3062 = vadd.f32 %v3050, %v3055
      %v3063 = vadd.f32 %v3051, %v3055
      %v3064 = vadd.f32 %v3052, %v3055
      %3065 = vst [vmem:[%s258] sm:$0xff] %v3057
      %3066 = vst [vmem:[%s258 + $0x8] sm:$0xff] %v3058
      %3067 = vst [vmem:[%s258 + $0x10] sm:$0xff] %v3059
      %3068 = vst [vmem:[%s258 + $0x18] sm:$0xff] %v3060
      %3069 = vst [vmem:[%s258 + $0x20] sm:$0xff] %v3061
      %3070 = vst [vmem:[%s258 + $0x28] sm:$0xff] %v3062
      %3071 = vst [vmem:[%s258 + $0x30] sm:$0xff] %v3063
      %3072 = vst [vmem:[%s258 + $0x38] sm:$0xff] %v3064
      %v3073 = vadd.f32 %v3057, %v3058
      %v3074 = vadd.f32 %v3073, %v3059
      %v3075 = vadd.f32 %v3074, %v3060
      %v3076 = vadd.f32 %v3075, %v3061
      %v3077 = vadd.f32 %v3076, %v3062
      %v3078 = vadd.f32 %v3077, %v3063
      %v3079 = vadd.f32 %v3078, %v3064
      %v3080 = vrot.slane %v3079, 4
      %v3081 = vadd.f32 %v3079, %v3080
      %v3082 = vrot.slane %v3081, 2
      %v3083 = vadd.f32 %v3081, %v3082
      %v3084 = vrot.slane %v3083, 1
      %v3085 = vadd.f32 %v3083, %v3084
      %3086 = vst [vmem:[%s262] sm:$0x1] %v3085
      %v3087 = vmul.f32 %v3057, %v3057
      %v3088 = vmul.f32 %v3058, %v3058
      %v3089 = vmul.f32 %v3059, %v3059
      %v3090 = vmul.f32 %v3060, %v3060
      %v3091 = vmul.f32 %v3061, %v3061
      %v3092 = vmul.f32 %v3062, %v3062
      %v3093 = vmul.f32 %v3063, %v3063
      %v3094 = vmul.f32 %v3064, %v3064
      %v3095 = vadd.f32 %v3087, %v3088
      %v3096 = vadd.f32 %v3095, %v3089
      %v3097 = vadd.f32 %v3096, %v3090
      %v3098 = vadd.f32 %v3097, %v3091
      %v3099 = vadd.f32 %v3098, %v3092
      %v3100 = vadd.f32 %v3099, %v3093
      %v3101 = vadd.f32 %v3100, %v3094
      %v3102 = vrot.slane %v3101, 4
      %v3103 = vadd.f32 %v3101, %v3102
      %v3104 = vrot.slane %v3103, 2
      %v3105 = vadd.f32 %v3103, %v3104
      %v3106 = vrot.slane %v3105, 1
      %v3107 = vadd.f32 %v3105, %v3106
      %3108 = vst [vmem:[%s262 + $0x1] sm:$0x1] %v3107
      %p3109 = scmp.lt.s32.totalorder %s18, 1
      %s3110 = scalar_select %p3109, %s18, 1
      %s3111 = smul.addr %s3110, 8
      %s3112 = smul.addr %s3111, 8
      %s3113 = scalar_lea.vmem %s5, %s3112
      %p3114 = scmp.lt.s32.totalorder %s18, 1
      %s3115 = scalar_select %p3114, %s18, 1
      %s3116 = smul.addr %s3115, 2
      %s3117 = scalar_lea.vmem %s6, %s3116
      // Predicated region
      $region41: #{block_forward.4} parent=39 // pred_check
        %p3118 = pneg %p146
      $region42: #{block_forward.4} parent=39 // pred_check_branch
        %3120 = sbr.rel (%p3118) target = $region44
      $region43: #{block_forward.4} parent=39 // pred_region
        _
      $region44: #{block_forward.4} parent=39 // pred_fallthru
        _
      // Predicated region
      $region45: #{block_forward.4} parent=39 // pred_check
        %p3121 = pneg %p172
      $region46: #{block_forward.4} parent=39 // pred_check_branch
        %3123 = sbr.rel (%p3121) target = $region48
      $region47: #{block_forward.4} parent=39 // pred_region
        _
      $region48: #{block_forward.4} parent=39 // pred_fallthru
        _
    $region40: #{block_forward.4} parent=5 // pred_fallthru
      _
    %p3124 = scmp.le.s32.totalorder 2, %s13
    // Predicated region
    $region49: #{block_forward.4} parent=5 // pred_check
      %p3125 = pneg %p3124
    $region50: #{block_forward.4} parent=5 // pred_check_branch
      %3127 = sbr.rel (%p3125) target = $region52
    $region51: #{block_forward.4} parent=5 // pred_region
      %s3128 = ssub.s32 %s13, 2
      // Predicated region
      $region53: #{block_forward.4} parent=51 // pred_check
        %p3129 = pneg %p152
      $region54: #{block_forward.4} parent=51 // pred_check_branch
        %3131 = sbr.rel (%p3129) target = $region56
      $region55: #{block_forward.4} parent=51 // pred_region
        %p3132 = scmp.lt.s32.totalorder %s19, 1
        %s3133 = scalar_select %p3132, %s19, 1
        %s3134 = smul.addr %s3133, 8
        %s3135 = smul.addr %s3134, 8
        %s3136 = scalar_lea.vmem %s5, %s3135
      $region56: #{block_forward.4} parent=51 // pred_fallthru
        _
      // Predicated region
      $region57: #{block_forward.4} parent=51 // pred_check
        %p3137 = pneg %p178
      $region58: #{block_forward.4} parent=51 // pred_check_branch
        %3139 = sbr.rel (%p3137) target = $region60
      $region59: #{block_forward.4} parent=51 // pred_region
        %p3140 = scmp.lt.s32.totalorder %s19, 1
        %s3141 = scalar_select %p3140, %s19, 1
        %s3142 = smul.addr %s3141, 2
        %s3143 = scalar_lea.vmem %s6, %s3142
      $region60: #{block_forward.4} parent=51 // pred_fallthru
        _
    $region52: #{block_forward.4} parent=5 // pred_fallthru
      _
  $region6: #{block_forward.4} parent=0 // loop_footer
    %s17 = sadd.s32 1, %s13
  $region7: #{block_forward.4} parent=0 // loop_footer_branch
    %12 = sbr.rel target = $region3
  $region8: #{block_forward.4} parent=0 // loop_exit
    _

</llo_original>
